<compile_context>
chip_gen: v7x
topology: tpu7x:2x2x1
jax: 0.10.0
libtpu: 0.0.40
codegen_flags: <defaults>
</compile_context>

<pallas_src>
import jax
import jax.numpy as jnp
from jax.experimental import pallas as pl

LANES = 128


# ---------------------------------------------------------------------------
# Pallas kernels
# ---------------------------------------------------------------------------
def _conv_pool_kernel(x_ref, w_ref, b_ref, o_ref):
    """Fused conv-as-matmul + bias + ReLU + 2x2/stride-2 max-pool.

    x_ref : [4, Qp, K]  bf16  im2col patches, one slab per pool quadrant;
                              rows within a slab are (b, ho, wo) ordered.
    w_ref : [K, 128]    bf16  packed conv weight, out-channels zero-padded.
    b_ref : [1, 128]    f32   bias, zero-padded.
    o_ref : [Qp, 128]   bf16  pooled activation (rows (b, ho, wo)).
    """
    w = w_ref[...]
    # One MXU matmul per pool quadrant against the resident weight, then an
    # elementwise max (the pool), bias add and ReLU -- max/ReLU commute and the
    # bias is quadrant-invariant, so this equals pool(relu(conv + b)).
    acc = jnp.dot(x_ref[0], w, preferred_element_type=jnp.float32)
    for q in range(1, 4):
        acc = jnp.maximum(
            acc, jnp.dot(x_ref[q], w, preferred_element_type=jnp.float32))
    acc = jnp.maximum(acc + b_ref[...], 0.0)
    o_ref[...] = acc.astype(o_ref.dtype)


def _bn_linear_kernel(x_ref, w_ref, b_ref, o_ref):
    """BatchNorm1d(affine=False, training-mode stats) fused with the Linear.

    Only correct because this call is a single un-gridded block: the batch
    statistics are computed over the full batch resident in VMEM.
    """
    x = x_ref[...].astype(jnp.float32)                         # [B, 1568]
    mean = jnp.mean(x, axis=0, keepdims=True)
    var = jnp.mean(jnp.square(x - mean), axis=0, keepdims=True)
    xn = (x - mean) * jax.lax.rsqrt(var + 1e-5)
    out = jnp.dot(xn.astype(w_ref.dtype), w_ref[...],
                  preferred_element_type=jnp.float32) + b_ref[...]
    o_ref[...] = out.astype(o_ref.dtype)


# ---------------------------------------------------------------------------
# pallas_call wrappers (gridless single block: whole problem fits VMEM here)
# ---------------------------------------------------------------------------
def conv_pool(patches, w, b):
    _, qp, _ = patches.shape
    n = w.shape[1]
    return pl.pallas_call(
        _conv_pool_kernel,
        out_shape=jax.ShapeDtypeStruct((qp, n), jnp.bfloat16),
    )(patches, w, b)


def bn_linear(feat, w, b):
    bsz = feat.shape[0]
    n = w.shape[1]
    return pl.pallas_call(
        _bn_linear_kernel,
        out_shape=jax.ShapeDtypeStruct((bsz, n), jnp.float32),
    )(feat, w, b)


# ---------------------------------------------------------------------------
# Plain-JAX glue: quadrant-ordered im2col and one-time parameter packing
# ---------------------------------------------------------------------------
def _round_up(x, m):
    return (x + m - 1) // m * m


def _im2col_pool_quadrants(x, k):
    """NHWC x [B,H,W,C] -> (patches [4, Qp, k*k*C] bf16, Q).

    Quadrant q = 2*hi + wi holds the im2col patches of conv-output positions
    (2*ho+hi, 2*wo+wi), row-ordered (b, ho, wo), so the 2x2/stride-2 max-pool
    of the conv output is an elementwise max over the 4 slabs inside the
    kernel.  Rows are zero-padded from Q = B*(H//2)*(W//2) up to Qp (mult. 8).
    """
    B, H, W, C = x.shape
    p = k // 2
    xp = jnp.pad(x, ((0, 0), (p, p), (p, p), (0, 0)))
    cols = [xp[:, dh:dh + H, dw:dw + W, :]
            for dh in range(k) for dw in range(k)]
    pat = jnp.stack(cols, axis=-2).reshape(B, H, W, k * k * C)   # [B,H,W,K]
    Ho, Wo = H // 2, W // 2
    Q = B * Ho * Wo
    quads = jnp.stack(
        [pat[:, hi::2, wi::2, :].reshape(Q, k * k * C)
         for hi in (0, 1) for wi in (0, 1)], axis=0)             # [4, Q, K]
    Qp = _round_up(Q, 8)
    if Qp != Q:
        quads = jnp.pad(quads, ((0, 0), (0, Qp - Q), (0, 0)))
    return quads.astype(jnp.bfloat16), Q


def _pad_lanes(a, n=LANES):
    pad = n - a.shape[-1]
    return jnp.pad(a, [(0, 0)] * (a.ndim - 1) + [(0, pad)])


def init_params(key):
    """Deterministic parameters matching the PyTorch module's shapes."""
    ks = jax.random.split(key, 6)

    def uni(k, shape, fan_in):
        bound = 1.0 / jnp.sqrt(jnp.float32(fan_in))
        return jax.random.uniform(k, shape, jnp.float32, -bound, bound)

    return {
        "conv1_w": uni(ks[0], (16, 1, 5, 5), 1 * 5 * 5),    # [outC, inC, kh, kw]
        "conv1_b": uni(ks[1], (16,), 1 * 5 * 5),
        "conv2_w": uni(ks[2], (32, 16, 5, 5), 16 * 5 * 5),
        "conv2_b": uni(ks[3], (32,), 16 * 5 * 5),
        "out_w":   uni(ks[4], (10, 1568), 1568),            # [out, in]
        "out_b":   uni(ks[5], (10,), 1568),
    }


def prepare_params(params):
    """One-time repacking of PyTorch-layout parameters for the kernels."""
    def pack_conv(w):                    # [O, C, kh, kw] -> [kh*kw*C, 128] bf16
        o, c, kh, kw = w.shape
        wp = w.transpose(2, 3, 1, 0).reshape(kh * kw * c, o)
        return _pad_lanes(wp).astype(jnp.bfloat16)

    def pack_bias(b):                    # [O] -> [1, 128] f32
        return _pad_lanes(b.reshape(1, -1)).astype(jnp.float32)

    # Fold the PyTorch NCHW flatten order (c*49 + h*7 + w) into a one-time row
    # permutation of the Linear weight so the forward pass flattens the pooled
    # NHWC activation directly ((h*7 + w)*32 + c) with no runtime transpose.
    w_out = params["out_w"].reshape(10, 32, 7, 7).transpose(2, 3, 1, 0)
    w_out = w_out.reshape(7 * 7 * 32, 10)
    return {
        "w1": pack_conv(params["conv1_w"]), "b1": pack_bias(params["conv1_b"]),
        "w2": pack_conv(params["conv2_w"]), "b2": pack_bias(params["conv2_b"]),
        "w_out": _pad_lanes(w_out).astype(jnp.bfloat16),
        "b_out": pack_bias(params["out_b"]),
    }


@jax.jit
def mnist30k_forward(data, packed):
    """data: NCHW float32 [B, 1, 28, 28] -> logits [B, 10]."""
    B = data.shape[0]
    x = data.reshape(B, 28, 28, 1)       # C=1: NCHW->NHWC is a pure reshape

    # conv1 (1->16, k=5, 'same') + ReLU + 2x2 max-pool, one fused kernel.
    pat1, q1 = _im2col_pool_quadrants(x, 5)                  # [4, Qp1, 25]
    y1 = conv_pool(pat1, packed["w1"], packed["b1"])         # [Qp1, 128] bf16
    a1 = y1[:q1].reshape(B, 14, 14, LANES)[..., :16]         # NHWC [B,14,14,16]

    # conv2 (16->32, k=5, 'same') + ReLU + 2x2 max-pool.
    pat2, q2 = _im2col_pool_quadrants(a1, 5)                 # [4, Qp2, 400]
    y2 = conv_pool(pat2, packed["w2"], packed["b2"])         # [Qp2, 128] bf16
    a2 = y2[:q2].reshape(B, 7, 7, LANES)[..., :32]           # [B,7,7,32]

    feat = a2.reshape(B, 7 * 7 * 32)     # order matches the permuted out_w rows

    # BatchNorm1d(1568, affine=False, training-mode stats) + Linear(1568->10).
    # TODO(synk): BatchNorm running-statistics (momentum buffer) updates are
    # not modeled -- forward normalization math only.
    logits = bn_linear(feat, packed["w_out"], packed["b_out"])  # [B, 128] f32
    return logits[:, :10]


if __name__ == "__main__":
    key = jax.random.PRNGKey(0)
    k_data, k_params = jax.random.split(key)
    # Module geometry forces 28x28 single-channel input (1568 = 32*7*7); B=4.
    data = jax.random.normal(k_data, (4, 1, 28, 28), jnp.float32)
    params = init_params(k_params)
    packed = prepare_params(params)

    logits = mnist30k_forward(data, packed)
    jax.block_until_ready(logits)
    assert logits.shape == (4, 10) and logits.dtype == jnp.float32
    print("KERNEL_OK")
</pallas_src>

<mosaic_0001>
module attributes {stable_mosaic.version = 11 : i64} {
  func.func @_conv_pool_kernel(%arg0: memref<4x784x25xbf16, #tpu.memory_space<vmem>>, %arg1: memref<25x128xbf16, #tpu.memory_space<vmem>>, %arg2: memref<1x128xf32, #tpu.memory_space<vmem>>, %arg3: memref<784x128xbf16, #tpu.memory_space<vmem>>) attributes {dimension_semantics = [], scalar_prefetch = 0 : i64, scratch_operands = 0 : i64, tpu.core_type = #tpu.core_type<tc>} {
    %c0 = arith.constant 0 : index
    %c0_0 = arith.constant 0 : index
    %0 = vector.load %arg1[%c0, %c0_0] : memref<25x128xbf16, #tpu.memory_space<vmem>>, vector<25x128xbf16>
    %c0_1 = arith.constant 0 : index
    %c0_2 = arith.constant 0 : index
    %c0_3 = arith.constant 0 : index
    %1 = vector.load %arg0[%c0_1, %c0_2, %c0_3] : memref<4x784x25xbf16, #tpu.memory_space<vmem>>, vector<1x784x25xbf16>
    %2 = vector.shape_cast %1 : vector<1x784x25xbf16> to vector<784x25xbf16>
    %cst = arith.constant dense<0.000000e+00> : vector<784x128xf32>
    %3 = tpu.matmul %2, %0, %cst {dimension_numbers = #tpu.dot_dimension_numbers<[1], [0], [0], [1], [0, 0, 1, 1], [], []>} : vector<784x25xbf16>, vector<25x128xbf16>, vector<784x128xf32> -> vector<784x128xf32>
    %c1 = arith.constant 1 : index
    %c0_4 = arith.constant 0 : index
    %c0_5 = arith.constant 0 : index
    %4 = vector.load %arg0[%c1, %c0_4, %c0_5] : memref<4x784x25xbf16, #tpu.memory_space<vmem>>, vector<1x784x25xbf16>
    %5 = vector.shape_cast %4 : vector<1x784x25xbf16> to vector<784x25xbf16>
    %cst_6 = arith.constant dense<0.000000e+00> : vector<784x128xf32>
    %6 = tpu.matmul %5, %0, %cst_6 {dimension_numbers = #tpu.dot_dimension_numbers<[1], [0], [0], [1], [0, 0, 1, 1], [], []>} : vector<784x25xbf16>, vector<25x128xbf16>, vector<784x128xf32> -> vector<784x128xf32>
    %7 = arith.maximumf %3, %6 : vector<784x128xf32>
    %c2 = arith.constant 2 : index
    %c0_7 = arith.constant 0 : index
    %c0_8 = arith.constant 0 : index
    %8 = vector.load %arg0[%c2, %c0_7, %c0_8] : memref<4x784x25xbf16, #tpu.memory_space<vmem>>, vector<1x784x25xbf16>
    %9 = vector.shape_cast %8 : vector<1x784x25xbf16> to vector<784x25xbf16>
    %cst_9 = arith.constant dense<0.000000e+00> : vector<784x128xf32>
    %10 = tpu.matmul %9, %0, %cst_9 {dimension_numbers = #tpu.dot_dimension_numbers<[1], [0], [0], [1], [0, 0, 1, 1], [], []>} : vector<784x25xbf16>, vector<25x128xbf16>, vector<784x128xf32> -> vector<784x128xf32>
    %11 = arith.maximumf %7, %10 : vector<784x128xf32>
    %c3 = arith.constant 3 : index
    %c0_10 = arith.constant 0 : index
    %c0_11 = arith.constant 0 : index
    %12 = vector.load %arg0[%c3, %c0_10, %c0_11] : memref<4x784x25xbf16, #tpu.memory_space<vmem>>, vector<1x784x25xbf16>
    %13 = vector.shape_cast %12 : vector<1x784x25xbf16> to vector<784x25xbf16>
    %cst_12 = arith.constant dense<0.000000e+00> : vector<784x128xf32>
    %14 = tpu.matmul %13, %0, %cst_12 {dimension_numbers = #tpu.dot_dimension_numbers<[1], [0], [0], [1], [0, 0, 1, 1], [], []>} : vector<784x25xbf16>, vector<25x128xbf16>, vector<784x128xf32> -> vector<784x128xf32>
    %15 = arith.maximumf %11, %14 : vector<784x128xf32>
    %c0_13 = arith.constant 0 : index
    %c0_14 = arith.constant 0 : index
    %16 = vector.load %arg2[%c0_13, %c0_14] : memref<1x128xf32, #tpu.memory_space<vmem>>, vector<1x128xf32>
    %17 = vector.broadcast %16 : vector<1x128xf32> to vector<784x128xf32>
    %18 = arith.addf %15, %17 : vector<784x128xf32>
    %cst_15 = arith.constant 0.000000e+00 : f32
    %19 = vector.broadcast %cst_15 : f32 to vector<784x128xf32>
    %20 = arith.maximumf %18, %19 : vector<784x128xf32>
    %21 = arith.truncf %20 : vector<784x128xf32> to vector<784x128xbf16>
    %c0_16 = arith.constant 0 : index
    %c0_17 = arith.constant 0 : index
    %22 = vector.load %arg3[%c0_16, %c0_17] : memref<784x128xbf16, #tpu.memory_space<vmem>>, vector<784x128xbf16>
    tpu.vector_store %arg3[%c0_16, %c0_17], %21 {strides = array<i32>} : memref<784x128xbf16, #tpu.memory_space<vmem>>, vector<784x128xbf16>,
    return
  }
}

module attributes {stable_mosaic.version = 11 : i64} {
  func.func @_conv_pool_kernel(%arg0: memref<4x200x400xbf16, #tpu.memory_space<vmem>>, %arg1: memref<400x128xbf16, #tpu.memory_space<vmem>>, %arg2: memref<1x128xf32, #tpu.memory_space<vmem>>, %arg3: memref<200x128xbf16, #tpu.memory_space<vmem>>) attributes {dimension_semantics = [], scalar_prefetch = 0 : i64, scratch_operands = 0 : i64, tpu.core_type = #tpu.core_type<tc>} {
    %c0 = arith.constant 0 : index
    %c0_0 = arith.constant 0 : index
    %0 = vector.load %arg1[%c0, %c0_0] : memref<400x128xbf16, #tpu.memory_space<vmem>>, vector<400x128xbf16>
    %c0_1 = arith.constant 0 : index
    %c0_2 = arith.constant 0 : index
    %c0_3 = arith.constant 0 : index
    %1 = vector.load %arg0[%c0_1, %c0_2, %c0_3] : memref<4x200x400xbf16, #tpu.memory_space<vmem>>, vector<1x200x400xbf16>
    %2 = vector.shape_cast %1 : vector<1x200x400xbf16> to vector<200x400xbf16>
    %cst = arith.constant dense<0.000000e+00> : vector<200x128xf32>
    %3 = tpu.matmul %2, %0, %cst {dimension_numbers = #tpu.dot_dimension_numbers<[1], [0], [0], [1], [0, 0, 1, 1], [], []>} : vector<200x400xbf16>, vector<400x128xbf16>, vector<200x128xf32> -> vector<200x128xf32>
    %c1 = arith.constant 1 : index
    %c0_4 = arith.constant 0 : index
    %c0_5 = arith.constant 0 : index
    %4 = vector.load %arg0[%c1, %c0_4, %c0_5] : memref<4x200x400xbf16, #tpu.memory_space<vmem>>, vector<1x200x400xbf16>
    %5 = vector.shape_cast %4 : vector<1x200x400xbf16> to vector<200x400xbf16>
    %cst_6 = arith.constant dense<0.000000e+00> : vector<200x128xf32>
    %6 = tpu.matmul %5, %0, %cst_6 {dimension_numbers = #tpu.dot_dimension_numbers<[1], [0], [0], [1], [0, 0, 1, 1], [], []>} : vector<200x400xbf16>, vector<400x128xbf16>, vector<200x128xf32> -> vector<200x128xf32>
    %7 = arith.maximumf %3, %6 : vector<200x128xf32>
    %c2 = arith.constant 2 : index
    %c0_7 = arith.constant 0 : index
    %c0_8 = arith.constant 0 : index
    %8 = vector.load %arg0[%c2, %c0_7, %c0_8] : memref<4x200x400xbf16, #tpu.memory_space<vmem>>, vector<1x200x400xbf16>
    %9 = vector.shape_cast %8 : vector<1x200x400xbf16> to vector<200x400xbf16>
    %cst_9 = arith.constant dense<0.000000e+00> : vector<200x128xf32>
    %10 = tpu.matmul %9, %0, %cst_9 {dimension_numbers = #tpu.dot_dimension_numbers<[1], [0], [0], [1], [0, 0, 1, 1], [], []>} : vector<200x400xbf16>, vector<400x128xbf16>, vector<200x128xf32> -> vector<200x128xf32>
    %11 = arith.maximumf %7, %10 : vector<200x128xf32>
    %c3 = arith.constant 3 : index
    %c0_10 = arith.constant 0 : index
    %c0_11 = arith.constant 0 : index
    %12 = vector.load %arg0[%c3, %c0_10, %c0_11] : memref<4x200x400xbf16, #tpu.memory_space<vmem>>, vector<1x200x400xbf16>
    %13 = vector.shape_cast %12 : vector<1x200x400xbf16> to vector<200x400xbf16>
    %cst_12 = arith.constant dense<0.000000e+00> : vector<200x128xf32>
    %14 = tpu.matmul %13, %0, %cst_12 {dimension_numbers = #tpu.dot_dimension_numbers<[1], [0], [0], [1], [0, 0, 1, 1], [], []>} : vector<200x400xbf16>, vector<400x128xbf16>, vector<200x128xf32> -> vector<200x128xf32>
    %15 = arith.maximumf %11, %14 : vector<200x128xf32>
    %c0_13 = arith.constant 0 : index
    %c0_14 = arith.constant 0 : index
    %16 = vector.load %arg2[%c0_13, %c0_14] : memref<1x128xf32, #tpu.memory_space<vmem>>, vector<1x128xf32>
    %17 = vector.broadcast %16 : vector<1x128xf32> to vector<200x128xf32>
    %18 = arith.addf %15, %17 : vector<200x128xf32>
    %cst_15 = arith.constant 0.000000e+00 : f32
    %19 = vector.broadcast %cst_15 : f32 to vector<200x128xf32>
    %20 = arith.maximumf %18, %19 : vector<200x128xf32>
    %21 = arith.truncf %20 : vector<200x128xf32> to vector<200x128xbf16>
    %c0_16 = arith.constant 0 : index
    %c0_17 = arith.constant 0 : index
    %22 = vector.load %arg3[%c0_16, %c0_17] : memref<200x128xbf16, #tpu.memory_space<vmem>>, vector<200x128xbf16>
    tpu.vector_store %arg3[%c0_16, %c0_17], %21 {strides = array<i32>} : memref<200x128xbf16, #tpu.memory_space<vmem>>, vector<200x128xbf16>,
    return
  }
}

module attributes {stable_mosaic.version = 11 : i64} {
  func.func @_bn_linear_kernel(%arg0: memref<4x1568xbf16, #tpu.memory_space<vmem>>, %arg1: memref<1568x128xbf16, #tpu.memory_space<vmem>>, %arg2: memref<1x128xf32, #tpu.memory_space<vmem>>, %arg3: memref<4x128xf32, #tpu.memory_space<vmem>>) attributes {dimension_semantics = [], scalar_prefetch = 0 : i64, scratch_operands = 0 : i64, tpu.core_type = #tpu.core_type<tc>} {
    %c0 = arith.constant 0 : index
    %c0_0 = arith.constant 0 : index
    %0 = vector.load %arg0[%c0, %c0_0] : memref<4x1568xbf16, #tpu.memory_space<vmem>>, vector<4x1568xbf16>
    %1 = arith.extf %0 : vector<4x1568xbf16> to vector<4x1568xf32>
    %cst = arith.constant dense<0.000000e+00> : vector<1568xf32>
    %2 = vector.multi_reduction <add>, %1, %cst [0] : vector<4x1568xf32> to vector<1568xf32>
    %3 = vector.shape_cast %2 : vector<1568xf32> to vector<1x1568xf32>
    %cst_1 = arith.constant 4.000000e+00 : f32
    %4 = vector.broadcast %cst_1 : f32 to vector<1x1568xf32>
    %5 = arith.divf %3, %4 : vector<1x1568xf32>
    %6 = vector.broadcast %5 : vector<1x1568xf32> to vector<4x1568xf32>
    %7 = arith.subf %1, %6 : vector<4x1568xf32>
    %8 = arith.mulf %7, %7 : vector<4x1568xf32>
    %cst_2 = arith.constant dense<0.000000e+00> : vector<1568xf32>
    %9 = vector.multi_reduction <add>, %8, %cst_2 [0] : vector<4x1568xf32> to vector<1568xf32>
    %10 = vector.shape_cast %9 : vector<1568xf32> to vector<1x1568xf32>
    %cst_3 = arith.constant 4.000000e+00 : f32
    %11 = vector.broadcast %cst_3 : f32 to vector<1x1568xf32>
    %12 = arith.divf %10, %11 : vector<1x1568xf32>
    %13 = vector.broadcast %5 : vector<1x1568xf32> to vector<4x1568xf32>
    %14 = arith.subf %1, %13 : vector<4x1568xf32>
    %cst_4 = arith.constant 9.99999974E-6 : f32
    %15 = vector.broadcast %cst_4 : f32 to vector<1x1568xf32>
    %16 = arith.addf %12, %15 : vector<1x1568xf32>
    %17 = math.rsqrt %16 : vector<1x1568xf32>
    %18 = vector.broadcast %17 : vector<1x1568xf32> to vector<4x1568xf32>
    %19 = arith.mulf %14, %18 : vector<4x1568xf32>
    %20 = arith.truncf %19 : vector<4x1568xf32> to vector<4x1568xbf16>
    %c0_5 = arith.constant 0 : index
    %c0_6 = arith.constant 0 : index
    %21 = vector.load %arg1[%c0_5, %c0_6] : memref<1568x128xbf16, #tpu.memory_space<vmem>>, vector<1568x128xbf16>
    %cst_7 = arith.constant dense<0.000000e+00> : vector<4x128xf32>
    %22 = tpu.matmul %20, %21, %cst_7 {dimension_numbers = #tpu.dot_dimension_numbers<[1], [0], [0], [1], [0, 0, 1, 1], [], []>} : vector<4x1568xbf16>, vector<1568x128xbf16>, vector<4x128xf32> -> vector<4x128xf32>
    %c0_8 = arith.constant 0 : index
    %c0_9 = arith.constant 0 : index
    %23 = vector.load %arg2[%c0_8, %c0_9] : memref<1x128xf32, #tpu.memory_space<vmem>>, vector<1x128xf32>
    %24 = vector.broadcast %23 : vector<1x128xf32> to vector<4x128xf32>
    %25 = arith.addf %22, %24 : vector<4x128xf32>
    %c0_10 = arith.constant 0 : index
    %c0_11 = arith.constant 0 : index
    %26 = vector.load %arg3[%c0_10, %c0_11] : memref<4x128xf32, #tpu.memory_space<vmem>>, vector<4x128xf32>
    tpu.vector_store %arg3[%c0_10, %c0_11], %25 {strides = array<i32>} : memref<4x128xf32, #tpu.memory_space<vmem>>, vector<4x128xf32>,
    return
  }
}

</mosaic_0001>

<llo_original>
// kernel: mnist30k_forward.3
$region0: #{mnist30k_forward.3}
  #allocation0 [shape = 'u32[]', space=smem, size = 0x4, offset = 0x4, fixed_abs, tag = 'smem constant byte address 0x4 - core index']
  #allocation1 [shape = 'u32[144,128]{1,0:T(1,128)}', space=vmem, size = 0x12000, scoped, tag = 'internal scratch']
  %s0 = inlined_call_operand.vmem [shape: bf16[4,784,25], index: 0, kind: input, shape index: {}]
  %s1 = inlined_call_operand.vmem [shape: bf16[25,128], index: 1, kind: input, shape index: {}]
  %s2 = inlined_call_operand.vmem [shape: f32[1,128], index: 2, kind: input, shape index: {}]
  %s3 = inlined_call_operand.vmem [shape: bf16[784,128], index: 3, kind: output, shape index: {}]
  %s4 = sld [smem:[#allocation0]]
  $region22: #{mnist30k_forward.3} parent=0
    _
  %s6 = ssub.s32 1, %s4
  %s7 = scalar_select 0, %s6, %s4
  // Predicated region
  $region2: #{mnist30k_forward.3} parent=0 // pred_check
    _
  $region3: #{mnist30k_forward.3} parent=0 // pred_check_branch
    %9 = sbr.rel (0) target = $region5
  $region4: #{mnist30k_forward.3} parent=0 // pred_region
    _
  $region5: #{mnist30k_forward.3} parent=0 // pred_fallthru
    _
  // Predicated region
  $region6: #{mnist30k_forward.3} parent=0 // pred_check
    _
  $region7: #{mnist30k_forward.3} parent=0 // pred_check_branch
    %11 = sbr.rel (0) target = $region9
  $region8: #{mnist30k_forward.3} parent=0 // pred_region
    _
  $region9: #{mnist30k_forward.3} parent=0 // pred_fallthru
    _
  // Predicated region
  $region10: #{mnist30k_forward.3} parent=0 // pred_check
    _
  $region11: #{mnist30k_forward.3} parent=0 // pred_check_branch
    %13 = sbr.rel (0) target = $region13
  $region12: #{mnist30k_forward.3} parent=0 // pred_region
    _
  $region13: #{mnist30k_forward.3} parent=0 // pred_fallthru
    _
  %v15 = vld [vmem:[%s1] sm:$0xf]
  %v16 = vld [vmem:[%s1 + $0x4] sm:$0xf]
  %v17 = vld [vmem:[%s1 + $0x8] sm:$0xf]
  %v18 = vld [vmem:[%s1 + $0xc] sm:$0x1]
  %v19 = vld [vmem:[%s0] sm:$0xf]
  %v20 = vld [vmem:[%s0 + $0x4] sm:$0xf]
  %v21 = vld [vmem:[%s0 + $0x8] sm:$0xf]
  %v22 = vld [vmem:[%s0 + $0xc] sm:$0xf]
  %v23 = vld [vmem:[%s0 + $0x10] sm:$0xf]
  %v24 = vld [vmem:[%s0 + $0x14] sm:$0xf]
  %v25 = vld [vmem:[%s0 + $0x18] sm:$0xf]
  %v26 = vld [vmem:[%s0 + $0x1c] sm:$0xf]
  %v27 = vld [vmem:[%s0 + $0x20] sm:$0xf]
  %v28 = vld [vmem:[%s0 + $0x24] sm:$0xf]
  %v29 = vld [vmem:[%s0 + $0x28] sm:$0xf]
  %v30 = vld [vmem:[%s0 + $0x2c] sm:$0xf]
  %v31 = vld [vmem:[%s0 + $0x30] sm:$0xf]
  %v32 = vld [vmem:[%s0 + $0x34] sm:$0xf]
  %v33 = vld [vmem:[%s0 + $0x38] sm:$0xf]
  %v34 = vld [vmem:[%s0 + $0x3c] sm:$0xf]
  %v35 = vld [vmem:[%s0 + $0x40] sm:$0xf]
  %v36 = vld [vmem:[%s0 + $0x44] sm:$0xf]
  %v37 = vld [vmem:[%s0 + $0x48] sm:$0xf]
  %v38 = vld [vmem:[%s0 + $0x4c] sm:$0xf]
  %v39 = vld [vmem:[%s0 + $0x50] sm:$0xf]
  %v40 = vld [vmem:[%s0 + $0x54] sm:$0xf]
  %v41 = vld [vmem:[%s0 + $0x58] sm:$0xf]
  %v42 = vld [vmem:[%s0 + $0x5c] sm:$0xf]
  %v43 = vld [vmem:[%s0 + $0x60] sm:$0xf]
  %v44 = vld [vmem:[%s0 + $0x64] sm:$0xf]
  %v45 = vld [vmem:[%s0 + $0x68] sm:$0xf]
  %v46 = vld [vmem:[%s0 + $0x6c] sm:$0xf]
  %v47 = vld [vmem:[%s0 + $0x70] sm:$0xf]
  %v48 = vld [vmem:[%s0 + $0x74] sm:$0xf]
  %v49 = vld [vmem:[%s0 + $0x78] sm:$0xf]
  %v50 = vld [vmem:[%s0 + $0x7c] sm:$0xf]
  %v51 = vld [vmem:[%s0 + $0x80] sm:$0xf]
  %v52 = vld [vmem:[%s0 + $0x84] sm:$0xf]
  %v53 = vld [vmem:[%s0 + $0x88] sm:$0xf]
  %v54 = vld [vmem:[%s0 + $0x8c] sm:$0xf]
  %v55 = vld [vmem:[%s0 + $0x90] sm:$0xf]
  %v56 = vld [vmem:[%s0 + $0x94] sm:$0xf]
  %v57 = vld [vmem:[%s0 + $0x98] sm:$0xf]
  %v58 = vld [vmem:[%s0 + $0x9c] sm:$0xf]
  %v59 = vld [vmem:[%s0 + $0xa0] sm:$0xf]
  %v60 = vld [vmem:[%s0 + $0xa4] sm:$0xf]
  %v61 = vld [vmem:[%s0 + $0xa8] sm:$0xf]
  %v62 = vld [vmem:[%s0 + $0xac] sm:$0xf]
  %v63 = vld [vmem:[%s0 + $0xb0] sm:$0xf]
  %v64 = vld [vmem:[%s0 + $0xb4] sm:$0xf]
  %v65 = vld [vmem:[%s0 + $0xb8] sm:$0xf]
  %v66 = vld [vmem:[%s0 + $0xbc] sm:$0xf]
  %v67 = vld [vmem:[%s0 + $0xc0] sm:$0xf]
  %v68 = vld [vmem:[%s0 + $0xc4] sm:$0xf]
  %v69 = vld [vmem:[%s0 + $0xc8] sm:$0xf]
  %v70 = vld [vmem:[%s0 + $0xcc] sm:$0xf]
  %v71 = vld [vmem:[%s0 + $0xd0] sm:$0xf]
  %v72 = vld [vmem:[%s0 + $0xd4] sm:$0xf]
  %v73 = vld [vmem:[%s0 + $0xd8] sm:$0xf]
  %v74 = vld [vmem:[%s0 + $0xdc] sm:$0xf]
  %v75 = vld [vmem:[%s0 + $0xe0] sm:$0xf]
  %v76 = vld [vmem:[%s0 + $0xe4] sm:$0xf]
  %v77 = vld [vmem:[%s0 + $0xe8] sm:$0xf]
  %v78 = vld [vmem:[%s0 + $0xec] sm:$0xf]
  %v79 = vld [vmem:[%s0 + $0xf0] sm:$0xf]
  %v80 = vld [vmem:[%s0 + $0xf4] sm:$0xf]
  %v81 = vld [vmem:[%s0 + $0xf8] sm:$0xf]
  %v82 = vld [vmem:[%s0 + $0xfc] sm:$0xf]
  %v83 = vld [vmem:[%s0 + $0x100] sm:$0xf]
  %v84 = vld [vmem:[%s0 + $0x104] sm:$0xf]
  %v85 = vld [vmem:[%s0 + $0x108] sm:$0xf]
  %v86 = vld [vmem:[%s0 + $0x10c] sm:$0xf]
  %v87 = vld [vmem:[%s0 + $0x110] sm:$0xf]
  %v88 = vld [vmem:[%s0 + $0x114] sm:$0xf]
  %v89 = vld [vmem:[%s0 + $0x118] sm:$0xf]
  %v90 = vld [vmem:[%s0 + $0x11c] sm:$0xf]
  %v91 = vld [vmem:[%s0 + $0x120] sm:$0xf]
  %v92 = vld [vmem:[%s0 + $0x124] sm:$0xf]
  %v93 = vld [vmem:[%s0 + $0x128] sm:$0xf]
  %v94 = vld [vmem:[%s0 + $0x12c] sm:$0xf]
  %v95 = vld [vmem:[%s0 + $0x130] sm:$0xf]
  %v96 = vld [vmem:[%s0 + $0x134] sm:$0xf]
  %v97 = vld [vmem:[%s0 + $0x138] sm:$0xf]
  %v98 = vld [vmem:[%s0 + $0x13c] sm:$0xf]
  %v99 = vld [vmem:[%s0 + $0x140] sm:$0xf]
  %v100 = vld [vmem:[%s0 + $0x144] sm:$0xf]
  %v101 = vld [vmem:[%s0 + $0x148] sm:$0xf]
  %v102 = vld [vmem:[%s0 + $0x14c] sm:$0xf]
  %v103 = vld [vmem:[%s0 + $0x150] sm:$0xf]
  %v104 = vld [vmem:[%s0 + $0x154] sm:$0xf]
  %v105 = vld [vmem:[%s0 + $0x158] sm:$0xf]
  %v106 = vld [vmem:[%s0 + $0x15c] sm:$0xf]
  %v107 = vld [vmem:[%s0 + $0x160] sm:$0xf]
  %v108 = vld [vmem:[%s0 + $0x164] sm:$0xf]
  %v109 = vld [vmem:[%s0 + $0x168] sm:$0xf]
  %v110 = vld [vmem:[%s0 + $0x16c] sm:$0xf]
  %v111 = vld [vmem:[%s0 + $0x170] sm:$0xf]
  %v112 = vld [vmem:[%s0 + $0x174] sm:$0xf]
  %v113 = vld [vmem:[%s0 + $0x178] sm:$0xf]
  %v114 = vld [vmem:[%s0 + $0x17c] sm:$0xf]
  %v115 = vld [vmem:[%s0 + $0x180] sm:$0xf]
  %v116 = vld [vmem:[%s0 + $0x184] sm:$0xf]
  %v215 = vunpack.c.l.b16 %v19
  %v216 = vunpack.c.l.b16 %v20
  %v217 = vunpack.c.l.b16 %v21
  %v218 = vunpack.c.l.b16 %v22
  %v219 = vunpack.c.l.b16 %v23
  %v220 = vunpack.c.l.b16 %v24
  %v221 = vunpack.c.l.b16 %v25
  %v222 = vunpack.c.l.b16 %v26
  %v223 = vunpack.c.l.b16 %v27
  %v224 = vunpack.c.l.b16 %v28
  %v225 = vunpack.c.l.b16 %v29
  %v226 = vunpack.c.l.b16 %v30
  %v227 = vunpack.c.l.b16 %v31
  %v228 = vunpack.c.l.b16 %v32
  %v229 = vunpack.c.l.b16 %v33
  %v230 = vunpack.c.l.b16 %v34
  %v231 = vunpack.c.l.b16 %v35
  %v232 = vunpack.c.l.b16 %v36
  %v233 = vunpack.c.l.b16 %v37
  %v234 = vunpack.c.l.b16 %v38
  %v235 = vunpack.c.l.b16 %v39
  %v236 = vunpack.c.l.b16 %v40
  %v237 = vunpack.c.l.b16 %v41
  %v238 = vunpack.c.l.b16 %v42
  %v239 = vunpack.c.l.b16 %v43
  %v240 = vunpack.c.l.b16 %v44
  %v241 = vunpack.c.l.b16 %v45
  %v242 = vunpack.c.l.b16 %v46
  %v243 = vunpack.c.l.b16 %v47
  %v244 = vunpack.c.l.b16 %v48
  %v245 = vunpack.c.l.b16 %v49
  %v246 = vunpack.c.l.b16 %v50
  %v247 = vunpack.c.l.b16 %v51
  %v248 = vunpack.c.l.b16 %v52
  %v249 = vunpack.c.l.b16 %v53
  %v250 = vunpack.c.l.b16 %v54
  %v251 = vunpack.c.l.b16 %v55
  %v252 = vunpack.c.l.b16 %v56
  %v253 = vunpack.c.l.b16 %v57
  %v254 = vunpack.c.l.b16 %v58
  %v255 = vunpack.c.l.b16 %v59
  %v256 = vunpack.c.l.b16 %v60
  %v257 = vunpack.c.l.b16 %v61
  %v258 = vunpack.c.l.b16 %v62
  %v259 = vunpack.c.l.b16 %v63
  %v260 = vunpack.c.l.b16 %v64
  %v261 = vunpack.c.l.b16 %v65
  %v262 = vunpack.c.l.b16 %v66
  %v263 = vunpack.c.l.b16 %v67
  %v264 = vunpack.c.l.b16 %v68
  %v265 = vunpack.c.l.b16 %v69
  %v266 = vunpack.c.l.b16 %v70
  %v267 = vunpack.c.l.b16 %v71
  %v268 = vunpack.c.l.b16 %v72
  %v269 = vunpack.c.l.b16 %v73
  %v270 = vunpack.c.l.b16 %v74
  %v271 = vunpack.c.l.b16 %v75
  %v272 = vunpack.c.l.b16 %v76
  %v273 = vunpack.c.l.b16 %v77
  %v274 = vunpack.c.l.b16 %v78
  %v275 = vunpack.c.l.b16 %v79
  %v276 = vunpack.c.l.b16 %v80
  %v277 = vunpack.c.l.b16 %v81
  %v278 = vunpack.c.l.b16 %v82
  %v279 = vunpack.c.l.b16 %v83
  %v280 = vunpack.c.l.b16 %v84
  %v281 = vunpack.c.l.b16 %v85
  %v282 = vunpack.c.l.b16 %v86
  %v283 = vunpack.c.l.b16 %v87
  %v284 = vunpack.c.l.b16 %v88
  %v285 = vunpack.c.l.b16 %v89
  %v286 = vunpack.c.l.b16 %v90
  %v287 = vunpack.c.l.b16 %v91
  %v288 = vunpack.c.l.b16 %v92
  %v289 = vunpack.c.l.b16 %v93
  %v290 = vunpack.c.l.b16 %v94
  %v291 = vunpack.c.l.b16 %v95
  %v292 = vunpack.c.l.b16 %v96
  %v293 = vunpack.c.l.b16 %v97
  %v294 = vunpack.c.l.b16 %v98
  %v295 = vunpack.c.l.b16 %v99
  %v296 = vunpack.c.l.b16 %v100
  %v297 = vunpack.c.l.b16 %v101
  %v298 = vunpack.c.l.b16 %v102
  %v299 = vunpack.c.l.b16 %v103
  %v300 = vunpack.c.l.b16 %v104
  %v301 = vunpack.c.l.b16 %v105
  %v302 = vunpack.c.l.b16 %v106
  %v303 = vunpack.c.l.b16 %v107
  %v304 = vunpack.c.l.b16 %v108
  %v305 = vunpack.c.l.b16 %v109
  %v306 = vunpack.c.l.b16 %v110
  %v307 = vunpack.c.l.b16 %v111
  %v308 = vunpack.c.l.b16 %v112
  %v309 = vunpack.c.l.b16 %v113
  %v310 = vunpack.c.l.b16 %v114
  %v311 = vunpack.c.l.b16 %v115
  %v312 = vunpack.c.l.b16 %v116
  %v313 = vpack.c.b16 %v216, %v215
  %v314 = vpack.c.b16 %v218, %v217
  %v315 = vpack.c.b16 %v220, %v219
  %v316 = vpack.c.b16 %v222, %v221
  %v317 = vpack.c.b16 %v224, %v223
  %v318 = vpack.c.b16 %v226, %v225
  %v319 = vpack.c.b16 %v228, %v227
  %v320 = vpack.c.b16 %v230, %v229
  %v321 = vpack.c.b16 %v232, %v231
  %v322 = vpack.c.b16 %v234, %v233
  %v323 = vpack.c.b16 %v236, %v235
  %v324 = vpack.c.b16 %v238, %v237
  %v325 = vpack.c.b16 %v240, %v239
  %v326 = vpack.c.b16 %v242, %v241
  %v327 = vpack.c.b16 %v244, %v243
  %v328 = vpack.c.b16 %v246, %v245
  %v329 = vpack.c.b16 %v248, %v247
  %v330 = vpack.c.b16 %v250, %v249
  %v331 = vpack.c.b16 %v252, %v251
  %v332 = vpack.c.b16 %v254, %v253
  %v333 = vpack.c.b16 %v256, %v255
  %v334 = vpack.c.b16 %v258, %v257
  %v335 = vpack.c.b16 %v260, %v259
  %v336 = vpack.c.b16 %v262, %v261
  %v337 = vpack.c.b16 %v264, %v263
  %v338 = vpack.c.b16 %v266, %v265
  %v339 = vpack.c.b16 %v268, %v267
  %v340 = vpack.c.b16 %v270, %v269
  %v341 = vpack.c.b16 %v272, %v271
  %v342 = vpack.c.b16 %v274, %v273
  %v343 = vpack.c.b16 %v276, %v275
  %v344 = vpack.c.b16 %v278, %v277
  %v345 = vpack.c.b16 %v280, %v279
  %v346 = vpack.c.b16 %v282, %v281
  %v347 = vpack.c.b16 %v284, %v283
  %v348 = vpack.c.b16 %v286, %v285
  %v349 = vpack.c.b16 %v288, %v287
  %v350 = vpack.c.b16 %v290, %v289
  %v351 = vpack.c.b16 %v292, %v291
  %v352 = vpack.c.b16 %v294, %v293
  %v353 = vpack.c.b16 %v296, %v295
  %v354 = vpack.c.b16 %v298, %v297
  %v355 = vpack.c.b16 %v300, %v299
  %v356 = vpack.c.b16 %v302, %v301
  %v357 = vpack.c.b16 %v304, %v303
  %v358 = vpack.c.b16 %v306, %v305
  %v359 = vpack.c.b16 %v308, %v307
  %v360 = vpack.c.b16 %v310, %v309
  %v361 = vpack.c.b16 %v312, %v311
  %v366 = vunpack.c.l.b16 %v15
  %v367 = vunpack.c.l.b16 %v16
  %v368 = vunpack.c.l.b16 %v17
  %v369 = vunpack.c.l.b16 %v18
  %v370 = vpack.c.b16 %v367, %v366
  %v371 = vpack.c.b16 %v369, %v368
  %vm373 = vcmask 203776
  %v375 = vsel %vm373, %v313, 0
  %v378 = vsel %vm373, %v314, 0
  %v381 = vsel %vm373, %v315, 0
  %v384 = vsel %vm373, %v316, 0
  %v387 = vsel %vm373, %v317, 0
  %v390 = vsel %vm373, %v318, 0
  %v393 = vsel %vm373, %v319, 0
  %v396 = vsel %vm373, %v320, 0
  %v399 = vsel %vm373, %v321, 0
  %v402 = vsel %vm373, %v322, 0
  %v405 = vsel %vm373, %v323, 0
  %v408 = vsel %vm373, %v324, 0
  %v411 = vsel %vm373, %v325, 0
  %v414 = vsel %vm373, %v326, 0
  %v417 = vsel %vm373, %v327, 0
  %v420 = vsel %vm373, %v328, 0
  %v423 = vsel %vm373, %v329, 0
  %v426 = vsel %vm373, %v330, 0
  %v429 = vsel %vm373, %v331, 0
  %v432 = vsel %vm373, %v332, 0
  %v435 = vsel %vm373, %v333, 0
  %v438 = vsel %vm373, %v334, 0
  %v441 = vsel %vm373, %v335, 0
  %v444 = vsel %vm373, %v336, 0
  %v447 = vsel %vm373, %v337, 0
  %v450 = vsel %vm373, %v338, 0
  %v453 = vsel %vm373, %v339, 0
  %v456 = vsel %vm373, %v340, 0
  %v459 = vsel %vm373, %v341, 0
  %v462 = vsel %vm373, %v342, 0
  %v465 = vsel %vm373, %v343, 0
  %v468 = vsel %vm373, %v344, 0
  %v471 = vsel %vm373, %v345, 0
  %v474 = vsel %vm373, %v346, 0
  %v477 = vsel %vm373, %v347, 0
  %v480 = vsel %vm373, %v348, 0
  %v483 = vsel %vm373, %v349, 0
  %v486 = vsel %vm373, %v350, 0
  %v489 = vsel %vm373, %v351, 0
  %v492 = vsel %vm373, %v352, 0
  %v495 = vsel %vm373, %v353, 0
  %v498 = vsel %vm373, %v354, 0
  %v501 = vsel %vm373, %v355, 0
  %v504 = vsel %vm373, %v356, 0
  %v507 = vsel %vm373, %v357, 0
  %v510 = vsel %vm373, %v358, 0
  %v513 = vsel %vm373, %v359, 0
  %v516 = vsel %vm373, %v360, 0
  %v519 = vsel %vm373, %v361, 0
  %vm521 = vcmask 1043456
  %vm522 = vcmask 1044480
  %v523 = vsel %vm521, 4294967295, 65535
  %v524 = vsel %vm522, %v523, 0
  %v526 = vand.u32 %v371, %v524
  %528 = vmatprep.subr.bf16.mxu0 0
  %529 = vmatpush1.bf16.msra.mxu0 %v370
  %530 = vmatprep.subr.bf16.mxu0 0
  %531 = vmatpush1.bf16.msra.mxu0 %v526
  %532 = vmatprep.subr.bf16.mxu0 0
  %533 = vmatpush1.bf16.msra.mxu0 0
  %534 = vmatprep.subr.bf16.mxu0 0
  %535 = vmatpush1.bf16.msra.mxu0 0
  %536 = vmatprep.subr.bf16.mxu0 0
  %537 = vmatpush1.bf16.msra.mxu0 0
  %538 = vmatprep.subr.bf16.mxu0 0
  %539 = vmatpush1.bf16.msra.mxu0 0
  %540 = vmatprep.subr.bf16.mxu0 0
  %541 = vmatpush1.bf16.msra.mxu0 0
  %542 = vmatprep.subr.bf16.mxu0 0
  %543 = vmatpush1.bf16.msra.mxu0 0
  %544 = vmatprep.subr.bf16.mxu0 0
  %545 = vmatpush1.bf16.msra.mxu0 0
  %546 = vmatprep.subr.bf16.mxu0 0
  %547 = vmatpush1.bf16.msra.mxu0 0
  %548 = vmatprep.subr.bf16.mxu0 0
  %549 = vmatpush1.bf16.msra.mxu0 0
  %550 = vmatprep.subr.bf16.mxu0 0
  %551 = vmatpush1.bf16.msra.mxu0 0
  %552 = vmatprep.subr.bf16.mxu0 0
  %553 = vmatpush1.bf16.msra.mxu0 0
  %554 = vmatprep.subr.bf16.mxu0 0
  %555 = vmatpush1.bf16.msra.mxu0 0
  %556 = vmatprep.subr.bf16.mxu0 0
  %557 = vmatpush1.bf16.msra.mxu0 0
  %558 = vmatprep.subr.bf16.mxu0 0
  %559 = vmatpush1.bf16.msra.mxu0 0
  %560 = vmatprep.mubr.bf16.mxu0 0
  %561 = vmatmul.mubr.bf16.gmra.mrb[0].mxu0 %v375
  %v562 = vpop.f32.mrb[0].mxu0
  %v563 = vadd.f32 0.0, %v562
  %v564 = vpop.f32.mrb[0].mxu0
  %v565 = vpop.f32.mrb[0].mxu0
  %v566 = vadd.f32 0.0, %v565
  %v567 = vpop.f32.mrb[0].mxu0
  %568 = vmatprep.mubr.bf16.mxu0 0
  %569 = vmatmul.mubr.bf16.gmra.mrb[0].mxu0 %v378
  %v570 = vpop.f32.mrb[0].mxu0
  %v571 = vadd.f32 0.0, %v570
  %v572 = vpop.f32.mrb[0].mxu0
  %v573 = vpop.f32.mrb[0].mxu0
  %v574 = vadd.f32 0.0, %v573
  %v575 = vpop.f32.mrb[0].mxu0
  %576 = vmatprep.mubr.bf16.mxu0 0
  %577 = vmatmul.mubr.bf16.gmra.mrb[0].mxu0 %v381
  %v578 = vpop.f32.mrb[0].mxu0
  %v579 = vadd.f32 0.0, %v578
  %v580 = vpop.f32.mrb[0].mxu0
  %v581 = vpop.f32.mrb[0].mxu0
  %v582 = vadd.f32 0.0, %v581
  %v583 = vpop.f32.mrb[0].mxu0
  %584 = vmatprep.mubr.bf16.mxu0 0
  %585 = vmatmul.mubr.bf16.gmra.mrb[0].mxu0 %v384
  %v586 = vpop.f32.mrb[0].mxu0
  %v587 = vadd.f32 0.0, %v586
  %v588 = vpop.f32.mrb[0].mxu0
  %v589 = vpop.f32.mrb[0].mxu0
  %v590 = vadd.f32 0.0, %v589
  %v591 = vpop.f32.mrb[0].mxu0
  %592 = vmatprep.mubr.bf16.mxu0 0
  %593 = vmatmul.mubr.bf16.gmra.mrb[0].mxu0 %v387
  %v594 = vpop.f32.mrb[0].mxu0
  %v595 = vadd.f32 0.0, %v594
  %v596 = vpop.f32.mrb[0].mxu0
  %v597 = vpop.f32.mrb[0].mxu0
  %v598 = vadd.f32 0.0, %v597
  %v599 = vpop.f32.mrb[0].mxu0
  %600 = vmatprep.mubr.bf16.mxu0 0
  %601 = vmatmul.mubr.bf16.gmra.mrb[0].mxu0 %v390
  %v602 = vpop.f32.mrb[0].mxu0
  %v603 = vadd.f32 0.0, %v602
  %v604 = vpop.f32.mrb[0].mxu0
  %v605 = vpop.f32.mrb[0].mxu0
  %v606 = vadd.f32 0.0, %v605
  %v607 = vpop.f32.mrb[0].mxu0
  %608 = vmatprep.mubr.bf16.mxu0 0
  %609 = vmatmul.mubr.bf16.gmra.mrb[0].mxu0 %v393
  %v610 = vpop.f32.mrb[0].mxu0
  %v611 = vadd.f32 0.0, %v610
  %v612 = vpop.f32.mrb[0].mxu0
  %v613 = vpop.f32.mrb[0].mxu0
  %v614 = vadd.f32 0.0, %v613
  %v615 = vpop.f32.mrb[0].mxu0
  %616 = vmatprep.mubr.bf16.mxu0 0
  %617 = vmatmul.mubr.bf16.gmra.mrb[0].mxu0 %v396
  %v618 = vpop.f32.mrb[0].mxu0
  %v619 = vadd.f32 0.0, %v618
  %v620 = vpop.f32.mrb[0].mxu0
  %v621 = vpop.f32.mrb[0].mxu0
  %v622 = vadd.f32 0.0, %v621
  %v623 = vpop.f32.mrb[0].mxu0
  %624 = vmatprep.mubr.bf16.mxu0 0
  %625 = vmatmul.mubr.bf16.gmra.mrb[0].mxu0 %v399
  %v626 = vpop.f32.mrb[0].mxu0
  %v627 = vadd.f32 0.0, %v626
  %v628 = vpop.f32.mrb[0].mxu0
  %v629 = vpop.f32.mrb[0].mxu0
  %v630 = vadd.f32 0.0, %v629
  %v631 = vpop.f32.mrb[0].mxu0
  %632 = vmatprep.mubr.bf16.mxu0 0
  %633 = vmatmul.mubr.bf16.gmra.mrb[0].mxu0 %v402
  %v634 = vpop.f32.mrb[0].mxu0
  %v635 = vadd.f32 0.0, %v634
  %v636 = vpop.f32.mrb[0].mxu0
  %v637 = vpop.f32.mrb[0].mxu0
  %v638 = vadd.f32 0.0, %v637
  %v639 = vpop.f32.mrb[0].mxu0
  %640 = vmatprep.mubr.bf16.mxu0 0
  %641 = vmatmul.mubr.bf16.gmra.mrb[0].mxu0 %v405
  %v642 = vpop.f32.mrb[0].mxu0
  %v643 = vadd.f32 0.0, %v642
  %v644 = vpop.f32.mrb[0].mxu0
  %v645 = vpop.f32.mrb[0].mxu0
  %v646 = vadd.f32 0.0, %v645
  %v647 = vpop.f32.mrb[0].mxu0
  %648 = vmatprep.mubr.bf16.mxu0 0
  %649 = vmatmul.mubr.bf16.gmra.mrb[0].mxu0 %v408
  %v650 = vpop.f32.mrb[0].mxu0
  %v651 = vadd.f32 0.0, %v650
  %v652 = vpop.f32.mrb[0].mxu0
  %v653 = vpop.f32.mrb[0].mxu0
  %v654 = vadd.f32 0.0, %v653
  %v655 = vpop.f32.mrb[0].mxu0
  %656 = vmatprep.mubr.bf16.mxu0 0
  %657 = vmatmul.mubr.bf16.gmra.mrb[0].mxu0 %v411
  %v658 = vpop.f32.mrb[0].mxu0
  %v659 = vadd.f32 0.0, %v658
  %v660 = vpop.f32.mrb[0].mxu0
  %v661 = vpop.f32.mrb[0].mxu0
  %v662 = vadd.f32 0.0, %v661
  %v663 = vpop.f32.mrb[0].mxu0
  %664 = vmatprep.mubr.bf16.mxu0 0
  %665 = vmatmul.mubr.bf16.gmra.mrb[0].mxu0 %v414
  %v666 = vpop.f32.mrb[0].mxu0
  %v667 = vadd.f32 0.0, %v666
  %v668 = vpop.f32.mrb[0].mxu0
  %v669 = vpop.f32.mrb[0].mxu0
  %v670 = vadd.f32 0.0, %v669
  %v671 = vpop.f32.mrb[0].mxu0
  %672 = vmatprep.mubr.bf16.mxu0 0
  %673 = vmatmul.mubr.bf16.gmra.mrb[0].mxu0 %v417
  %v674 = vpop.f32.mrb[0].mxu0
  %v675 = vadd.f32 0.0, %v674
  %v676 = vpop.f32.mrb[0].mxu0
  %v677 = vpop.f32.mrb[0].mxu0
  %v678 = vadd.f32 0.0, %v677
  %v679 = vpop.f32.mrb[0].mxu0
  %680 = vmatprep.mubr.bf16.mxu0 0
  %681 = vmatmul.mubr.bf16.gmra.mrb[0].mxu0 %v420
  %v682 = vpop.f32.mrb[0].mxu0
  %v683 = vadd.f32 0.0, %v682
  %v684 = vpop.f32.mrb[0].mxu0
  %v685 = vpop.f32.mrb[0].mxu0
  %v686 = vadd.f32 0.0, %v685
  %v687 = vpop.f32.mrb[0].mxu0
  %688 = vmatprep.mubr.bf16.mxu0 0
  %689 = vmatmul.mubr.bf16.gmra.mrb[0].mxu0 %v423
  %v690 = vpop.f32.mrb[0].mxu0
  %v691 = vadd.f32 0.0, %v690
  %v692 = vpop.f32.mrb[0].mxu0
  %v693 = vpop.f32.mrb[0].mxu0
  %v694 = vadd.f32 0.0, %v693
  %v695 = vpop.f32.mrb[0].mxu0
  %696 = vmatprep.mubr.bf16.mxu0 0
  %697 = vmatmul.mubr.bf16.gmra.mrb[0].mxu0 %v426
  %v698 = vpop.f32.mrb[0].mxu0
  %v699 = vadd.f32 0.0, %v698
  %v700 = vpop.f32.mrb[0].mxu0
  %v701 = vpop.f32.mrb[0].mxu0
  %v702 = vadd.f32 0.0, %v701
  %v703 = vpop.f32.mrb[0].mxu0
  %704 = vmatprep.mubr.bf16.mxu0 0
  %705 = vmatmul.mubr.bf16.gmra.mrb[0].mxu0 %v429
  %v706 = vpop.f32.mrb[0].mxu0
  %v707 = vadd.f32 0.0, %v706
  %v708 = vpop.f32.mrb[0].mxu0
  %v709 = vpop.f32.mrb[0].mxu0
  %v710 = vadd.f32 0.0, %v709
  %v711 = vpop.f32.mrb[0].mxu0
  %712 = vmatprep.mubr.bf16.mxu0 0
  %713 = vmatmul.mubr.bf16.gmra.mrb[0].mxu0 %v432
  %v714 = vpop.f32.mrb[0].mxu0
  %v715 = vadd.f32 0.0, %v714
  %v716 = vpop.f32.mrb[0].mxu0
  %v717 = vpop.f32.mrb[0].mxu0
  %v718 = vadd.f32 0.0, %v717
  %v719 = vpop.f32.mrb[0].mxu0
  %720 = vmatprep.mubr.bf16.mxu0 0
  %721 = vmatmul.mubr.bf16.gmra.mrb[0].mxu0 %v435
  %v722 = vpop.f32.mrb[0].mxu0
  %v723 = vadd.f32 0.0, %v722
  %v724 = vpop.f32.mrb[0].mxu0
  %v725 = vpop.f32.mrb[0].mxu0
  %v726 = vadd.f32 0.0, %v725
  %v727 = vpop.f32.mrb[0].mxu0
  %728 = vmatprep.mubr.bf16.mxu0 0
  %729 = vmatmul.mubr.bf16.gmra.mrb[0].mxu0 %v438
  %v730 = vpop.f32.mrb[0].mxu0
  %v731 = vadd.f32 0.0, %v730
  %v732 = vpop.f32.mrb[0].mxu0
  %v733 = vpop.f32.mrb[0].mxu0
  %v734 = vadd.f32 0.0, %v733
  %v735 = vpop.f32.mrb[0].mxu0
  %736 = vmatprep.mubr.bf16.mxu0 0
  %737 = vmatmul.mubr.bf16.gmra.mrb[0].mxu0 %v441
  %v738 = vpop.f32.mrb[0].mxu0
  %v739 = vadd.f32 0.0, %v738
  %v740 = vpop.f32.mrb[0].mxu0
  %v741 = vpop.f32.mrb[0].mxu0
  %v742 = vadd.f32 0.0, %v741
  %v743 = vpop.f32.mrb[0].mxu0
  %744 = vmatprep.mubr.bf16.mxu0 0
  %745 = vmatmul.mubr.bf16.gmra.mrb[0].mxu0 %v444
  %v746 = vpop.f32.mrb[0].mxu0
  %v747 = vadd.f32 0.0, %v746
  %v748 = vpop.f32.mrb[0].mxu0
  %v749 = vpop.f32.mrb[0].mxu0
  %v750 = vadd.f32 0.0, %v749
  %v751 = vpop.f32.mrb[0].mxu0
  %752 = vmatprep.mubr.bf16.mxu0 0
  %753 = vmatmul.mubr.bf16.gmra.mrb[0].mxu0 %v447
  %v754 = vpop.f32.mrb[0].mxu0
  %v755 = vadd.f32 0.0, %v754
  %v756 = vpop.f32.mrb[0].mxu0
  %v757 = vpop.f32.mrb[0].mxu0
  %v758 = vadd.f32 0.0, %v757
  %v759 = vpop.f32.mrb[0].mxu0
  %760 = vmatprep.mubr.bf16.mxu0 0
  %761 = vmatmul.mubr.bf16.gmra.mrb[0].mxu0 %v450
  %v762 = vpop.f32.mrb[0].mxu0
  %v763 = vadd.f32 0.0, %v762
  %v764 = vpop.f32.mrb[0].mxu0
  %v765 = vpop.f32.mrb[0].mxu0
  %v766 = vadd.f32 0.0, %v765
  %v767 = vpop.f32.mrb[0].mxu0
  %768 = vmatprep.mubr.bf16.mxu0 0
  %769 = vmatmul.mubr.bf16.gmra.mrb[0].mxu0 %v453
  %v770 = vpop.f32.mrb[0].mxu0
  %v771 = vadd.f32 0.0, %v770
  %v772 = vpop.f32.mrb[0].mxu0
  %v773 = vpop.f32.mrb[0].mxu0
  %v774 = vadd.f32 0.0, %v773
  %v775 = vpop.f32.mrb[0].mxu0
  %776 = vmatprep.mubr.bf16.mxu0 0
  %777 = vmatmul.mubr.bf16.gmra.mrb[0].mxu0 %v456
  %v778 = vpop.f32.mrb[0].mxu0
  %v779 = vadd.f32 0.0, %v778
  %v780 = vpop.f32.mrb[0].mxu0
  %v781 = vpop.f32.mrb[0].mxu0
  %v782 = vadd.f32 0.0, %v781
  %v783 = vpop.f32.mrb[0].mxu0
  %784 = vmatprep.mubr.bf16.mxu0 0
  %785 = vmatmul.mubr.bf16.gmra.mrb[0].mxu0 %v459
  %v786 = vpop.f32.mrb[0].mxu0
  %v787 = vadd.f32 0.0, %v786
  %v788 = vpop.f32.mrb[0].mxu0
  %v789 = vpop.f32.mrb[0].mxu0
  %v790 = vadd.f32 0.0, %v789
  %v791 = vpop.f32.mrb[0].mxu0
  %792 = vmatprep.mubr.bf16.mxu0 0
  %793 = vmatmul.mubr.bf16.gmra.mrb[0].mxu0 %v462
  %v794 = vpop.f32.mrb[0].mxu0
  %v795 = vadd.f32 0.0, %v794
  %v796 = vpop.f32.mrb[0].mxu0
  %v797 = vpop.f32.mrb[0].mxu0
  %v798 = vadd.f32 0.0, %v797
  %v799 = vpop.f32.mrb[0].mxu0
  %800 = vmatprep.mubr.bf16.mxu0 0
  %801 = vmatmul.mubr.bf16.gmra.mrb[0].mxu0 %v465
  %v802 = vpop.f32.mrb[0].mxu0
  %v803 = vadd.f32 0.0, %v802
  %v804 = vpop.f32.mrb[0].mxu0
  %v805 = vpop.f32.mrb[0].mxu0
  %v806 = vadd.f32 0.0, %v805
  %v807 = vpop.f32.mrb[0].mxu0
  %808 = vmatprep.mubr.bf16.mxu0 0
  %809 = vmatmul.mubr.bf16.gmra.mrb[0].mxu0 %v468
  %v810 = vpop.f32.mrb[0].mxu0
  %v811 = vadd.f32 0.0, %v810
  %v812 = vpop.f32.mrb[0].mxu0
  %v813 = vpop.f32.mrb[0].mxu0
  %v814 = vadd.f32 0.0, %v813
  %v815 = vpop.f32.mrb[0].mxu0
  %816 = vmatprep.mubr.bf16.mxu0 0
  %817 = vmatmul.mubr.bf16.gmra.mrb[0].mxu0 %v471
  %v818 = vpop.f32.mrb[0].mxu0
  %v819 = vadd.f32 0.0, %v818
  %v820 = vpop.f32.mrb[0].mxu0
  %v821 = vpop.f32.mrb[0].mxu0
  %v822 = vadd.f32 0.0, %v821
  %v823 = vpop.f32.mrb[0].mxu0
  %824 = vmatprep.mubr.bf16.mxu0 0
  %825 = vmatmul.mubr.bf16.gmra.mrb[0].mxu0 %v474
  %v826 = vpop.f32.mrb[0].mxu0
  %v827 = vadd.f32 0.0, %v826
  %v828 = vpop.f32.mrb[0].mxu0
  %v829 = vpop.f32.mrb[0].mxu0
  %v830 = vadd.f32 0.0, %v829
  %v831 = vpop.f32.mrb[0].mxu0
  %832 = vmatprep.mubr.bf16.mxu0 0
  %833 = vmatmul.mubr.bf16.gmra.mrb[0].mxu0 %v477
  %v834 = vpop.f32.mrb[0].mxu0
  %v835 = vadd.f32 0.0, %v834
  %v836 = vpop.f32.mrb[0].mxu0
  %v837 = vpop.f32.mrb[0].mxu0
  %v838 = vadd.f32 0.0, %v837
  %v839 = vpop.f32.mrb[0].mxu0
  %840 = vmatprep.mubr.bf16.mxu0 0
  %841 = vmatmul.mubr.bf16.gmra.mrb[0].mxu0 %v480
  %v842 = vpop.f32.mrb[0].mxu0
  %v843 = vadd.f32 0.0, %v842
  %v844 = vpop.f32.mrb[0].mxu0
  %v845 = vpop.f32.mrb[0].mxu0
  %v846 = vadd.f32 0.0, %v845
  %v847 = vpop.f32.mrb[0].mxu0
  %848 = vmatprep.mubr.bf16.mxu0 0
  %849 = vmatmul.mubr.bf16.gmra.mrb[0].mxu0 %v483
  %v850 = vpop.f32.mrb[0].mxu0
  %v851 = vadd.f32 0.0, %v850
  %v852 = vpop.f32.mrb[0].mxu0
  %v853 = vpop.f32.mrb[0].mxu0
  %v854 = vadd.f32 0.0, %v853
  %v855 = vpop.f32.mrb[0].mxu0
  %856 = vmatprep.mubr.bf16.mxu0 0
  %857 = vmatmul.mubr.bf16.gmra.mrb[0].mxu0 %v486
  %v858 = vpop.f32.mrb[0].mxu0
  %v859 = vadd.f32 0.0, %v858
  %v860 = vpop.f32.mrb[0].mxu0
  %v861 = vpop.f32.mrb[0].mxu0
  %v862 = vadd.f32 0.0, %v861
  %v863 = vpop.f32.mrb[0].mxu0
  %864 = vmatprep.mubr.bf16.mxu0 0
  %865 = vmatmul.mubr.bf16.gmra.mrb[0].mxu0 %v489
  %v866 = vpop.f32.mrb[0].mxu0
  %v867 = vadd.f32 0.0, %v866
  %v868 = vpop.f32.mrb[0].mxu0
  %v869 = vpop.f32.mrb[0].mxu0
  %v870 = vadd.f32 0.0, %v869
  %v871 = vpop.f32.mrb[0].mxu0
  %872 = vmatprep.mubr.bf16.mxu0 0
  %873 = vmatmul.mubr.bf16.gmra.mrb[0].mxu0 %v492
  %v874 = vpop.f32.mrb[0].mxu0
  %v875 = vadd.f32 0.0, %v874
  %v876 = vpop.f32.mrb[0].mxu0
  %v877 = vpop.f32.mrb[0].mxu0
  %v878 = vadd.f32 0.0, %v877
  %v879 = vpop.f32.mrb[0].mxu0
  %880 = vmatprep.mubr.bf16.mxu0 0
  %881 = vmatmul.mubr.bf16.gmra.mrb[0].mxu0 %v495
  %v882 = vpop.f32.mrb[0].mxu0
  %v883 = vadd.f32 0.0, %v882
  %v884 = vpop.f32.mrb[0].mxu0
  %v885 = vpop.f32.mrb[0].mxu0
  %v886 = vadd.f32 0.0, %v885
  %v887 = vpop.f32.mrb[0].mxu0
  %888 = vmatprep.mubr.bf16.mxu0 0
  %889 = vmatmul.mubr.bf16.gmra.mrb[0].mxu0 %v498
  %v890 = vpop.f32.mrb[0].mxu0
  %v891 = vadd.f32 0.0, %v890
  %v892 = vpop.f32.mrb[0].mxu0
  %v893 = vpop.f32.mrb[0].mxu0
  %v894 = vadd.f32 0.0, %v893
  %v895 = vpop.f32.mrb[0].mxu0
  %896 = vmatprep.mubr.bf16.mxu0 0
  %897 = vmatmul.mubr.bf16.gmra.mrb[0].mxu0 %v501
  %v898 = vpop.f32.mrb[0].mxu0
  %v899 = vadd.f32 0.0, %v898
  %v900 = vpop.f32.mrb[0].mxu0
  %v901 = vpop.f32.mrb[0].mxu0
  %v902 = vadd.f32 0.0, %v901
  %v903 = vpop.f32.mrb[0].mxu0
  %904 = vmatprep.mubr.bf16.mxu0 0
  %905 = vmatmul.mubr.bf16.gmra.mrb[0].mxu0 %v504
  %v906 = vpop.f32.mrb[0].mxu0
  %v907 = vadd.f32 0.0, %v906
  %v908 = vpop.f32.mrb[0].mxu0
  %v909 = vpop.f32.mrb[0].mxu0
  %v910 = vadd.f32 0.0, %v909
  %v911 = vpop.f32.mrb[0].mxu0
  %912 = vmatprep.mubr.bf16.mxu0 0
  %913 = vmatmul.mubr.bf16.gmra.mrb[0].mxu0 %v507
  %v914 = vpop.f32.mrb[0].mxu0
  %v915 = vadd.f32 0.0, %v914
  %v916 = vpop.f32.mrb[0].mxu0
  %v917 = vpop.f32.mrb[0].mxu0
  %v918 = vadd.f32 0.0, %v917
  %v919 = vpop.f32.mrb[0].mxu0
  %920 = vmatprep.mubr.bf16.mxu0 0
  %921 = vmatmul.mubr.bf16.gmra.mrb[0].mxu0 %v510
  %v922 = vpop.f32.mrb[0].mxu0
  %v923 = vadd.f32 0.0, %v922
  %v924 = vpop.f32.mrb[0].mxu0
  %v925 = vpop.f32.mrb[0].mxu0
  %v926 = vadd.f32 0.0, %v925
  %v927 = vpop.f32.mrb[0].mxu0
  %928 = vmatprep.mubr.bf16.mxu0 0
  %929 = vmatmul.mubr.bf16.gmra.mrb[0].mxu0 %v513
  %v930 = vpop.f32.mrb[0].mxu0
  %v931 = vadd.f32 0.0, %v930
  %v932 = vpop.f32.mrb[0].mxu0
  %v933 = vpop.f32.mrb[0].mxu0
  %v934 = vadd.f32 0.0, %v933
  %v935 = vpop.f32.mrb[0].mxu0
  %936 = vmatprep.mubr.bf16.mxu0 0
  %937 = vmatmul.mubr.bf16.gmra.mrb[0].mxu0 %v516
  %v938 = vpop.f32.mrb[0].mxu0
  %v939 = vadd.f32 0.0, %v938
  %v940 = vpop.f32.mrb[0].mxu0
  %v941 = vpop.f32.mrb[0].mxu0
  %v942 = vadd.f32 0.0, %v941
  %v943 = vpop.f32.mrb[0].mxu0
  %944 = vmatprep.mubr.bf16.mxu0 0
  %945 = vmatmul.mubr.bf16.gmra.mrb[0].mxu0 %v519
  %v946 = vpop.f32.mrb[0].mxu0
  %v947 = vadd.f32 0.0, %v946
  %v948 = vpop.f32.mrb[0].mxu0
  %v949 = vpop.f32.mrb[0].mxu0
  %v950 = vadd.f32 0.0, %v949
  %v951 = vpop.f32.mrb[0].mxu0
  %952 = vdwg.mxu0
  %s953 = scalar_lea.vmem %s0, 392
  %v954 = vld [vmem:[%s953] sm:$0xf]
  %v955 = vld [vmem:[%s953 + $0x4] sm:$0xf]
  %v956 = vld [vmem:[%s953 + $0x8] sm:$0xf]
  %v957 = vld [vmem:[%s953 + $0xc] sm:$0xf]
  %v958 = vld [vmem:[%s953 + $0x10] sm:$0xf]
  %v959 = vld [vmem:[%s953 + $0x14] sm:$0xf]
  %v960 = vld [vmem:[%s953 + $0x18] sm:$0xf]
  %v961 = vld [vmem:[%s953 + $0x1c] sm:$0xf]
  %v962 = vld [vmem:[%s953 + $0x20] sm:$0xf]
  %v963 = vld [vmem:[%s953 + $0x24] sm:$0xf]
  %v964 = vld [vmem:[%s953 + $0x28] sm:$0xf]
  %v965 = vld [vmem:[%s953 + $0x2c] sm:$0xf]
  %v966 = vld [vmem:[%s953 + $0x30] sm:$0xf]
  %v967 = vld [vmem:[%s953 + $0x34] sm:$0xf]
  %v968 = vld [vmem:[%s953 + $0x38] sm:$0xf]
  %v969 = vld [vmem:[%s953 + $0x3c] sm:$0xf]
  %v970 = vld [vmem:[%s953 + $0x40] sm:$0xf]
  %v971 = vld [vmem:[%s953 + $0x44] sm:$0xf]
  %v972 = vld [vmem:[%s953 + $0x48] sm:$0xf]
  %v973 = vld [vmem:[%s953 + $0x4c] sm:$0xf]
  %v974 = vld [vmem:[%s953 + $0x50] sm:$0xf]
  %v975 = vld [vmem:[%s953 + $0x54] sm:$0xf]
  %v976 = vld [vmem:[%s953 + $0x58] sm:$0xf]
  %v977 = vld [vmem:[%s953 + $0x5c] sm:$0xf]
  %v978 = vld [vmem:[%s953 + $0x60] sm:$0xf]
  %v979 = vld [vmem:[%s953 + $0x64] sm:$0xf]
  %v980 = vld [vmem:[%s953 + $0x68] sm:$0xf]
  %v981 = vld [vmem:[%s953 + $0x6c] sm:$0xf]
  %v982 = vld [vmem:[%s953 + $0x70] sm:$0xf]
  %v983 = vld [vmem:[%s953 + $0x74] sm:$0xf]
  %v984 = vld [vmem:[%s953 + $0x78] sm:$0xf]
  %v985 = vld [vmem:[%s953 + $0x7c] sm:$0xf]
  %v986 = vld [vmem:[%s953 + $0x80] sm:$0xf]
  %v987 = vld [vmem:[%s953 + $0x84] sm:$0xf]
  %v988 = vld [vmem:[%s953 + $0x88] sm:$0xf]
  %v989 = vld [vmem:[%s953 + $0x8c] sm:$0xf]
  %v990 = vld [vmem:[%s953 + $0x90] sm:$0xf]
  %v991 = vld [vmem:[%s953 + $0x94] sm:$0xf]
  %v992 = vld [vmem:[%s953 + $0x98] sm:$0xf]
  %v993 = vld [vmem:[%s953 + $0x9c] sm:$0xf]
  %v994 = vld [vmem:[%s953 + $0xa0] sm:$0xf]
  %v995 = vld [vmem:[%s953 + $0xa4] sm:$0xf]
  %v996 = vld [vmem:[%s953 + $0xa8] sm:$0xf]
  %v997 = vld [vmem:[%s953 + $0xac] sm:$0xf]
  %v998 = vld [vmem:[%s953 + $0xb0] sm:$0xf]
  %v999 = vld [vmem:[%s953 + $0xb4] sm:$0xf]
  %v1000 = vld [vmem:[%s953 + $0xb8] sm:$0xf]
  %v1001 = vld [vmem:[%s953 + $0xbc] sm:$0xf]
  %v1002 = vld [vmem:[%s953 + $0xc0] sm:$0xf]
  %v1003 = vld [vmem:[%s953 + $0xc4] sm:$0xf]
  %v1004 = vld [vmem:[%s953 + $0xc8] sm:$0xf]
  %v1005 = vld [vmem:[%s953 + $0xcc] sm:$0xf]
  %v1006 = vld [vmem:[%s953 + $0xd0] sm:$0xf]
  %v1007 = vld [vmem:[%s953 + $0xd4] sm:$0xf]
  %v1008 = vld [vmem:[%s953 + $0xd8] sm:$0xf]
  %v1009 = vld [vmem:[%s953 + $0xdc] sm:$0xf]
  %v1010 = vld [vmem:[%s953 + $0xe0] sm:$0xf]
  %v1011 = vld [vmem:[%s953 + $0xe4] sm:$0xf]
  %v1012 = vld [vmem:[%s953 + $0xe8] sm:$0xf]
  %v1013 = vld [vmem:[%s953 + $0xec] sm:$0xf]
  %v1014 = vld [vmem:[%s953 + $0xf0] sm:$0xf]
  %v1015 = vld [vmem:[%s953 + $0xf4] sm:$0xf]
  %v1016 = vld [vmem:[%s953 + $0xf8] sm:$0xf]
  %v1017 = vld [vmem:[%s953 + $0xfc] sm:$0xf]
  %v1018 = vld [vmem:[%s953 + $0x100] sm:$0xf]
  %v1019 = vld [vmem:[%s953 + $0x104] sm:$0xf]
  %v1020 = vld [vmem:[%s953 + $0x108] sm:$0xf]
  %v1021 = vld [vmem:[%s953 + $0x10c] sm:$0xf]
  %v1022 = vld [vmem:[%s953 + $0x110] sm:$0xf]
  %v1023 = vld [vmem:[%s953 + $0x114] sm:$0xf]
  %v1024 = vld [vmem:[%s953 + $0x118] sm:$0xf]
  %v1025 = vld [vmem:[%s953 + $0x11c] sm:$0xf]
  %v1026 = vld [vmem:[%s953 + $0x120] sm:$0xf]
  %v1027 = vld [vmem:[%s953 + $0x124] sm:$0xf]
  %v1028 = vld [vmem:[%s953 + $0x128] sm:$0xf]
  %v1029 = vld [vmem:[%s953 + $0x12c] sm:$0xf]
  %v1030 = vld [vmem:[%s953 + $0x130] sm:$0xf]
  %v1031 = vld [vmem:[%s953 + $0x134] sm:$0xf]
  %v1032 = vld [vmem:[%s953 + $0x138] sm:$0xf]
  %v1033 = vld [vmem:[%s953 + $0x13c] sm:$0xf]
  %v1034 = vld [vmem:[%s953 + $0x140] sm:$0xf]
  %v1035 = vld [vmem:[%s953 + $0x144] sm:$0xf]
  %v1036 = vld [vmem:[%s953 + $0x148] sm:$0xf]
  %v1037 = vld [vmem:[%s953 + $0x14c] sm:$0xf]
  %v1038 = vld [vmem:[%s953 + $0x150] sm:$0xf]
  %v1039 = vld [vmem:[%s953 + $0x154] sm:$0xf]
  %v1040 = vld [vmem:[%s953 + $0x158] sm:$0xf]
  %v1041 = vld [vmem:[%s953 + $0x15c] sm:$0xf]
  %v1042 = vld [vmem:[%s953 + $0x160] sm:$0xf]
  %v1043 = vld [vmem:[%s953 + $0x164] sm:$0xf]
  %v1044 = vld [vmem:[%s953 + $0x168] sm:$0xf]
  %v1045 = vld [vmem:[%s953 + $0x16c] sm:$0xf]
  %v1046 = vld [vmem:[%s953 + $0x170] sm:$0xf]
  %v1047 = vld [vmem:[%s953 + $0x174] sm:$0xf]
  %v1048 = vld [vmem:[%s953 + $0x178] sm:$0xf]
  %v1049 = vld [vmem:[%s953 + $0x17c] sm:$0xf]
  %v1050 = vld [vmem:[%s953 + $0x180] sm:$0xf]
  %v1051 = vld [vmem:[%s953 + $0x184] sm:$0xf]
  %v1150 = vunpack.c.l.b16 %v954
  %v1151 = vunpack.c.l.b16 %v955
  %v1152 = vunpack.c.l.b16 %v956
  %v1153 = vunpack.c.l.b16 %v957
  %v1154 = vunpack.c.l.b16 %v958
  %v1155 = vunpack.c.l.b16 %v959
  %v1156 = vunpack.c.l.b16 %v960
  %v1157 = vunpack.c.l.b16 %v961
  %v1158 = vunpack.c.l.b16 %v962
  %v1159 = vunpack.c.l.b16 %v963
  %v1160 = vunpack.c.l.b16 %v964
  %v1161 = vunpack.c.l.b16 %v965
  %v1162 = vunpack.c.l.b16 %v966
  %v1163 = vunpack.c.l.b16 %v967
  %v1164 = vunpack.c.l.b16 %v968
  %v1165 = vunpack.c.l.b16 %v969
  %v1166 = vunpack.c.l.b16 %v970
  %v1167 = vunpack.c.l.b16 %v971
  %v1168 = vunpack.c.l.b16 %v972
  %v1169 = vunpack.c.l.b16 %v973
  %v1170 = vunpack.c.l.b16 %v974
  %v1171 = vunpack.c.l.b16 %v975
  %v1172 = vunpack.c.l.b16 %v976
  %v1173 = vunpack.c.l.b16 %v977
  %v1174 = vunpack.c.l.b16 %v978
  %v1175 = vunpack.c.l.b16 %v979
  %v1176 = vunpack.c.l.b16 %v980
  %v1177 = vunpack.c.l.b16 %v981
  %v1178 = vunpack.c.l.b16 %v982
  %v1179 = vunpack.c.l.b16 %v983
  %v1180 = vunpack.c.l.b16 %v984
  %v1181 = vunpack.c.l.b16 %v985
  %v1182 = vunpack.c.l.b16 %v986
  %v1183 = vunpack.c.l.b16 %v987
  %v1184 = vunpack.c.l.b16 %v988
  %v1185 = vunpack.c.l.b16 %v989
  %v1186 = vunpack.c.l.b16 %v990
  %v1187 = vunpack.c.l.b16 %v991
  %v1188 = vunpack.c.l.b16 %v992
  %v1189 = vunpack.c.l.b16 %v993
  %v1190 = vunpack.c.l.b16 %v994
  %v1191 = vunpack.c.l.b16 %v995
  %v1192 = vunpack.c.l.b16 %v996
  %v1193 = vunpack.c.l.b16 %v997
  %v1194 = vunpack.c.l.b16 %v998
  %v1195 = vunpack.c.l.b16 %v999
  %v1196 = vunpack.c.l.b16 %v1000
  %v1197 = vunpack.c.l.b16 %v1001
  %v1198 = vunpack.c.l.b16 %v1002
  %v1199 = vunpack.c.l.b16 %v1003
  %v1200 = vunpack.c.l.b16 %v1004
  %v1201 = vunpack.c.l.b16 %v1005
  %v1202 = vunpack.c.l.b16 %v1006
  %v1203 = vunpack.c.l.b16 %v1007
  %v1204 = vunpack.c.l.b16 %v1008
  %v1205 = vunpack.c.l.b16 %v1009
  %v1206 = vunpack.c.l.b16 %v1010
  %v1207 = vunpack.c.l.b16 %v1011
  %v1208 = vunpack.c.l.b16 %v1012
  %v1209 = vunpack.c.l.b16 %v1013
  %v1210 = vunpack.c.l.b16 %v1014
  %v1211 = vunpack.c.l.b16 %v1015
  %v1212 = vunpack.c.l.b16 %v1016
  %v1213 = vunpack.c.l.b16 %v1017
  %v1214 = vunpack.c.l.b16 %v1018
  %v1215 = vunpack.c.l.b16 %v1019
  %v1216 = vunpack.c.l.b16 %v1020
  %v1217 = vunpack.c.l.b16 %v1021
  %v1218 = vunpack.c.l.b16 %v1022
  %v1219 = vunpack.c.l.b16 %v1023
  %v1220 = vunpack.c.l.b16 %v1024
  %v1221 = vunpack.c.l.b16 %v1025
  %v1222 = vunpack.c.l.b16 %v1026
  %v1223 = vunpack.c.l.b16 %v1027
  %v1224 = vunpack.c.l.b16 %v1028
  %v1225 = vunpack.c.l.b16 %v1029
  %v1226 = vunpack.c.l.b16 %v1030
  %v1227 = vunpack.c.l.b16 %v1031
  %v1228 = vunpack.c.l.b16 %v1032
  %v1229 = vunpack.c.l.b16 %v1033
  %v1230 = vunpack.c.l.b16 %v1034
  %v1231 = vunpack.c.l.b16 %v1035
  %v1232 = vunpack.c.l.b16 %v1036
  %v1233 = vunpack.c.l.b16 %v1037
  %v1234 = vunpack.c.l.b16 %v1038
  %v1235 = vunpack.c.l.b16 %v1039
  %v1236 = vunpack.c.l.b16 %v1040
  %v1237 = vunpack.c.l.b16 %v1041
  %v1238 = vunpack.c.l.b16 %v1042
  %v1239 = vunpack.c.l.b16 %v1043
  %v1240 = vunpack.c.l.b16 %v1044
  %v1241 = vunpack.c.l.b16 %v1045
  %v1242 = vunpack.c.l.b16 %v1046
  %v1243 = vunpack.c.l.b16 %v1047
  %v1244 = vunpack.c.l.b16 %v1048
  %v1245 = vunpack.c.l.b16 %v1049
  %v1246 = vunpack.c.l.b16 %v1050
  %v1247 = vunpack.c.l.b16 %v1051
  %v1248 = vpack.c.b16 %v1151, %v1150
  %v1249 = vpack.c.b16 %v1153, %v1152
  %v1250 = vpack.c.b16 %v1155, %v1154
  %v1251 = vpack.c.b16 %v1157, %v1156
  %v1252 = vpack.c.b16 %v1159, %v1158
  %v1253 = vpack.c.b16 %v1161, %v1160
  %v1254 = vpack.c.b16 %v1163, %v1162
  %v1255 = vpack.c.b16 %v1165, %v1164
  %v1256 = vpack.c.b16 %v1167, %v1166
  %v1257 = vpack.c.b16 %v1169, %v1168
  %v1258 = vpack.c.b16 %v1171, %v1170
  %v1259 = vpack.c.b16 %v1173, %v1172
  %v1260 = vpack.c.b16 %v1175, %v1174
  %v1261 = vpack.c.b16 %v1177, %v1176
  %v1262 = vpack.c.b16 %v1179, %v1178
  %v1263 = vpack.c.b16 %v1181, %v1180
  %v1264 = vpack.c.b16 %v1183, %v1182
  %v1265 = vpack.c.b16 %v1185, %v1184
  %v1266 = vpack.c.b16 %v1187, %v1186
  %v1267 = vpack.c.b16 %v1189, %v1188
  %v1268 = vpack.c.b16 %v1191, %v1190
  %v1269 = vpack.c.b16 %v1193, %v1192
  %v1270 = vpack.c.b16 %v1195, %v1194
  %v1271 = vpack.c.b16 %v1197, %v1196
  %v1272 = vpack.c.b16 %v1199, %v1198
  %v1273 = vpack.c.b16 %v1201, %v1200
  %v1274 = vpack.c.b16 %v1203, %v1202
  %v1275 = vpack.c.b16 %v1205, %v1204
  %v1276 = vpack.c.b16 %v1207, %v1206
  %v1277 = vpack.c.b16 %v1209, %v1208
  %v1278 = vpack.c.b16 %v1211, %v1210
  %v1279 = vpack.c.b16 %v1213, %v1212
  %v1280 = vpack.c.b16 %v1215, %v1214
  %v1281 = vpack.c.b16 %v1217, %v1216
  %v1282 = vpack.c.b16 %v1219, %v1218
  %v1283 = vpack.c.b16 %v1221, %v1220
  %v1284 = vpack.c.b16 %v1223, %v1222
  %v1285 = vpack.c.b16 %v1225, %v1224
  %v1286 = vpack.c.b16 %v1227, %v1226
  %v1287 = vpack.c.b16 %v1229, %v1228
  %v1288 = vpack.c.b16 %v1231, %v1230
  %v1289 = vpack.c.b16 %v1233, %v1232
  %v1290 = vpack.c.b16 %v1235, %v1234
  %v1291 = vpack.c.b16 %v1237, %v1236
  %v1292 = vpack.c.b16 %v1239, %v1238
  %v1293 = vpack.c.b16 %v1241, %v1240
  %v1294 = vpack.c.b16 %v1243, %v1242
  %v1295 = vpack.c.b16 %v1245, %v1244
  %v1296 = vpack.c.b16 %v1247, %v1246
  %v1298 = vsel %vm373, %v1248, 0
  %v1301 = vsel %vm373, %v1249, 0
  %v1304 = vsel %vm373, %v1250, 0
  %v1307 = vsel %vm373, %v1251, 0
  %v1310 = vsel %vm373, %v1252, 0
  %v1313 = vsel %vm373, %v1253, 0
  %v1316 = vsel %vm373, %v1254, 0
  %v1319 = vsel %vm373, %v1255, 0
  %v1322 = vsel %vm373, %v1256, 0
  %v1325 = vsel %vm373, %v1257, 0
  %v1328 = vsel %vm373, %v1258, 0
  %v1331 = vsel %vm373, %v1259, 0
  %v1334 = vsel %vm373, %v1260, 0
  %v1337 = vsel %vm373, %v1261, 0
  %v1340 = vsel %vm373, %v1262, 0
  %v1343 = vsel %vm373, %v1263, 0
  %v1346 = vsel %vm373, %v1264, 0
  %v1349 = vsel %vm373, %v1265, 0
  %v1352 = vsel %vm373, %v1266, 0
  %v1355 = vsel %vm373, %v1267, 0
  %v1358 = vsel %vm373, %v1268, 0
  %v1361 = vsel %vm373, %v1269, 0
  %v1364 = vsel %vm373, %v1270, 0
  %v1367 = vsel %vm373, %v1271, 0
  %v1370 = vsel %vm373, %v1272, 0
  %v1373 = vsel %vm373, %v1273, 0
  %v1376 = vsel %vm373, %v1274, 0
  %v1379 = vsel %vm373, %v1275, 0
  %v1382 = vsel %vm373, %v1276, 0
  %v1385 = vsel %vm373, %v1277, 0
  %v1388 = vsel %vm373, %v1278, 0
  %v1391 = vsel %vm373, %v1279, 0
  %v1394 = vsel %vm373, %v1280, 0
  %v1397 = vsel %vm373, %v1281, 0
  %v1400 = vsel %vm373, %v1282, 0
  %v1403 = vsel %vm373, %v1283, 0
  %v1406 = vsel %vm373, %v1284, 0
  %v1409 = vsel %vm373, %v1285, 0
  %v1412 = vsel %vm373, %v1286, 0
  %v1415 = vsel %vm373, %v1287, 0
  %v1418 = vsel %vm373, %v1288, 0
  %v1421 = vsel %vm373, %v1289, 0
  %v1424 = vsel %vm373, %v1290, 0
  %v1427 = vsel %vm373, %v1291, 0
  %v1430 = vsel %vm373, %v1292, 0
  %v1433 = vsel %vm373, %v1293, 0
  %v1436 = vsel %vm373, %v1294, 0
  %v1439 = vsel %vm373, %v1295, 0
  %v1442 = vsel %vm373, %v1296, 0
  %1444 = vmatprep.subr.bf16.mxu0 0
  %1445 = vmatpush1.bf16.msra.mxu0 %v370
  %1446 = vmatprep.subr.bf16.mxu0 0
  %1447 = vmatpush1.bf16.msra.mxu0 %v526
  %1448 = vmatprep.subr.bf16.mxu0 0
  %1449 = vmatpush1.bf16.msra.mxu0 0
  %1450 = vmatprep.subr.bf16.mxu0 0
  %1451 = vmatpush1.bf16.msra.mxu0 0
  %1452 = vmatprep.subr.bf16.mxu0 0
  %1453 = vmatpush1.bf16.msra.mxu0 0
  %1454 = vmatprep.subr.bf16.mxu0 0
  %1455 = vmatpush1.bf16.msra.mxu0 0
  %1456 = vmatprep.subr.bf16.mxu0 0
  %1457 = vmatpush1.bf16.msra.mxu0 0
  %1458 = vmatprep.subr.bf16.mxu0 0
  %1459 = vmatpush1.bf16.msra.mxu0 0
  %1460 = vmatprep.subr.bf16.mxu0 0
  %1461 = vmatpush1.bf16.msra.mxu0 0
  %1462 = vmatprep.subr.bf16.mxu0 0
  %1463 = vmatpush1.bf16.msra.mxu0 0
  %1464 = vmatprep.subr.bf16.mxu0 0
  %1465 = vmatpush1.bf16.msra.mxu0 0
  %1466 = vmatprep.subr.bf16.mxu0 0
  %1467 = vmatpush1.bf16.msra.mxu0 0
  %1468 = vmatprep.subr.bf16.mxu0 0
  %1469 = vmatpush1.bf16.msra.mxu0 0
  %1470 = vmatprep.subr.bf16.mxu0 0
  %1471 = vmatpush1.bf16.msra.mxu0 0
  %1472 = vmatprep.subr.bf16.mxu0 0
  %1473 = vmatpush1.bf16.msra.mxu0 0
  %1474 = vmatprep.subr.bf16.mxu0 0
  %1475 = vmatpush1.bf16.msra.mxu0 0
  %1476 = vmatprep.mubr.bf16.mxu0 0
  %1477 = vmatmul.mubr.bf16.gmra.mrb[0].mxu0 %v1298
  %v1478 = vpop.f32.mrb[0].mxu0
  %v1479 = vadd.f32 0.0, %v1478
  %v1480 = vpop.f32.mrb[0].mxu0
  %v1481 = vpop.f32.mrb[0].mxu0
  %v1482 = vadd.f32 0.0, %v1481
  %v1483 = vpop.f32.mrb[0].mxu0
  %1484 = vmatprep.mubr.bf16.mxu0 0
  %1485 = vmatmul.mubr.bf16.gmra.mrb[0].mxu0 %v1301
  %v1486 = vpop.f32.mrb[0].mxu0
  %v1487 = vadd.f32 0.0, %v1486
  %v1488 = vpop.f32.mrb[0].mxu0
  %v1489 = vpop.f32.mrb[0].mxu0
  %v1490 = vadd.f32 0.0, %v1489
  %v1491 = vpop.f32.mrb[0].mxu0
  %1492 = vmatprep.mubr.bf16.mxu0 0
  %1493 = vmatmul.mubr.bf16.gmra.mrb[0].mxu0 %v1304
  %v1494 = vpop.f32.mrb[0].mxu0
  %v1495 = vadd.f32 0.0, %v1494
  %v1496 = vpop.f32.mrb[0].mxu0
  %v1497 = vpop.f32.mrb[0].mxu0
  %v1498 = vadd.f32 0.0, %v1497
  %v1499 = vpop.f32.mrb[0].mxu0
  %1500 = vmatprep.mubr.bf16.mxu0 0
  %1501 = vmatmul.mubr.bf16.gmra.mrb[0].mxu0 %v1307
  %v1502 = vpop.f32.mrb[0].mxu0
  %v1503 = vadd.f32 0.0, %v1502
  %v1504 = vpop.f32.mrb[0].mxu0
  %v1505 = vpop.f32.mrb[0].mxu0
  %v1506 = vadd.f32 0.0, %v1505
  %v1507 = vpop.f32.mrb[0].mxu0
  %1508 = vmatprep.mubr.bf16.mxu0 0
  %1509 = vmatmul.mubr.bf16.gmra.mrb[0].mxu0 %v1310
  %v1510 = vpop.f32.mrb[0].mxu0
  %v1511 = vadd.f32 0.0, %v1510
  %v1512 = vpop.f32.mrb[0].mxu0
  %v1513 = vpop.f32.mrb[0].mxu0
  %v1514 = vadd.f32 0.0, %v1513
  %v1515 = vpop.f32.mrb[0].mxu0
  %1516 = vmatprep.mubr.bf16.mxu0 0
  %1517 = vmatmul.mubr.bf16.gmra.mrb[0].mxu0 %v1313
  %v1518 = vpop.f32.mrb[0].mxu0
  %v1519 = vadd.f32 0.0, %v1518
  %v1520 = vpop.f32.mrb[0].mxu0
  %v1521 = vpop.f32.mrb[0].mxu0
  %v1522 = vadd.f32 0.0, %v1521
  %v1523 = vpop.f32.mrb[0].mxu0
  %1524 = vmatprep.mubr.bf16.mxu0 0
  %1525 = vmatmul.mubr.bf16.gmra.mrb[0].mxu0 %v1316
  %v1526 = vpop.f32.mrb[0].mxu0
  %v1527 = vadd.f32 0.0, %v1526
  %v1528 = vpop.f32.mrb[0].mxu0
  %v1529 = vpop.f32.mrb[0].mxu0
  %v1530 = vadd.f32 0.0, %v1529
  %v1531 = vpop.f32.mrb[0].mxu0
  %1532 = vmatprep.mubr.bf16.mxu0 0
  %1533 = vmatmul.mubr.bf16.gmra.mrb[0].mxu0 %v1319
  %v1534 = vpop.f32.mrb[0].mxu0
  %v1535 = vadd.f32 0.0, %v1534
  %v1536 = vpop.f32.mrb[0].mxu0
  %v1537 = vpop.f32.mrb[0].mxu0
  %v1538 = vadd.f32 0.0, %v1537
  %v1539 = vpop.f32.mrb[0].mxu0
  %1540 = vmatprep.mubr.bf16.mxu0 0
  %1541 = vmatmul.mubr.bf16.gmra.mrb[0].mxu0 %v1322
  %v1542 = vpop.f32.mrb[0].mxu0
  %v1543 = vadd.f32 0.0, %v1542
  %v1544 = vpop.f32.mrb[0].mxu0
  %v1545 = vpop.f32.mrb[0].mxu0
  %v1546 = vadd.f32 0.0, %v1545
  %v1547 = vpop.f32.mrb[0].mxu0
  %1548 = vmatprep.mubr.bf16.mxu0 0
  %1549 = vmatmul.mubr.bf16.gmra.mrb[0].mxu0 %v1325
  %v1550 = vpop.f32.mrb[0].mxu0
  %v1551 = vadd.f32 0.0, %v1550
  %v1552 = vpop.f32.mrb[0].mxu0
  %v1553 = vpop.f32.mrb[0].mxu0
  %v1554 = vadd.f32 0.0, %v1553
  %v1555 = vpop.f32.mrb[0].mxu0
  %1556 = vmatprep.mubr.bf16.mxu0 0
  %1557 = vmatmul.mubr.bf16.gmra.mrb[0].mxu0 %v1328
  %v1558 = vpop.f32.mrb[0].mxu0
  %v1559 = vadd.f32 0.0, %v1558
  %v1560 = vpop.f32.mrb[0].mxu0
  %v1561 = vpop.f32.mrb[0].mxu0
  %v1562 = vadd.f32 0.0, %v1561
  %v1563 = vpop.f32.mrb[0].mxu0
  %1564 = vmatprep.mubr.bf16.mxu0 0
  %1565 = vmatmul.mubr.bf16.gmra.mrb[0].mxu0 %v1331
  %v1566 = vpop.f32.mrb[0].mxu0
  %v1567 = vadd.f32 0.0, %v1566
  %v1568 = vpop.f32.mrb[0].mxu0
  %v1569 = vpop.f32.mrb[0].mxu0
  %v1570 = vadd.f32 0.0, %v1569
  %v1571 = vpop.f32.mrb[0].mxu0
  %1572 = vmatprep.mubr.bf16.mxu0 0
  %1573 = vmatmul.mubr.bf16.gmra.mrb[0].mxu0 %v1334
  %v1574 = vpop.f32.mrb[0].mxu0
  %v1575 = vadd.f32 0.0, %v1574
  %v1576 = vpop.f32.mrb[0].mxu0
  %v1577 = vpop.f32.mrb[0].mxu0
  %v1578 = vadd.f32 0.0, %v1577
  %v1579 = vpop.f32.mrb[0].mxu0
  %1580 = vmatprep.mubr.bf16.mxu0 0
  %1581 = vmatmul.mubr.bf16.gmra.mrb[0].mxu0 %v1337
  %v1582 = vpop.f32.mrb[0].mxu0
  %v1583 = vadd.f32 0.0, %v1582
  %v1584 = vpop.f32.mrb[0].mxu0
  %v1585 = vpop.f32.mrb[0].mxu0
  %v1586 = vadd.f32 0.0, %v1585
  %v1587 = vpop.f32.mrb[0].mxu0
  %1588 = vmatprep.mubr.bf16.mxu0 0
  %1589 = vmatmul.mubr.bf16.gmra.mrb[0].mxu0 %v1340
  %v1590 = vpop.f32.mrb[0].mxu0
  %v1591 = vadd.f32 0.0, %v1590
  %v1592 = vpop.f32.mrb[0].mxu0
  %v1593 = vpop.f32.mrb[0].mxu0
  %v1594 = vadd.f32 0.0, %v1593
  %v1595 = vpop.f32.mrb[0].mxu0
  %1596 = vmatprep.mubr.bf16.mxu0 0
  %1597 = vmatmul.mubr.bf16.gmra.mrb[0].mxu0 %v1343
  %v1598 = vpop.f32.mrb[0].mxu0
  %v1599 = vadd.f32 0.0, %v1598
  %v1600 = vpop.f32.mrb[0].mxu0
  %v1601 = vpop.f32.mrb[0].mxu0
  %v1602 = vadd.f32 0.0, %v1601
  %v1603 = vpop.f32.mrb[0].mxu0
  %1604 = vmatprep.mubr.bf16.mxu0 0
  %1605 = vmatmul.mubr.bf16.gmra.mrb[0].mxu0 %v1346
  %v1606 = vpop.f32.mrb[0].mxu0
  %v1607 = vadd.f32 0.0, %v1606
  %v1608 = vpop.f32.mrb[0].mxu0
  %v1609 = vpop.f32.mrb[0].mxu0
  %v1610 = vadd.f32 0.0, %v1609
  %v1611 = vpop.f32.mrb[0].mxu0
  %1612 = vmatprep.mubr.bf16.mxu0 0
  %1613 = vmatmul.mubr.bf16.gmra.mrb[0].mxu0 %v1349
  %v1614 = vpop.f32.mrb[0].mxu0
  %v1615 = vadd.f32 0.0, %v1614
  %v1616 = vpop.f32.mrb[0].mxu0
  %v1617 = vpop.f32.mrb[0].mxu0
  %v1618 = vadd.f32 0.0, %v1617
  %v1619 = vpop.f32.mrb[0].mxu0
  %1620 = vmatprep.mubr.bf16.mxu0 0
  %1621 = vmatmul.mubr.bf16.gmra.mrb[0].mxu0 %v1352
  %v1622 = vpop.f32.mrb[0].mxu0
  %v1623 = vadd.f32 0.0, %v1622
  %v1624 = vpop.f32.mrb[0].mxu0
  %v1625 = vpop.f32.mrb[0].mxu0
  %v1626 = vadd.f32 0.0, %v1625
  %v1627 = vpop.f32.mrb[0].mxu0
  %1628 = vmatprep.mubr.bf16.mxu0 0
  %1629 = vmatmul.mubr.bf16.gmra.mrb[0].mxu0 %v1355
  %v1630 = vpop.f32.mrb[0].mxu0
  %v1631 = vadd.f32 0.0, %v1630
  %v1632 = vpop.f32.mrb[0].mxu0
  %v1633 = vpop.f32.mrb[0].mxu0
  %v1634 = vadd.f32 0.0, %v1633
  %v1635 = vpop.f32.mrb[0].mxu0
  %1636 = vmatprep.mubr.bf16.mxu0 0
  %1637 = vmatmul.mubr.bf16.gmra.mrb[0].mxu0 %v1358
  %v1638 = vpop.f32.mrb[0].mxu0
  %v1639 = vadd.f32 0.0, %v1638
  %v1640 = vpop.f32.mrb[0].mxu0
  %v1641 = vpop.f32.mrb[0].mxu0
  %v1642 = vadd.f32 0.0, %v1641
  %v1643 = vpop.f32.mrb[0].mxu0
  %1644 = vmatprep.mubr.bf16.mxu0 0
  %1645 = vmatmul.mubr.bf16.gmra.mrb[0].mxu0 %v1361
  %v1646 = vpop.f32.mrb[0].mxu0
  %v1647 = vadd.f32 0.0, %v1646
  %v1648 = vpop.f32.mrb[0].mxu0
  %v1649 = vpop.f32.mrb[0].mxu0
  %v1650 = vadd.f32 0.0, %v1649
  %v1651 = vpop.f32.mrb[0].mxu0
  %1652 = vmatprep.mubr.bf16.mxu0 0
  %1653 = vmatmul.mubr.bf16.gmra.mrb[0].mxu0 %v1364
  %v1654 = vpop.f32.mrb[0].mxu0
  %v1655 = vadd.f32 0.0, %v1654
  %v1656 = vpop.f32.mrb[0].mxu0
  %v1657 = vpop.f32.mrb[0].mxu0
  %v1658 = vadd.f32 0.0, %v1657
  %v1659 = vpop.f32.mrb[0].mxu0
  %1660 = vmatprep.mubr.bf16.mxu0 0
  %1661 = vmatmul.mubr.bf16.gmra.mrb[0].mxu0 %v1367
  %v1662 = vpop.f32.mrb[0].mxu0
  %v1663 = vadd.f32 0.0, %v1662
  %v1664 = vpop.f32.mrb[0].mxu0
  %v1665 = vpop.f32.mrb[0].mxu0
  %v1666 = vadd.f32 0.0, %v1665
  %v1667 = vpop.f32.mrb[0].mxu0
  %1668 = vmatprep.mubr.bf16.mxu0 0
  %1669 = vmatmul.mubr.bf16.gmra.mrb[0].mxu0 %v1370
  %v1670 = vpop.f32.mrb[0].mxu0
  %v1671 = vadd.f32 0.0, %v1670
  %v1672 = vpop.f32.mrb[0].mxu0
  %v1673 = vpop.f32.mrb[0].mxu0
  %v1674 = vadd.f32 0.0, %v1673
  %v1675 = vpop.f32.mrb[0].mxu0
  %1676 = vmatprep.mubr.bf16.mxu0 0
  %1677 = vmatmul.mubr.bf16.gmra.mrb[0].mxu0 %v1373
  %v1678 = vpop.f32.mrb[0].mxu0
  %v1679 = vadd.f32 0.0, %v1678
  %v1680 = vpop.f32.mrb[0].mxu0
  %v1681 = vpop.f32.mrb[0].mxu0
  %v1682 = vadd.f32 0.0, %v1681
  %v1683 = vpop.f32.mrb[0].mxu0
  %1684 = vmatprep.mubr.bf16.mxu0 0
  %1685 = vmatmul.mubr.bf16.gmra.mrb[0].mxu0 %v1376
  %v1686 = vpop.f32.mrb[0].mxu0
  %v1687 = vadd.f32 0.0, %v1686
  %v1688 = vpop.f32.mrb[0].mxu0
  %v1689 = vpop.f32.mrb[0].mxu0
  %v1690 = vadd.f32 0.0, %v1689
  %v1691 = vpop.f32.mrb[0].mxu0
  %1692 = vmatprep.mubr.bf16.mxu0 0
  %1693 = vmatmul.mubr.bf16.gmra.mrb[0].mxu0 %v1379
  %v1694 = vpop.f32.mrb[0].mxu0
  %v1695 = vadd.f32 0.0, %v1694
  %v1696 = vpop.f32.mrb[0].mxu0
  %v1697 = vpop.f32.mrb[0].mxu0
  %v1698 = vadd.f32 0.0, %v1697
  %v1699 = vpop.f32.mrb[0].mxu0
  %1700 = vmatprep.mubr.bf16.mxu0 0
  %1701 = vmatmul.mubr.bf16.gmra.mrb[0].mxu0 %v1382
  %v1702 = vpop.f32.mrb[0].mxu0
  %v1703 = vadd.f32 0.0, %v1702
  %v1704 = vpop.f32.mrb[0].mxu0
  %v1705 = vpop.f32.mrb[0].mxu0
  %v1706 = vadd.f32 0.0, %v1705
  %v1707 = vpop.f32.mrb[0].mxu0
  %1708 = vmatprep.mubr.bf16.mxu0 0
  %1709 = vmatmul.mubr.bf16.gmra.mrb[0].mxu0 %v1385
  %v1710 = vpop.f32.mrb[0].mxu0
  %v1711 = vadd.f32 0.0, %v1710
  %v1712 = vpop.f32.mrb[0].mxu0
  %v1713 = vpop.f32.mrb[0].mxu0
  %v1714 = vadd.f32 0.0, %v1713
  %v1715 = vpop.f32.mrb[0].mxu0
  %1716 = vmatprep.mubr.bf16.mxu0 0
  %1717 = vmatmul.mubr.bf16.gmra.mrb[0].mxu0 %v1388
  %v1718 = vpop.f32.mrb[0].mxu0
  %v1719 = vadd.f32 0.0, %v1718
  %v1720 = vpop.f32.mrb[0].mxu0
  %v1721 = vpop.f32.mrb[0].mxu0
  %v1722 = vadd.f32 0.0, %v1721
  %v1723 = vpop.f32.mrb[0].mxu0
  %1724 = vmatprep.mubr.bf16.mxu0 0
  %1725 = vmatmul.mubr.bf16.gmra.mrb[0].mxu0 %v1391
  %v1726 = vpop.f32.mrb[0].mxu0
  %v1727 = vadd.f32 0.0, %v1726
  %v1728 = vpop.f32.mrb[0].mxu0
  %v1729 = vpop.f32.mrb[0].mxu0
  %v1730 = vadd.f32 0.0, %v1729
  %v1731 = vpop.f32.mrb[0].mxu0
  %1732 = vmatprep.mubr.bf16.mxu0 0
  %1733 = vmatmul.mubr.bf16.gmra.mrb[0].mxu0 %v1394
  %v1734 = vpop.f32.mrb[0].mxu0
  %v1735 = vadd.f32 0.0, %v1734
  %v1736 = vpop.f32.mrb[0].mxu0
  %v1737 = vpop.f32.mrb[0].mxu0
  %v1738 = vadd.f32 0.0, %v1737
  %v1739 = vpop.f32.mrb[0].mxu0
  %1740 = vmatprep.mubr.bf16.mxu0 0
  %1741 = vmatmul.mubr.bf16.gmra.mrb[0].mxu0 %v1397
  %v1742 = vpop.f32.mrb[0].mxu0
  %v1743 = vadd.f32 0.0, %v1742
  %v1744 = vpop.f32.mrb[0].mxu0
  %v1745 = vpop.f32.mrb[0].mxu0
  %v1746 = vadd.f32 0.0, %v1745
  %v1747 = vpop.f32.mrb[0].mxu0
  %1748 = vmatprep.mubr.bf16.mxu0 0
  %1749 = vmatmul.mubr.bf16.gmra.mrb[0].mxu0 %v1400
  %v1750 = vpop.f32.mrb[0].mxu0
  %v1751 = vadd.f32 0.0, %v1750
  %v1752 = vpop.f32.mrb[0].mxu0
  %v1753 = vpop.f32.mrb[0].mxu0
  %v1754 = vadd.f32 0.0, %v1753
  %v1755 = vpop.f32.mrb[0].mxu0
  %1756 = vmatprep.mubr.bf16.mxu0 0
  %1757 = vmatmul.mubr.bf16.gmra.mrb[0].mxu0 %v1403
  %v1758 = vpop.f32.mrb[0].mxu0
  %v1759 = vadd.f32 0.0, %v1758
  %v1760 = vpop.f32.mrb[0].mxu0
  %v1761 = vpop.f32.mrb[0].mxu0
  %v1762 = vadd.f32 0.0, %v1761
  %v1763 = vpop.f32.mrb[0].mxu0
  %1764 = vmatprep.mubr.bf16.mxu0 0
  %1765 = vmatmul.mubr.bf16.gmra.mrb[0].mxu0 %v1406
  %v1766 = vpop.f32.mrb[0].mxu0
  %v1767 = vadd.f32 0.0, %v1766
  %v1768 = vpop.f32.mrb[0].mxu0
  %v1769 = vpop.f32.mrb[0].mxu0
  %v1770 = vadd.f32 0.0, %v1769
  %v1771 = vpop.f32.mrb[0].mxu0
  %1772 = vmatprep.mubr.bf16.mxu0 0
  %1773 = vmatmul.mubr.bf16.gmra.mrb[0].mxu0 %v1409
  %v1774 = vpop.f32.mrb[0].mxu0
  %v1775 = vadd.f32 0.0, %v1774
  %v1776 = vpop.f32.mrb[0].mxu0
  %v1777 = vpop.f32.mrb[0].mxu0
  %v1778 = vadd.f32 0.0, %v1777
  %v1779 = vpop.f32.mrb[0].mxu0
  %1780 = vmatprep.mubr.bf16.mxu0 0
  %1781 = vmatmul.mubr.bf16.gmra.mrb[0].mxu0 %v1412
  %v1782 = vpop.f32.mrb[0].mxu0
  %v1783 = vadd.f32 0.0, %v1782
  %v1784 = vpop.f32.mrb[0].mxu0
  %v1785 = vpop.f32.mrb[0].mxu0
  %v1786 = vadd.f32 0.0, %v1785
  %v1787 = vpop.f32.mrb[0].mxu0
  %1788 = vmatprep.mubr.bf16.mxu0 0
  %1789 = vmatmul.mubr.bf16.gmra.mrb[0].mxu0 %v1415
  %v1790 = vpop.f32.mrb[0].mxu0
  %v1791 = vadd.f32 0.0, %v1790
  %v1792 = vpop.f32.mrb[0].mxu0
  %v1793 = vpop.f32.mrb[0].mxu0
  %v1794 = vadd.f32 0.0, %v1793
  %v1795 = vpop.f32.mrb[0].mxu0
  %1796 = vmatprep.mubr.bf16.mxu0 0
  %1797 = vmatmul.mubr.bf16.gmra.mrb[0].mxu0 %v1418
  %v1798 = vpop.f32.mrb[0].mxu0
  %v1799 = vadd.f32 0.0, %v1798
  %v1800 = vpop.f32.mrb[0].mxu0
  %v1801 = vpop.f32.mrb[0].mxu0
  %v1802 = vadd.f32 0.0, %v1801
  %v1803 = vpop.f32.mrb[0].mxu0
  %1804 = vmatprep.mubr.bf16.mxu0 0
  %1805 = vmatmul.mubr.bf16.gmra.mrb[0].mxu0 %v1421
  %v1806 = vpop.f32.mrb[0].mxu0
  %v1807 = vadd.f32 0.0, %v1806
  %v1808 = vpop.f32.mrb[0].mxu0
  %v1809 = vpop.f32.mrb[0].mxu0
  %v1810 = vadd.f32 0.0, %v1809
  %v1811 = vpop.f32.mrb[0].mxu0
  %1812 = vmatprep.mubr.bf16.mxu0 0
  %1813 = vmatmul.mubr.bf16.gmra.mrb[0].mxu0 %v1424
  %v1814 = vpop.f32.mrb[0].mxu0
  %v1815 = vadd.f32 0.0, %v1814
  %v1816 = vpop.f32.mrb[0].mxu0
  %v1817 = vpop.f32.mrb[0].mxu0
  %v1818 = vadd.f32 0.0, %v1817
  %v1819 = vpop.f32.mrb[0].mxu0
  %1820 = vmatprep.mubr.bf16.mxu0 0
  %1821 = vmatmul.mubr.bf16.gmra.mrb[0].mxu0 %v1427
  %v1822 = vpop.f32.mrb[0].mxu0
  %v1823 = vadd.f32 0.0, %v1822
  %v1824 = vpop.f32.mrb[0].mxu0
  %v1825 = vpop.f32.mrb[0].mxu0
  %v1826 = vadd.f32 0.0, %v1825
  %v1827 = vpop.f32.mrb[0].mxu0
  %1828 = vmatprep.mubr.bf16.mxu0 0
  %1829 = vmatmul.mubr.bf16.gmra.mrb[0].mxu0 %v1430
  %v1830 = vpop.f32.mrb[0].mxu0
  %v1831 = vadd.f32 0.0, %v1830
  %v1832 = vpop.f32.mrb[0].mxu0
  %v1833 = vpop.f32.mrb[0].mxu0
  %v1834 = vadd.f32 0.0, %v1833
  %v1835 = vpop.f32.mrb[0].mxu0
  %1836 = vmatprep.mubr.bf16.mxu0 0
  %1837 = vmatmul.mubr.bf16.gmra.mrb[0].mxu0 %v1433
  %v1838 = vpop.f32.mrb[0].mxu0
  %v1839 = vadd.f32 0.0, %v1838
  %v1840 = vpop.f32.mrb[0].mxu0
  %v1841 = vpop.f32.mrb[0].mxu0
  %v1842 = vadd.f32 0.0, %v1841
  %v1843 = vpop.f32.mrb[0].mxu0
  %1844 = vmatprep.mubr.bf16.mxu0 0
  %1845 = vmatmul.mubr.bf16.gmra.mrb[0].mxu0 %v1436
  %v1846 = vpop.f32.mrb[0].mxu0
  %v1847 = vadd.f32 0.0, %v1846
  %v1848 = vpop.f32.mrb[0].mxu0
  %v1849 = vpop.f32.mrb[0].mxu0
  %v1850 = vadd.f32 0.0, %v1849
  %v1851 = vpop.f32.mrb[0].mxu0
  %1852 = vmatprep.mubr.bf16.mxu0 0
  %1853 = vmatmul.mubr.bf16.gmra.mrb[0].mxu0 %v1439
  %v1854 = vpop.f32.mrb[0].mxu0
  %v1855 = vadd.f32 0.0, %v1854
  %v1856 = vpop.f32.mrb[0].mxu0
  %v1857 = vpop.f32.mrb[0].mxu0
  %v1858 = vadd.f32 0.0, %v1857
  %v1859 = vpop.f32.mrb[0].mxu0
  %1860 = vmatprep.mubr.bf16.mxu0 0
  %1861 = vmatmul.mubr.bf16.gmra.mrb[0].mxu0 %v1442
  %v1862 = vpop.f32.mrb[0].mxu0
  %v1863 = vadd.f32 0.0, %v1862
  %v1864 = vpop.f32.mrb[0].mxu0
  %v1865 = vpop.f32.mrb[0].mxu0
  %v1866 = vadd.f32 0.0, %v1865
  %v1867 = vpop.f32.mrb[0].mxu0
  %1868 = vdwg.mxu0
  %v1869 = vmax.f32 %v563, %v1479
  %v1870 = vmax.f32 %v566, %v1482
  %v1871 = vmax.f32 %v571, %v1487
  %v1872 = vmax.f32 %v574, %v1490
  %v1873 = vmax.f32 %v579, %v1495
  %v1874 = vmax.f32 %v582, %v1498
  %v1875 = vmax.f32 %v587, %v1503
  %v1876 = vmax.f32 %v590, %v1506
  %v1877 = vmax.f32 %v595, %v1511
  %v1878 = vmax.f32 %v598, %v1514
  %v1879 = vmax.f32 %v603, %v1519
  %v1880 = vmax.f32 %v606, %v1522
  %v1881 = vmax.f32 %v611, %v1527
  %v1882 = vmax.f32 %v614, %v1530
  %v1883 = vmax.f32 %v619, %v1535
  %v1884 = vmax.f32 %v622, %v1538
  %v1885 = vmax.f32 %v627, %v1543
  %v1886 = vmax.f32 %v630, %v1546
  %v1887 = vmax.f32 %v635, %v1551
  %v1888 = vmax.f32 %v638, %v1554
  %v1889 = vmax.f32 %v643, %v1559
  %v1890 = vmax.f32 %v646, %v1562
  %v1891 = vmax.f32 %v651, %v1567
  %v1892 = vmax.f32 %v654, %v1570
  %v1893 = vmax.f32 %v659, %v1575
  %v1894 = vmax.f32 %v662, %v1578
  %v1895 = vmax.f32 %v667, %v1583
  %v1896 = vmax.f32 %v670, %v1586
  %v1897 = vmax.f32 %v675, %v1591
  %v1898 = vmax.f32 %v678, %v1594
  %v1899 = vmax.f32 %v683, %v1599
  %v1900 = vmax.f32 %v686, %v1602
  %v1901 = vmax.f32 %v691, %v1607
  %v1902 = vmax.f32 %v694, %v1610
  %v1903 = vmax.f32 %v699, %v1615
  %v1904 = vmax.f32 %v702, %v1618
  %v1905 = vmax.f32 %v707, %v1623
  %v1906 = vmax.f32 %v710, %v1626
  %v1907 = vmax.f32 %v715, %v1631
  %v1908 = vmax.f32 %v718, %v1634
  %v1909 = vmax.f32 %v723, %v1639
  %v1910 = vmax.f32 %v726, %v1642
  %v1911 = vmax.f32 %v731, %v1647
  %v1912 = vmax.f32 %v734, %v1650
  %v1913 = vmax.f32 %v739, %v1655
  %v1914 = vmax.f32 %v742, %v1658
  %v1915 = vmax.f32 %v747, %v1663
  %v1916 = vmax.f32 %v750, %v1666
  %v1917 = vmax.f32 %v755, %v1671
  %v1918 = vmax.f32 %v758, %v1674
  %v1919 = vmax.f32 %v763, %v1679
  %v1920 = vmax.f32 %v766, %v1682
  %v1921 = vmax.f32 %v771, %v1687
  %v1922 = vmax.f32 %v774, %v1690
  %v1923 = vmax.f32 %v779, %v1695
  %v1924 = vmax.f32 %v782, %v1698
  %v1925 = vmax.f32 %v787, %v1703
  %v1926 = vmax.f32 %v790, %v1706
  %v1927 = vmax.f32 %v795, %v1711
  %v1928 = vmax.f32 %v798, %v1714
  %v1929 = vmax.f32 %v803, %v1719
  %v1930 = vmax.f32 %v806, %v1722
  %v1931 = vmax.f32 %v811, %v1727
  %v1932 = vmax.f32 %v814, %v1730
  %v1933 = vmax.f32 %v819, %v1735
  %v1934 = vmax.f32 %v822, %v1738
  %v1935 = vmax.f32 %v827, %v1743
  %v1936 = vmax.f32 %v830, %v1746
  %v1937 = vmax.f32 %v835, %v1751
  %v1938 = vmax.f32 %v838, %v1754
  %v1939 = vmax.f32 %v843, %v1759
  %v1940 = vmax.f32 %v846, %v1762
  %v1941 = vmax.f32 %v851, %v1767
  %v1942 = vmax.f32 %v854, %v1770
  %v1943 = vmax.f32 %v859, %v1775
  %v1944 = vmax.f32 %v862, %v1778
  %v1945 = vmax.f32 %v867, %v1783
  %v1946 = vmax.f32 %v870, %v1786
  %v1947 = vmax.f32 %v875, %v1791
  %v1948 = vmax.f32 %v878, %v1794
  %v1949 = vmax.f32 %v883, %v1799
  %v1950 = vmax.f32 %v886, %v1802
  %v1951 = vmax.f32 %v891, %v1807
  %v1952 = vmax.f32 %v894, %v1810
  %v1953 = vmax.f32 %v899, %v1815
  %v1954 = vmax.f32 %v902, %v1818
  %v1955 = vmax.f32 %v907, %v1823
  %v1956 = vmax.f32 %v910, %v1826
  %v1957 = vmax.f32 %v915, %v1831
  %v1958 = vmax.f32 %v918, %v1834
  %v1959 = vmax.f32 %v923, %v1839
  %v1960 = vmax.f32 %v926, %v1842
  %v1961 = vmax.f32 %v931, %v1847
  %v1962 = vmax.f32 %v934, %v1850
  %v1963 = vmax.f32 %v939, %v1855
  %v1964 = vmax.f32 %v942, %v1858
  %v1965 = vmax.f32 %v947, %v1863
  %v1966 = vmax.f32 %v950, %v1866
  %s1967 = scalar_lea.vmem %s0, 784
  %v1968 = vld [vmem:[%s1967] sm:$0xf]
  %v1969 = vld [vmem:[%s1967 + $0x4] sm:$0xf]
  %v1970 = vld [vmem:[%s1967 + $0x8] sm:$0xf]
  %v1971 = vld [vmem:[%s1967 + $0xc] sm:$0xf]
  %v1972 = vld [vmem:[%s1967 + $0x10] sm:$0xf]
  %v1973 = vld [vmem:[%s1967 + $0x14] sm:$0xf]
  %v1974 = vld [vmem:[%s1967 + $0x18] sm:$0xf]
  %v1975 = vld [vmem:[%s1967 + $0x1c] sm:$0xf]
  %v1976 = vld [vmem:[%s1967 + $0x20] sm:$0xf]
  %v1977 = vld [vmem:[%s1967 + $0x24] sm:$0xf]
  %v1978 = vld [vmem:[%s1967 + $0x28] sm:$0xf]
  %v1979 = vld [vmem:[%s1967 + $0x2c] sm:$0xf]
  %v1980 = vld [vmem:[%s1967 + $0x30] sm:$0xf]
  %v1981 = vld [vmem:[%s1967 + $0x34] sm:$0xf]
  %v1982 = vld [vmem:[%s1967 + $0x38] sm:$0xf]
  %v1983 = vld [vmem:[%s1967 + $0x3c] sm:$0xf]
  %v1984 = vld [vmem:[%s1967 + $0x40] sm:$0xf]
  %v1985 = vld [vmem:[%s1967 + $0x44] sm:$0xf]
  %v1986 = vld [vmem:[%s1967 + $0x48] sm:$0xf]
  %v1987 = vld [vmem:[%s1967 + $0x4c] sm:$0xf]
  %v1988 = vld [vmem:[%s1967 + $0x50] sm:$0xf]
  %v1989 = vld [vmem:[%s1967 + $0x54] sm:$0xf]
  %v1990 = vld [vmem:[%s1967 + $0x58] sm:$0xf]
  %v1991 = vld [vmem:[%s1967 + $0x5c] sm:$0xf]
  %v1992 = vld [vmem:[%s1967 + $0x60] sm:$0xf]
  %v1993 = vld [vmem:[%s1967 + $0x64] sm:$0xf]
  %v1994 = vld [vmem:[%s1967 + $0x68] sm:$0xf]
  %v1995 = vld [vmem:[%s1967 + $0x6c] sm:$0xf]
  %v1996 = vld [vmem:[%s1967 + $0x70] sm:$0xf]
  %v1997 = vld [vmem:[%s1967 + $0x74] sm:$0xf]
  %v1998 = vld [vmem:[%s1967 + $0x78] sm:$0xf]
  %v1999 = vld [vmem:[%s1967 + $0x7c] sm:$0xf]
  %v2000 = vld [vmem:[%s1967 + $0x80] sm:$0xf]
  %v2001 = vld [vmem:[%s1967 + $0x84] sm:$0xf]
  %v2002 = vld [vmem:[%s1967 + $0x88] sm:$0xf]
  %v2003 = vld [vmem:[%s1967 + $0x8c] sm:$0xf]
  %v2004 = vld [vmem:[%s1967 + $0x90] sm:$0xf]
  %v2005 = vld [vmem:[%s1967 + $0x94] sm:$0xf]
  %v2006 = vld [vmem:[%s1967 + $0x98] sm:$0xf]
  %v2007 = vld [vmem:[%s1967 + $0x9c] sm:$0xf]
  %v2008 = vld [vmem:[%s1967 + $0xa0] sm:$0xf]
  %v2009 = vld [vmem:[%s1967 + $0xa4] sm:$0xf]
  %v2010 = vld [vmem:[%s1967 + $0xa8] sm:$0xf]
  %v2011 = vld [vmem:[%s1967 + $0xac] sm:$0xf]
  %v2012 = vld [vmem:[%s1967 + $0xb0] sm:$0xf]
  %v2013 = vld [vmem:[%s1967 + $0xb4] sm:$0xf]
  %v2014 = vld [vmem:[%s1967 + $0xb8] sm:$0xf]
  %v2015 = vld [vmem:[%s1967 + $0xbc] sm:$0xf]
  %v2016 = vld [vmem:[%s1967 + $0xc0] sm:$0xf]
  %v2017 = vld [vmem:[%s1967 + $0xc4] sm:$0xf]
  %v2018 = vld [vmem:[%s1967 + $0xc8] sm:$0xf]
  %v2019 = vld [vmem:[%s1967 + $0xcc] sm:$0xf]
  %v2020 = vld [vmem:[%s1967 + $0xd0] sm:$0xf]
  %v2021 = vld [vmem:[%s1967 + $0xd4] sm:$0xf]
  %v2022 = vld [vmem:[%s1967 + $0xd8] sm:$0xf]
  %v2023 = vld [vmem:[%s1967 + $0xdc] sm:$0xf]
  %v2024 = vld [vmem:[%s1967 + $0xe0] sm:$0xf]
  %v2025 = vld [vmem:[%s1967 + $0xe4] sm:$0xf]
  %v2026 = vld [vmem:[%s1967 + $0xe8] sm:$0xf]
  %v2027 = vld [vmem:[%s1967 + $0xec] sm:$0xf]
  %v2028 = vld [vmem:[%s1967 + $0xf0] sm:$0xf]
  %v2029 = vld [vmem:[%s1967 + $0xf4] sm:$0xf]
  %v2030 = vld [vmem:[%s1967 + $0xf8] sm:$0xf]
  %v2031 = vld [vmem:[%s1967 + $0xfc] sm:$0xf]
  %v2032 = vld [vmem:[%s1967 + $0x100] sm:$0xf]
  %v2033 = vld [vmem:[%s1967 + $0x104] sm:$0xf]
  %v2034 = vld [vmem:[%s1967 + $0x108] sm:$0xf]
  %v2035 = vld [vmem:[%s1967 + $0x10c] sm:$0xf]
  %v2036 = vld [vmem:[%s1967 + $0x110] sm:$0xf]
  %v2037 = vld [vmem:[%s1967 + $0x114] sm:$0xf]
  %v2038 = vld [vmem:[%s1967 + $0x118] sm:$0xf]
  %v2039 = vld [vmem:[%s1967 + $0x11c] sm:$0xf]
  %v2040 = vld [vmem:[%s1967 + $0x120] sm:$0xf]
  %v2041 = vld [vmem:[%s1967 + $0x124] sm:$0xf]
  %v2042 = vld [vmem:[%s1967 + $0x128] sm:$0xf]
  %v2043 = vld [vmem:[%s1967 + $0x12c] sm:$0xf]
  %v2044 = vld [vmem:[%s1967 + $0x130] sm:$0xf]
  %v2045 = vld [vmem:[%s1967 + $0x134] sm:$0xf]
  %v2046 = vld [vmem:[%s1967 + $0x138] sm:$0xf]
  %v2047 = vld [vmem:[%s1967 + $0x13c] sm:$0xf]
  %v2048 = vld [vmem:[%s1967 + $0x140] sm:$0xf]
  %v2049 = vld [vmem:[%s1967 + $0x144] sm:$0xf]
  %v2050 = vld [vmem:[%s1967 + $0x148] sm:$0xf]
  %v2051 = vld [vmem:[%s1967 + $0x14c] sm:$0xf]
  %v2052 = vld [vmem:[%s1967 + $0x150] sm:$0xf]
  %v2053 = vld [vmem:[%s1967 + $0x154] sm:$0xf]
  %v2054 = vld [vmem:[%s1967 + $0x158] sm:$0xf]
  %v2055 = vld [vmem:[%s1967 + $0x15c] sm:$0xf]
  %v2056 = vld [vmem:[%s1967 + $0x160] sm:$0xf]
  %v2057 = vld [vmem:[%s1967 + $0x164] sm:$0xf]
  %v2058 = vld [vmem:[%s1967 + $0x168] sm:$0xf]
  %v2059 = vld [vmem:[%s1967 + $0x16c] sm:$0xf]
  %v2060 = vld [vmem:[%s1967 + $0x170] sm:$0xf]
  %v2061 = vld [vmem:[%s1967 + $0x174] sm:$0xf]
  %v2062 = vld [vmem:[%s1967 + $0x178] sm:$0xf]
  %v2063 = vld [vmem:[%s1967 + $0x17c] sm:$0xf]
  %v2064 = vld [vmem:[%s1967 + $0x180] sm:$0xf]
  %v2065 = vld [vmem:[%s1967 + $0x184] sm:$0xf]
  %v2164 = vunpack.c.l.b16 %v1968
  %v2165 = vunpack.c.l.b16 %v1969
  %v2166 = vunpack.c.l.b16 %v1970
  %v2167 = vunpack.c.l.b16 %v1971
  %v2168 = vunpack.c.l.b16 %v1972
  %v2169 = vunpack.c.l.b16 %v1973
  %v2170 = vunpack.c.l.b16 %v1974
  %v2171 = vunpack.c.l.b16 %v1975
  %v2172 = vunpack.c.l.b16 %v1976
  %v2173 = vunpack.c.l.b16 %v1977
  %v2174 = vunpack.c.l.b16 %v1978
  %v2175 = vunpack.c.l.b16 %v1979
  %v2176 = vunpack.c.l.b16 %v1980
  %v2177 = vunpack.c.l.b16 %v1981
  %v2178 = vunpack.c.l.b16 %v1982
  %v2179 = vunpack.c.l.b16 %v1983
  %v2180 = vunpack.c.l.b16 %v1984
  %v2181 = vunpack.c.l.b16 %v1985
  %v2182 = vunpack.c.l.b16 %v1986
  %v2183 = vunpack.c.l.b16 %v1987
  %v2184 = vunpack.c.l.b16 %v1988
  %v2185 = vunpack.c.l.b16 %v1989
  %v2186 = vunpack.c.l.b16 %v1990
  %v2187 = vunpack.c.l.b16 %v1991
  %v2188 = vunpack.c.l.b16 %v1992
  %v2189 = vunpack.c.l.b16 %v1993
  %v2190 = vunpack.c.l.b16 %v1994
  %v2191 = vunpack.c.l.b16 %v1995
  %v2192 = vunpack.c.l.b16 %v1996
  %v2193 = vunpack.c.l.b16 %v1997
  %v2194 = vunpack.c.l.b16 %v1998
  %v2195 = vunpack.c.l.b16 %v1999
  %v2196 = vunpack.c.l.b16 %v2000
  %v2197 = vunpack.c.l.b16 %v2001
  %v2198 = vunpack.c.l.b16 %v2002
  %v2199 = vunpack.c.l.b16 %v2003
  %v2200 = vunpack.c.l.b16 %v2004
  %v2201 = vunpack.c.l.b16 %v2005
  %v2202 = vunpack.c.l.b16 %v2006
  %v2203 = vunpack.c.l.b16 %v2007
  %v2204 = vunpack.c.l.b16 %v2008
  %v2205 = vunpack.c.l.b16 %v2009
  %v2206 = vunpack.c.l.b16 %v2010
  %v2207 = vunpack.c.l.b16 %v2011
  %v2208 = vunpack.c.l.b16 %v2012
  %v2209 = vunpack.c.l.b16 %v2013
  %v2210 = vunpack.c.l.b16 %v2014
  %v2211 = vunpack.c.l.b16 %v2015
  %v2212 = vunpack.c.l.b16 %v2016
  %v2213 = vunpack.c.l.b16 %v2017
  %v2214 = vunpack.c.l.b16 %v2018
  %v2215 = vunpack.c.l.b16 %v2019
  %v2216 = vunpack.c.l.b16 %v2020
  %v2217 = vunpack.c.l.b16 %v2021
  %v2218 = vunpack.c.l.b16 %v2022
  %v2219 = vunpack.c.l.b16 %v2023
  %v2220 = vunpack.c.l.b16 %v2024
  %v2221 = vunpack.c.l.b16 %v2025
  %v2222 = vunpack.c.l.b16 %v2026
  %v2223 = vunpack.c.l.b16 %v2027
  %v2224 = vunpack.c.l.b16 %v2028
  %v2225 = vunpack.c.l.b16 %v2029
  %v2226 = vunpack.c.l.b16 %v2030
  %v2227 = vunpack.c.l.b16 %v2031
  %v2228 = vunpack.c.l.b16 %v2032
  %v2229 = vunpack.c.l.b16 %v2033
  %v2230 = vunpack.c.l.b16 %v2034
  %v2231 = vunpack.c.l.b16 %v2035
  %v2232 = vunpack.c.l.b16 %v2036
  %v2233 = vunpack.c.l.b16 %v2037
  %v2234 = vunpack.c.l.b16 %v2038
  %v2235 = vunpack.c.l.b16 %v2039
  %v2236 = vunpack.c.l.b16 %v2040
  %v2237 = vunpack.c.l.b16 %v2041
  %v2238 = vunpack.c.l.b16 %v2042
  %v2239 = vunpack.c.l.b16 %v2043
  %v2240 = vunpack.c.l.b16 %v2044
  %v2241 = vunpack.c.l.b16 %v2045
  %v2242 = vunpack.c.l.b16 %v2046
  %v2243 = vunpack.c.l.b16 %v2047
  %v2244 = vunpack.c.l.b16 %v2048
  %v2245 = vunpack.c.l.b16 %v2049
  %v2246 = vunpack.c.l.b16 %v2050
  %v2247 = vunpack.c.l.b16 %v2051
  %v2248 = vunpack.c.l.b16 %v2052
  %v2249 = vunpack.c.l.b16 %v2053
  %v2250 = vunpack.c.l.b16 %v2054
  %v2251 = vunpack.c.l.b16 %v2055
  %v2252 = vunpack.c.l.b16 %v2056
  %v2253 = vunpack.c.l.b16 %v2057
  %v2254 = vunpack.c.l.b16 %v2058
  %v2255 = vunpack.c.l.b16 %v2059
  %v2256 = vunpack.c.l.b16 %v2060
  %v2257 = vunpack.c.l.b16 %v2061
  %v2258 = vunpack.c.l.b16 %v2062
  %v2259 = vunpack.c.l.b16 %v2063
  %v2260 = vunpack.c.l.b16 %v2064
  %v2261 = vunpack.c.l.b16 %v2065
  %v2262 = vpack.c.b16 %v2165, %v2164
  %v2263 = vpack.c.b16 %v2167, %v2166
  %v2264 = vpack.c.b16 %v2169, %v2168
  %v2265 = vpack.c.b16 %v2171, %v2170
  %v2266 = vpack.c.b16 %v2173, %v2172
  %v2267 = vpack.c.b16 %v2175, %v2174
  %v2268 = vpack.c.b16 %v2177, %v2176
  %v2269 = vpack.c.b16 %v2179, %v2178
  %v2270 = vpack.c.b16 %v2181, %v2180
  %v2271 = vpack.c.b16 %v2183, %v2182
  %v2272 = vpack.c.b16 %v2185, %v2184
  %v2273 = vpack.c.b16 %v2187, %v2186
  %v2274 = vpack.c.b16 %v2189, %v2188
  %v2275 = vpack.c.b16 %v2191, %v2190
  %v2276 = vpack.c.b16 %v2193, %v2192
  %v2277 = vpack.c.b16 %v2195, %v2194
  %v2278 = vpack.c.b16 %v2197, %v2196
  %v2279 = vpack.c.b16 %v2199, %v2198
  %v2280 = vpack.c.b16 %v2201, %v2200
  %v2281 = vpack.c.b16 %v2203, %v2202
  %v2282 = vpack.c.b16 %v2205, %v2204
  %v2283 = vpack.c.b16 %v2207, %v2206
  %v2284 = vpack.c.b16 %v2209, %v2208
  %v2285 = vpack.c.b16 %v2211, %v2210
  %v2286 = vpack.c.b16 %v2213, %v2212
  %v2287 = vpack.c.b16 %v2215, %v2214
  %v2288 = vpack.c.b16 %v2217, %v2216
  %v2289 = vpack.c.b16 %v2219, %v2218
  %v2290 = vpack.c.b16 %v2221, %v2220
  %v2291 = vpack.c.b16 %v2223, %v2222
  %v2292 = vpack.c.b16 %v2225, %v2224
  %v2293 = vpack.c.b16 %v2227, %v2226
  %v2294 = vpack.c.b16 %v2229, %v2228
  %v2295 = vpack.c.b16 %v2231, %v2230
  %v2296 = vpack.c.b16 %v2233, %v2232
  %v2297 = vpack.c.b16 %v2235, %v2234
  %v2298 = vpack.c.b16 %v2237, %v2236
  %v2299 = vpack.c.b16 %v2239, %v2238
  %v2300 = vpack.c.b16 %v2241, %v2240
  %v2301 = vpack.c.b16 %v2243, %v2242
  %v2302 = vpack.c.b16 %v2245, %v2244
  %v2303 = vpack.c.b16 %v2247, %v2246
  %v2304 = vpack.c.b16 %v2249, %v2248
  %v2305 = vpack.c.b16 %v2251, %v2250
  %v2306 = vpack.c.b16 %v2253, %v2252
  %v2307 = vpack.c.b16 %v2255, %v2254
  %v2308 = vpack.c.b16 %v2257, %v2256
  %v2309 = vpack.c.b16 %v2259, %v2258
  %v2310 = vpack.c.b16 %v2261, %v2260
  %v2312 = vsel %vm373, %v2262, 0
  %v2315 = vsel %vm373, %v2263, 0
  %v2318 = vsel %vm373, %v2264, 0
  %v2321 = vsel %vm373, %v2265, 0
  %v2324 = vsel %vm373, %v2266, 0
  %v2327 = vsel %vm373, %v2267, 0
  %v2330 = vsel %vm373, %v2268, 0
  %v2333 = vsel %vm373, %v2269, 0
  %v2336 = vsel %vm373, %v2270, 0
  %v2339 = vsel %vm373, %v2271, 0
  %v2342 = vsel %vm373, %v2272, 0
  %v2345 = vsel %vm373, %v2273, 0
  %v2348 = vsel %vm373, %v2274, 0
  %v2351 = vsel %vm373, %v2275, 0
  %v2354 = vsel %vm373, %v2276, 0
  %v2357 = vsel %vm373, %v2277, 0
  %v2360 = vsel %vm373, %v2278, 0
  %v2363 = vsel %vm373, %v2279, 0
  %v2366 = vsel %vm373, %v2280, 0
  %v2369 = vsel %vm373, %v2281, 0
  %v2372 = vsel %vm373, %v2282, 0
  %v2375 = vsel %vm373, %v2283, 0
  %v2378 = vsel %vm373, %v2284, 0
  %v2381 = vsel %vm373, %v2285, 0
  %v2384 = vsel %vm373, %v2286, 0
  %v2387 = vsel %vm373, %v2287, 0
  %v2390 = vsel %vm373, %v2288, 0
  %v2393 = vsel %vm373, %v2289, 0
  %v2396 = vsel %vm373, %v2290, 0
  %v2399 = vsel %vm373, %v2291, 0
  %v2402 = vsel %vm373, %v2292, 0
  %v2405 = vsel %vm373, %v2293, 0
  %v2408 = vsel %vm373, %v2294, 0
  %v2411 = vsel %vm373, %v2295, 0
  %v2414 = vsel %vm373, %v2296, 0
  %v2417 = vsel %vm373, %v2297, 0
  %v2420 = vsel %vm373, %v2298, 0
  %v2423 = vsel %vm373, %v2299, 0
  %v2426 = vsel %vm373, %v2300, 0
  %v2429 = vsel %vm373, %v2301, 0
  %v2432 = vsel %vm373, %v2302, 0
  %v2435 = vsel %vm373, %v2303, 0
  %v2438 = vsel %vm373, %v2304, 0
  %v2441 = vsel %vm373, %v2305, 0
  %v2444 = vsel %vm373, %v2306, 0
  %v2447 = vsel %vm373, %v2307, 0
  %v2450 = vsel %vm373, %v2308, 0
  %v2453 = vsel %vm373, %v2309, 0
  %v2456 = vsel %vm373, %v2310, 0
  %2458 = vmatprep.subr.bf16.mxu0 0
  %2459 = vmatpush1.bf16.msra.mxu0 %v370
  %2460 = vmatprep.subr.bf16.mxu0 0
  %2461 = vmatpush1.bf16.msra.mxu0 %v526
  %2462 = vmatprep.subr.bf16.mxu0 0
  %2463 = vmatpush1.bf16.msra.mxu0 0
  %2464 = vmatprep.subr.bf16.mxu0 0
  %2465 = vmatpush1.bf16.msra.mxu0 0
  %2466 = vmatprep.subr.bf16.mxu0 0
  %2467 = vmatpush1.bf16.msra.mxu0 0
  %2468 = vmatprep.subr.bf16.mxu0 0
  %2469 = vmatpush1.bf16.msra.mxu0 0
  %2470 = vmatprep.subr.bf16.mxu0 0
  %2471 = vmatpush1.bf16.msra.mxu0 0
  %2472 = vmatprep.subr.bf16.mxu0 0
  %2473 = vmatpush1.bf16.msra.mxu0 0
  %2474 = vmatprep.subr.bf16.mxu0 0
  %2475 = vmatpush1.bf16.msra.mxu0 0
  %2476 = vmatprep.subr.bf16.mxu0 0
  %2477 = vmatpush1.bf16.msra.mxu0 0
  %2478 = vmatprep.subr.bf16.mxu0 0
  %2479 = vmatpush1.bf16.msra.mxu0 0
  %2480 = vmatprep.subr.bf16.mxu0 0
  %2481 = vmatpush1.bf16.msra.mxu0 0
  %2482 = vmatprep.subr.bf16.mxu0 0
  %2483 = vmatpush1.bf16.msra.mxu0 0
  %2484 = vmatprep.subr.bf16.mxu0 0
  %2485 = vmatpush1.bf16.msra.mxu0 0
  %2486 = vmatprep.subr.bf16.mxu0 0
  %2487 = vmatpush1.bf16.msra.mxu0 0
  %2488 = vmatprep.subr.bf16.mxu0 0
  %2489 = vmatpush1.bf16.msra.mxu0 0
  %2490 = vmatprep.mubr.bf16.mxu0 0
  %2491 = vmatmul.mubr.bf16.gmra.mrb[0].mxu0 %v2312
  %v2492 = vpop.f32.mrb[0].mxu0
  %v2493 = vadd.f32 0.0, %v2492
  %v2494 = vpop.f32.mrb[0].mxu0
  %v2495 = vpop.f32.mrb[0].mxu0
  %v2496 = vadd.f32 0.0, %v2495
  %v2497 = vpop.f32.mrb[0].mxu0
  %2498 = vmatprep.mubr.bf16.mxu0 0
  %2499 = vmatmul.mubr.bf16.gmra.mrb[0].mxu0 %v2315
  %v2500 = vpop.f32.mrb[0].mxu0
  %v2501 = vadd.f32 0.0, %v2500
  %v2502 = vpop.f32.mrb[0].mxu0
  %v2503 = vpop.f32.mrb[0].mxu0
  %v2504 = vadd.f32 0.0, %v2503
  %v2505 = vpop.f32.mrb[0].mxu0
  %2506 = vmatprep.mubr.bf16.mxu0 0
  %2507 = vmatmul.mubr.bf16.gmra.mrb[0].mxu0 %v2318
  %v2508 = vpop.f32.mrb[0].mxu0
  %v2509 = vadd.f32 0.0, %v2508
  %v2510 = vpop.f32.mrb[0].mxu0
  %v2511 = vpop.f32.mrb[0].mxu0
  %v2512 = vadd.f32 0.0, %v2511
  %v2513 = vpop.f32.mrb[0].mxu0
  %2514 = vmatprep.mubr.bf16.mxu0 0
  %2515 = vmatmul.mubr.bf16.gmra.mrb[0].mxu0 %v2321
  %v2516 = vpop.f32.mrb[0].mxu0
  %v2517 = vadd.f32 0.0, %v2516
  %v2518 = vpop.f32.mrb[0].mxu0
  %v2519 = vpop.f32.mrb[0].mxu0
  %v2520 = vadd.f32 0.0, %v2519
  %v2521 = vpop.f32.mrb[0].mxu0
  %2522 = vmatprep.mubr.bf16.mxu0 0
  %2523 = vmatmul.mubr.bf16.gmra.mrb[0].mxu0 %v2324
  %v2524 = vpop.f32.mrb[0].mxu0
  %v2525 = vadd.f32 0.0, %v2524
  %v2526 = vpop.f32.mrb[0].mxu0
  %v2527 = vpop.f32.mrb[0].mxu0
  %v2528 = vadd.f32 0.0, %v2527
  %v2529 = vpop.f32.mrb[0].mxu0
  %2530 = vmatprep.mubr.bf16.mxu0 0
  %2531 = vmatmul.mubr.bf16.gmra.mrb[0].mxu0 %v2327
  %v2532 = vpop.f32.mrb[0].mxu0
  %v2533 = vadd.f32 0.0, %v2532
  %v2534 = vpop.f32.mrb[0].mxu0
  %v2535 = vpop.f32.mrb[0].mxu0
  %v2536 = vadd.f32 0.0, %v2535
  %v2537 = vpop.f32.mrb[0].mxu0
  %2538 = vmatprep.mubr.bf16.mxu0 0
  %2539 = vmatmul.mubr.bf16.gmra.mrb[0].mxu0 %v2330
  %v2540 = vpop.f32.mrb[0].mxu0
  %v2541 = vadd.f32 0.0, %v2540
  %v2542 = vpop.f32.mrb[0].mxu0
  %v2543 = vpop.f32.mrb[0].mxu0
  %v2544 = vadd.f32 0.0, %v2543
  %v2545 = vpop.f32.mrb[0].mxu0
  %2546 = vmatprep.mubr.bf16.mxu0 0
  %2547 = vmatmul.mubr.bf16.gmra.mrb[0].mxu0 %v2333
  %v2548 = vpop.f32.mrb[0].mxu0
  %v2549 = vadd.f32 0.0, %v2548
  %v2550 = vpop.f32.mrb[0].mxu0
  %v2551 = vpop.f32.mrb[0].mxu0
  %v2552 = vadd.f32 0.0, %v2551
  %v2553 = vpop.f32.mrb[0].mxu0
  %2554 = vmatprep.mubr.bf16.mxu0 0
  %2555 = vmatmul.mubr.bf16.gmra.mrb[0].mxu0 %v2336
  %v2556 = vpop.f32.mrb[0].mxu0
  %v2557 = vadd.f32 0.0, %v2556
  %v2558 = vpop.f32.mrb[0].mxu0
  %v2559 = vpop.f32.mrb[0].mxu0
  %v2560 = vadd.f32 0.0, %v2559
  %v2561 = vpop.f32.mrb[0].mxu0
  %2562 = vmatprep.mubr.bf16.mxu0 0
  %2563 = vmatmul.mubr.bf16.gmra.mrb[0].mxu0 %v2339
  %v2564 = vpop.f32.mrb[0].mxu0
  %v2565 = vadd.f32 0.0, %v2564
  %v2566 = vpop.f32.mrb[0].mxu0
  %v2567 = vpop.f32.mrb[0].mxu0
  %v2568 = vadd.f32 0.0, %v2567
  %v2569 = vpop.f32.mrb[0].mxu0
  %2570 = vmatprep.mubr.bf16.mxu0 0
  %2571 = vmatmul.mubr.bf16.gmra.mrb[0].mxu0 %v2342
  %v2572 = vpop.f32.mrb[0].mxu0
  %v2573 = vadd.f32 0.0, %v2572
  %v2574 = vpop.f32.mrb[0].mxu0
  %v2575 = vpop.f32.mrb[0].mxu0
  %v2576 = vadd.f32 0.0, %v2575
  %v2577 = vpop.f32.mrb[0].mxu0
  %2578 = vmatprep.mubr.bf16.mxu0 0
  %2579 = vmatmul.mubr.bf16.gmra.mrb[0].mxu0 %v2345
  %v2580 = vpop.f32.mrb[0].mxu0
  %v2581 = vadd.f32 0.0, %v2580
  %v2582 = vpop.f32.mrb[0].mxu0
  %v2583 = vpop.f32.mrb[0].mxu0
  %v2584 = vadd.f32 0.0, %v2583
  %v2585 = vpop.f32.mrb[0].mxu0
  %2586 = vmatprep.mubr.bf16.mxu0 0
  %2587 = vmatmul.mubr.bf16.gmra.mrb[0].mxu0 %v2348
  %v2588 = vpop.f32.mrb[0].mxu0
  %v2589 = vadd.f32 0.0, %v2588
  %v2590 = vpop.f32.mrb[0].mxu0
  %v2591 = vpop.f32.mrb[0].mxu0
  %v2592 = vadd.f32 0.0, %v2591
  %v2593 = vpop.f32.mrb[0].mxu0
  %2594 = vmatprep.mubr.bf16.mxu0 0
  %2595 = vmatmul.mubr.bf16.gmra.mrb[0].mxu0 %v2351
  %v2596 = vpop.f32.mrb[0].mxu0
  %v2597 = vadd.f32 0.0, %v2596
  %v2598 = vpop.f32.mrb[0].mxu0
  %v2599 = vpop.f32.mrb[0].mxu0
  %v2600 = vadd.f32 0.0, %v2599
  %v2601 = vpop.f32.mrb[0].mxu0
  %2602 = vmatprep.mubr.bf16.mxu0 0
  %2603 = vmatmul.mubr.bf16.gmra.mrb[0].mxu0 %v2354
  %v2604 = vpop.f32.mrb[0].mxu0
  %v2605 = vadd.f32 0.0, %v2604
  %v2606 = vpop.f32.mrb[0].mxu0
  %v2607 = vpop.f32.mrb[0].mxu0
  %v2608 = vadd.f32 0.0, %v2607
  %v2609 = vpop.f32.mrb[0].mxu0
  %2610 = vmatprep.mubr.bf16.mxu0 0
  %2611 = vmatmul.mubr.bf16.gmra.mrb[0].mxu0 %v2357
  %v2612 = vpop.f32.mrb[0].mxu0
  %v2613 = vadd.f32 0.0, %v2612
  %v2614 = vpop.f32.mrb[0].mxu0
  %v2615 = vpop.f32.mrb[0].mxu0
  %v2616 = vadd.f32 0.0, %v2615
  %v2617 = vpop.f32.mrb[0].mxu0
  %2618 = vmatprep.mubr.bf16.mxu0 0
  %2619 = vmatmul.mubr.bf16.gmra.mrb[0].mxu0 %v2360
  %v2620 = vpop.f32.mrb[0].mxu0
  %v2621 = vadd.f32 0.0, %v2620
  %v2622 = vpop.f32.mrb[0].mxu0
  %v2623 = vpop.f32.mrb[0].mxu0
  %v2624 = vadd.f32 0.0, %v2623
  %v2625 = vpop.f32.mrb[0].mxu0
  %2626 = vmatprep.mubr.bf16.mxu0 0
  %2627 = vmatmul.mubr.bf16.gmra.mrb[0].mxu0 %v2363
  %v2628 = vpop.f32.mrb[0].mxu0
  %v2629 = vadd.f32 0.0, %v2628
  %v2630 = vpop.f32.mrb[0].mxu0
  %v2631 = vpop.f32.mrb[0].mxu0
  %v2632 = vadd.f32 0.0, %v2631
  %v2633 = vpop.f32.mrb[0].mxu0
  %2634 = vmatprep.mubr.bf16.mxu0 0
  %2635 = vmatmul.mubr.bf16.gmra.mrb[0].mxu0 %v2366
  %v2636 = vpop.f32.mrb[0].mxu0
  %v2637 = vadd.f32 0.0, %v2636
  %v2638 = vpop.f32.mrb[0].mxu0
  %v2639 = vpop.f32.mrb[0].mxu0
  %v2640 = vadd.f32 0.0, %v2639
  %v2641 = vpop.f32.mrb[0].mxu0
  %2642 = vmatprep.mubr.bf16.mxu0 0
  %2643 = vmatmul.mubr.bf16.gmra.mrb[0].mxu0 %v2369
  %v2644 = vpop.f32.mrb[0].mxu0
  %v2645 = vadd.f32 0.0, %v2644
  %v2646 = vpop.f32.mrb[0].mxu0
  %v2647 = vpop.f32.mrb[0].mxu0
  %v2648 = vadd.f32 0.0, %v2647
  %v2649 = vpop.f32.mrb[0].mxu0
  %2650 = vmatprep.mubr.bf16.mxu0 0
  %2651 = vmatmul.mubr.bf16.gmra.mrb[0].mxu0 %v2372
  %v2652 = vpop.f32.mrb[0].mxu0
  %v2653 = vadd.f32 0.0, %v2652
  %v2654 = vpop.f32.mrb[0].mxu0
  %v2655 = vpop.f32.mrb[0].mxu0
  %v2656 = vadd.f32 0.0, %v2655
  %v2657 = vpop.f32.mrb[0].mxu0
  %2658 = vmatprep.mubr.bf16.mxu0 0
  %2659 = vmatmul.mubr.bf16.gmra.mrb[0].mxu0 %v2375
  %v2660 = vpop.f32.mrb[0].mxu0
  %v2661 = vadd.f32 0.0, %v2660
  %v2662 = vpop.f32.mrb[0].mxu0
  %v2663 = vpop.f32.mrb[0].mxu0
  %v2664 = vadd.f32 0.0, %v2663
  %v2665 = vpop.f32.mrb[0].mxu0
  %2666 = vmatprep.mubr.bf16.mxu0 0
  %2667 = vmatmul.mubr.bf16.gmra.mrb[0].mxu0 %v2378
  %v2668 = vpop.f32.mrb[0].mxu0
  %v2669 = vadd.f32 0.0, %v2668
  %v2670 = vpop.f32.mrb[0].mxu0
  %v2671 = vpop.f32.mrb[0].mxu0
  %v2672 = vadd.f32 0.0, %v2671
  %v2673 = vpop.f32.mrb[0].mxu0
  %2674 = vmatprep.mubr.bf16.mxu0 0
  %2675 = vmatmul.mubr.bf16.gmra.mrb[0].mxu0 %v2381
  %v2676 = vpop.f32.mrb[0].mxu0
  %v2677 = vadd.f32 0.0, %v2676
  %v2678 = vpop.f32.mrb[0].mxu0
  %v2679 = vpop.f32.mrb[0].mxu0
  %v2680 = vadd.f32 0.0, %v2679
  %v2681 = vpop.f32.mrb[0].mxu0
  %2682 = vmatprep.mubr.bf16.mxu0 0
  %2683 = vmatmul.mubr.bf16.gmra.mrb[0].mxu0 %v2384
  %v2684 = vpop.f32.mrb[0].mxu0
  %v2685 = vadd.f32 0.0, %v2684
  %v2686 = vpop.f32.mrb[0].mxu0
  %v2687 = vpop.f32.mrb[0].mxu0
  %v2688 = vadd.f32 0.0, %v2687
  %v2689 = vpop.f32.mrb[0].mxu0
  %2690 = vmatprep.mubr.bf16.mxu0 0
  %2691 = vmatmul.mubr.bf16.gmra.mrb[0].mxu0 %v2387
  %v2692 = vpop.f32.mrb[0].mxu0
  %v2693 = vadd.f32 0.0, %v2692
  %v2694 = vpop.f32.mrb[0].mxu0
  %v2695 = vpop.f32.mrb[0].mxu0
  %v2696 = vadd.f32 0.0, %v2695
  %v2697 = vpop.f32.mrb[0].mxu0
  %2698 = vmatprep.mubr.bf16.mxu0 0
  %2699 = vmatmul.mubr.bf16.gmra.mrb[0].mxu0 %v2390
  %v2700 = vpop.f32.mrb[0].mxu0
  %v2701 = vadd.f32 0.0, %v2700
  %v2702 = vpop.f32.mrb[0].mxu0
  %v2703 = vpop.f32.mrb[0].mxu0
  %v2704 = vadd.f32 0.0, %v2703
  %v2705 = vpop.f32.mrb[0].mxu0
  %2706 = vmatprep.mubr.bf16.mxu0 0
  %2707 = vmatmul.mubr.bf16.gmra.mrb[0].mxu0 %v2393
  %v2708 = vpop.f32.mrb[0].mxu0
  %v2709 = vadd.f32 0.0, %v2708
  %v2710 = vpop.f32.mrb[0].mxu0
  %v2711 = vpop.f32.mrb[0].mxu0
  %v2712 = vadd.f32 0.0, %v2711
  %v2713 = vpop.f32.mrb[0].mxu0
  %2714 = vmatprep.mubr.bf16.mxu0 0
  %2715 = vmatmul.mubr.bf16.gmra.mrb[0].mxu0 %v2396
  %v2716 = vpop.f32.mrb[0].mxu0
  %v2717 = vadd.f32 0.0, %v2716
  %v2718 = vpop.f32.mrb[0].mxu0
  %v2719 = vpop.f32.mrb[0].mxu0
  %v2720 = vadd.f32 0.0, %v2719
  %v2721 = vpop.f32.mrb[0].mxu0
  %2722 = vmatprep.mubr.bf16.mxu0 0
  %2723 = vmatmul.mubr.bf16.gmra.mrb[0].mxu0 %v2399
  %v2724 = vpop.f32.mrb[0].mxu0
  %v2725 = vadd.f32 0.0, %v2724
  %v2726 = vpop.f32.mrb[0].mxu0
  %v2727 = vpop.f32.mrb[0].mxu0
  %v2728 = vadd.f32 0.0, %v2727
  %v2729 = vpop.f32.mrb[0].mxu0
  %2730 = vmatprep.mubr.bf16.mxu0 0
  %2731 = vmatmul.mubr.bf16.gmra.mrb[0].mxu0 %v2402
  %v2732 = vpop.f32.mrb[0].mxu0
  %v2733 = vadd.f32 0.0, %v2732
  %v2734 = vpop.f32.mrb[0].mxu0
  %v2735 = vpop.f32.mrb[0].mxu0
  %v2736 = vadd.f32 0.0, %v2735
  %v2737 = vpop.f32.mrb[0].mxu0
  %2738 = vmatprep.mubr.bf16.mxu0 0
  %2739 = vmatmul.mubr.bf16.gmra.mrb[0].mxu0 %v2405
  %v2740 = vpop.f32.mrb[0].mxu0
  %v2741 = vadd.f32 0.0, %v2740
  %v2742 = vpop.f32.mrb[0].mxu0
  %v2743 = vpop.f32.mrb[0].mxu0
  %v2744 = vadd.f32 0.0, %v2743
  %v2745 = vpop.f32.mrb[0].mxu0
  %2746 = vmatprep.mubr.bf16.mxu0 0
  %2747 = vmatmul.mubr.bf16.gmra.mrb[0].mxu0 %v2408
  %v2748 = vpop.f32.mrb[0].mxu0
  %v2749 = vadd.f32 0.0, %v2748
  %v2750 = vpop.f32.mrb[0].mxu0
  %v2751 = vpop.f32.mrb[0].mxu0
  %v2752 = vadd.f32 0.0, %v2751
  %v2753 = vpop.f32.mrb[0].mxu0
  %2754 = vmatprep.mubr.bf16.mxu0 0
  %2755 = vmatmul.mubr.bf16.gmra.mrb[0].mxu0 %v2411
  %v2756 = vpop.f32.mrb[0].mxu0
  %v2757 = vadd.f32 0.0, %v2756
  %v2758 = vpop.f32.mrb[0].mxu0
  %v2759 = vpop.f32.mrb[0].mxu0
  %v2760 = vadd.f32 0.0, %v2759
  %v2761 = vpop.f32.mrb[0].mxu0
  %2762 = vmatprep.mubr.bf16.mxu0 0
  %2763 = vmatmul.mubr.bf16.gmra.mrb[0].mxu0 %v2414
  %v2764 = vpop.f32.mrb[0].mxu0
  %v2765 = vadd.f32 0.0, %v2764
  %v2766 = vpop.f32.mrb[0].mxu0
  %v2767 = vpop.f32.mrb[0].mxu0
  %v2768 = vadd.f32 0.0, %v2767
  %v2769 = vpop.f32.mrb[0].mxu0
  %2770 = vmatprep.mubr.bf16.mxu0 0
  %2771 = vmatmul.mubr.bf16.gmra.mrb[0].mxu0 %v2417
  %v2772 = vpop.f32.mrb[0].mxu0
  %v2773 = vadd.f32 0.0, %v2772
  %v2774 = vpop.f32.mrb[0].mxu0
  %v2775 = vpop.f32.mrb[0].mxu0
  %v2776 = vadd.f32 0.0, %v2775
  %v2777 = vpop.f32.mrb[0].mxu0
  %2778 = vmatprep.mubr.bf16.mxu0 0
  %2779 = vmatmul.mubr.bf16.gmra.mrb[0].mxu0 %v2420
  %v2780 = vpop.f32.mrb[0].mxu0
  %v2781 = vadd.f32 0.0, %v2780
  %v2782 = vpop.f32.mrb[0].mxu0
  %v2783 = vpop.f32.mrb[0].mxu0
  %v2784 = vadd.f32 0.0, %v2783
  %v2785 = vpop.f32.mrb[0].mxu0
  %2786 = vmatprep.mubr.bf16.mxu0 0
  %2787 = vmatmul.mubr.bf16.gmra.mrb[0].mxu0 %v2423
  %v2788 = vpop.f32.mrb[0].mxu0
  %v2789 = vadd.f32 0.0, %v2788
  %v2790 = vpop.f32.mrb[0].mxu0
  %v2791 = vpop.f32.mrb[0].mxu0
  %v2792 = vadd.f32 0.0, %v2791
  %v2793 = vpop.f32.mrb[0].mxu0
  %2794 = vmatprep.mubr.bf16.mxu0 0
  %2795 = vmatmul.mubr.bf16.gmra.mrb[0].mxu0 %v2426
  %v2796 = vpop.f32.mrb[0].mxu0
  %v2797 = vadd.f32 0.0, %v2796
  %v2798 = vpop.f32.mrb[0].mxu0
  %v2799 = vpop.f32.mrb[0].mxu0
  %v2800 = vadd.f32 0.0, %v2799
  %v2801 = vpop.f32.mrb[0].mxu0
  %2802 = vmatprep.mubr.bf16.mxu0 0
  %2803 = vmatmul.mubr.bf16.gmra.mrb[0].mxu0 %v2429
  %v2804 = vpop.f32.mrb[0].mxu0
  %v2805 = vadd.f32 0.0, %v2804
  %v2806 = vpop.f32.mrb[0].mxu0
  %v2807 = vpop.f32.mrb[0].mxu0
  %v2808 = vadd.f32 0.0, %v2807
  %v2809 = vpop.f32.mrb[0].mxu0
  %2810 = vmatprep.mubr.bf16.mxu0 0
  %2811 = vmatmul.mubr.bf16.gmra.mrb[0].mxu0 %v2432
  %v2812 = vpop.f32.mrb[0].mxu0
  %v2813 = vadd.f32 0.0, %v2812
  %v2814 = vpop.f32.mrb[0].mxu0
  %v2815 = vpop.f32.mrb[0].mxu0
  %v2816 = vadd.f32 0.0, %v2815
  %v2817 = vpop.f32.mrb[0].mxu0
  %2818 = vmatprep.mubr.bf16.mxu0 0
  %2819 = vmatmul.mubr.bf16.gmra.mrb[0].mxu0 %v2435
  %v2820 = vpop.f32.mrb[0].mxu0
  %v2821 = vadd.f32 0.0, %v2820
  %v2822 = vpop.f32.mrb[0].mxu0
  %v2823 = vpop.f32.mrb[0].mxu0
  %v2824 = vadd.f32 0.0, %v2823
  %v2825 = vpop.f32.mrb[0].mxu0
  %2826 = vmatprep.mubr.bf16.mxu0 0
  %2827 = vmatmul.mubr.bf16.gmra.mrb[0].mxu0 %v2438
  %v2828 = vpop.f32.mrb[0].mxu0
  %v2829 = vadd.f32 0.0, %v2828
  %v2830 = vpop.f32.mrb[0].mxu0
  %v2831 = vpop.f32.mrb[0].mxu0
  %v2832 = vadd.f32 0.0, %v2831
  %v2833 = vpop.f32.mrb[0].mxu0
  %2834 = vmatprep.mubr.bf16.mxu0 0
  %2835 = vmatmul.mubr.bf16.gmra.mrb[0].mxu0 %v2441
  %v2836 = vpop.f32.mrb[0].mxu0
  %v2837 = vadd.f32 0.0, %v2836
  %v2838 = vpop.f32.mrb[0].mxu0
  %v2839 = vpop.f32.mrb[0].mxu0
  %v2840 = vadd.f32 0.0, %v2839
  %v2841 = vpop.f32.mrb[0].mxu0
  %2842 = vmatprep.mubr.bf16.mxu0 0
  %2843 = vmatmul.mubr.bf16.gmra.mrb[0].mxu0 %v2444
  %v2844 = vpop.f32.mrb[0].mxu0
  %v2845 = vadd.f32 0.0, %v2844
  %v2846 = vpop.f32.mrb[0].mxu0
  %v2847 = vpop.f32.mrb[0].mxu0
  %v2848 = vadd.f32 0.0, %v2847
  %v2849 = vpop.f32.mrb[0].mxu0
  %2850 = vmatprep.mubr.bf16.mxu0 0
  %2851 = vmatmul.mubr.bf16.gmra.mrb[0].mxu0 %v2447
  %v2852 = vpop.f32.mrb[0].mxu0
  %v2853 = vadd.f32 0.0, %v2852
  %v2854 = vpop.f32.mrb[0].mxu0
  %v2855 = vpop.f32.mrb[0].mxu0
  %v2856 = vadd.f32 0.0, %v2855
  %v2857 = vpop.f32.mrb[0].mxu0
  %2858 = vmatprep.mubr.bf16.mxu0 0
  %2859 = vmatmul.mubr.bf16.gmra.mrb[0].mxu0 %v2450
  %v2860 = vpop.f32.mrb[0].mxu0
  %v2861 = vadd.f32 0.0, %v2860
  %v2862 = vpop.f32.mrb[0].mxu0
  %v2863 = vpop.f32.mrb[0].mxu0
  %v2864 = vadd.f32 0.0, %v2863
  %v2865 = vpop.f32.mrb[0].mxu0
  %2866 = vmatprep.mubr.bf16.mxu0 0
  %2867 = vmatmul.mubr.bf16.gmra.mrb[0].mxu0 %v2453
  %v2868 = vpop.f32.mrb[0].mxu0
  %v2869 = vadd.f32 0.0, %v2868
  %v2870 = vpop.f32.mrb[0].mxu0
  %v2871 = vpop.f32.mrb[0].mxu0
  %v2872 = vadd.f32 0.0, %v2871
  %v2873 = vpop.f32.mrb[0].mxu0
  %2874 = vmatprep.mubr.bf16.mxu0 0
  %2875 = vmatmul.mubr.bf16.gmra.mrb[0].mxu0 %v2456
  %v2876 = vpop.f32.mrb[0].mxu0
  %v2877 = vadd.f32 0.0, %v2876
  %v2878 = vpop.f32.mrb[0].mxu0
  %v2879 = vpop.f32.mrb[0].mxu0
  %v2880 = vadd.f32 0.0, %v2879
  %v2881 = vpop.f32.mrb[0].mxu0
  %2882 = vdwg.mxu0
  %v2883 = vmax.f32 %v1869, %v2493
  %v2884 = vmax.f32 %v1870, %v2496
  %v2885 = vmax.f32 %v1871, %v2501
  %v2886 = vmax.f32 %v1872, %v2504
  %v2887 = vmax.f32 %v1873, %v2509
  %v2888 = vmax.f32 %v1874, %v2512
  %v2889 = vmax.f32 %v1875, %v2517
  %v2890 = vmax.f32 %v1876, %v2520
  %v2891 = vmax.f32 %v1877, %v2525
  %v2892 = vmax.f32 %v1878, %v2528
  %v2893 = vmax.f32 %v1879, %v2533
  %v2894 = vmax.f32 %v1880, %v2536
  %v2895 = vmax.f32 %v1881, %v2541
  %v2896 = vmax.f32 %v1882, %v2544
  %v2897 = vmax.f32 %v1883, %v2549
  %v2898 = vmax.f32 %v1884, %v2552
  %v2899 = vmax.f32 %v1885, %v2557
  %v2900 = vmax.f32 %v1886, %v2560
  %v2901 = vmax.f32 %v1887, %v2565
  %v2902 = vmax.f32 %v1888, %v2568
  %v2903 = vmax.f32 %v1889, %v2573
  %v2904 = vmax.f32 %v1890, %v2576
  %v2905 = vmax.f32 %v1891, %v2581
  %v2906 = vmax.f32 %v1892, %v2584
  %v2907 = vmax.f32 %v1893, %v2589
  %v2908 = vmax.f32 %v1894, %v2592
  %v2909 = vmax.f32 %v1895, %v2597
  %v2910 = vmax.f32 %v1896, %v2600
  %v2911 = vmax.f32 %v1897, %v2605
  %v2912 = vmax.f32 %v1898, %v2608
  %v2913 = vmax.f32 %v1899, %v2613
  %v2914 = vmax.f32 %v1900, %v2616
  %v2915 = vmax.f32 %v1901, %v2621
  %v2916 = vmax.f32 %v1902, %v2624
  %v2917 = vmax.f32 %v1903, %v2629
  %v2918 = vmax.f32 %v1904, %v2632
  %v2919 = vmax.f32 %v1905, %v2637
  %v2920 = vmax.f32 %v1906, %v2640
  %v2921 = vmax.f32 %v1907, %v2645
  %v2922 = vmax.f32 %v1908, %v2648
  %v2923 = vmax.f32 %v1909, %v2653
  %v2924 = vmax.f32 %v1910, %v2656
  %v2925 = vmax.f32 %v1911, %v2661
  %v2926 = vmax.f32 %v1912, %v2664
  %v2927 = vmax.f32 %v1913, %v2669
  %v2928 = vmax.f32 %v1914, %v2672
  %v2929 = vmax.f32 %v1915, %v2677
  %v2930 = vmax.f32 %v1916, %v2680
  %v2931 = vmax.f32 %v1917, %v2685
  %v2932 = vmax.f32 %v1918, %v2688
  %v2933 = vmax.f32 %v1919, %v2693
  %v2934 = vmax.f32 %v1920, %v2696
  %v2935 = vmax.f32 %v1921, %v2701
  %v2936 = vmax.f32 %v1922, %v2704
  %v2937 = vmax.f32 %v1923, %v2709
  %v2938 = vmax.f32 %v1924, %v2712
  %v2939 = vmax.f32 %v1925, %v2717
  %v2940 = vmax.f32 %v1926, %v2720
  %v2941 = vmax.f32 %v1927, %v2725
  %v2942 = vmax.f32 %v1928, %v2728
  %v2943 = vmax.f32 %v1929, %v2733
  %v2944 = vmax.f32 %v1930, %v2736
  %v2945 = vmax.f32 %v1931, %v2741
  %v2946 = vmax.f32 %v1932, %v2744
  %v2947 = vmax.f32 %v1933, %v2749
  %v2948 = vmax.f32 %v1934, %v2752
  %v2949 = vmax.f32 %v1935, %v2757
  %v2950 = vmax.f32 %v1936, %v2760
  %v2951 = vmax.f32 %v1937, %v2765
  %v2952 = vmax.f32 %v1938, %v2768
  %v2953 = vmax.f32 %v1939, %v2773
  %v2954 = vmax.f32 %v1940, %v2776
  %v2955 = vmax.f32 %v1941, %v2781
  %v2956 = vmax.f32 %v1942, %v2784
  %v2957 = vmax.f32 %v1943, %v2789
  %v2958 = vmax.f32 %v1944, %v2792
  %v2959 = vmax.f32 %v1945, %v2797
  %v2960 = vmax.f32 %v1946, %v2800
  %v2961 = vmax.f32 %v1947, %v2805
  %v2962 = vmax.f32 %v1948, %v2808
  %v2963 = vmax.f32 %v1949, %v2813
  %v2964 = vmax.f32 %v1950, %v2816
  %v2965 = vmax.f32 %v1951, %v2821
  %v2966 = vmax.f32 %v1952, %v2824
  %v2967 = vmax.f32 %v1953, %v2829
  %v2968 = vmax.f32 %v1954, %v2832
  %v2969 = vmax.f32 %v1955, %v2837
  %v2970 = vmax.f32 %v1956, %v2840
  %v2971 = vmax.f32 %v1957, %v2845
  %v2972 = vmax.f32 %v1958, %v2848
  %v2973 = vmax.f32 %v1959, %v2853
  %v2974 = vmax.f32 %v1960, %v2856
  %v2975 = vmax.f32 %v1961, %v2861
  %v2976 = vmax.f32 %v1962, %v2864
  %v2977 = vmax.f32 %v1963, %v2869
  %v2978 = vmax.f32 %v1964, %v2872
  %v2979 = vmax.f32 %v1965, %v2877
  %v2980 = vmax.f32 %v1966, %v2880
  %s2981 = scalar_lea.vmem %s0, 1176
  %v2982 = vld [vmem:[%s2981] sm:$0xf]
  %v2983 = vld [vmem:[%s2981 + $0x4] sm:$0xf]
  %v2984 = vld [vmem:[%s2981 + $0x8] sm:$0xf]
  %v2985 = vld [vmem:[%s2981 + $0xc] sm:$0xf]
  %v2986 = vld [vmem:[%s2981 + $0x10] sm:$0xf]
  %v2987 = vld [vmem:[%s2981 + $0x14] sm:$0xf]
  %v2988 = vld [vmem:[%s2981 + $0x18] sm:$0xf]
  %v2989 = vld [vmem:[%s2981 + $0x1c] sm:$0xf]
  %v2990 = vld [vmem:[%s2981 + $0x20] sm:$0xf]
  %v2991 = vld [vmem:[%s2981 + $0x24] sm:$0xf]
  %v2992 = vld [vmem:[%s2981 + $0x28] sm:$0xf]
  %v2993 = vld [vmem:[%s2981 + $0x2c] sm:$0xf]
  %v2994 = vld [vmem:[%s2981 + $0x30] sm:$0xf]
  %v2995 = vld [vmem:[%s2981 + $0x34] sm:$0xf]
  %v2996 = vld [vmem:[%s2981 + $0x38] sm:$0xf]
  %v2997 = vld [vmem:[%s2981 + $0x3c] sm:$0xf]
  %v2998 = vld [vmem:[%s2981 + $0x40] sm:$0xf]
  %v2999 = vld [vmem:[%s2981 + $0x44] sm:$0xf]
  %v3000 = vld [vmem:[%s2981 + $0x48] sm:$0xf]
  %v3001 = vld [vmem:[%s2981 + $0x4c] sm:$0xf]
  %v3002 = vld [vmem:[%s2981 + $0x50] sm:$0xf]
  %v3003 = vld [vmem:[%s2981 + $0x54] sm:$0xf]
  %v3004 = vld [vmem:[%s2981 + $0x58] sm:$0xf]
  %v3005 = vld [vmem:[%s2981 + $0x5c] sm:$0xf]
  %v3006 = vld [vmem:[%s2981 + $0x60] sm:$0xf]
  %v3007 = vld [vmem:[%s2981 + $0x64] sm:$0xf]
  %v3008 = vld [vmem:[%s2981 + $0x68] sm:$0xf]
  %v3009 = vld [vmem:[%s2981 + $0x6c] sm:$0xf]
  %v3010 = vld [vmem:[%s2981 + $0x70] sm:$0xf]
  %v3011 = vld [vmem:[%s2981 + $0x74] sm:$0xf]
  %v3012 = vld [vmem:[%s2981 + $0x78] sm:$0xf]
  %v3013 = vld [vmem:[%s2981 + $0x7c] sm:$0xf]
  %v3014 = vld [vmem:[%s2981 + $0x80] sm:$0xf]
  %v3015 = vld [vmem:[%s2981 + $0x84] sm:$0xf]
  %v3016 = vld [vmem:[%s2981 + $0x88] sm:$0xf]
  %v3017 = vld [vmem:[%s2981 + $0x8c] sm:$0xf]
  %v3018 = vld [vmem:[%s2981 + $0x90] sm:$0xf]
  %v3019 = vld [vmem:[%s2981 + $0x94] sm:$0xf]
  %v3020 = vld [vmem:[%s2981 + $0x98] sm:$0xf]
  %v3021 = vld [vmem:[%s2981 + $0x9c] sm:$0xf]
  %v3022 = vld [vmem:[%s2981 + $0xa0] sm:$0xf]
  %v3023 = vld [vmem:[%s2981 + $0xa4] sm:$0xf]
  %v3024 = vld [vmem:[%s2981 + $0xa8] sm:$0xf]
  %v3025 = vld [vmem:[%s2981 + $0xac] sm:$0xf]
  %v3026 = vld [vmem:[%s2981 + $0xb0] sm:$0xf]
  %v3027 = vld [vmem:[%s2981 + $0xb4] sm:$0xf]
  %v3028 = vld [vmem:[%s2981 + $0xb8] sm:$0xf]
  %v3029 = vld [vmem:[%s2981 + $0xbc] sm:$0xf]
  %v3030 = vld [vmem:[%s2981 + $0xc0] sm:$0xf]
  %v3031 = vld [vmem:[%s2981 + $0xc4] sm:$0xf]
  %v3032 = vld [vmem:[%s2981 + $0xc8] sm:$0xf]
  %v3033 = vld [vmem:[%s2981 + $0xcc] sm:$0xf]
  %v3034 = vld [vmem:[%s2981 + $0xd0] sm:$0xf]
  %v3035 = vld [vmem:[%s2981 + $0xd4] sm:$0xf]
  %v3036 = vld [vmem:[%s2981 + $0xd8] sm:$0xf]
  %v3037 = vld [vmem:[%s2981 + $0xdc] sm:$0xf]
  %v3038 = vld [vmem:[%s2981 + $0xe0] sm:$0xf]
  %v3039 = vld [vmem:[%s2981 + $0xe4] sm:$0xf]
  %v3040 = vld [vmem:[%s2981 + $0xe8] sm:$0xf]
  %v3041 = vld [vmem:[%s2981 + $0xec] sm:$0xf]
  %v3042 = vld [vmem:[%s2981 + $0xf0] sm:$0xf]
  %v3043 = vld [vmem:[%s2981 + $0xf4] sm:$0xf]
  %v3044 = vld [vmem:[%s2981 + $0xf8] sm:$0xf]
  %v3045 = vld [vmem:[%s2981 + $0xfc] sm:$0xf]
  %v3046 = vld [vmem:[%s2981 + $0x100] sm:$0xf]
  %v3047 = vld [vmem:[%s2981 + $0x104] sm:$0xf]
  %v3048 = vld [vmem:[%s2981 + $0x108] sm:$0xf]
  %v3049 = vld [vmem:[%s2981 + $0x10c] sm:$0xf]
  %v3050 = vld [vmem:[%s2981 + $0x110] sm:$0xf]
  %v3051 = vld [vmem:[%s2981 + $0x114] sm:$0xf]
  %v3052 = vld [vmem:[%s2981 + $0x118] sm:$0xf]
  %v3053 = vld [vmem:[%s2981 + $0x11c] sm:$0xf]
  %v3054 = vld [vmem:[%s2981 + $0x120] sm:$0xf]
  %v3055 = vld [vmem:[%s2981 + $0x124] sm:$0xf]
  %v3056 = vld [vmem:[%s2981 + $0x128] sm:$0xf]
  %v3057 = vld [vmem:[%s2981 + $0x12c] sm:$0xf]
  %v3058 = vld [vmem:[%s2981 + $0x130] sm:$0xf]
  %v3059 = vld [vmem:[%s2981 + $0x134] sm:$0xf]
  %v3060 = vld [vmem:[%s2981 + $0x138] sm:$0xf]
  %v3061 = vld [vmem:[%s2981 + $0x13c] sm:$0xf]
  %v3062 = vld [vmem:[%s2981 + $0x140] sm:$0xf]
  %v3063 = vld [vmem:[%s2981 + $0x144] sm:$0xf]
  %v3064 = vld [vmem:[%s2981 + $0x148] sm:$0xf]
  %v3065 = vld [vmem:[%s2981 + $0x14c] sm:$0xf]
  %v3066 = vld [vmem:[%s2981 + $0x150] sm:$0xf]
  %v3067 = vld [vmem:[%s2981 + $0x154] sm:$0xf]
  %v3068 = vld [vmem:[%s2981 + $0x158] sm:$0xf]
  %v3069 = vld [vmem:[%s2981 + $0x15c] sm:$0xf]
  %v3070 = vld [vmem:[%s2981 + $0x160] sm:$0xf]
  %v3071 = vld [vmem:[%s2981 + $0x164] sm:$0xf]
  %v3072 = vld [vmem:[%s2981 + $0x168] sm:$0xf]
  %v3073 = vld [vmem:[%s2981 + $0x16c] sm:$0xf]
  %v3074 = vld [vmem:[%s2981 + $0x170] sm:$0xf]
  %v3075 = vld [vmem:[%s2981 + $0x174] sm:$0xf]
  %v3076 = vld [vmem:[%s2981 + $0x178] sm:$0xf]
  %v3077 = vld [vmem:[%s2981 + $0x17c] sm:$0xf]
  %v3078 = vld [vmem:[%s2981 + $0x180] sm:$0xf]
  %v3079 = vld [vmem:[%s2981 + $0x184] sm:$0xf]
  %v3178 = vunpack.c.l.b16 %v2982
  %v3179 = vunpack.c.l.b16 %v2983
  %v3180 = vunpack.c.l.b16 %v2984
  %v3181 = vunpack.c.l.b16 %v2985
  %v3182 = vunpack.c.l.b16 %v2986
  %v3183 = vunpack.c.l.b16 %v2987
  %v3184 = vunpack.c.l.b16 %v2988
  %v3185 = vunpack.c.l.b16 %v2989
  %v3186 = vunpack.c.l.b16 %v2990
  %v3187 = vunpack.c.l.b16 %v2991
  %v3188 = vunpack.c.l.b16 %v2992
  %v3189 = vunpack.c.l.b16 %v2993
  %v3190 = vunpack.c.l.b16 %v2994
  %v3191 = vunpack.c.l.b16 %v2995
  %v3192 = vunpack.c.l.b16 %v2996
  %v3193 = vunpack.c.l.b16 %v2997
  %v3194 = vunpack.c.l.b16 %v2998
  %v3195 = vunpack.c.l.b16 %v2999
  %v3196 = vunpack.c.l.b16 %v3000
  %v3197 = vunpack.c.l.b16 %v3001
  %v3198 = vunpack.c.l.b16 %v3002
  %v3199 = vunpack.c.l.b16 %v3003
  %v3200 = vunpack.c.l.b16 %v3004
  %v3201 = vunpack.c.l.b16 %v3005
  %v3202 = vunpack.c.l.b16 %v3006
  %v3203 = vunpack.c.l.b16 %v3007
  %v3204 = vunpack.c.l.b16 %v3008
  %v3205 = vunpack.c.l.b16 %v3009
  %v3206 = vunpack.c.l.b16 %v3010
  %v3207 = vunpack.c.l.b16 %v3011
  %v3208 = vunpack.c.l.b16 %v3012
  %v3209 = vunpack.c.l.b16 %v3013
  %v3210 = vunpack.c.l.b16 %v3014
  %v3211 = vunpack.c.l.b16 %v3015
  %v3212 = vunpack.c.l.b16 %v3016
  %v3213 = vunpack.c.l.b16 %v3017
  %v3214 = vunpack.c.l.b16 %v3018
  %v3215 = vunpack.c.l.b16 %v3019
  %v3216 = vunpack.c.l.b16 %v3020
  %v3217 = vunpack.c.l.b16 %v3021
  %v3218 = vunpack.c.l.b16 %v3022
  %v3219 = vunpack.c.l.b16 %v3023
  %v3220 = vunpack.c.l.b16 %v3024
  %v3221 = vunpack.c.l.b16 %v3025
  %v3222 = vunpack.c.l.b16 %v3026
  %v3223 = vunpack.c.l.b16 %v3027
  %v3224 = vunpack.c.l.b16 %v3028
  %v3225 = vunpack.c.l.b16 %v3029
  %v3226 = vunpack.c.l.b16 %v3030
  %v3227 = vunpack.c.l.b16 %v3031
  %v3228 = vunpack.c.l.b16 %v3032
  %v3229 = vunpack.c.l.b16 %v3033
  %v3230 = vunpack.c.l.b16 %v3034
  %v3231 = vunpack.c.l.b16 %v3035
  %v3232 = vunpack.c.l.b16 %v3036
  %v3233 = vunpack.c.l.b16 %v3037
  %v3234 = vunpack.c.l.b16 %v3038
  %v3235 = vunpack.c.l.b16 %v3039
  %v3236 = vunpack.c.l.b16 %v3040
  %v3237 = vunpack.c.l.b16 %v3041
  %v3238 = vunpack.c.l.b16 %v3042
  %v3239 = vunpack.c.l.b16 %v3043
  %v3240 = vunpack.c.l.b16 %v3044
  %v3241 = vunpack.c.l.b16 %v3045
  %v3242 = vunpack.c.l.b16 %v3046
  %v3243 = vunpack.c.l.b16 %v3047
  %v3244 = vunpack.c.l.b16 %v3048
  %v3245 = vunpack.c.l.b16 %v3049
  %v3246 = vunpack.c.l.b16 %v3050
  %v3247 = vunpack.c.l.b16 %v3051
  %v3248 = vunpack.c.l.b16 %v3052
  %v3249 = vunpack.c.l.b16 %v3053
  %v3250 = vunpack.c.l.b16 %v3054
  %v3251 = vunpack.c.l.b16 %v3055
  %v3252 = vunpack.c.l.b16 %v3056
  %v3253 = vunpack.c.l.b16 %v3057
  %v3254 = vunpack.c.l.b16 %v3058
  %v3255 = vunpack.c.l.b16 %v3059
  %v3256 = vunpack.c.l.b16 %v3060
  %v3257 = vunpack.c.l.b16 %v3061
  %v3258 = vunpack.c.l.b16 %v3062
  %v3259 = vunpack.c.l.b16 %v3063
  %v3260 = vunpack.c.l.b16 %v3064
  %v3261 = vunpack.c.l.b16 %v3065
  %v3262 = vunpack.c.l.b16 %v3066
  %v3263 = vunpack.c.l.b16 %v3067
  %v3264 = vunpack.c.l.b16 %v3068
  %v3265 = vunpack.c.l.b16 %v3069
  %v3266 = vunpack.c.l.b16 %v3070
  %v3267 = vunpack.c.l.b16 %v3071
  %v3268 = vunpack.c.l.b16 %v3072
  %v3269 = vunpack.c.l.b16 %v3073
  %v3270 = vunpack.c.l.b16 %v3074
  %v3271 = vunpack.c.l.b16 %v3075
  %v3272 = vunpack.c.l.b16 %v3076
  %v3273 = vunpack.c.l.b16 %v3077
  %v3274 = vunpack.c.l.b16 %v3078
  %v3275 = vunpack.c.l.b16 %v3079
  %v3276 = vpack.c.b16 %v3179, %v3178
  %v3277 = vpack.c.b16 %v3181, %v3180
  %v3278 = vpack.c.b16 %v3183, %v3182
  %v3279 = vpack.c.b16 %v3185, %v3184
  %v3280 = vpack.c.b16 %v3187, %v3186
  %v3281 = vpack.c.b16 %v3189, %v3188
  %v3282 = vpack.c.b16 %v3191, %v3190
  %v3283 = vpack.c.b16 %v3193, %v3192
  %v3284 = vpack.c.b16 %v3195, %v3194
  %v3285 = vpack.c.b16 %v3197, %v3196
  %v3286 = vpack.c.b16 %v3199, %v3198
  %v3287 = vpack.c.b16 %v3201, %v3200
  %v3288 = vpack.c.b16 %v3203, %v3202
  %v3289 = vpack.c.b16 %v3205, %v3204
  %v3290 = vpack.c.b16 %v3207, %v3206
  %v3291 = vpack.c.b16 %v3209, %v3208
  %v3292 = vpack.c.b16 %v3211, %v3210
  %v3293 = vpack.c.b16 %v3213, %v3212
  %v3294 = vpack.c.b16 %v3215, %v3214
  %v3295 = vpack.c.b16 %v3217, %v3216
  %v3296 = vpack.c.b16 %v3219, %v3218
  %v3297 = vpack.c.b16 %v3221, %v3220
  %v3298 = vpack.c.b16 %v3223, %v3222
  %v3299 = vpack.c.b16 %v3225, %v3224
  %v3300 = vpack.c.b16 %v3227, %v3226
  %v3301 = vpack.c.b16 %v3229, %v3228
  %v3302 = vpack.c.b16 %v3231, %v3230
  %v3303 = vpack.c.b16 %v3233, %v3232
  %v3304 = vpack.c.b16 %v3235, %v3234
  %v3305 = vpack.c.b16 %v3237, %v3236
  %v3306 = vpack.c.b16 %v3239, %v3238
  %v3307 = vpack.c.b16 %v3241, %v3240
  %v3308 = vpack.c.b16 %v3243, %v3242
  %v3309 = vpack.c.b16 %v3245, %v3244
  %v3310 = vpack.c.b16 %v3247, %v3246
  %v3311 = vpack.c.b16 %v3249, %v3248
  %v3312 = vpack.c.b16 %v3251, %v3250
  %v3313 = vpack.c.b16 %v3253, %v3252
  %v3314 = vpack.c.b16 %v3255, %v3254
  %v3315 = vpack.c.b16 %v3257, %v3256
  %v3316 = vpack.c.b16 %v3259, %v3258
  %v3317 = vpack.c.b16 %v3261, %v3260
  %v3318 = vpack.c.b16 %v3263, %v3262
  %v3319 = vpack.c.b16 %v3265, %v3264
  %v3320 = vpack.c.b16 %v3267, %v3266
  %v3321 = vpack.c.b16 %v3269, %v3268
  %v3322 = vpack.c.b16 %v3271, %v3270
  %v3323 = vpack.c.b16 %v3273, %v3272
  %v3324 = vpack.c.b16 %v3275, %v3274
  %v3326 = vsel %vm373, %v3276, 0
  %v3329 = vsel %vm373, %v3277, 0
  %v3332 = vsel %vm373, %v3278, 0
  %v3335 = vsel %vm373, %v3279, 0
  %v3338 = vsel %vm373, %v3280, 0
  %v3341 = vsel %vm373, %v3281, 0
  %v3344 = vsel %vm373, %v3282, 0
  %v3347 = vsel %vm373, %v3283, 0
  %v3350 = vsel %vm373, %v3284, 0
  %v3353 = vsel %vm373, %v3285, 0
  %v3356 = vsel %vm373, %v3286, 0
  %v3359 = vsel %vm373, %v3287, 0
  %v3362 = vsel %vm373, %v3288, 0
  %v3365 = vsel %vm373, %v3289, 0
  %v3368 = vsel %vm373, %v3290, 0
  %v3371 = vsel %vm373, %v3291, 0
  %v3374 = vsel %vm373, %v3292, 0
  %v3377 = vsel %vm373, %v3293, 0
  %v3380 = vsel %vm373, %v3294, 0
  %v3383 = vsel %vm373, %v3295, 0
  %v3386 = vsel %vm373, %v3296, 0
  %v3389 = vsel %vm373, %v3297, 0
  %v3392 = vsel %vm373, %v3298, 0
  %v3395 = vsel %vm373, %v3299, 0
  %v3398 = vsel %vm373, %v3300, 0
  %v3401 = vsel %vm373, %v3301, 0
  %v3404 = vsel %vm373, %v3302, 0
  %v3407 = vsel %vm373, %v3303, 0
  %v3410 = vsel %vm373, %v3304, 0
  %v3413 = vsel %vm373, %v3305, 0
  %v3416 = vsel %vm373, %v3306, 0
  %v3419 = vsel %vm373, %v3307, 0
  %v3422 = vsel %vm373, %v3308, 0
  %v3425 = vsel %vm373, %v3309, 0
  %v3428 = vsel %vm373, %v3310, 0
  %v3431 = vsel %vm373, %v3311, 0
  %v3434 = vsel %vm373, %v3312, 0
  %v3437 = vsel %vm373, %v3313, 0
  %v3440 = vsel %vm373, %v3314, 0
  %v3443 = vsel %vm373, %v3315, 0
  %v3446 = vsel %vm373, %v3316, 0
  %v3449 = vsel %vm373, %v3317, 0
  %v3452 = vsel %vm373, %v3318, 0
  %v3455 = vsel %vm373, %v3319, 0
  %v3458 = vsel %vm373, %v3320, 0
  %v3461 = vsel %vm373, %v3321, 0
  %v3464 = vsel %vm373, %v3322, 0
  %v3467 = vsel %vm373, %v3323, 0
  %v3470 = vsel %vm373, %v3324, 0
  %3472 = vmatprep.subr.bf16.mxu0 0
  %3473 = vmatpush1.bf16.msra.mxu0 %v370
  %3474 = vmatprep.subr.bf16.mxu0 0
  %3475 = vmatpush1.bf16.msra.mxu0 %v526
  %3476 = vmatprep.subr.bf16.mxu0 0
  %3477 = vmatpush1.bf16.msra.mxu0 0
  %3478 = vmatprep.subr.bf16.mxu0 0
  %3479 = vmatpush1.bf16.msra.mxu0 0
  %3480 = vmatprep.subr.bf16.mxu0 0
  %3481 = vmatpush1.bf16.msra.mxu0 0
  %3482 = vmatprep.subr.bf16.mxu0 0
  %3483 = vmatpush1.bf16.msra.mxu0 0
  %3484 = vmatprep.subr.bf16.mxu0 0
  %3485 = vmatpush1.bf16.msra.mxu0 0
  %3486 = vmatprep.subr.bf16.mxu0 0
  %3487 = vmatpush1.bf16.msra.mxu0 0
  %3488 = vmatprep.subr.bf16.mxu0 0
  %3489 = vmatpush1.bf16.msra.mxu0 0
  %3490 = vmatprep.subr.bf16.mxu0 0
  %3491 = vmatpush1.bf16.msra.mxu0 0
  %3492 = vmatprep.subr.bf16.mxu0 0
  %3493 = vmatpush1.bf16.msra.mxu0 0
  %3494 = vmatprep.subr.bf16.mxu0 0
  %3495 = vmatpush1.bf16.msra.mxu0 0
  %3496 = vmatprep.subr.bf16.mxu0 0
  %3497 = vmatpush1.bf16.msra.mxu0 0
  %3498 = vmatprep.subr.bf16.mxu0 0
  %3499 = vmatpush1.bf16.msra.mxu0 0
  %3500 = vmatprep.subr.bf16.mxu0 0
  %3501 = vmatpush1.bf16.msra.mxu0 0
  %3502 = vmatprep.subr.bf16.mxu0 0
  %3503 = vmatpush1.bf16.msra.mxu0 0
  %3504 = vmatprep.mubr.bf16.mxu0 0
  %3505 = vmatmul.mubr.bf16.gmra.mrb[0].mxu0 %v3326
  %v3506 = vpop.f32.mrb[0].mxu0
  %v3507 = vadd.f32 0.0, %v3506
  %v3508 = vpop.f32.mrb[0].mxu0
  %v3509 = vpop.f32.mrb[0].mxu0
  %v3510 = vadd.f32 0.0, %v3509
  %v3511 = vpop.f32.mrb[0].mxu0
  %3512 = vmatprep.mubr.bf16.mxu0 0
  %3513 = vmatmul.mubr.bf16.gmra.mrb[0].mxu0 %v3329
  %v3514 = vpop.f32.mrb[0].mxu0
  %v3515 = vadd.f32 0.0, %v3514
  %v3516 = vpop.f32.mrb[0].mxu0
  %v3517 = vpop.f32.mrb[0].mxu0
  %v3518 = vadd.f32 0.0, %v3517
  %v3519 = vpop.f32.mrb[0].mxu0
  %3520 = vmatprep.mubr.bf16.mxu0 0
  %3521 = vmatmul.mubr.bf16.gmra.mrb[0].mxu0 %v3332
  %v3522 = vpop.f32.mrb[0].mxu0
  %v3523 = vadd.f32 0.0, %v3522
  %v3524 = vpop.f32.mrb[0].mxu0
  %v3525 = vpop.f32.mrb[0].mxu0
  %v3526 = vadd.f32 0.0, %v3525
  %v3527 = vpop.f32.mrb[0].mxu0
  %3528 = vmatprep.mubr.bf16.mxu0 0
  %3529 = vmatmul.mubr.bf16.gmra.mrb[0].mxu0 %v3335
  %v3530 = vpop.f32.mrb[0].mxu0
  %v3531 = vadd.f32 0.0, %v3530
  %v3532 = vpop.f32.mrb[0].mxu0
  %v3533 = vpop.f32.mrb[0].mxu0
  %v3534 = vadd.f32 0.0, %v3533
  %v3535 = vpop.f32.mrb[0].mxu0
  %3536 = vmatprep.mubr.bf16.mxu0 0
  %3537 = vmatmul.mubr.bf16.gmra.mrb[0].mxu0 %v3338
  %v3538 = vpop.f32.mrb[0].mxu0
  %v3539 = vadd.f32 0.0, %v3538
  %v3540 = vpop.f32.mrb[0].mxu0
  %v3541 = vpop.f32.mrb[0].mxu0
  %v3542 = vadd.f32 0.0, %v3541
  %v3543 = vpop.f32.mrb[0].mxu0
  %3544 = vmatprep.mubr.bf16.mxu0 0
  %3545 = vmatmul.mubr.bf16.gmra.mrb[0].mxu0 %v3341
  %v3546 = vpop.f32.mrb[0].mxu0
  %v3547 = vadd.f32 0.0, %v3546
  %v3548 = vpop.f32.mrb[0].mxu0
  %v3549 = vpop.f32.mrb[0].mxu0
  %v3550 = vadd.f32 0.0, %v3549
  %v3551 = vpop.f32.mrb[0].mxu0
  %3552 = vmatprep.mubr.bf16.mxu0 0
  %3553 = vmatmul.mubr.bf16.gmra.mrb[0].mxu0 %v3344
  %v3554 = vpop.f32.mrb[0].mxu0
  %v3555 = vadd.f32 0.0, %v3554
  %v3556 = vpop.f32.mrb[0].mxu0
  %v3557 = vpop.f32.mrb[0].mxu0
  %v3558 = vadd.f32 0.0, %v3557
  %v3559 = vpop.f32.mrb[0].mxu0
  %3560 = vmatprep.mubr.bf16.mxu0 0
  %3561 = vmatmul.mubr.bf16.gmra.mrb[0].mxu0 %v3347
  %v3562 = vpop.f32.mrb[0].mxu0
  %v3563 = vadd.f32 0.0, %v3562
  %v3564 = vpop.f32.mrb[0].mxu0
  %v3565 = vpop.f32.mrb[0].mxu0
  %v3566 = vadd.f32 0.0, %v3565
  %v3567 = vpop.f32.mrb[0].mxu0
  %3568 = vmatprep.mubr.bf16.mxu0 0
  %3569 = vmatmul.mubr.bf16.gmra.mrb[0].mxu0 %v3350
  %v3570 = vpop.f32.mrb[0].mxu0
  %v3571 = vadd.f32 0.0, %v3570
  %v3572 = vpop.f32.mrb[0].mxu0
  %v3573 = vpop.f32.mrb[0].mxu0
  %v3574 = vadd.f32 0.0, %v3573
  %v3575 = vpop.f32.mrb[0].mxu0
  %3576 = vmatprep.mubr.bf16.mxu0 0
  %3577 = vmatmul.mubr.bf16.gmra.mrb[0].mxu0 %v3353
  %v3578 = vpop.f32.mrb[0].mxu0
  %v3579 = vadd.f32 0.0, %v3578
  %v3580 = vpop.f32.mrb[0].mxu0
  %v3581 = vpop.f32.mrb[0].mxu0
  %v3582 = vadd.f32 0.0, %v3581
  %v3583 = vpop.f32.mrb[0].mxu0
  %3584 = vmatprep.mubr.bf16.mxu0 0
  %3585 = vmatmul.mubr.bf16.gmra.mrb[0].mxu0 %v3356
  %v3586 = vpop.f32.mrb[0].mxu0
  %v3587 = vadd.f32 0.0, %v3586
  %v3588 = vpop.f32.mrb[0].mxu0
  %v3589 = vpop.f32.mrb[0].mxu0
  %v3590 = vadd.f32 0.0, %v3589
  %v3591 = vpop.f32.mrb[0].mxu0
  %3592 = vmatprep.mubr.bf16.mxu0 0
  %3593 = vmatmul.mubr.bf16.gmra.mrb[0].mxu0 %v3359
  %v3594 = vpop.f32.mrb[0].mxu0
  %v3595 = vadd.f32 0.0, %v3594
  %v3596 = vpop.f32.mrb[0].mxu0
  %v3597 = vpop.f32.mrb[0].mxu0
  %v3598 = vadd.f32 0.0, %v3597
  %v3599 = vpop.f32.mrb[0].mxu0
  %3600 = vmatprep.mubr.bf16.mxu0 0
  %3601 = vmatmul.mubr.bf16.gmra.mrb[0].mxu0 %v3362
  %v3602 = vpop.f32.mrb[0].mxu0
  %v3603 = vadd.f32 0.0, %v3602
  %v3604 = vpop.f32.mrb[0].mxu0
  %v3605 = vpop.f32.mrb[0].mxu0
  %v3606 = vadd.f32 0.0, %v3605
  %v3607 = vpop.f32.mrb[0].mxu0
  %3608 = vmatprep.mubr.bf16.mxu0 0
  %3609 = vmatmul.mubr.bf16.gmra.mrb[0].mxu0 %v3365
  %v3610 = vpop.f32.mrb[0].mxu0
  %v3611 = vadd.f32 0.0, %v3610
  %v3612 = vpop.f32.mrb[0].mxu0
  %v3613 = vpop.f32.mrb[0].mxu0
  %v3614 = vadd.f32 0.0, %v3613
  %v3615 = vpop.f32.mrb[0].mxu0
  %3616 = vmatprep.mubr.bf16.mxu0 0
  %3617 = vmatmul.mubr.bf16.gmra.mrb[0].mxu0 %v3368
  %v3618 = vpop.f32.mrb[0].mxu0
  %v3619 = vadd.f32 0.0, %v3618
  %v3620 = vpop.f32.mrb[0].mxu0
  %v3621 = vpop.f32.mrb[0].mxu0
  %v3622 = vadd.f32 0.0, %v3621
  %v3623 = vpop.f32.mrb[0].mxu0
  %3624 = vmatprep.mubr.bf16.mxu0 0
  %3625 = vmatmul.mubr.bf16.gmra.mrb[0].mxu0 %v3371
  %v3626 = vpop.f32.mrb[0].mxu0
  %v3627 = vadd.f32 0.0, %v3626
  %v3628 = vpop.f32.mrb[0].mxu0
  %v3629 = vpop.f32.mrb[0].mxu0
  %v3630 = vadd.f32 0.0, %v3629
  %v3631 = vpop.f32.mrb[0].mxu0
  %3632 = vmatprep.mubr.bf16.mxu0 0
  %3633 = vmatmul.mubr.bf16.gmra.mrb[0].mxu0 %v3374
  %v3634 = vpop.f32.mrb[0].mxu0
  %v3635 = vadd.f32 0.0, %v3634
  %v3636 = vpop.f32.mrb[0].mxu0
  %v3637 = vpop.f32.mrb[0].mxu0
  %v3638 = vadd.f32 0.0, %v3637
  %v3639 = vpop.f32.mrb[0].mxu0
  %3640 = vmatprep.mubr.bf16.mxu0 0
  %3641 = vmatmul.mubr.bf16.gmra.mrb[0].mxu0 %v3377
  %v3642 = vpop.f32.mrb[0].mxu0
  %v3643 = vadd.f32 0.0, %v3642
  %v3644 = vpop.f32.mrb[0].mxu0
  %v3645 = vpop.f32.mrb[0].mxu0
  %v3646 = vadd.f32 0.0, %v3645
  %v3647 = vpop.f32.mrb[0].mxu0
  %3648 = vmatprep.mubr.bf16.mxu0 0
  %3649 = vmatmul.mubr.bf16.gmra.mrb[0].mxu0 %v3380
  %v3650 = vpop.f32.mrb[0].mxu0
  %v3651 = vadd.f32 0.0, %v3650
  %v3652 = vpop.f32.mrb[0].mxu0
  %v3653 = vpop.f32.mrb[0].mxu0
  %v3654 = vadd.f32 0.0, %v3653
  %v3655 = vpop.f32.mrb[0].mxu0
  %3656 = vmatprep.mubr.bf16.mxu0 0
  %3657 = vmatmul.mubr.bf16.gmra.mrb[0].mxu0 %v3383
  %v3658 = vpop.f32.mrb[0].mxu0
  %v3659 = vadd.f32 0.0, %v3658
  %v3660 = vpop.f32.mrb[0].mxu0
  %v3661 = vpop.f32.mrb[0].mxu0
  %v3662 = vadd.f32 0.0, %v3661
  %v3663 = vpop.f32.mrb[0].mxu0
  %3664 = vmatprep.mubr.bf16.mxu0 0
  %3665 = vmatmul.mubr.bf16.gmra.mrb[0].mxu0 %v3386
  %v3666 = vpop.f32.mrb[0].mxu0
  %v3667 = vadd.f32 0.0, %v3666
  %v3668 = vpop.f32.mrb[0].mxu0
  %v3669 = vpop.f32.mrb[0].mxu0
  %v3670 = vadd.f32 0.0, %v3669
  %v3671 = vpop.f32.mrb[0].mxu0
  %3672 = vmatprep.mubr.bf16.mxu0 0
  %3673 = vmatmul.mubr.bf16.gmra.mrb[0].mxu0 %v3389
  %v3674 = vpop.f32.mrb[0].mxu0
  %v3675 = vadd.f32 0.0, %v3674
  %v3676 = vpop.f32.mrb[0].mxu0
  %v3677 = vpop.f32.mrb[0].mxu0
  %v3678 = vadd.f32 0.0, %v3677
  %v3679 = vpop.f32.mrb[0].mxu0
  %3680 = vmatprep.mubr.bf16.mxu0 0
  %3681 = vmatmul.mubr.bf16.gmra.mrb[0].mxu0 %v3392
  %v3682 = vpop.f32.mrb[0].mxu0
  %v3683 = vadd.f32 0.0, %v3682
  %v3684 = vpop.f32.mrb[0].mxu0
  %v3685 = vpop.f32.mrb[0].mxu0
  %v3686 = vadd.f32 0.0, %v3685
  %v3687 = vpop.f32.mrb[0].mxu0
  %3688 = vmatprep.mubr.bf16.mxu0 0
  %3689 = vmatmul.mubr.bf16.gmra.mrb[0].mxu0 %v3395
  %v3690 = vpop.f32.mrb[0].mxu0
  %v3691 = vadd.f32 0.0, %v3690
  %v3692 = vpop.f32.mrb[0].mxu0
  %v3693 = vpop.f32.mrb[0].mxu0
  %v3694 = vadd.f32 0.0, %v3693
  %v3695 = vpop.f32.mrb[0].mxu0
  %3696 = vmatprep.mubr.bf16.mxu0 0
  %3697 = vmatmul.mubr.bf16.gmra.mrb[0].mxu0 %v3398
  %v3698 = vpop.f32.mrb[0].mxu0
  %v3699 = vadd.f32 0.0, %v3698
  %v3700 = vpop.f32.mrb[0].mxu0
  %v3701 = vpop.f32.mrb[0].mxu0
  %v3702 = vadd.f32 0.0, %v3701
  %v3703 = vpop.f32.mrb[0].mxu0
  %3704 = vmatprep.mubr.bf16.mxu0 0
  %3705 = vmatmul.mubr.bf16.gmra.mrb[0].mxu0 %v3401
  %v3706 = vpop.f32.mrb[0].mxu0
  %v3707 = vadd.f32 0.0, %v3706
  %v3708 = vpop.f32.mrb[0].mxu0
  %v3709 = vpop.f32.mrb[0].mxu0
  %v3710 = vadd.f32 0.0, %v3709
  %v3711 = vpop.f32.mrb[0].mxu0
  %3712 = vmatprep.mubr.bf16.mxu0 0
  %3713 = vmatmul.mubr.bf16.gmra.mrb[0].mxu0 %v3404
  %v3714 = vpop.f32.mrb[0].mxu0
  %v3715 = vadd.f32 0.0, %v3714
  %v3716 = vpop.f32.mrb[0].mxu0
  %v3717 = vpop.f32.mrb[0].mxu0
  %v3718 = vadd.f32 0.0, %v3717
  %v3719 = vpop.f32.mrb[0].mxu0
  %3720 = vmatprep.mubr.bf16.mxu0 0
  %3721 = vmatmul.mubr.bf16.gmra.mrb[0].mxu0 %v3407
  %v3722 = vpop.f32.mrb[0].mxu0
  %v3723 = vadd.f32 0.0, %v3722
  %v3724 = vpop.f32.mrb[0].mxu0
  %v3725 = vpop.f32.mrb[0].mxu0
  %v3726 = vadd.f32 0.0, %v3725
  %v3727 = vpop.f32.mrb[0].mxu0
  %3728 = vmatprep.mubr.bf16.mxu0 0
  %3729 = vmatmul.mubr.bf16.gmra.mrb[0].mxu0 %v3410
  %v3730 = vpop.f32.mrb[0].mxu0
  %v3731 = vadd.f32 0.0, %v3730
  %v3732 = vpop.f32.mrb[0].mxu0
  %v3733 = vpop.f32.mrb[0].mxu0
  %v3734 = vadd.f32 0.0, %v3733
  %v3735 = vpop.f32.mrb[0].mxu0
  %3736 = vmatprep.mubr.bf16.mxu0 0
  %3737 = vmatmul.mubr.bf16.gmra.mrb[0].mxu0 %v3413
  %v3738 = vpop.f32.mrb[0].mxu0
  %v3739 = vadd.f32 0.0, %v3738
  %v3740 = vpop.f32.mrb[0].mxu0
  %v3741 = vpop.f32.mrb[0].mxu0
  %v3742 = vadd.f32 0.0, %v3741
  %v3743 = vpop.f32.mrb[0].mxu0
  %3744 = vmatprep.mubr.bf16.mxu0 0
  %3745 = vmatmul.mubr.bf16.gmra.mrb[0].mxu0 %v3416
  %v3746 = vpop.f32.mrb[0].mxu0
  %v3747 = vadd.f32 0.0, %v3746
  %v3748 = vpop.f32.mrb[0].mxu0
  %v3749 = vpop.f32.mrb[0].mxu0
  %v3750 = vadd.f32 0.0, %v3749
  %v3751 = vpop.f32.mrb[0].mxu0
  %3752 = vmatprep.mubr.bf16.mxu0 0
  %3753 = vmatmul.mubr.bf16.gmra.mrb[0].mxu0 %v3419
  %v3754 = vpop.f32.mrb[0].mxu0
  %v3755 = vadd.f32 0.0, %v3754
  %v3756 = vpop.f32.mrb[0].mxu0
  %v3757 = vpop.f32.mrb[0].mxu0
  %v3758 = vadd.f32 0.0, %v3757
  %v3759 = vpop.f32.mrb[0].mxu0
  %3760 = vmatprep.mubr.bf16.mxu0 0
  %3761 = vmatmul.mubr.bf16.gmra.mrb[0].mxu0 %v3422
  %v3762 = vpop.f32.mrb[0].mxu0
  %v3763 = vadd.f32 0.0, %v3762
  %v3764 = vpop.f32.mrb[0].mxu0
  %v3765 = vpop.f32.mrb[0].mxu0
  %v3766 = vadd.f32 0.0, %v3765
  %v3767 = vpop.f32.mrb[0].mxu0
  %3768 = vmatprep.mubr.bf16.mxu0 0
  %3769 = vmatmul.mubr.bf16.gmra.mrb[0].mxu0 %v3425
  %v3770 = vpop.f32.mrb[0].mxu0
  %v3771 = vadd.f32 0.0, %v3770
  %v3772 = vpop.f32.mrb[0].mxu0
  %v3773 = vpop.f32.mrb[0].mxu0
  %v3774 = vadd.f32 0.0, %v3773
  %v3775 = vpop.f32.mrb[0].mxu0
  %3776 = vmatprep.mubr.bf16.mxu0 0
  %3777 = vmatmul.mubr.bf16.gmra.mrb[0].mxu0 %v3428
  %v3778 = vpop.f32.mrb[0].mxu0
  %v3779 = vadd.f32 0.0, %v3778
  %v3780 = vpop.f32.mrb[0].mxu0
  %v3781 = vpop.f32.mrb[0].mxu0
  %v3782 = vadd.f32 0.0, %v3781
  %v3783 = vpop.f32.mrb[0].mxu0
  %3784 = vmatprep.mubr.bf16.mxu0 0
  %3785 = vmatmul.mubr.bf16.gmra.mrb[0].mxu0 %v3431
  %v3786 = vpop.f32.mrb[0].mxu0
  %v3787 = vadd.f32 0.0, %v3786
  %v3788 = vpop.f32.mrb[0].mxu0
  %v3789 = vpop.f32.mrb[0].mxu0
  %v3790 = vadd.f32 0.0, %v3789
  %v3791 = vpop.f32.mrb[0].mxu0
  %3792 = vmatprep.mubr.bf16.mxu0 0
  %3793 = vmatmul.mubr.bf16.gmra.mrb[0].mxu0 %v3434
  %v3794 = vpop.f32.mrb[0].mxu0
  %v3795 = vadd.f32 0.0, %v3794
  %v3796 = vpop.f32.mrb[0].mxu0
  %v3797 = vpop.f32.mrb[0].mxu0
  %v3798 = vadd.f32 0.0, %v3797
  %v3799 = vpop.f32.mrb[0].mxu0
  %3800 = vmatprep.mubr.bf16.mxu0 0
  %3801 = vmatmul.mubr.bf16.gmra.mrb[0].mxu0 %v3437
  %v3802 = vpop.f32.mrb[0].mxu0
  %v3803 = vadd.f32 0.0, %v3802
  %v3804 = vpop.f32.mrb[0].mxu0
  %v3805 = vpop.f32.mrb[0].mxu0
  %v3806 = vadd.f32 0.0, %v3805
  %v3807 = vpop.f32.mrb[0].mxu0
  %3808 = vmatprep.mubr.bf16.mxu0 0
  %3809 = vmatmul.mubr.bf16.gmra.mrb[0].mxu0 %v3440
  %v3810 = vpop.f32.mrb[0].mxu0
  %v3811 = vadd.f32 0.0, %v3810
  %v3812 = vpop.f32.mrb[0].mxu0
  %v3813 = vpop.f32.mrb[0].mxu0
  %v3814 = vadd.f32 0.0, %v3813
  %v3815 = vpop.f32.mrb[0].mxu0
  %3816 = vmatprep.mubr.bf16.mxu0 0
  %3817 = vmatmul.mubr.bf16.gmra.mrb[0].mxu0 %v3443
  %v3818 = vpop.f32.mrb[0].mxu0
  %v3819 = vadd.f32 0.0, %v3818
  %v3820 = vpop.f32.mrb[0].mxu0
  %v3821 = vpop.f32.mrb[0].mxu0
  %v3822 = vadd.f32 0.0, %v3821
  %v3823 = vpop.f32.mrb[0].mxu0
  %3824 = vmatprep.mubr.bf16.mxu0 0
  %3825 = vmatmul.mubr.bf16.gmra.mrb[0].mxu0 %v3446
  %v3826 = vpop.f32.mrb[0].mxu0
  %v3827 = vadd.f32 0.0, %v3826
  %v3828 = vpop.f32.mrb[0].mxu0
  %v3829 = vpop.f32.mrb[0].mxu0
  %v3830 = vadd.f32 0.0, %v3829
  %v3831 = vpop.f32.mrb[0].mxu0
  %3832 = vmatprep.mubr.bf16.mxu0 0
  %3833 = vmatmul.mubr.bf16.gmra.mrb[0].mxu0 %v3449
  %v3834 = vpop.f32.mrb[0].mxu0
  %v3835 = vadd.f32 0.0, %v3834
  %v3836 = vpop.f32.mrb[0].mxu0
  %v3837 = vpop.f32.mrb[0].mxu0
  %v3838 = vadd.f32 0.0, %v3837
  %v3839 = vpop.f32.mrb[0].mxu0
  %3840 = vmatprep.mubr.bf16.mxu0 0
  %3841 = vmatmul.mubr.bf16.gmra.mrb[0].mxu0 %v3452
  %v3842 = vpop.f32.mrb[0].mxu0
  %v3843 = vadd.f32 0.0, %v3842
  %v3844 = vpop.f32.mrb[0].mxu0
  %v3845 = vpop.f32.mrb[0].mxu0
  %v3846 = vadd.f32 0.0, %v3845
  %v3847 = vpop.f32.mrb[0].mxu0
  %3848 = vmatprep.mubr.bf16.mxu0 0
  %3849 = vmatmul.mubr.bf16.gmra.mrb[0].mxu0 %v3455
  %v3850 = vpop.f32.mrb[0].mxu0
  %v3851 = vadd.f32 0.0, %v3850
  %v3852 = vpop.f32.mrb[0].mxu0
  %v3853 = vpop.f32.mrb[0].mxu0
  %v3854 = vadd.f32 0.0, %v3853
  %v3855 = vpop.f32.mrb[0].mxu0
  %3856 = vmatprep.mubr.bf16.mxu0 0
  %3857 = vmatmul.mubr.bf16.gmra.mrb[0].mxu0 %v3458
  %v3858 = vpop.f32.mrb[0].mxu0
  %v3859 = vadd.f32 0.0, %v3858
  %v3860 = vpop.f32.mrb[0].mxu0
  %v3861 = vpop.f32.mrb[0].mxu0
  %v3862 = vadd.f32 0.0, %v3861
  %v3863 = vpop.f32.mrb[0].mxu0
  %3864 = vmatprep.mubr.bf16.mxu0 0
  %3865 = vmatmul.mubr.bf16.gmra.mrb[0].mxu0 %v3461
  %v3866 = vpop.f32.mrb[0].mxu0
  %v3867 = vadd.f32 0.0, %v3866
  %v3868 = vpop.f32.mrb[0].mxu0
  %v3869 = vpop.f32.mrb[0].mxu0
  %v3870 = vadd.f32 0.0, %v3869
  %v3871 = vpop.f32.mrb[0].mxu0
  %3872 = vmatprep.mubr.bf16.mxu0 0
  %3873 = vmatmul.mubr.bf16.gmra.mrb[0].mxu0 %v3464
  %v3874 = vpop.f32.mrb[0].mxu0
  %v3875 = vadd.f32 0.0, %v3874
  %v3876 = vpop.f32.mrb[0].mxu0
  %v3877 = vpop.f32.mrb[0].mxu0
  %v3878 = vadd.f32 0.0, %v3877
  %v3879 = vpop.f32.mrb[0].mxu0
  %3880 = vmatprep.mubr.bf16.mxu0 0
  %3881 = vmatmul.mubr.bf16.gmra.mrb[0].mxu0 %v3467
  %v3882 = vpop.f32.mrb[0].mxu0
  %v3883 = vadd.f32 0.0, %v3882
  %v3884 = vpop.f32.mrb[0].mxu0
  %v3885 = vpop.f32.mrb[0].mxu0
  %v3886 = vadd.f32 0.0, %v3885
  %v3887 = vpop.f32.mrb[0].mxu0
  %3888 = vmatprep.mubr.bf16.mxu0 0
  %3889 = vmatmul.mubr.bf16.gmra.mrb[0].mxu0 %v3470
  %v3890 = vpop.f32.mrb[0].mxu0
  %v3891 = vadd.f32 0.0, %v3890
  %v3892 = vpop.f32.mrb[0].mxu0
  %v3893 = vpop.f32.mrb[0].mxu0
  %v3894 = vadd.f32 0.0, %v3893
  %v3895 = vpop.f32.mrb[0].mxu0
  %3896 = vdwg.mxu0
  %v3897 = vmax.f32 %v2883, %v3507
  %v3898 = vmax.f32 %v2884, %v3510
  %v3899 = vmax.f32 %v2885, %v3515
  %v3900 = vmax.f32 %v2886, %v3518
  %v3901 = vmax.f32 %v2887, %v3523
  %v3902 = vmax.f32 %v2888, %v3526
  %v3903 = vmax.f32 %v2889, %v3531
  %v3904 = vmax.f32 %v2890, %v3534
  %v3905 = vmax.f32 %v2891, %v3539
  %v3906 = vmax.f32 %v2892, %v3542
  %v3907 = vmax.f32 %v2893, %v3547
  %v3908 = vmax.f32 %v2894, %v3550
  %v3909 = vmax.f32 %v2895, %v3555
  %v3910 = vmax.f32 %v2896, %v3558
  %v3911 = vmax.f32 %v2897, %v3563
  %v3912 = vmax.f32 %v2898, %v3566
  %v3913 = vmax.f32 %v2899, %v3571
  %v3914 = vmax.f32 %v2900, %v3574
  %v3915 = vmax.f32 %v2901, %v3579
  %v3916 = vmax.f32 %v2902, %v3582
  %v3917 = vmax.f32 %v2903, %v3587
  %v3918 = vmax.f32 %v2904, %v3590
  %v3919 = vmax.f32 %v2905, %v3595
  %v3920 = vmax.f32 %v2906, %v3598
  %v3921 = vmax.f32 %v2907, %v3603
  %v3922 = vmax.f32 %v2908, %v3606
  %v3923 = vmax.f32 %v2909, %v3611
  %v3924 = vmax.f32 %v2910, %v3614
  %v3925 = vmax.f32 %v2911, %v3619
  %v3926 = vmax.f32 %v2912, %v3622
  %v3927 = vmax.f32 %v2913, %v3627
  %v3928 = vmax.f32 %v2914, %v3630
  %v3929 = vmax.f32 %v2915, %v3635
  %v3930 = vmax.f32 %v2916, %v3638
  %v3931 = vmax.f32 %v2917, %v3643
  %v3932 = vmax.f32 %v2918, %v3646
  %v3933 = vmax.f32 %v2919, %v3651
  %v3934 = vmax.f32 %v2920, %v3654
  %v3935 = vmax.f32 %v2921, %v3659
  %v3936 = vmax.f32 %v2922, %v3662
  %v3937 = vmax.f32 %v2923, %v3667
  %v3938 = vmax.f32 %v2924, %v3670
  %v3939 = vmax.f32 %v2925, %v3675
  %v3940 = vmax.f32 %v2926, %v3678
  %v3941 = vmax.f32 %v2927, %v3683
  %v3942 = vmax.f32 %v2928, %v3686
  %v3943 = vmax.f32 %v2929, %v3691
  %v3944 = vmax.f32 %v2930, %v3694
  %v3945 = vmax.f32 %v2931, %v3699
  %v3946 = vmax.f32 %v2932, %v3702
  %v3947 = vmax.f32 %v2933, %v3707
  %v3948 = vmax.f32 %v2934, %v3710
  %v3949 = vmax.f32 %v2935, %v3715
  %v3950 = vmax.f32 %v2936, %v3718
  %v3951 = vmax.f32 %v2937, %v3723
  %v3952 = vmax.f32 %v2938, %v3726
  %v3953 = vmax.f32 %v2939, %v3731
  %v3954 = vmax.f32 %v2940, %v3734
  %v3955 = vmax.f32 %v2941, %v3739
  %v3956 = vmax.f32 %v2942, %v3742
  %v3957 = vmax.f32 %v2943, %v3747
  %v3958 = vmax.f32 %v2944, %v3750
  %v3959 = vmax.f32 %v2945, %v3755
  %v3960 = vmax.f32 %v2946, %v3758
  %v3961 = vmax.f32 %v2947, %v3763
  %v3962 = vmax.f32 %v2948, %v3766
  %v3963 = vmax.f32 %v2949, %v3771
  %v3964 = vmax.f32 %v2950, %v3774
  %v3965 = vmax.f32 %v2951, %v3779
  %v3966 = vmax.f32 %v2952, %v3782
  %v3967 = vmax.f32 %v2953, %v3787
  %v3968 = vmax.f32 %v2954, %v3790
  %v3969 = vmax.f32 %v2955, %v3795
  %v3970 = vmax.f32 %v2956, %v3798
  %v3971 = vmax.f32 %v2957, %v3803
  %v3972 = vmax.f32 %v2958, %v3806
  %v3973 = vmax.f32 %v2959, %v3811
  %v3974 = vmax.f32 %v2960, %v3814
  %v3975 = vmax.f32 %v2961, %v3819
  %v3976 = vmax.f32 %v2962, %v3822
  %v3977 = vmax.f32 %v2963, %v3827
  %v3978 = vmax.f32 %v2964, %v3830
  %v3979 = vmax.f32 %v2965, %v3835
  %v3980 = vmax.f32 %v2966, %v3838
  %v3981 = vmax.f32 %v2967, %v3843
  %v3982 = vmax.f32 %v2968, %v3846
  %v3983 = vmax.f32 %v2969, %v3851
  %v3984 = vmax.f32 %v2970, %v3854
  %v3985 = vmax.f32 %v2971, %v3859
  %v3986 = vmax.f32 %v2972, %v3862
  %v3987 = vmax.f32 %v2973, %v3867
  %v3988 = vmax.f32 %v2974, %v3870
  %v3989 = vmax.f32 %v2975, %v3875
  %v3990 = vmax.f32 %v2976, %v3878
  %v3991 = vmax.f32 %v2977, %v3883
  %v3992 = vmax.f32 %v2978, %v3886
  %v3993 = vmax.f32 %v2979, %v3891
  %v3994 = vmax.f32 %v2980, %v3894
  %v3995 = vld [vmem:[%s2] sm:$0x1]
  %v3997 = vlaneseq
  %v3998 = vshrl.u32 %v3997, 7
  %v3999 = vsub.s32 0, %v3998
  %v4000 = vrot.slane %v3995, %v3999
  %v4002 = vadd.f32 %v3897, %v4000
  %v4003 = vadd.f32 %v3898, %v4000
  %v4004 = vadd.f32 %v3899, %v4000
  %v4005 = vadd.f32 %v3900, %v4000
  %v4006 = vadd.f32 %v3901, %v4000
  %v4007 = vadd.f32 %v3902, %v4000
  %v4008 = vadd.f32 %v3903, %v4000
  %v4009 = vadd.f32 %v3904, %v4000
  %v4010 = vadd.f32 %v3905, %v4000
  %v4011 = vadd.f32 %v3906, %v4000
  %v4012 = vadd.f32 %v3907, %v4000
  %v4013 = vadd.f32 %v3908, %v4000
  %v4014 = vadd.f32 %v3909, %v4000
  %v4015 = vadd.f32 %v3910, %v4000
  %v4016 = vadd.f32 %v3911, %v4000
  %v4017 = vadd.f32 %v3912, %v4000
  %v4018 = vadd.f32 %v3913, %v4000
  %v4019 = vadd.f32 %v3914, %v4000
  %v4020 = vadd.f32 %v3915, %v4000
  %v4021 = vadd.f32 %v3916, %v4000
  %v4022 = vadd.f32 %v3917, %v4000
  %v4023 = vadd.f32 %v3918, %v4000
  %v4024 = vadd.f32 %v3919, %v4000
  %v4025 = vadd.f32 %v3920, %v4000
  %v4026 = vadd.f32 %v3921, %v4000
  %v4027 = vadd.f32 %v3922, %v4000
  %v4028 = vadd.f32 %v3923, %v4000
  %v4029 = vadd.f32 %v3924, %v4000
  %v4030 = vadd.f32 %v3925, %v4000
  %v4031 = vadd.f32 %v3926, %v4000
  %v4032 = vadd.f32 %v3927, %v4000
  %v4033 = vadd.f32 %v3928, %v4000
  %v4034 = vadd.f32 %v3929, %v4000
  %v4035 = vadd.f32 %v3930, %v4000
  %v4036 = vadd.f32 %v3931, %v4000
  %v4037 = vadd.f32 %v3932, %v4000
  %v4038 = vadd.f32 %v3933, %v4000
  %v4039 = vadd.f32 %v3934, %v4000
  %v4040 = vadd.f32 %v3935, %v4000
  %v4041 = vadd.f32 %v3936, %v4000
  %v4042 = vadd.f32 %v3937, %v4000
  %v4043 = vadd.f32 %v3938, %v4000
  %v4044 = vadd.f32 %v3939, %v4000
  %v4045 = vadd.f32 %v3940, %v4000
  %v4046 = vadd.f32 %v3941, %v4000
  %v4047 = vadd.f32 %v3942, %v4000
  %v4048 = vadd.f32 %v3943, %v4000
  %v4049 = vadd.f32 %v3944, %v4000
  %v4050 = vadd.f32 %v3945, %v4000
  %v4051 = vadd.f32 %v3946, %v4000
  %v4052 = vadd.f32 %v3947, %v4000
  %v4053 = vadd.f32 %v3948, %v4000
  %v4054 = vadd.f32 %v3949, %v4000
  %v4055 = vadd.f32 %v3950, %v4000
  %v4056 = vadd.f32 %v3951, %v4000
  %v4057 = vadd.f32 %v3952, %v4000
  %v4058 = vadd.f32 %v3953, %v4000
  %v4059 = vadd.f32 %v3954, %v4000
  %v4060 = vadd.f32 %v3955, %v4000
  %v4061 = vadd.f32 %v3956, %v4000
  %v4062 = vadd.f32 %v3957, %v4000
  %v4063 = vadd.f32 %v3958, %v4000
  %v4064 = vadd.f32 %v3959, %v4000
  %v4065 = vadd.f32 %v3960, %v4000
  %v4066 = vadd.f32 %v3961, %v4000
  %v4067 = vadd.f32 %v3962, %v4000
  %v4068 = vadd.f32 %v3963, %v4000
  %v4069 = vadd.f32 %v3964, %v4000
  %v4070 = vadd.f32 %v3965, %v4000
  %v4071 = vadd.f32 %v3966, %v4000
  %v4072 = vadd.f32 %v3967, %v4000
  %v4073 = vadd.f32 %v3968, %v4000
  %v4074 = vadd.f32 %v3969, %v4000
  %v4075 = vadd.f32 %v3970, %v4000
  %v4076 = vadd.f32 %v3971, %v4000
  %v4077 = vadd.f32 %v3972, %v4000
  %v4078 = vadd.f32 %v3973, %v4000
  %v4079 = vadd.f32 %v3974, %v4000
  %v4080 = vadd.f32 %v3975, %v4000
  %v4081 = vadd.f32 %v3976, %v4000
  %v4082 = vadd.f32 %v3977, %v4000
  %v4083 = vadd.f32 %v3978, %v4000
  %v4084 = vadd.f32 %v3979, %v4000
  %v4085 = vadd.f32 %v3980, %v4000
  %v4086 = vadd.f32 %v3981, %v4000
  %v4087 = vadd.f32 %v3982, %v4000
  %v4088 = vadd.f32 %v3983, %v4000
  %v4089 = vadd.f32 %v3984, %v4000
  %v4090 = vadd.f32 %v3985, %v4000
  %v4091 = vadd.f32 %v3986, %v4000
  %v4092 = vadd.f32 %v3987, %v4000
  %v4093 = vadd.f32 %v3988, %v4000
  %v4094 = vadd.f32 %v3989, %v4000
  %v4095 = vadd.f32 %v3990, %v4000
  %v4096 = vadd.f32 %v3991, %v4000
  %v4097 = vadd.f32 %v3992, %v4000
  %v4098 = vadd.f32 %v3993, %v4000
  %v4099 = vadd.f32 %v3994, %v4000
  %v4100 = vmax.f32 %v4002, 0.0
  %v4101 = vmax.f32 %v4003, 0.0
  %v4102 = vmax.f32 %v4004, 0.0
  %v4103 = vmax.f32 %v4005, 0.0
  %v4104 = vmax.f32 %v4006, 0.0
  %v4105 = vmax.f32 %v4007, 0.0
  %v4106 = vmax.f32 %v4008, 0.0
  %v4107 = vmax.f32 %v4009, 0.0
  %v4108 = vmax.f32 %v4010, 0.0
  %v4109 = vmax.f32 %v4011, 0.0
  %v4110 = vmax.f32 %v4012, 0.0
  %v4111 = vmax.f32 %v4013, 0.0
  %v4112 = vmax.f32 %v4014, 0.0
  %v4113 = vmax.f32 %v4015, 0.0
  %v4114 = vmax.f32 %v4016, 0.0
  %v4115 = vmax.f32 %v4017, 0.0
  %v4116 = vmax.f32 %v4018, 0.0
  %v4117 = vmax.f32 %v4019, 0.0
  %v4118 = vmax.f32 %v4020, 0.0
  %v4119 = vmax.f32 %v4021, 0.0
  %v4120 = vmax.f32 %v4022, 0.0
  %v4121 = vmax.f32 %v4023, 0.0
  %v4122 = vmax.f32 %v4024, 0.0
  %v4123 = vmax.f32 %v4025, 0.0
  %v4124 = vmax.f32 %v4026, 0.0
  %v4125 = vmax.f32 %v4027, 0.0
  %v4126 = vmax.f32 %v4028, 0.0
  %v4127 = vmax.f32 %v4029, 0.0
  %v4128 = vmax.f32 %v4030, 0.0
  %v4129 = vmax.f32 %v4031, 0.0
  %v4130 = vmax.f32 %v4032, 0.0
  %v4131 = vmax.f32 %v4033, 0.0
  %v4132 = vmax.f32 %v4034, 0.0
  %v4133 = vmax.f32 %v4035, 0.0
  %v4134 = vmax.f32 %v4036, 0.0
  %v4135 = vmax.f32 %v4037, 0.0
  %v4136 = vmax.f32 %v4038, 0.0
  %v4137 = vmax.f32 %v4039, 0.0
  %v4138 = vmax.f32 %v4040, 0.0
  %v4139 = vmax.f32 %v4041, 0.0
  %v4140 = vmax.f32 %v4042, 0.0
  %v4141 = vmax.f32 %v4043, 0.0
  %v4142 = vmax.f32 %v4044, 0.0
  %v4143 = vmax.f32 %v4045, 0.0
  %v4144 = vmax.f32 %v4046, 0.0
  %v4145 = vmax.f32 %v4047, 0.0
  %v4146 = vmax.f32 %v4048, 0.0
  %v4147 = vmax.f32 %v4049, 0.0
  %v4148 = vmax.f32 %v4050, 0.0
  %v4149 = vmax.f32 %v4051, 0.0
  %v4150 = vmax.f32 %v4052, 0.0
  %v4151 = vmax.f32 %v4053, 0.0
  %v4152 = vmax.f32 %v4054, 0.0
  %v4153 = vmax.f32 %v4055, 0.0
  %v4154 = vmax.f32 %v4056, 0.0
  %v4155 = vmax.f32 %v4057, 0.0
  %v4156 = vmax.f32 %v4058, 0.0
  %v4157 = vmax.f32 %v4059, 0.0
  %v4158 = vmax.f32 %v4060, 0.0
  %v4159 = vmax.f32 %v4061, 0.0
  %v4160 = vmax.f32 %v4062, 0.0
  %v4161 = vmax.f32 %v4063, 0.0
  %v4162 = vmax.f32 %v4064, 0.0
  %v4163 = vmax.f32 %v4065, 0.0
  %v4164 = vmax.f32 %v4066, 0.0
  %v4165 = vmax.f32 %v4067, 0.0
  %v4166 = vmax.f32 %v4068, 0.0
  %v4167 = vmax.f32 %v4069, 0.0
  %v4168 = vmax.f32 %v4070, 0.0
  %v4169 = vmax.f32 %v4071, 0.0
  %v4170 = vmax.f32 %v4072, 0.0
  %v4171 = vmax.f32 %v4073, 0.0
  %v4172 = vmax.f32 %v4074, 0.0
  %v4173 = vmax.f32 %v4075, 0.0
  %v4174 = vmax.f32 %v4076, 0.0
  %v4175 = vmax.f32 %v4077, 0.0
  %v4176 = vmax.f32 %v4078, 0.0
  %v4177 = vmax.f32 %v4079, 0.0
  %v4178 = vmax.f32 %v4080, 0.0
  %v4179 = vmax.f32 %v4081, 0.0
  %v4180 = vmax.f32 %v4082, 0.0
  %v4181 = vmax.f32 %v4083, 0.0
  %v4182 = vmax.f32 %v4084, 0.0
  %v4183 = vmax.f32 %v4085, 0.0
  %v4184 = vmax.f32 %v4086, 0.0
  %v4185 = vmax.f32 %v4087, 0.0
  %v4186 = vmax.f32 %v4088, 0.0
  %v4187 = vmax.f32 %v4089, 0.0
  %v4188 = vmax.f32 %v4090, 0.0
  %v4189 = vmax.f32 %v4091, 0.0
  %v4190 = vmax.f32 %v4092, 0.0
  %v4191 = vmax.f32 %v4093, 0.0
  %v4192 = vmax.f32 %v4094, 0.0
  %v4193 = vmax.f32 %v4095, 0.0
  %v4194 = vmax.f32 %v4096, 0.0
  %v4195 = vmax.f32 %v4097, 0.0
  %v4196 = vmax.f32 %v4098, 0.0
  %v4197 = vmax.f32 %v4099, 0.0
  %v4198 = vpack.c.bf16 %v4101, %v4100
  %v4199 = vpack.c.bf16 %v4103, %v4102
  %v4200 = vpack.c.bf16 %v4105, %v4104
  %v4201 = vpack.c.bf16 %v4107, %v4106
  %v4202 = vpack.c.bf16 %v4109, %v4108
  %v4203 = vpack.c.bf16 %v4111, %v4110
  %v4204 = vpack.c.bf16 %v4113, %v4112
  %v4205 = vpack.c.bf16 %v4115, %v4114
  %v4206 = vpack.c.bf16 %v4117, %v4116
  %v4207 = vpack.c.bf16 %v4119, %v4118
  %v4208 = vpack.c.bf16 %v4121, %v4120
  %v4209 = vpack.c.bf16 %v4123, %v4122
  %v4210 = vpack.c.bf16 %v4125, %v4124
  %v4211 = vpack.c.bf16 %v4127, %v4126
  %v4212 = vpack.c.bf16 %v4129, %v4128
  %v4213 = vpack.c.bf16 %v4131, %v4130
  %v4214 = vpack.c.bf16 %v4133, %v4132
  %v4215 = vpack.c.bf16 %v4135, %v4134
  %v4216 = vpack.c.bf16 %v4137, %v4136
  %v4217 = vpack.c.bf16 %v4139, %v4138
  %v4218 = vpack.c.bf16 %v4141, %v4140
  %v4219 = vpack.c.bf16 %v4143, %v4142
  %v4220 = vpack.c.bf16 %v4145, %v4144
  %v4221 = vpack.c.bf16 %v4147, %v4146
  %v4222 = vpack.c.bf16 %v4149, %v4148
  %v4223 = vpack.c.bf16 %v4151, %v4150
  %v4224 = vpack.c.bf16 %v4153, %v4152
  %v4225 = vpack.c.bf16 %v4155, %v4154
  %v4226 = vpack.c.bf16 %v4157, %v4156
  %v4227 = vpack.c.bf16 %v4159, %v4158
  %v4228 = vpack.c.bf16 %v4161, %v4160
  %v4229 = vpack.c.bf16 %v4163, %v4162
  %v4230 = vpack.c.bf16 %v4165, %v4164
  %v4231 = vpack.c.bf16 %v4167, %v4166
  %v4232 = vpack.c.bf16 %v4169, %v4168
  %v4233 = vpack.c.bf16 %v4171, %v4170
  %v4234 = vpack.c.bf16 %v4173, %v4172
  %v4235 = vpack.c.bf16 %v4175, %v4174
  %v4236 = vpack.c.bf16 %v4177, %v4176
  %v4237 = vpack.c.bf16 %v4179, %v4178
  %v4238 = vpack.c.bf16 %v4181, %v4180
  %v4239 = vpack.c.bf16 %v4183, %v4182
  %v4240 = vpack.c.bf16 %v4185, %v4184
  %v4241 = vpack.c.bf16 %v4187, %v4186
  %v4242 = vpack.c.bf16 %v4189, %v4188
  %v4243 = vpack.c.bf16 %v4191, %v4190
  %v4244 = vpack.c.bf16 %v4193, %v4192
  %v4245 = vpack.c.bf16 %v4195, %v4194
  %v4246 = vpack.c.bf16 %v4197, %v4196
  %v4296 = vunpack.c.l.b16 %v4198
  %v4297 = vunpack.c.h.b16 %v4198
  %v4298 = vunpack.c.l.b16 %v4199
  %v4299 = vunpack.c.h.b16 %v4199
  %v4300 = vunpack.c.l.b16 %v4200
  %v4301 = vunpack.c.h.b16 %v4200
  %v4302 = vunpack.c.l.b16 %v4201
  %v4303 = vunpack.c.h.b16 %v4201
  %v4304 = vunpack.c.l.b16 %v4202
  %v4305 = vunpack.c.h.b16 %v4202
  %v4306 = vunpack.c.l.b16 %v4203
  %v4307 = vunpack.c.h.b16 %v4203
  %v4308 = vunpack.c.l.b16 %v4204
  %v4309 = vunpack.c.h.b16 %v4204
  %v4310 = vunpack.c.l.b16 %v4205
  %v4311 = vunpack.c.h.b16 %v4205
  %v4312 = vunpack.c.l.b16 %v4206
  %v4313 = vunpack.c.h.b16 %v4206
  %v4314 = vunpack.c.l.b16 %v4207
  %v4315 = vunpack.c.h.b16 %v4207
  %v4316 = vunpack.c.l.b16 %v4208
  %v4317 = vunpack.c.h.b16 %v4208
  %v4318 = vunpack.c.l.b16 %v4209
  %v4319 = vunpack.c.h.b16 %v4209
  %v4320 = vunpack.c.l.b16 %v4210
  %v4321 = vunpack.c.h.b16 %v4210
  %v4322 = vunpack.c.l.b16 %v4211
  %v4323 = vunpack.c.h.b16 %v4211
  %v4324 = vunpack.c.l.b16 %v4212
  %v4325 = vunpack.c.h.b16 %v4212
  %v4326 = vunpack.c.l.b16 %v4213
  %v4327 = vunpack.c.h.b16 %v4213
  %v4328 = vunpack.c.l.b16 %v4214
  %v4329 = vunpack.c.h.b16 %v4214
  %v4330 = vunpack.c.l.b16 %v4215
  %v4331 = vunpack.c.h.b16 %v4215
  %v4332 = vunpack.c.l.b16 %v4216
  %v4333 = vunpack.c.h.b16 %v4216
  %v4334 = vunpack.c.l.b16 %v4217
  %v4335 = vunpack.c.h.b16 %v4217
  %v4336 = vunpack.c.l.b16 %v4218
  %v4337 = vunpack.c.h.b16 %v4218
  %v4338 = vunpack.c.l.b16 %v4219
  %v4339 = vunpack.c.h.b16 %v4219
  %v4340 = vunpack.c.l.b16 %v4220
  %v4341 = vunpack.c.h.b16 %v4220
  %v4342 = vunpack.c.l.b16 %v4221
  %v4343 = vunpack.c.h.b16 %v4221
  %v4344 = vunpack.c.l.b16 %v4222
  %v4345 = vunpack.c.h.b16 %v4222
  %v4346 = vunpack.c.l.b16 %v4223
  %v4347 = vunpack.c.h.b16 %v4223
  %v4348 = vunpack.c.l.b16 %v4224
  %v4349 = vunpack.c.h.b16 %v4224
  %v4350 = vunpack.c.l.b16 %v4225
  %v4351 = vunpack.c.h.b16 %v4225
  %v4352 = vunpack.c.l.b16 %v4226
  %v4353 = vunpack.c.h.b16 %v4226
  %v4354 = vunpack.c.l.b16 %v4227
  %v4355 = vunpack.c.h.b16 %v4227
  %v4356 = vunpack.c.l.b16 %v4228
  %v4357 = vunpack.c.h.b16 %v4228
  %v4358 = vunpack.c.l.b16 %v4229
  %v4359 = vunpack.c.h.b16 %v4229
  %v4360 = vunpack.c.l.b16 %v4230
  %v4361 = vunpack.c.h.b16 %v4230
  %v4362 = vunpack.c.l.b16 %v4231
  %v4363 = vunpack.c.h.b16 %v4231
  %v4364 = vunpack.c.l.b16 %v4232
  %v4365 = vunpack.c.h.b16 %v4232
  %v4366 = vunpack.c.l.b16 %v4233
  %v4367 = vunpack.c.h.b16 %v4233
  %v4368 = vunpack.c.l.b16 %v4234
  %v4369 = vunpack.c.h.b16 %v4234
  %v4370 = vunpack.c.l.b16 %v4235
  %v4371 = vunpack.c.h.b16 %v4235
  %v4372 = vunpack.c.l.b16 %v4236
  %v4373 = vunpack.c.h.b16 %v4236
  %v4374 = vunpack.c.l.b16 %v4237
  %v4375 = vunpack.c.h.b16 %v4237
  %v4376 = vunpack.c.l.b16 %v4238
  %v4377 = vunpack.c.h.b16 %v4238
  %v4378 = vunpack.c.l.b16 %v4239
  %v4379 = vunpack.c.h.b16 %v4239
  %v4380 = vunpack.c.l.b16 %v4240
  %v4381 = vunpack.c.h.b16 %v4240
  %v4382 = vunpack.c.l.b16 %v4241
  %v4383 = vunpack.c.h.b16 %v4241
  %v4384 = vunpack.c.l.b16 %v4242
  %v4385 = vunpack.c.h.b16 %v4242
  %v4386 = vunpack.c.l.b16 %v4243
  %v4387 = vunpack.c.h.b16 %v4243
  %v4388 = vunpack.c.l.b16 %v4244
  %v4389 = vunpack.c.h.b16 %v4244
  %v4390 = vunpack.c.l.b16 %v4245
  %v4391 = vunpack.c.h.b16 %v4245
  %v4392 = vunpack.c.l.b16 %v4246
  %v4393 = vunpack.c.h.b16 %v4246
  %v4394 = vpack.c.b16 %v4296, %v4296
  %v4395 = vpack.c.b16 %v4297, %v4297
  %v4396 = vpack.c.b16 %v4298, %v4298
  %v4397 = vpack.c.b16 %v4299, %v4299
  %v4398 = vpack.c.b16 %v4300, %v4300
  %v4399 = vpack.c.b16 %v4301, %v4301
  %v4400 = vpack.c.b16 %v4302, %v4302
  %v4401 = vpack.c.b16 %v4303, %v4303
  %v4402 = vpack.c.b16 %v4304, %v4304
  %v4403 = vpack.c.b16 %v4305, %v4305
  %v4404 = vpack.c.b16 %v4306, %v4306
  %v4405 = vpack.c.b16 %v4307, %v4307
  %v4406 = vpack.c.b16 %v4308, %v4308
  %v4407 = vpack.c.b16 %v4309, %v4309
  %v4408 = vpack.c.b16 %v4310, %v4310
  %v4409 = vpack.c.b16 %v4311, %v4311
  %v4410 = vpack.c.b16 %v4312, %v4312
  %v4411 = vpack.c.b16 %v4313, %v4313
  %v4412 = vpack.c.b16 %v4314, %v4314
  %v4413 = vpack.c.b16 %v4315, %v4315
  %v4414 = vpack.c.b16 %v4316, %v4316
  %v4415 = vpack.c.b16 %v4317, %v4317
  %v4416 = vpack.c.b16 %v4318, %v4318
  %v4417 = vpack.c.b16 %v4319, %v4319
  %v4418 = vpack.c.b16 %v4320, %v4320
  %v4419 = vpack.c.b16 %v4321, %v4321
  %v4420 = vpack.c.b16 %v4322, %v4322
  %v4421 = vpack.c.b16 %v4323, %v4323
  %v4422 = vpack.c.b16 %v4324, %v4324
  %v4423 = vpack.c.b16 %v4325, %v4325
  %v4424 = vpack.c.b16 %v4326, %v4326
  %v4425 = vpack.c.b16 %v4327, %v4327
  %v4426 = vpack.c.b16 %v4328, %v4328
  %v4427 = vpack.c.b16 %v4329, %v4329
  %v4428 = vpack.c.b16 %v4330, %v4330
  %v4429 = vpack.c.b16 %v4331, %v4331
  %v4430 = vpack.c.b16 %v4332, %v4332
  %v4431 = vpack.c.b16 %v4333, %v4333
  %v4432 = vpack.c.b16 %v4334, %v4334
  %v4433 = vpack.c.b16 %v4335, %v4335
  %v4434 = vpack.c.b16 %v4336, %v4336
  %v4435 = vpack.c.b16 %v4337, %v4337
  %v4436 = vpack.c.b16 %v4338, %v4338
  %v4437 = vpack.c.b16 %v4339, %v4339
  %v4438 = vpack.c.b16 %v4340, %v4340
  %v4439 = vpack.c.b16 %v4341, %v4341
  %v4440 = vpack.c.b16 %v4342, %v4342
  %v4441 = vpack.c.b16 %v4343, %v4343
  %v4442 = vpack.c.b16 %v4344, %v4344
  %v4443 = vpack.c.b16 %v4345, %v4345
  %v4444 = vpack.c.b16 %v4346, %v4346
  %v4445 = vpack.c.b16 %v4347, %v4347
  %v4446 = vpack.c.b16 %v4348, %v4348
  %v4447 = vpack.c.b16 %v4349, %v4349
  %v4448 = vpack.c.b16 %v4350, %v4350
  %v4449 = vpack.c.b16 %v4351, %v4351
  %v4450 = vpack.c.b16 %v4352, %v4352
  %v4451 = vpack.c.b16 %v4353, %v4353
  %v4452 = vpack.c.b16 %v4354, %v4354
  %v4453 = vpack.c.b16 %v4355, %v4355
  %v4454 = vpack.c.b16 %v4356, %v4356
  %v4455 = vpack.c.b16 %v4357, %v4357
  %v4456 = vpack.c.b16 %v4358, %v4358
  %v4457 = vpack.c.b16 %v4359, %v4359
  %v4458 = vpack.c.b16 %v4360, %v4360
  %v4459 = vpack.c.b16 %v4361, %v4361
  %v4460 = vpack.c.b16 %v4362, %v4362
  %v4461 = vpack.c.b16 %v4363, %v4363
  %v4462 = vpack.c.b16 %v4364, %v4364
  %v4463 = vpack.c.b16 %v4365, %v4365
  %v4464 = vpack.c.b16 %v4366, %v4366
  %v4465 = vpack.c.b16 %v4367, %v4367
  %v4466 = vpack.c.b16 %v4368, %v4368
  %v4467 = vpack.c.b16 %v4369, %v4369
  %v4468 = vpack.c.b16 %v4370, %v4370
  %v4469 = vpack.c.b16 %v4371, %v4371
  %v4470 = vpack.c.b16 %v4372, %v4372
  %v4471 = vpack.c.b16 %v4373, %v4373
  %v4472 = vpack.c.b16 %v4374, %v4374
  %v4473 = vpack.c.b16 %v4375, %v4375
  %v4474 = vpack.c.b16 %v4376, %v4376
  %v4475 = vpack.c.b16 %v4377, %v4377
  %v4476 = vpack.c.b16 %v4378, %v4378
  %v4477 = vpack.c.b16 %v4379, %v4379
  %v4478 = vpack.c.b16 %v4380, %v4380
  %v4479 = vpack.c.b16 %v4381, %v4381
  %v4480 = vpack.c.b16 %v4382, %v4382
  %v4481 = vpack.c.b16 %v4383, %v4383
  %v4482 = vpack.c.b16 %v4384, %v4384
  %v4483 = vpack.c.b16 %v4385, %v4385
  %v4484 = vpack.c.b16 %v4386, %v4386
  %v4485 = vpack.c.b16 %v4387, %v4387
  %v4486 = vpack.c.b16 %v4388, %v4388
  %v4487 = vpack.c.b16 %v4389, %v4389
  %v4488 = vpack.c.b16 %v4390, %v4390
  %v4489 = vpack.c.b16 %v4391, %v4391
  %v4490 = vpack.c.b16 %v4392, %v4392
  %v4491 = vpack.c.b16 %v4393, %v4393
  %4590 = vst [vmem:[%s3] sm:$0xf] %v4394
  %4591 = vst [vmem:[%s3 + $0x4] sm:$0xf] %v4395
  %4592 = vst [vmem:[%s3 + $0x8] sm:$0xf] %v4396
  %4593 = vst [vmem:[%s3 + $0xc] sm:$0xf] %v4397
  %4594 = vst [vmem:[%s3 + $0x10] sm:$0xf] %v4398
  %4595 = vst [vmem:[%s3 + $0x14] sm:$0xf] %v4399
  %4596 = vst [vmem:[%s3 + $0x18] sm:$0xf] %v4400
  %4597 = vst [vmem:[%s3 + $0x1c] sm:$0xf] %v4401
  %4598 = vst [vmem:[%s3 + $0x20] sm:$0xf] %v4402
  %4599 = vst [vmem:[%s3 + $0x24] sm:$0xf] %v4403
  %4600 = vst [vmem:[%s3 + $0x28] sm:$0xf] %v4404
  %4601 = vst [vmem:[%s3 + $0x2c] sm:$0xf] %v4405
  %4602 = vst [vmem:[%s3 + $0x30] sm:$0xf] %v4406
  %4603 = vst [vmem:[%s3 + $0x34] sm:$0xf] %v4407
  %4604 = vst [vmem:[%s3 + $0x38] sm:$0xf] %v4408
  %4605 = vst [vmem:[%s3 + $0x3c] sm:$0xf] %v4409
  %4606 = vst [vmem:[%s3 + $0x40] sm:$0xf] %v4410
  %4607 = vst [vmem:[%s3 + $0x44] sm:$0xf] %v4411
  %4608 = vst [vmem:[%s3 + $0x48] sm:$0xf] %v4412
  %4609 = vst [vmem:[%s3 + $0x4c] sm:$0xf] %v4413
  %4610 = vst [vmem:[%s3 + $0x50] sm:$0xf] %v4414
  %4611 = vst [vmem:[%s3 + $0x54] sm:$0xf] %v4415
  %4612 = vst [vmem:[%s3 + $0x58] sm:$0xf] %v4416
  %4613 = vst [vmem:[%s3 + $0x5c] sm:$0xf] %v4417
  %4614 = vst [vmem:[%s3 + $0x60] sm:$0xf] %v4418
  %4615 = vst [vmem:[%s3 + $0x64] sm:$0xf] %v4419
  %4616 = vst [vmem:[%s3 + $0x68] sm:$0xf] %v4420
  %4617 = vst [vmem:[%s3 + $0x6c] sm:$0xf] %v4421
  %4618 = vst [vmem:[%s3 + $0x70] sm:$0xf] %v4422
  %4619 = vst [vmem:[%s3 + $0x74] sm:$0xf] %v4423
  %4620 = vst [vmem:[%s3 + $0x78] sm:$0xf] %v4424
  %4621 = vst [vmem:[%s3 + $0x7c] sm:$0xf] %v4425
  %4622 = vst [vmem:[%s3 + $0x80] sm:$0xf] %v4426
  %4623 = vst [vmem:[%s3 + $0x84] sm:$0xf] %v4427
  %4624 = vst [vmem:[%s3 + $0x88] sm:$0xf] %v4428
  %4625 = vst [vmem:[%s3 + $0x8c] sm:$0xf] %v4429
  %4626 = vst [vmem:[%s3 + $0x90] sm:$0xf] %v4430
  %4627 = vst [vmem:[%s3 + $0x94] sm:$0xf] %v4431
  %4628 = vst [vmem:[%s3 + $0x98] sm:$0xf] %v4432
  %4629 = vst [vmem:[%s3 + $0x9c] sm:$0xf] %v4433
  %4630 = vst [vmem:[%s3 + $0xa0] sm:$0xf] %v4434
  %4631 = vst [vmem:[%s3 + $0xa4] sm:$0xf] %v4435
  %4632 = vst [vmem:[%s3 + $0xa8] sm:$0xf] %v4436
  %4633 = vst [vmem:[%s3 + $0xac] sm:$0xf] %v4437
  %4634 = vst [vmem:[%s3 + $0xb0] sm:$0xf] %v4438
  %4635 = vst [vmem:[%s3 + $0xb4] sm:$0xf] %v4439
  %4636 = vst [vmem:[%s3 + $0xb8] sm:$0xf] %v4440
  %4637 = vst [vmem:[%s3 + $0xbc] sm:$0xf] %v4441
  %4638 = vst [vmem:[%s3 + $0xc0] sm:$0xf] %v4442
  %4639 = vst [vmem:[%s3 + $0xc4] sm:$0xf] %v4443
  %4640 = vst [vmem:[%s3 + $0xc8] sm:$0xf] %v4444
  %4641 = vst [vmem:[%s3 + $0xcc] sm:$0xf] %v4445
  %4642 = vst [vmem:[%s3 + $0xd0] sm:$0xf] %v4446
  %4643 = vst [vmem:[%s3 + $0xd4] sm:$0xf] %v4447
  %4644 = vst [vmem:[%s3 + $0xd8] sm:$0xf] %v4448
  %4645 = vst [vmem:[%s3 + $0xdc] sm:$0xf] %v4449
  %4646 = vst [vmem:[%s3 + $0xe0] sm:$0xf] %v4450
  %4647 = vst [vmem:[%s3 + $0xe4] sm:$0xf] %v4451
  %4648 = vst [vmem:[%s3 + $0xe8] sm:$0xf] %v4452
  %4649 = vst [vmem:[%s3 + $0xec] sm:$0xf] %v4453
  %4650 = vst [vmem:[%s3 + $0xf0] sm:$0xf] %v4454
  %4651 = vst [vmem:[%s3 + $0xf4] sm:$0xf] %v4455
  %4652 = vst [vmem:[%s3 + $0xf8] sm:$0xf] %v4456
  %4653 = vst [vmem:[%s3 + $0xfc] sm:$0xf] %v4457
  %4654 = vst [vmem:[%s3 + $0x100] sm:$0xf] %v4458
  %4655 = vst [vmem:[%s3 + $0x104] sm:$0xf] %v4459
  %4656 = vst [vmem:[%s3 + $0x108] sm:$0xf] %v4460
  %4657 = vst [vmem:[%s3 + $0x10c] sm:$0xf] %v4461
  %4658 = vst [vmem:[%s3 + $0x110] sm:$0xf] %v4462
  %4659 = vst [vmem:[%s3 + $0x114] sm:$0xf] %v4463
  %4660 = vst [vmem:[%s3 + $0x118] sm:$0xf] %v4464
  %4661 = vst [vmem:[%s3 + $0x11c] sm:$0xf] %v4465
  %4662 = vst [vmem:[%s3 + $0x120] sm:$0xf] %v4466
  %4663 = vst [vmem:[%s3 + $0x124] sm:$0xf] %v4467
  %4664 = vst [vmem:[%s3 + $0x128] sm:$0xf] %v4468
  %4665 = vst [vmem:[%s3 + $0x12c] sm:$0xf] %v4469
  %4666 = vst [vmem:[%s3 + $0x130] sm:$0xf] %v4470
  %4667 = vst [vmem:[%s3 + $0x134] sm:$0xf] %v4471
  %4668 = vst [vmem:[%s3 + $0x138] sm:$0xf] %v4472
  %4669 = vst [vmem:[%s3 + $0x13c] sm:$0xf] %v4473
  %4670 = vst [vmem:[%s3 + $0x140] sm:$0xf] %v4474
  %4671 = vst [vmem:[%s3 + $0x144] sm:$0xf] %v4475
  %4672 = vst [vmem:[%s3 + $0x148] sm:$0xf] %v4476
  %4673 = vst [vmem:[%s3 + $0x14c] sm:$0xf] %v4477
  %4674 = vst [vmem:[%s3 + $0x150] sm:$0xf] %v4478
  %4675 = vst [vmem:[%s3 + $0x154] sm:$0xf] %v4479
  %4676 = vst [vmem:[%s3 + $0x158] sm:$0xf] %v4480
  %4677 = vst [vmem:[%s3 + $0x15c] sm:$0xf] %v4481
  %4678 = vst [vmem:[%s3 + $0x160] sm:$0xf] %v4482
  %4679 = vst [vmem:[%s3 + $0x164] sm:$0xf] %v4483
  %4680 = vst [vmem:[%s3 + $0x168] sm:$0xf] %v4484
  %4681 = vst [vmem:[%s3 + $0x16c] sm:$0xf] %v4485
  %4682 = vst [vmem:[%s3 + $0x170] sm:$0xf] %v4486
  %4683 = vst [vmem:[%s3 + $0x174] sm:$0xf] %v4487
  %4684 = vst [vmem:[%s3 + $0x178] sm:$0xf] %v4488
  %4685 = vst [vmem:[%s3 + $0x17c] sm:$0xf] %v4489
  %4686 = vst [vmem:[%s3 + $0x180] sm:$0xf] %v4490
  %4687 = vst [vmem:[%s3 + $0x184] sm:$0xf] %v4491
  // Predicated region
  $region14: #{mnist30k_forward.3} parent=0 // pred_check
    _
  $region15: #{mnist30k_forward.3} parent=0 // pred_check_branch
    %4689 = sbr.rel (0) target = $region17
  $region16: #{mnist30k_forward.3} parent=0 // pred_region
    _
  $region17: #{mnist30k_forward.3} parent=0 // pred_fallthru
    _
  // Predicated region
  $region18: #{mnist30k_forward.3} parent=0 // pred_check
    _
  $region19: #{mnist30k_forward.3} parent=0 // pred_check_branch
    %4691 = sbr.rel (0) target = $region21
  $region20: #{mnist30k_forward.3} parent=0 // pred_region
    _
  $region21: #{mnist30k_forward.3} parent=0 // pred_fallthru
    _

// kernel: mnist30k_forward.4
$region0: #{mnist30k_forward.4}
  #allocation0 [shape = 'u32[]', space=smem, size = 0x4, offset = 0x4, fixed_abs, tag = 'smem constant byte address 0x4 - core index']
  #allocation1 [shape = 'u32[144,128]{1,0:T(1,128)}', space=vmem, size = 0x12000, scoped, tag = 'internal scratch']
  %s0 = inlined_call_operand.vmem [shape: bf16[4,200,400], index: 0, kind: input, shape index: {}]
  %s1 = inlined_call_operand.vmem [shape: bf16[400,128], index: 1, kind: input, shape index: {}]
  %s2 = inlined_call_operand.vmem [shape: f32[1,128], index: 2, kind: input, shape index: {}]
  %s3 = inlined_call_operand.vmem [shape: bf16[200,128], index: 3, kind: output, shape index: {}]
  %s4 = sld [smem:[#allocation0]]
  $region22: #{mnist30k_forward.4} parent=0
    _
  %s6 = ssub.s32 1, %s4
  %s7 = scalar_select 0, %s6, %s4
  // Predicated region
  $region2: #{mnist30k_forward.4} parent=0 // pred_check
    _
  $region3: #{mnist30k_forward.4} parent=0 // pred_check_branch
    %9 = sbr.rel (0) target = $region5
  $region4: #{mnist30k_forward.4} parent=0 // pred_region
    _
  $region5: #{mnist30k_forward.4} parent=0 // pred_fallthru
    _
  // Predicated region
  $region6: #{mnist30k_forward.4} parent=0 // pred_check
    _
  $region7: #{mnist30k_forward.4} parent=0 // pred_check_branch
    %11 = sbr.rel (0) target = $region9
  $region8: #{mnist30k_forward.4} parent=0 // pred_region
    _
  $region9: #{mnist30k_forward.4} parent=0 // pred_fallthru
    _
  // Predicated region
  $region10: #{mnist30k_forward.4} parent=0 // pred_check
    _
  $region11: #{mnist30k_forward.4} parent=0 // pred_check_branch
    %13 = sbr.rel (0) target = $region13
  $region12: #{mnist30k_forward.4} parent=0 // pred_region
    _
  $region13: #{mnist30k_forward.4} parent=0 // pred_fallthru
    _
  %v15 = vld [vmem:[%s1] sm:$0xf]
  %v16 = vld [vmem:[%s1 + $0x4] sm:$0xf]
  %v17 = vld [vmem:[%s1 + $0x8] sm:$0xf]
  %v18 = vld [vmem:[%s1 + $0xc] sm:$0xf]
  %v19 = vld [vmem:[%s1 + $0x10] sm:$0xf]
  %v20 = vld [vmem:[%s1 + $0x14] sm:$0xf]
  %v21 = vld [vmem:[%s1 + $0x18] sm:$0xf]
  %v22 = vld [vmem:[%s1 + $0x1c] sm:$0xf]
  %v23 = vld [vmem:[%s1 + $0x20] sm:$0xf]
  %v24 = vld [vmem:[%s1 + $0x24] sm:$0xf]
  %v25 = vld [vmem:[%s1 + $0x28] sm:$0xf]
  %v26 = vld [vmem:[%s1 + $0x2c] sm:$0xf]
  %v27 = vld [vmem:[%s1 + $0x30] sm:$0xf]
  %v28 = vld [vmem:[%s1 + $0x34] sm:$0xf]
  %v29 = vld [vmem:[%s1 + $0x38] sm:$0xf]
  %v30 = vld [vmem:[%s1 + $0x3c] sm:$0xf]
  %v31 = vld [vmem:[%s1 + $0x40] sm:$0xf]
  %v32 = vld [vmem:[%s1 + $0x44] sm:$0xf]
  %v33 = vld [vmem:[%s1 + $0x48] sm:$0xf]
  %v34 = vld [vmem:[%s1 + $0x4c] sm:$0xf]
  %v35 = vld [vmem:[%s1 + $0x50] sm:$0xf]
  %v36 = vld [vmem:[%s1 + $0x54] sm:$0xf]
  %v37 = vld [vmem:[%s1 + $0x58] sm:$0xf]
  %v38 = vld [vmem:[%s1 + $0x5c] sm:$0xf]
  %v39 = vld [vmem:[%s1 + $0x60] sm:$0xf]
  %v40 = vld [vmem:[%s1 + $0x64] sm:$0xf]
  %v41 = vld [vmem:[%s1 + $0x68] sm:$0xf]
  %v42 = vld [vmem:[%s1 + $0x6c] sm:$0xf]
  %v43 = vld [vmem:[%s1 + $0x70] sm:$0xf]
  %v44 = vld [vmem:[%s1 + $0x74] sm:$0xf]
  %v45 = vld [vmem:[%s1 + $0x78] sm:$0xf]
  %v46 = vld [vmem:[%s1 + $0x7c] sm:$0xf]
  %v47 = vld [vmem:[%s1 + $0x80] sm:$0xf]
  %v48 = vld [vmem:[%s1 + $0x84] sm:$0xf]
  %v49 = vld [vmem:[%s1 + $0x88] sm:$0xf]
  %v50 = vld [vmem:[%s1 + $0x8c] sm:$0xf]
  %v51 = vld [vmem:[%s1 + $0x90] sm:$0xf]
  %v52 = vld [vmem:[%s1 + $0x94] sm:$0xf]
  %v53 = vld [vmem:[%s1 + $0x98] sm:$0xf]
  %v54 = vld [vmem:[%s1 + $0x9c] sm:$0xf]
  %v55 = vld [vmem:[%s1 + $0xa0] sm:$0xf]
  %v56 = vld [vmem:[%s1 + $0xa4] sm:$0xf]
  %v57 = vld [vmem:[%s1 + $0xa8] sm:$0xf]
  %v58 = vld [vmem:[%s1 + $0xac] sm:$0xf]
  %v59 = vld [vmem:[%s1 + $0xb0] sm:$0xf]
  %v60 = vld [vmem:[%s1 + $0xb4] sm:$0xf]
  %v61 = vld [vmem:[%s1 + $0xb8] sm:$0xf]
  %v62 = vld [vmem:[%s1 + $0xbc] sm:$0xf]
  %v63 = vld [vmem:[%s1 + $0xc0] sm:$0xf]
  %v64 = vld [vmem:[%s1 + $0xc4] sm:$0xf]
  %v65 = vld [vmem:[%s0] sm:$0xff]
  %v66 = vld [vmem:[%s0 + $0x8] sm:$0xff]
  %v67 = vld [vmem:[%s0 + $0x10] sm:$0xff]
  %v68 = vld [vmem:[%s0 + $0x18] sm:$0xff]
  %v69 = vld [vmem:[%s0 + $0x20] sm:$0xff]
  %v70 = vld [vmem:[%s0 + $0x28] sm:$0xff]
  %v71 = vld [vmem:[%s0 + $0x30] sm:$0xff]
  %v72 = vld [vmem:[%s0 + $0x38] sm:$0xff]
  %v73 = vld [vmem:[%s0 + $0x40] sm:$0xff]
  %v74 = vld [vmem:[%s0 + $0x48] sm:$0xff]
  %v75 = vld [vmem:[%s0 + $0x50] sm:$0xff]
  %v76 = vld [vmem:[%s0 + $0x58] sm:$0xff]
  %v77 = vld [vmem:[%s0 + $0x60] sm:$0xff]
  %v78 = vld [vmem:[%s0 + $0x68] sm:$0xff]
  %v79 = vld [vmem:[%s0 + $0x70] sm:$0xff]
  %v80 = vld [vmem:[%s0 + $0x78] sm:$0xff]
  %v81 = vld [vmem:[%s0 + $0x80] sm:$0xff]
  %v82 = vld [vmem:[%s0 + $0x88] sm:$0xff]
  %v83 = vld [vmem:[%s0 + $0x90] sm:$0xff]
  %v84 = vld [vmem:[%s0 + $0x98] sm:$0xff]
  %v85 = vld [vmem:[%s0 + $0xa0] sm:$0xff]
  %v86 = vld [vmem:[%s0 + $0xa8] sm:$0xff]
  %v87 = vld [vmem:[%s0 + $0xb0] sm:$0xff]
  %v88 = vld [vmem:[%s0 + $0xb8] sm:$0xff]
  %v89 = vld [vmem:[%s0 + $0xc0] sm:$0xff]
  %v90 = vld [vmem:[%s0 + $0xc8] sm:$0xff]
  %v91 = vld [vmem:[%s0 + $0xd0] sm:$0xff]
  %v92 = vld [vmem:[%s0 + $0xd8] sm:$0xff]
  %v93 = vld [vmem:[%s0 + $0xe0] sm:$0xff]
  %v94 = vld [vmem:[%s0 + $0xe8] sm:$0xff]
  %v95 = vld [vmem:[%s0 + $0xf0] sm:$0xff]
  %v96 = vld [vmem:[%s0 + $0xf8] sm:$0xff]
  %v97 = vld [vmem:[%s0 + $0x100] sm:$0xff]
  %v98 = vld [vmem:[%s0 + $0x108] sm:$0xff]
  %v99 = vld [vmem:[%s0 + $0x110] sm:$0xff]
  %v100 = vld [vmem:[%s0 + $0x118] sm:$0xff]
  %v101 = vld [vmem:[%s0 + $0x120] sm:$0xff]
  %v102 = vld [vmem:[%s0 + $0x128] sm:$0xff]
  %v103 = vld [vmem:[%s0 + $0x130] sm:$0xff]
  %v104 = vld [vmem:[%s0 + $0x138] sm:$0xff]
  %v105 = vld [vmem:[%s0 + $0x140] sm:$0xff]
  %v106 = vld [vmem:[%s0 + $0x148] sm:$0xff]
  %v107 = vld [vmem:[%s0 + $0x150] sm:$0xff]
  %v108 = vld [vmem:[%s0 + $0x158] sm:$0xff]
  %v109 = vld [vmem:[%s0 + $0x160] sm:$0xff]
  %v110 = vld [vmem:[%s0 + $0x168] sm:$0xff]
  %v111 = vld [vmem:[%s0 + $0x170] sm:$0xff]
  %v112 = vld [vmem:[%s0 + $0x178] sm:$0xff]
  %v113 = vld [vmem:[%s0 + $0x180] sm:$0xff]
  %v114 = vld [vmem:[%s0 + $0x188] sm:$0xff]
  %v165 = vunpack.c.l.b16 %v65
  %v166 = vunpack.c.h.b16 %v65
  %v167 = vunpack.c.l.b16 %v66
  %v168 = vunpack.c.h.b16 %v66
  %v169 = vunpack.c.l.b16 %v67
  %v170 = vunpack.c.h.b16 %v67
  %v171 = vunpack.c.l.b16 %v68
  %v172 = vunpack.c.h.b16 %v68
  %v173 = vunpack.c.l.b16 %v69
  %v174 = vunpack.c.h.b16 %v69
  %v175 = vunpack.c.l.b16 %v70
  %v176 = vunpack.c.h.b16 %v70
  %v177 = vunpack.c.l.b16 %v71
  %v178 = vunpack.c.h.b16 %v71
  %v179 = vunpack.c.l.b16 %v72
  %v180 = vunpack.c.h.b16 %v72
  %v181 = vunpack.c.l.b16 %v73
  %v182 = vunpack.c.h.b16 %v73
  %v183 = vunpack.c.l.b16 %v74
  %v184 = vunpack.c.h.b16 %v74
  %v185 = vunpack.c.l.b16 %v75
  %v186 = vunpack.c.h.b16 %v75
  %v187 = vunpack.c.l.b16 %v76
  %v188 = vunpack.c.h.b16 %v76
  %v189 = vunpack.c.l.b16 %v77
  %v190 = vunpack.c.h.b16 %v77
  %v191 = vunpack.c.l.b16 %v78
  %v192 = vunpack.c.h.b16 %v78
  %v193 = vunpack.c.l.b16 %v79
  %v194 = vunpack.c.h.b16 %v79
  %v195 = vunpack.c.l.b16 %v80
  %v196 = vunpack.c.h.b16 %v80
  %v197 = vunpack.c.l.b16 %v81
  %v198 = vunpack.c.h.b16 %v81
  %v199 = vunpack.c.l.b16 %v82
  %v200 = vunpack.c.h.b16 %v82
  %v201 = vunpack.c.l.b16 %v83
  %v202 = vunpack.c.h.b16 %v83
  %v203 = vunpack.c.l.b16 %v84
  %v204 = vunpack.c.h.b16 %v84
  %v205 = vunpack.c.l.b16 %v85
  %v206 = vunpack.c.h.b16 %v85
  %v207 = vunpack.c.l.b16 %v86
  %v208 = vunpack.c.h.b16 %v86
  %v209 = vunpack.c.l.b16 %v87
  %v210 = vunpack.c.h.b16 %v87
  %v211 = vunpack.c.l.b16 %v88
  %v212 = vunpack.c.h.b16 %v88
  %v213 = vunpack.c.l.b16 %v89
  %v214 = vunpack.c.h.b16 %v89
  %v215 = vunpack.c.l.b16 %v90
  %v216 = vunpack.c.h.b16 %v90
  %v217 = vunpack.c.l.b16 %v91
  %v218 = vunpack.c.h.b16 %v91
  %v219 = vunpack.c.l.b16 %v92
  %v220 = vunpack.c.h.b16 %v92
  %v221 = vunpack.c.l.b16 %v93
  %v222 = vunpack.c.h.b16 %v93
  %v223 = vunpack.c.l.b16 %v94
  %v224 = vunpack.c.h.b16 %v94
  %v225 = vunpack.c.l.b16 %v95
  %v226 = vunpack.c.h.b16 %v95
  %v227 = vunpack.c.l.b16 %v96
  %v228 = vunpack.c.h.b16 %v96
  %v229 = vunpack.c.l.b16 %v97
  %v230 = vunpack.c.h.b16 %v97
  %v231 = vunpack.c.l.b16 %v98
  %v232 = vunpack.c.h.b16 %v98
  %v233 = vunpack.c.l.b16 %v99
  %v234 = vunpack.c.h.b16 %v99
  %v235 = vunpack.c.l.b16 %v100
  %v236 = vunpack.c.h.b16 %v100
  %v237 = vunpack.c.l.b16 %v101
  %v238 = vunpack.c.h.b16 %v101
  %v239 = vunpack.c.l.b16 %v102
  %v240 = vunpack.c.h.b16 %v102
  %v241 = vunpack.c.l.b16 %v103
  %v242 = vunpack.c.h.b16 %v103
  %v243 = vunpack.c.l.b16 %v104
  %v244 = vunpack.c.h.b16 %v104
  %v245 = vunpack.c.l.b16 %v105
  %v246 = vunpack.c.h.b16 %v105
  %v247 = vunpack.c.l.b16 %v106
  %v248 = vunpack.c.h.b16 %v106
  %v249 = vunpack.c.l.b16 %v107
  %v250 = vunpack.c.h.b16 %v107
  %v251 = vunpack.c.l.b16 %v108
  %v252 = vunpack.c.h.b16 %v108
  %v253 = vunpack.c.l.b16 %v109
  %v254 = vunpack.c.h.b16 %v109
  %v255 = vunpack.c.l.b16 %v110
  %v256 = vunpack.c.h.b16 %v110
  %v257 = vunpack.c.l.b16 %v111
  %v258 = vunpack.c.h.b16 %v111
  %v259 = vunpack.c.l.b16 %v112
  %v260 = vunpack.c.h.b16 %v112
  %v261 = vunpack.c.l.b16 %v113
  %v262 = vunpack.c.h.b16 %v113
  %v263 = vunpack.c.l.b16 %v114
  %v264 = vunpack.c.h.b16 %v114
  %v265 = vpack.c.b16 %v169, %v165
  %v266 = vpack.c.b16 %v170, %v166
  %v267 = vpack.c.b16 %v171, %v167
  %v268 = vpack.c.b16 %v172, %v168
  %v269 = vpack.c.b16 %v177, %v173
  %v270 = vpack.c.b16 %v178, %v174
  %v271 = vpack.c.b16 %v179, %v175
  %v272 = vpack.c.b16 %v180, %v176
  %v273 = vpack.c.b16 %v185, %v181
  %v274 = vpack.c.b16 %v186, %v182
  %v275 = vpack.c.b16 %v187, %v183
  %v276 = vpack.c.b16 %v188, %v184
  %v277 = vpack.c.b16 %v193, %v189
  %v278 = vpack.c.b16 %v194, %v190
  %v279 = vpack.c.b16 %v195, %v191
  %v280 = vpack.c.b16 %v196, %v192
  %v281 = vpack.c.b16 %v201, %v197
  %v282 = vpack.c.b16 %v202, %v198
  %v283 = vpack.c.b16 %v203, %v199
  %v284 = vpack.c.b16 %v204, %v200
  %v285 = vpack.c.b16 %v209, %v205
  %v286 = vpack.c.b16 %v210, %v206
  %v287 = vpack.c.b16 %v211, %v207
  %v288 = vpack.c.b16 %v212, %v208
  %v289 = vpack.c.b16 %v217, %v213
  %v290 = vpack.c.b16 %v218, %v214
  %v291 = vpack.c.b16 %v219, %v215
  %v292 = vpack.c.b16 %v220, %v216
  %v293 = vpack.c.b16 %v225, %v221
  %v294 = vpack.c.b16 %v226, %v222
  %v295 = vpack.c.b16 %v227, %v223
  %v296 = vpack.c.b16 %v228, %v224
  %v297 = vpack.c.b16 %v233, %v229
  %v298 = vpack.c.b16 %v234, %v230
  %v299 = vpack.c.b16 %v235, %v231
  %v300 = vpack.c.b16 %v236, %v232
  %v301 = vpack.c.b16 %v241, %v237
  %v302 = vpack.c.b16 %v242, %v238
  %v303 = vpack.c.b16 %v243, %v239
  %v304 = vpack.c.b16 %v244, %v240
  %v305 = vpack.c.b16 %v249, %v245
  %v306 = vpack.c.b16 %v250, %v246
  %v307 = vpack.c.b16 %v251, %v247
  %v308 = vpack.c.b16 %v252, %v248
  %v309 = vpack.c.b16 %v257, %v253
  %v310 = vpack.c.b16 %v258, %v254
  %v311 = vpack.c.b16 %v259, %v255
  %v312 = vpack.c.b16 %v260, %v256
  %v313 = vpack.c.b16 %v261, %v261
  %v314 = vpack.c.b16 %v262, %v262
  %v315 = vpack.c.b16 %v263, %v263
  %v316 = vpack.c.b16 %v264, %v264
  %v406 = vunpack.c.l.b16 %v15
  %v407 = vunpack.c.l.b16 %v16
  %v408 = vunpack.c.l.b16 %v17
  %v409 = vunpack.c.l.b16 %v18
  %v410 = vunpack.c.l.b16 %v19
  %v411 = vunpack.c.l.b16 %v20
  %v412 = vunpack.c.l.b16 %v21
  %v413 = vunpack.c.l.b16 %v22
  %v414 = vunpack.c.l.b16 %v23
  %v415 = vunpack.c.l.b16 %v24
  %v416 = vunpack.c.l.b16 %v25
  %v417 = vunpack.c.l.b16 %v26
  %v418 = vunpack.c.l.b16 %v27
  %v419 = vunpack.c.l.b16 %v28
  %v420 = vunpack.c.l.b16 %v29
  %v421 = vunpack.c.l.b16 %v30
  %v422 = vunpack.c.l.b16 %v31
  %v423 = vunpack.c.l.b16 %v32
  %v424 = vunpack.c.l.b16 %v33
  %v425 = vunpack.c.l.b16 %v34
  %v426 = vunpack.c.l.b16 %v35
  %v427 = vunpack.c.l.b16 %v36
  %v428 = vunpack.c.l.b16 %v37
  %v429 = vunpack.c.l.b16 %v38
  %v430 = vunpack.c.l.b16 %v39
  %v431 = vunpack.c.l.b16 %v40
  %v432 = vunpack.c.l.b16 %v41
  %v433 = vunpack.c.l.b16 %v42
  %v434 = vunpack.c.l.b16 %v43
  %v435 = vunpack.c.l.b16 %v44
  %v436 = vunpack.c.l.b16 %v45
  %v437 = vunpack.c.l.b16 %v46
  %v438 = vunpack.c.l.b16 %v47
  %v439 = vunpack.c.l.b16 %v48
  %v440 = vunpack.c.l.b16 %v49
  %v441 = vunpack.c.l.b16 %v50
  %v442 = vunpack.c.l.b16 %v51
  %v443 = vunpack.c.l.b16 %v52
  %v444 = vunpack.c.l.b16 %v53
  %v445 = vunpack.c.l.b16 %v54
  %v446 = vunpack.c.l.b16 %v55
  %v447 = vunpack.c.l.b16 %v56
  %v448 = vunpack.c.l.b16 %v57
  %v449 = vunpack.c.l.b16 %v58
  %v450 = vunpack.c.l.b16 %v59
  %v451 = vunpack.c.l.b16 %v60
  %v452 = vunpack.c.l.b16 %v61
  %v453 = vunpack.c.l.b16 %v62
  %v454 = vunpack.c.l.b16 %v63
  %v455 = vunpack.c.l.b16 %v64
  %v456 = vpack.c.b16 %v407, %v406
  %v457 = vpack.c.b16 %v409, %v408
  %v458 = vpack.c.b16 %v411, %v410
  %v459 = vpack.c.b16 %v413, %v412
  %v460 = vpack.c.b16 %v415, %v414
  %v461 = vpack.c.b16 %v417, %v416
  %v462 = vpack.c.b16 %v419, %v418
  %v463 = vpack.c.b16 %v421, %v420
  %v464 = vpack.c.b16 %v423, %v422
  %v465 = vpack.c.b16 %v425, %v424
  %v466 = vpack.c.b16 %v427, %v426
  %v467 = vpack.c.b16 %v429, %v428
  %v468 = vpack.c.b16 %v431, %v430
  %v469 = vpack.c.b16 %v433, %v432
  %v470 = vpack.c.b16 %v435, %v434
  %v471 = vpack.c.b16 %v437, %v436
  %v472 = vpack.c.b16 %v439, %v438
  %v473 = vpack.c.b16 %v441, %v440
  %v474 = vpack.c.b16 %v443, %v442
  %v475 = vpack.c.b16 %v445, %v444
  %v476 = vpack.c.b16 %v447, %v446
  %v477 = vpack.c.b16 %v449, %v448
  %v478 = vpack.c.b16 %v451, %v450
  %v479 = vpack.c.b16 %v453, %v452
  %v480 = vpack.c.b16 %v455, %v454
  %vm506 = vcmask 130048
  %v508 = vsel %vm506, %v268, 0
  %v511 = vsel %vm506, %v272, 0
  %v514 = vsel %vm506, %v276, 0
  %v517 = vsel %vm506, %v280, 0
  %v520 = vsel %vm506, %v284, 0
  %v523 = vsel %vm506, %v288, 0
  %v526 = vsel %vm506, %v292, 0
  %v529 = vsel %vm506, %v296, 0
  %v532 = vsel %vm506, %v300, 0
  %v535 = vsel %vm506, %v304, 0
  %v538 = vsel %vm506, %v308, 0
  %v541 = vsel %vm506, %v312, 0
  %v544 = vsel %vm506, %v316, 0
  %546 = vmatprep.subr.bf16.mxu0 0
  %547 = vmatpush1.bf16.msra.mxu0 %v456
  %548 = vmatprep.subr.bf16.mxu0 0
  %549 = vmatpush1.bf16.msra.mxu0 %v457
  %550 = vmatprep.subr.bf16.mxu0 0
  %551 = vmatpush1.bf16.msra.mxu0 %v458
  %552 = vmatprep.subr.bf16.mxu0 0
  %553 = vmatpush1.bf16.msra.mxu0 %v459
  %554 = vmatprep.subr.bf16.mxu0 0
  %555 = vmatpush1.bf16.msra.mxu0 %v460
  %556 = vmatprep.subr.bf16.mxu0 0
  %557 = vmatpush1.bf16.msra.mxu0 %v461
  %558 = vmatprep.subr.bf16.mxu0 0
  %559 = vmatpush1.bf16.msra.mxu0 %v462
  %560 = vmatprep.subr.bf16.mxu0 0
  %561 = vmatpush1.bf16.msra.mxu0 %v463
  %562 = vmatprep.subr.bf16.mxu0 0
  %563 = vmatpush1.bf16.msra.mxu0 %v464
  %564 = vmatprep.subr.bf16.mxu0 0
  %565 = vmatpush1.bf16.msra.mxu0 %v465
  %566 = vmatprep.subr.bf16.mxu0 0
  %567 = vmatpush1.bf16.msra.mxu0 %v466
  %568 = vmatprep.subr.bf16.mxu0 0
  %569 = vmatpush1.bf16.msra.mxu0 %v467
  %570 = vmatprep.subr.bf16.mxu0 0
  %571 = vmatpush1.bf16.msra.mxu0 %v468
  %572 = vmatprep.subr.bf16.mxu0 0
  %573 = vmatpush1.bf16.msra.mxu0 %v469
  %574 = vmatprep.subr.bf16.mxu0 0
  %575 = vmatpush1.bf16.msra.mxu0 %v470
  %576 = vmatprep.subr.bf16.mxu0 0
  %577 = vmatpush1.bf16.msra.mxu0 %v471
  %578 = vmatprep.mubr.bf16.mxu0 %v266
  %579 = vmatmul.mubr.bf16.gmra.mrb[0].mxu0 %v265
  %v580 = vpop.f32.mrb[0].mxu0
  %v581 = vadd.f32 0.0, %v580
  %v582 = vpop.f32.mrb[0].mxu0
  %v583 = vpop.f32.mrb[0].mxu0
  %v584 = vadd.f32 0.0, %v583
  %v585 = vpop.f32.mrb[0].mxu0
  %586 = vmatprep.mubr.bf16.mxu0 %v270
  %587 = vmatmul.mubr.bf16.gmra.mrb[0].mxu0 %v269
  %v588 = vpop.f32.mrb[0].mxu0
  %v589 = vadd.f32 0.0, %v588
  %v590 = vpop.f32.mrb[0].mxu0
  %v591 = vpop.f32.mrb[0].mxu0
  %v592 = vadd.f32 0.0, %v591
  %v593 = vpop.f32.mrb[0].mxu0
  %594 = vmatprep.mubr.bf16.mxu0 %v274
  %595 = vmatmul.mubr.bf16.gmra.mrb[0].mxu0 %v273
  %v596 = vpop.f32.mrb[0].mxu0
  %v597 = vadd.f32 0.0, %v596
  %v598 = vpop.f32.mrb[0].mxu0
  %v599 = vpop.f32.mrb[0].mxu0
  %v600 = vadd.f32 0.0, %v599
  %v601 = vpop.f32.mrb[0].mxu0
  %602 = vmatprep.mubr.bf16.mxu0 %v278
  %603 = vmatmul.mubr.bf16.gmra.mrb[0].mxu0 %v277
  %v604 = vpop.f32.mrb[0].mxu0
  %v605 = vadd.f32 0.0, %v604
  %v606 = vpop.f32.mrb[0].mxu0
  %v607 = vpop.f32.mrb[0].mxu0
  %v608 = vadd.f32 0.0, %v607
  %v609 = vpop.f32.mrb[0].mxu0
  %610 = vmatprep.mubr.bf16.mxu0 %v282
  %611 = vmatmul.mubr.bf16.gmra.mrb[0].mxu0 %v281
  %v612 = vpop.f32.mrb[0].mxu0
  %v613 = vadd.f32 0.0, %v612
  %v614 = vpop.f32.mrb[0].mxu0
  %v615 = vpop.f32.mrb[0].mxu0
  %v616 = vadd.f32 0.0, %v615
  %v617 = vpop.f32.mrb[0].mxu0
  %618 = vmatprep.mubr.bf16.mxu0 %v286
  %619 = vmatmul.mubr.bf16.gmra.mrb[0].mxu0 %v285
  %v620 = vpop.f32.mrb[0].mxu0
  %v621 = vadd.f32 0.0, %v620
  %v622 = vpop.f32.mrb[0].mxu0
  %v623 = vpop.f32.mrb[0].mxu0
  %v624 = vadd.f32 0.0, %v623
  %v625 = vpop.f32.mrb[0].mxu0
  %626 = vmatprep.mubr.bf16.mxu0 %v290
  %627 = vmatmul.mubr.bf16.gmra.mrb[0].mxu0 %v289
  %v628 = vpop.f32.mrb[0].mxu0
  %v629 = vadd.f32 0.0, %v628
  %v630 = vpop.f32.mrb[0].mxu0
  %v631 = vpop.f32.mrb[0].mxu0
  %v632 = vadd.f32 0.0, %v631
  %v633 = vpop.f32.mrb[0].mxu0
  %634 = vmatprep.mubr.bf16.mxu0 %v294
  %635 = vmatmul.mubr.bf16.gmra.mrb[0].mxu0 %v293
  %v636 = vpop.f32.mrb[0].mxu0
  %v637 = vadd.f32 0.0, %v636
  %v638 = vpop.f32.mrb[0].mxu0
  %v639 = vpop.f32.mrb[0].mxu0
  %v640 = vadd.f32 0.0, %v639
  %v641 = vpop.f32.mrb[0].mxu0
  %642 = vmatprep.mubr.bf16.mxu0 %v298
  %643 = vmatmul.mubr.bf16.gmra.mrb[0].mxu0 %v297
  %v644 = vpop.f32.mrb[0].mxu0
  %v645 = vadd.f32 0.0, %v644
  %v646 = vpop.f32.mrb[0].mxu0
  %v647 = vpop.f32.mrb[0].mxu0
  %v648 = vadd.f32 0.0, %v647
  %v649 = vpop.f32.mrb[0].mxu0
  %650 = vmatprep.mubr.bf16.mxu0 %v302
  %651 = vmatmul.mubr.bf16.gmra.mrb[0].mxu0 %v301
  %v652 = vpop.f32.mrb[0].mxu0
  %v653 = vadd.f32 0.0, %v652
  %v654 = vpop.f32.mrb[0].mxu0
  %v655 = vpop.f32.mrb[0].mxu0
  %v656 = vadd.f32 0.0, %v655
  %v657 = vpop.f32.mrb[0].mxu0
  %658 = vmatprep.mubr.bf16.mxu0 %v306
  %659 = vmatmul.mubr.bf16.gmra.mrb[0].mxu0 %v305
  %v660 = vpop.f32.mrb[0].mxu0
  %v661 = vadd.f32 0.0, %v660
  %v662 = vpop.f32.mrb[0].mxu0
  %v663 = vpop.f32.mrb[0].mxu0
  %v664 = vadd.f32 0.0, %v663
  %v665 = vpop.f32.mrb[0].mxu0
  %666 = vmatprep.mubr.bf16.mxu0 %v310
  %667 = vmatmul.mubr.bf16.gmra.mrb[0].mxu0 %v309
  %v668 = vpop.f32.mrb[0].mxu0
  %v669 = vadd.f32 0.0, %v668
  %v670 = vpop.f32.mrb[0].mxu0
  %v671 = vpop.f32.mrb[0].mxu0
  %v672 = vadd.f32 0.0, %v671
  %v673 = vpop.f32.mrb[0].mxu0
  %674 = vmatprep.mubr.bf16.mxu0 %v314
  %675 = vmatmul.mubr.bf16.gmra.mrb[0].mxu0 %v313
  %v676 = vpop.f32.mrb[0].mxu0
  %v677 = vadd.f32 0.0, %v676
  %v678 = vpop.f32.mrb[0].mxu0
  %v679 = vpop.f32.mrb[0].mxu0
  %v680 = vpop.f32.mrb[0].mxu0
  %681 = vdwg.mxu0
  %682 = vmatprep.subr.bf16.mxu0 0
  %683 = vmatpush1.bf16.msra.mxu0 %v472
  %684 = vmatprep.subr.bf16.mxu0 0
  %685 = vmatpush1.bf16.msra.mxu0 %v473
  %686 = vmatprep.subr.bf16.mxu0 0
  %687 = vmatpush1.bf16.msra.mxu0 %v474
  %688 = vmatprep.subr.bf16.mxu0 0
  %689 = vmatpush1.bf16.msra.mxu0 %v475
  %690 = vmatprep.subr.bf16.mxu0 0
  %691 = vmatpush1.bf16.msra.mxu0 %v476
  %692 = vmatprep.subr.bf16.mxu0 0
  %693 = vmatpush1.bf16.msra.mxu0 %v477
  %694 = vmatprep.subr.bf16.mxu0 0
  %695 = vmatpush1.bf16.msra.mxu0 %v478
  %696 = vmatprep.subr.bf16.mxu0 0
  %697 = vmatpush1.bf16.msra.mxu0 %v479
  %698 = vmatprep.subr.bf16.mxu0 0
  %699 = vmatpush1.bf16.msra.mxu0 %v480
  %700 = vmatprep.subr.bf16.mxu0 0
  %701 = vmatpush1.bf16.msra.mxu0 0
  %702 = vmatprep.subr.bf16.mxu0 0
  %703 = vmatpush1.bf16.msra.mxu0 0
  %704 = vmatprep.subr.bf16.mxu0 0
  %705 = vmatpush1.bf16.msra.mxu0 0
  %706 = vmatprep.subr.bf16.mxu0 0
  %707 = vmatpush1.bf16.msra.mxu0 0
  %708 = vmatprep.subr.bf16.mxu0 0
  %709 = vmatpush1.bf16.msra.mxu0 0
  %710 = vmatprep.subr.bf16.mxu0 0
  %711 = vmatpush1.bf16.msra.mxu0 0
  %712 = vmatprep.subr.bf16.mxu0 0
  %713 = vmatpush1.bf16.msra.mxu0 0
  %714 = vmatprep.mubr.bf16.mxu0 %v508
  %715 = vmatmul.mubr.bf16.gmra.mrb[0].mxu0 %v267
  %v716 = vpop.f32.mrb[0].mxu0
  %v717 = vadd.f32 %v581, %v716
  %v718 = vpop.f32.mrb[0].mxu0
  %v719 = vpop.f32.mrb[0].mxu0
  %v720 = vadd.f32 %v584, %v719
  %v721 = vpop.f32.mrb[0].mxu0
  %722 = vmatprep.mubr.bf16.mxu0 %v511
  %723 = vmatmul.mubr.bf16.gmra.mrb[0].mxu0 %v271
  %v724 = vpop.f32.mrb[0].mxu0
  %v725 = vadd.f32 %v589, %v724
  %v726 = vpop.f32.mrb[0].mxu0
  %v727 = vpop.f32.mrb[0].mxu0
  %v728 = vadd.f32 %v592, %v727
  %v729 = vpop.f32.mrb[0].mxu0
  %730 = vmatprep.mubr.bf16.mxu0 %v514
  %731 = vmatmul.mubr.bf16.gmra.mrb[0].mxu0 %v275
  %v732 = vpop.f32.mrb[0].mxu0
  %v733 = vadd.f32 %v597, %v732
  %v734 = vpop.f32.mrb[0].mxu0
  %v735 = vpop.f32.mrb[0].mxu0
  %v736 = vadd.f32 %v600, %v735
  %v737 = vpop.f32.mrb[0].mxu0
  %738 = vmatprep.mubr.bf16.mxu0 %v517
  %739 = vmatmul.mubr.bf16.gmra.mrb[0].mxu0 %v279
  %v740 = vpop.f32.mrb[0].mxu0
  %v741 = vadd.f32 %v605, %v740
  %v742 = vpop.f32.mrb[0].mxu0
  %v743 = vpop.f32.mrb[0].mxu0
  %v744 = vadd.f32 %v608, %v743
  %v745 = vpop.f32.mrb[0].mxu0
  %746 = vmatprep.mubr.bf16.mxu0 %v520
  %747 = vmatmul.mubr.bf16.gmra.mrb[0].mxu0 %v283
  %v748 = vpop.f32.mrb[0].mxu0
  %v749 = vadd.f32 %v613, %v748
  %v750 = vpop.f32.mrb[0].mxu0
  %v751 = vpop.f32.mrb[0].mxu0
  %v752 = vadd.f32 %v616, %v751
  %v753 = vpop.f32.mrb[0].mxu0
  %754 = vmatprep.mubr.bf16.mxu0 %v523
  %755 = vmatmul.mubr.bf16.gmra.mrb[0].mxu0 %v287
  %v756 = vpop.f32.mrb[0].mxu0
  %v757 = vadd.f32 %v621, %v756
  %v758 = vpop.f32.mrb[0].mxu0
  %v759 = vpop.f32.mrb[0].mxu0
  %v760 = vadd.f32 %v624, %v759
  %v761 = vpop.f32.mrb[0].mxu0
  %762 = vmatprep.mubr.bf16.mxu0 %v526
  %763 = vmatmul.mubr.bf16.gmra.mrb[0].mxu0 %v291
  %v764 = vpop.f32.mrb[0].mxu0
  %v765 = vadd.f32 %v629, %v764
  %v766 = vpop.f32.mrb[0].mxu0
  %v767 = vpop.f32.mrb[0].mxu0
  %v768 = vadd.f32 %v632, %v767
  %v769 = vpop.f32.mrb[0].mxu0
  %770 = vmatprep.mubr.bf16.mxu0 %v529
  %771 = vmatmul.mubr.bf16.gmra.mrb[0].mxu0 %v295
  %v772 = vpop.f32.mrb[0].mxu0
  %v773 = vadd.f32 %v637, %v772
  %v774 = vpop.f32.mrb[0].mxu0
  %v775 = vpop.f32.mrb[0].mxu0
  %v776 = vadd.f32 %v640, %v775
  %v777 = vpop.f32.mrb[0].mxu0
  %778 = vmatprep.mubr.bf16.mxu0 %v532
  %779 = vmatmul.mubr.bf16.gmra.mrb[0].mxu0 %v299
  %v780 = vpop.f32.mrb[0].mxu0
  %v781 = vadd.f32 %v645, %v780
  %v782 = vpop.f32.mrb[0].mxu0
  %v783 = vpop.f32.mrb[0].mxu0
  %v784 = vadd.f32 %v648, %v783
  %v785 = vpop.f32.mrb[0].mxu0
  %786 = vmatprep.mubr.bf16.mxu0 %v535
  %787 = vmatmul.mubr.bf16.gmra.mrb[0].mxu0 %v303
  %v788 = vpop.f32.mrb[0].mxu0
  %v789 = vadd.f32 %v653, %v788
  %v790 = vpop.f32.mrb[0].mxu0
  %v791 = vpop.f32.mrb[0].mxu0
  %v792 = vadd.f32 %v656, %v791
  %v793 = vpop.f32.mrb[0].mxu0
  %794 = vmatprep.mubr.bf16.mxu0 %v538
  %795 = vmatmul.mubr.bf16.gmra.mrb[0].mxu0 %v307
  %v796 = vpop.f32.mrb[0].mxu0
  %v797 = vadd.f32 %v661, %v796
  %v798 = vpop.f32.mrb[0].mxu0
  %v799 = vpop.f32.mrb[0].mxu0
  %v800 = vadd.f32 %v664, %v799
  %v801 = vpop.f32.mrb[0].mxu0
  %802 = vmatprep.mubr.bf16.mxu0 %v541
  %803 = vmatmul.mubr.bf16.gmra.mrb[0].mxu0 %v311
  %v804 = vpop.f32.mrb[0].mxu0
  %v805 = vadd.f32 %v669, %v804
  %v806 = vpop.f32.mrb[0].mxu0
  %v807 = vpop.f32.mrb[0].mxu0
  %v808 = vadd.f32 %v672, %v807
  %v809 = vpop.f32.mrb[0].mxu0
  %810 = vmatprep.mubr.bf16.mxu0 %v544
  %811 = vmatmul.mubr.bf16.gmra.mrb[0].mxu0 %v315
  %v812 = vpop.f32.mrb[0].mxu0
  %v813 = vadd.f32 %v677, %v812
  %v814 = vpop.f32.mrb[0].mxu0
  %v815 = vpop.f32.mrb[0].mxu0
  %v816 = vpop.f32.mrb[0].mxu0
  %817 = vdwg.mxu0
  %s818 = scalar_lea.vmem %s0, 400
  %v819 = vld [vmem:[%s818] sm:$0xff]
  %v820 = vld [vmem:[%s818 + $0x8] sm:$0xff]
  %v821 = vld [vmem:[%s818 + $0x10] sm:$0xff]
  %v822 = vld [vmem:[%s818 + $0x18] sm:$0xff]
  %v823 = vld [vmem:[%s818 + $0x20] sm:$0xff]
  %v824 = vld [vmem:[%s818 + $0x28] sm:$0xff]
  %v825 = vld [vmem:[%s818 + $0x30] sm:$0xff]
  %v826 = vld [vmem:[%s818 + $0x38] sm:$0xff]
  %v827 = vld [vmem:[%s818 + $0x40] sm:$0xff]
  %v828 = vld [vmem:[%s818 + $0x48] sm:$0xff]
  %v829 = vld [vmem:[%s818 + $0x50] sm:$0xff]
  %v830 = vld [vmem:[%s818 + $0x58] sm:$0xff]
  %v831 = vld [vmem:[%s818 + $0x60] sm:$0xff]
  %v832 = vld [vmem:[%s818 + $0x68] sm:$0xff]
  %v833 = vld [vmem:[%s818 + $0x70] sm:$0xff]
  %v834 = vld [vmem:[%s818 + $0x78] sm:$0xff]
  %v835 = vld [vmem:[%s818 + $0x80] sm:$0xff]
  %v836 = vld [vmem:[%s818 + $0x88] sm:$0xff]
  %v837 = vld [vmem:[%s818 + $0x90] sm:$0xff]
  %v838 = vld [vmem:[%s818 + $0x98] sm:$0xff]
  %v839 = vld [vmem:[%s818 + $0xa0] sm:$0xff]
  %v840 = vld [vmem:[%s818 + $0xa8] sm:$0xff]
  %v841 = vld [vmem:[%s818 + $0xb0] sm:$0xff]
  %v842 = vld [vmem:[%s818 + $0xb8] sm:$0xff]
  %v843 = vld [vmem:[%s818 + $0xc0] sm:$0xff]
  %v844 = vld [vmem:[%s818 + $0xc8] sm:$0xff]
  %v845 = vld [vmem:[%s818 + $0xd0] sm:$0xff]
  %v846 = vld [vmem:[%s818 + $0xd8] sm:$0xff]
  %v847 = vld [vmem:[%s818 + $0xe0] sm:$0xff]
  %v848 = vld [vmem:[%s818 + $0xe8] sm:$0xff]
  %v849 = vld [vmem:[%s818 + $0xf0] sm:$0xff]
  %v850 = vld [vmem:[%s818 + $0xf8] sm:$0xff]
  %v851 = vld [vmem:[%s818 + $0x100] sm:$0xff]
  %v852 = vld [vmem:[%s818 + $0x108] sm:$0xff]
  %v853 = vld [vmem:[%s818 + $0x110] sm:$0xff]
  %v854 = vld [vmem:[%s818 + $0x118] sm:$0xff]
  %v855 = vld [vmem:[%s818 + $0x120] sm:$0xff]
  %v856 = vld [vmem:[%s818 + $0x128] sm:$0xff]
  %v857 = vld [vmem:[%s818 + $0x130] sm:$0xff]
  %v858 = vld [vmem:[%s818 + $0x138] sm:$0xff]
  %v859 = vld [vmem:[%s818 + $0x140] sm:$0xff]
  %v860 = vld [vmem:[%s818 + $0x148] sm:$0xff]
  %v861 = vld [vmem:[%s818 + $0x150] sm:$0xff]
  %v862 = vld [vmem:[%s818 + $0x158] sm:$0xff]
  %v863 = vld [vmem:[%s818 + $0x160] sm:$0xff]
  %v864 = vld [vmem:[%s818 + $0x168] sm:$0xff]
  %v865 = vld [vmem:[%s818 + $0x170] sm:$0xff]
  %v866 = vld [vmem:[%s818 + $0x178] sm:$0xff]
  %v867 = vld [vmem:[%s818 + $0x180] sm:$0xff]
  %v868 = vld [vmem:[%s818 + $0x188] sm:$0xff]
  %v919 = vunpack.c.l.b16 %v819
  %v920 = vunpack.c.h.b16 %v819
  %v921 = vunpack.c.l.b16 %v820
  %v922 = vunpack.c.h.b16 %v820
  %v923 = vunpack.c.l.b16 %v821
  %v924 = vunpack.c.h.b16 %v821
  %v925 = vunpack.c.l.b16 %v822
  %v926 = vunpack.c.h.b16 %v822
  %v927 = vunpack.c.l.b16 %v823
  %v928 = vunpack.c.h.b16 %v823
  %v929 = vunpack.c.l.b16 %v824
  %v930 = vunpack.c.h.b16 %v824
  %v931 = vunpack.c.l.b16 %v825
  %v932 = vunpack.c.h.b16 %v825
  %v933 = vunpack.c.l.b16 %v826
  %v934 = vunpack.c.h.b16 %v826
  %v935 = vunpack.c.l.b16 %v827
  %v936 = vunpack.c.h.b16 %v827
  %v937 = vunpack.c.l.b16 %v828
  %v938 = vunpack.c.h.b16 %v828
  %v939 = vunpack.c.l.b16 %v829
  %v940 = vunpack.c.h.b16 %v829
  %v941 = vunpack.c.l.b16 %v830
  %v942 = vunpack.c.h.b16 %v830
  %v943 = vunpack.c.l.b16 %v831
  %v944 = vunpack.c.h.b16 %v831
  %v945 = vunpack.c.l.b16 %v832
  %v946 = vunpack.c.h.b16 %v832
  %v947 = vunpack.c.l.b16 %v833
  %v948 = vunpack.c.h.b16 %v833
  %v949 = vunpack.c.l.b16 %v834
  %v950 = vunpack.c.h.b16 %v834
  %v951 = vunpack.c.l.b16 %v835
  %v952 = vunpack.c.h.b16 %v835
  %v953 = vunpack.c.l.b16 %v836
  %v954 = vunpack.c.h.b16 %v836
  %v955 = vunpack.c.l.b16 %v837
  %v956 = vunpack.c.h.b16 %v837
  %v957 = vunpack.c.l.b16 %v838
  %v958 = vunpack.c.h.b16 %v838
  %v959 = vunpack.c.l.b16 %v839
  %v960 = vunpack.c.h.b16 %v839
  %v961 = vunpack.c.l.b16 %v840
  %v962 = vunpack.c.h.b16 %v840
  %v963 = vunpack.c.l.b16 %v841
  %v964 = vunpack.c.h.b16 %v841
  %v965 = vunpack.c.l.b16 %v842
  %v966 = vunpack.c.h.b16 %v842
  %v967 = vunpack.c.l.b16 %v843
  %v968 = vunpack.c.h.b16 %v843
  %v969 = vunpack.c.l.b16 %v844
  %v970 = vunpack.c.h.b16 %v844
  %v971 = vunpack.c.l.b16 %v845
  %v972 = vunpack.c.h.b16 %v845
  %v973 = vunpack.c.l.b16 %v846
  %v974 = vunpack.c.h.b16 %v846
  %v975 = vunpack.c.l.b16 %v847
  %v976 = vunpack.c.h.b16 %v847
  %v977 = vunpack.c.l.b16 %v848
  %v978 = vunpack.c.h.b16 %v848
  %v979 = vunpack.c.l.b16 %v849
  %v980 = vunpack.c.h.b16 %v849
  %v981 = vunpack.c.l.b16 %v850
  %v982 = vunpack.c.h.b16 %v850
  %v983 = vunpack.c.l.b16 %v851
  %v984 = vunpack.c.h.b16 %v851
  %v985 = vunpack.c.l.b16 %v852
  %v986 = vunpack.c.h.b16 %v852
  %v987 = vunpack.c.l.b16 %v853
  %v988 = vunpack.c.h.b16 %v853
  %v989 = vunpack.c.l.b16 %v854
  %v990 = vunpack.c.h.b16 %v854
  %v991 = vunpack.c.l.b16 %v855
  %v992 = vunpack.c.h.b16 %v855
  %v993 = vunpack.c.l.b16 %v856
  %v994 = vunpack.c.h.b16 %v856
  %v995 = vunpack.c.l.b16 %v857
  %v996 = vunpack.c.h.b16 %v857
  %v997 = vunpack.c.l.b16 %v858
  %v998 = vunpack.c.h.b16 %v858
  %v999 = vunpack.c.l.b16 %v859
  %v1000 = vunpack.c.h.b16 %v859
  %v1001 = vunpack.c.l.b16 %v860
  %v1002 = vunpack.c.h.b16 %v860
  %v1003 = vunpack.c.l.b16 %v861
  %v1004 = vunpack.c.h.b16 %v861
  %v1005 = vunpack.c.l.b16 %v862
  %v1006 = vunpack.c.h.b16 %v862
  %v1007 = vunpack.c.l.b16 %v863
  %v1008 = vunpack.c.h.b16 %v863
  %v1009 = vunpack.c.l.b16 %v864
  %v1010 = vunpack.c.h.b16 %v864
  %v1011 = vunpack.c.l.b16 %v865
  %v1012 = vunpack.c.h.b16 %v865
  %v1013 = vunpack.c.l.b16 %v866
  %v1014 = vunpack.c.h.b16 %v866
  %v1015 = vunpack.c.l.b16 %v867
  %v1016 = vunpack.c.h.b16 %v867
  %v1017 = vunpack.c.l.b16 %v868
  %v1018 = vunpack.c.h.b16 %v868
  %v1019 = vpack.c.b16 %v923, %v919
  %v1020 = vpack.c.b16 %v924, %v920
  %v1021 = vpack.c.b16 %v925, %v921
  %v1022 = vpack.c.b16 %v926, %v922
  %v1023 = vpack.c.b16 %v931, %v927
  %v1024 = vpack.c.b16 %v932, %v928
  %v1025 = vpack.c.b16 %v933, %v929
  %v1026 = vpack.c.b16 %v934, %v930
  %v1027 = vpack.c.b16 %v939, %v935
  %v1028 = vpack.c.b16 %v940, %v936
  %v1029 = vpack.c.b16 %v941, %v937
  %v1030 = vpack.c.b16 %v942, %v938
  %v1031 = vpack.c.b16 %v947, %v943
  %v1032 = vpack.c.b16 %v948, %v944
  %v1033 = vpack.c.b16 %v949, %v945
  %v1034 = vpack.c.b16 %v950, %v946
  %v1035 = vpack.c.b16 %v955, %v951
  %v1036 = vpack.c.b16 %v956, %v952
  %v1037 = vpack.c.b16 %v957, %v953
  %v1038 = vpack.c.b16 %v958, %v954
  %v1039 = vpack.c.b16 %v963, %v959
  %v1040 = vpack.c.b16 %v964, %v960
  %v1041 = vpack.c.b16 %v965, %v961
  %v1042 = vpack.c.b16 %v966, %v962
  %v1043 = vpack.c.b16 %v971, %v967
  %v1044 = vpack.c.b16 %v972, %v968
  %v1045 = vpack.c.b16 %v973, %v969
  %v1046 = vpack.c.b16 %v974, %v970
  %v1047 = vpack.c.b16 %v979, %v975
  %v1048 = vpack.c.b16 %v980, %v976
  %v1049 = vpack.c.b16 %v981, %v977
  %v1050 = vpack.c.b16 %v982, %v978
  %v1051 = vpack.c.b16 %v987, %v983
  %v1052 = vpack.c.b16 %v988, %v984
  %v1053 = vpack.c.b16 %v989, %v985
  %v1054 = vpack.c.b16 %v990, %v986
  %v1055 = vpack.c.b16 %v995, %v991
  %v1056 = vpack.c.b16 %v996, %v992
  %v1057 = vpack.c.b16 %v997, %v993
  %v1058 = vpack.c.b16 %v998, %v994
  %v1059 = vpack.c.b16 %v1003, %v999
  %v1060 = vpack.c.b16 %v1004, %v1000
  %v1061 = vpack.c.b16 %v1005, %v1001
  %v1062 = vpack.c.b16 %v1006, %v1002
  %v1063 = vpack.c.b16 %v1011, %v1007
  %v1064 = vpack.c.b16 %v1012, %v1008
  %v1065 = vpack.c.b16 %v1013, %v1009
  %v1066 = vpack.c.b16 %v1014, %v1010
  %v1067 = vpack.c.b16 %v1015, %v1015
  %v1068 = vpack.c.b16 %v1016, %v1016
  %v1069 = vpack.c.b16 %v1017, %v1017
  %v1070 = vpack.c.b16 %v1018, %v1018
  %v1111 = vsel %vm506, %v1022, 0
  %v1114 = vsel %vm506, %v1026, 0
  %v1117 = vsel %vm506, %v1030, 0
  %v1120 = vsel %vm506, %v1034, 0
  %v1123 = vsel %vm506, %v1038, 0
  %v1126 = vsel %vm506, %v1042, 0
  %v1129 = vsel %vm506, %v1046, 0
  %v1132 = vsel %vm506, %v1050, 0
  %v1135 = vsel %vm506, %v1054, 0
  %v1138 = vsel %vm506, %v1058, 0
  %v1141 = vsel %vm506, %v1062, 0
  %v1144 = vsel %vm506, %v1066, 0
  %v1147 = vsel %vm506, %v1070, 0
  %1149 = vmatprep.subr.bf16.mxu0 0
  %1150 = vmatpush1.bf16.msra.mxu0 %v456
  %1151 = vmatprep.subr.bf16.mxu0 0
  %1152 = vmatpush1.bf16.msra.mxu0 %v457
  %1153 = vmatprep.subr.bf16.mxu0 0
  %1154 = vmatpush1.bf16.msra.mxu0 %v458
  %1155 = vmatprep.subr.bf16.mxu0 0
  %1156 = vmatpush1.bf16.msra.mxu0 %v459
  %1157 = vmatprep.subr.bf16.mxu0 0
  %1158 = vmatpush1.bf16.msra.mxu0 %v460
  %1159 = vmatprep.subr.bf16.mxu0 0
  %1160 = vmatpush1.bf16.msra.mxu0 %v461
  %1161 = vmatprep.subr.bf16.mxu0 0
  %1162 = vmatpush1.bf16.msra.mxu0 %v462
  %1163 = vmatprep.subr.bf16.mxu0 0
  %1164 = vmatpush1.bf16.msra.mxu0 %v463
  %1165 = vmatprep.subr.bf16.mxu0 0
  %1166 = vmatpush1.bf16.msra.mxu0 %v464
  %1167 = vmatprep.subr.bf16.mxu0 0
  %1168 = vmatpush1.bf16.msra.mxu0 %v465
  %1169 = vmatprep.subr.bf16.mxu0 0
  %1170 = vmatpush1.bf16.msra.mxu0 %v466
  %1171 = vmatprep.subr.bf16.mxu0 0
  %1172 = vmatpush1.bf16.msra.mxu0 %v467
  %1173 = vmatprep.subr.bf16.mxu0 0
  %1174 = vmatpush1.bf16.msra.mxu0 %v468
  %1175 = vmatprep.subr.bf16.mxu0 0
  %1176 = vmatpush1.bf16.msra.mxu0 %v469
  %1177 = vmatprep.subr.bf16.mxu0 0
  %1178 = vmatpush1.bf16.msra.mxu0 %v470
  %1179 = vmatprep.subr.bf16.mxu0 0
  %1180 = vmatpush1.bf16.msra.mxu0 %v471
  %1181 = vmatprep.mubr.bf16.mxu0 %v1020
  %1182 = vmatmul.mubr.bf16.gmra.mrb[0].mxu0 %v1019
  %v1183 = vpop.f32.mrb[0].mxu0
  %v1184 = vadd.f32 0.0, %v1183
  %v1185 = vpop.f32.mrb[0].mxu0
  %v1186 = vpop.f32.mrb[0].mxu0
  %v1187 = vadd.f32 0.0, %v1186
  %v1188 = vpop.f32.mrb[0].mxu0
  %1189 = vmatprep.mubr.bf16.mxu0 %v1024
  %1190 = vmatmul.mubr.bf16.gmra.mrb[0].mxu0 %v1023
  %v1191 = vpop.f32.mrb[0].mxu0
  %v1192 = vadd.f32 0.0, %v1191
  %v1193 = vpop.f32.mrb[0].mxu0
  %v1194 = vpop.f32.mrb[0].mxu0
  %v1195 = vadd.f32 0.0, %v1194
  %v1196 = vpop.f32.mrb[0].mxu0
  %1197 = vmatprep.mubr.bf16.mxu0 %v1028
  %1198 = vmatmul.mubr.bf16.gmra.mrb[0].mxu0 %v1027
  %v1199 = vpop.f32.mrb[0].mxu0
  %v1200 = vadd.f32 0.0, %v1199
  %v1201 = vpop.f32.mrb[0].mxu0
  %v1202 = vpop.f32.mrb[0].mxu0
  %v1203 = vadd.f32 0.0, %v1202
  %v1204 = vpop.f32.mrb[0].mxu0
  %1205 = vmatprep.mubr.bf16.mxu0 %v1032
  %1206 = vmatmul.mubr.bf16.gmra.mrb[0].mxu0 %v1031
  %v1207 = vpop.f32.mrb[0].mxu0
  %v1208 = vadd.f32 0.0, %v1207
  %v1209 = vpop.f32.mrb[0].mxu0
  %v1210 = vpop.f32.mrb[0].mxu0
  %v1211 = vadd.f32 0.0, %v1210
  %v1212 = vpop.f32.mrb[0].mxu0
  %1213 = vmatprep.mubr.bf16.mxu0 %v1036
  %1214 = vmatmul.mubr.bf16.gmra.mrb[0].mxu0 %v1035
  %v1215 = vpop.f32.mrb[0].mxu0
  %v1216 = vadd.f32 0.0, %v1215
  %v1217 = vpop.f32.mrb[0].mxu0
  %v1218 = vpop.f32.mrb[0].mxu0
  %v1219 = vadd.f32 0.0, %v1218
  %v1220 = vpop.f32.mrb[0].mxu0
  %1221 = vmatprep.mubr.bf16.mxu0 %v1040
  %1222 = vmatmul.mubr.bf16.gmra.mrb[0].mxu0 %v1039
  %v1223 = vpop.f32.mrb[0].mxu0
  %v1224 = vadd.f32 0.0, %v1223
  %v1225 = vpop.f32.mrb[0].mxu0
  %v1226 = vpop.f32.mrb[0].mxu0
  %v1227 = vadd.f32 0.0, %v1226
  %v1228 = vpop.f32.mrb[0].mxu0
  %1229 = vmatprep.mubr.bf16.mxu0 %v1044
  %1230 = vmatmul.mubr.bf16.gmra.mrb[0].mxu0 %v1043
  %v1231 = vpop.f32.mrb[0].mxu0
  %v1232 = vadd.f32 0.0, %v1231
  %v1233 = vpop.f32.mrb[0].mxu0
  %v1234 = vpop.f32.mrb[0].mxu0
  %v1235 = vadd.f32 0.0, %v1234
  %v1236 = vpop.f32.mrb[0].mxu0
  %1237 = vmatprep.mubr.bf16.mxu0 %v1048
  %1238 = vmatmul.mubr.bf16.gmra.mrb[0].mxu0 %v1047
  %v1239 = vpop.f32.mrb[0].mxu0
  %v1240 = vadd.f32 0.0, %v1239
  %v1241 = vpop.f32.mrb[0].mxu0
  %v1242 = vpop.f32.mrb[0].mxu0
  %v1243 = vadd.f32 0.0, %v1242
  %v1244 = vpop.f32.mrb[0].mxu0
  %1245 = vmatprep.mubr.bf16.mxu0 %v1052
  %1246 = vmatmul.mubr.bf16.gmra.mrb[0].mxu0 %v1051
  %v1247 = vpop.f32.mrb[0].mxu0
  %v1248 = vadd.f32 0.0, %v1247
  %v1249 = vpop.f32.mrb[0].mxu0
  %v1250 = vpop.f32.mrb[0].mxu0
  %v1251 = vadd.f32 0.0, %v1250
  %v1252 = vpop.f32.mrb[0].mxu0
  %1253 = vmatprep.mubr.bf16.mxu0 %v1056
  %1254 = vmatmul.mubr.bf16.gmra.mrb[0].mxu0 %v1055
  %v1255 = vpop.f32.mrb[0].mxu0
  %v1256 = vadd.f32 0.0, %v1255
  %v1257 = vpop.f32.mrb[0].mxu0
  %v1258 = vpop.f32.mrb[0].mxu0
  %v1259 = vadd.f32 0.0, %v1258
  %v1260 = vpop.f32.mrb[0].mxu0
  %1261 = vmatprep.mubr.bf16.mxu0 %v1060
  %1262 = vmatmul.mubr.bf16.gmra.mrb[0].mxu0 %v1059
  %v1263 = vpop.f32.mrb[0].mxu0
  %v1264 = vadd.f32 0.0, %v1263
  %v1265 = vpop.f32.mrb[0].mxu0
  %v1266 = vpop.f32.mrb[0].mxu0
  %v1267 = vadd.f32 0.0, %v1266
  %v1268 = vpop.f32.mrb[0].mxu0
  %1269 = vmatprep.mubr.bf16.mxu0 %v1064
  %1270 = vmatmul.mubr.bf16.gmra.mrb[0].mxu0 %v1063
  %v1271 = vpop.f32.mrb[0].mxu0
  %v1272 = vadd.f32 0.0, %v1271
  %v1273 = vpop.f32.mrb[0].mxu0
  %v1274 = vpop.f32.mrb[0].mxu0
  %v1275 = vadd.f32 0.0, %v1274
  %v1276 = vpop.f32.mrb[0].mxu0
  %1277 = vmatprep.mubr.bf16.mxu0 %v1068
  %1278 = vmatmul.mubr.bf16.gmra.mrb[0].mxu0 %v1067
  %v1279 = vpop.f32.mrb[0].mxu0
  %v1280 = vadd.f32 0.0, %v1279
  %v1281 = vpop.f32.mrb[0].mxu0
  %v1282 = vpop.f32.mrb[0].mxu0
  %v1283 = vpop.f32.mrb[0].mxu0
  %1284 = vdwg.mxu0
  %1285 = vmatprep.subr.bf16.mxu0 0
  %1286 = vmatpush1.bf16.msra.mxu0 %v472
  %1287 = vmatprep.subr.bf16.mxu0 0
  %1288 = vmatpush1.bf16.msra.mxu0 %v473
  %1289 = vmatprep.subr.bf16.mxu0 0
  %1290 = vmatpush1.bf16.msra.mxu0 %v474
  %1291 = vmatprep.subr.bf16.mxu0 0
  %1292 = vmatpush1.bf16.msra.mxu0 %v475
  %1293 = vmatprep.subr.bf16.mxu0 0
  %1294 = vmatpush1.bf16.msra.mxu0 %v476
  %1295 = vmatprep.subr.bf16.mxu0 0
  %1296 = vmatpush1.bf16.msra.mxu0 %v477
  %1297 = vmatprep.subr.bf16.mxu0 0
  %1298 = vmatpush1.bf16.msra.mxu0 %v478
  %1299 = vmatprep.subr.bf16.mxu0 0
  %1300 = vmatpush1.bf16.msra.mxu0 %v479
  %1301 = vmatprep.subr.bf16.mxu0 0
  %1302 = vmatpush1.bf16.msra.mxu0 %v480
  %1303 = vmatprep.subr.bf16.mxu0 0
  %1304 = vmatpush1.bf16.msra.mxu0 0
  %1305 = vmatprep.subr.bf16.mxu0 0
  %1306 = vmatpush1.bf16.msra.mxu0 0
  %1307 = vmatprep.subr.bf16.mxu0 0
  %1308 = vmatpush1.bf16.msra.mxu0 0
  %1309 = vmatprep.subr.bf16.mxu0 0
  %1310 = vmatpush1.bf16.msra.mxu0 0
  %1311 = vmatprep.subr.bf16.mxu0 0
  %1312 = vmatpush1.bf16.msra.mxu0 0
  %1313 = vmatprep.subr.bf16.mxu0 0
  %1314 = vmatpush1.bf16.msra.mxu0 0
  %1315 = vmatprep.subr.bf16.mxu0 0
  %1316 = vmatpush1.bf16.msra.mxu0 0
  %1317 = vmatprep.mubr.bf16.mxu0 %v1111
  %1318 = vmatmul.mubr.bf16.gmra.mrb[0].mxu0 %v1021
  %v1319 = vpop.f32.mrb[0].mxu0
  %v1320 = vadd.f32 %v1184, %v1319
  %v1321 = vpop.f32.mrb[0].mxu0
  %v1322 = vpop.f32.mrb[0].mxu0
  %v1323 = vadd.f32 %v1187, %v1322
  %v1324 = vpop.f32.mrb[0].mxu0
  %1325 = vmatprep.mubr.bf16.mxu0 %v1114
  %1326 = vmatmul.mubr.bf16.gmra.mrb[0].mxu0 %v1025
  %v1327 = vpop.f32.mrb[0].mxu0
  %v1328 = vadd.f32 %v1192, %v1327
  %v1329 = vpop.f32.mrb[0].mxu0
  %v1330 = vpop.f32.mrb[0].mxu0
  %v1331 = vadd.f32 %v1195, %v1330
  %v1332 = vpop.f32.mrb[0].mxu0
  %1333 = vmatprep.mubr.bf16.mxu0 %v1117
  %1334 = vmatmul.mubr.bf16.gmra.mrb[0].mxu0 %v1029
  %v1335 = vpop.f32.mrb[0].mxu0
  %v1336 = vadd.f32 %v1200, %v1335
  %v1337 = vpop.f32.mrb[0].mxu0
  %v1338 = vpop.f32.mrb[0].mxu0
  %v1339 = vadd.f32 %v1203, %v1338
  %v1340 = vpop.f32.mrb[0].mxu0
  %1341 = vmatprep.mubr.bf16.mxu0 %v1120
  %1342 = vmatmul.mubr.bf16.gmra.mrb[0].mxu0 %v1033
  %v1343 = vpop.f32.mrb[0].mxu0
  %v1344 = vadd.f32 %v1208, %v1343
  %v1345 = vpop.f32.mrb[0].mxu0
  %v1346 = vpop.f32.mrb[0].mxu0
  %v1347 = vadd.f32 %v1211, %v1346
  %v1348 = vpop.f32.mrb[0].mxu0
  %1349 = vmatprep.mubr.bf16.mxu0 %v1123
  %1350 = vmatmul.mubr.bf16.gmra.mrb[0].mxu0 %v1037
  %v1351 = vpop.f32.mrb[0].mxu0
  %v1352 = vadd.f32 %v1216, %v1351
  %v1353 = vpop.f32.mrb[0].mxu0
  %v1354 = vpop.f32.mrb[0].mxu0
  %v1355 = vadd.f32 %v1219, %v1354
  %v1356 = vpop.f32.mrb[0].mxu0
  %1357 = vmatprep.mubr.bf16.mxu0 %v1126
  %1358 = vmatmul.mubr.bf16.gmra.mrb[0].mxu0 %v1041
  %v1359 = vpop.f32.mrb[0].mxu0
  %v1360 = vadd.f32 %v1224, %v1359
  %v1361 = vpop.f32.mrb[0].mxu0
  %v1362 = vpop.f32.mrb[0].mxu0
  %v1363 = vadd.f32 %v1227, %v1362
  %v1364 = vpop.f32.mrb[0].mxu0
  %1365 = vmatprep.mubr.bf16.mxu0 %v1129
  %1366 = vmatmul.mubr.bf16.gmra.mrb[0].mxu0 %v1045
  %v1367 = vpop.f32.mrb[0].mxu0
  %v1368 = vadd.f32 %v1232, %v1367
  %v1369 = vpop.f32.mrb[0].mxu0
  %v1370 = vpop.f32.mrb[0].mxu0
  %v1371 = vadd.f32 %v1235, %v1370
  %v1372 = vpop.f32.mrb[0].mxu0
  %1373 = vmatprep.mubr.bf16.mxu0 %v1132
  %1374 = vmatmul.mubr.bf16.gmra.mrb[0].mxu0 %v1049
  %v1375 = vpop.f32.mrb[0].mxu0
  %v1376 = vadd.f32 %v1240, %v1375
  %v1377 = vpop.f32.mrb[0].mxu0
  %v1378 = vpop.f32.mrb[0].mxu0
  %v1379 = vadd.f32 %v1243, %v1378
  %v1380 = vpop.f32.mrb[0].mxu0
  %1381 = vmatprep.mubr.bf16.mxu0 %v1135
  %1382 = vmatmul.mubr.bf16.gmra.mrb[0].mxu0 %v1053
  %v1383 = vpop.f32.mrb[0].mxu0
  %v1384 = vadd.f32 %v1248, %v1383
  %v1385 = vpop.f32.mrb[0].mxu0
  %v1386 = vpop.f32.mrb[0].mxu0
  %v1387 = vadd.f32 %v1251, %v1386
  %v1388 = vpop.f32.mrb[0].mxu0
  %1389 = vmatprep.mubr.bf16.mxu0 %v1138
  %1390 = vmatmul.mubr.bf16.gmra.mrb[0].mxu0 %v1057
  %v1391 = vpop.f32.mrb[0].mxu0
  %v1392 = vadd.f32 %v1256, %v1391
  %v1393 = vpop.f32.mrb[0].mxu0
  %v1394 = vpop.f32.mrb[0].mxu0
  %v1395 = vadd.f32 %v1259, %v1394
  %v1396 = vpop.f32.mrb[0].mxu0
  %1397 = vmatprep.mubr.bf16.mxu0 %v1141
  %1398 = vmatmul.mubr.bf16.gmra.mrb[0].mxu0 %v1061
  %v1399 = vpop.f32.mrb[0].mxu0
  %v1400 = vadd.f32 %v1264, %v1399
  %v1401 = vpop.f32.mrb[0].mxu0
  %v1402 = vpop.f32.mrb[0].mxu0
  %v1403 = vadd.f32 %v1267, %v1402
  %v1404 = vpop.f32.mrb[0].mxu0
  %1405 = vmatprep.mubr.bf16.mxu0 %v1144
  %1406 = vmatmul.mubr.bf16.gmra.mrb[0].mxu0 %v1065
  %v1407 = vpop.f32.mrb[0].mxu0
  %v1408 = vadd.f32 %v1272, %v1407
  %v1409 = vpop.f32.mrb[0].mxu0
  %v1410 = vpop.f32.mrb[0].mxu0
  %v1411 = vadd.f32 %v1275, %v1410
  %v1412 = vpop.f32.mrb[0].mxu0
  %1413 = vmatprep.mubr.bf16.mxu0 %v1147
  %1414 = vmatmul.mubr.bf16.gmra.mrb[0].mxu0 %v1069
  %v1415 = vpop.f32.mrb[0].mxu0
  %v1416 = vadd.f32 %v1280, %v1415
  %v1417 = vpop.f32.mrb[0].mxu0
  %v1418 = vpop.f32.mrb[0].mxu0
  %v1419 = vpop.f32.mrb[0].mxu0
  %1420 = vdwg.mxu0
  %v1421 = vmax.f32 %v717, %v1320
  %v1422 = vmax.f32 %v720, %v1323
  %v1423 = vmax.f32 %v725, %v1328
  %v1424 = vmax.f32 %v728, %v1331
  %v1425 = vmax.f32 %v733, %v1336
  %v1426 = vmax.f32 %v736, %v1339
  %v1427 = vmax.f32 %v741, %v1344
  %v1428 = vmax.f32 %v744, %v1347
  %v1429 = vmax.f32 %v749, %v1352
  %v1430 = vmax.f32 %v752, %v1355
  %v1431 = vmax.f32 %v757, %v1360
  %v1432 = vmax.f32 %v760, %v1363
  %v1433 = vmax.f32 %v765, %v1368
  %v1434 = vmax.f32 %v768, %v1371
  %v1435 = vmax.f32 %v773, %v1376
  %v1436 = vmax.f32 %v776, %v1379
  %v1437 = vmax.f32 %v781, %v1384
  %v1438 = vmax.f32 %v784, %v1387
  %v1439 = vmax.f32 %v789, %v1392
  %v1440 = vmax.f32 %v792, %v1395
  %v1441 = vmax.f32 %v797, %v1400
  %v1442 = vmax.f32 %v800, %v1403
  %v1443 = vmax.f32 %v805, %v1408
  %v1444 = vmax.f32 %v808, %v1411
  %v1445 = vmax.f32 %v813, %v1416
  %s1446 = scalar_lea.vmem %s0, 800
  %v1447 = vld [vmem:[%s1446] sm:$0xff]
  %v1448 = vld [vmem:[%s1446 + $0x8] sm:$0xff]
  %v1449 = vld [vmem:[%s1446 + $0x10] sm:$0xff]
  %v1450 = vld [vmem:[%s1446 + $0x18] sm:$0xff]
  %v1451 = vld [vmem:[%s1446 + $0x20] sm:$0xff]
  %v1452 = vld [vmem:[%s1446 + $0x28] sm:$0xff]
  %v1453 = vld [vmem:[%s1446 + $0x30] sm:$0xff]
  %v1454 = vld [vmem:[%s1446 + $0x38] sm:$0xff]
  %v1455 = vld [vmem:[%s1446 + $0x40] sm:$0xff]
  %v1456 = vld [vmem:[%s1446 + $0x48] sm:$0xff]
  %v1457 = vld [vmem:[%s1446 + $0x50] sm:$0xff]
  %v1458 = vld [vmem:[%s1446 + $0x58] sm:$0xff]
  %v1459 = vld [vmem:[%s1446 + $0x60] sm:$0xff]
  %v1460 = vld [vmem:[%s1446 + $0x68] sm:$0xff]
  %v1461 = vld [vmem:[%s1446 + $0x70] sm:$0xff]
  %v1462 = vld [vmem:[%s1446 + $0x78] sm:$0xff]
  %v1463 = vld [vmem:[%s1446 + $0x80] sm:$0xff]
  %v1464 = vld [vmem:[%s1446 + $0x88] sm:$0xff]
  %v1465 = vld [vmem:[%s1446 + $0x90] sm:$0xff]
  %v1466 = vld [vmem:[%s1446 + $0x98] sm:$0xff]
  %v1467 = vld [vmem:[%s1446 + $0xa0] sm:$0xff]
  %v1468 = vld [vmem:[%s1446 + $0xa8] sm:$0xff]
  %v1469 = vld [vmem:[%s1446 + $0xb0] sm:$0xff]
  %v1470 = vld [vmem:[%s1446 + $0xb8] sm:$0xff]
  %v1471 = vld [vmem:[%s1446 + $0xc0] sm:$0xff]
  %v1472 = vld [vmem:[%s1446 + $0xc8] sm:$0xff]
  %v1473 = vld [vmem:[%s1446 + $0xd0] sm:$0xff]
  %v1474 = vld [vmem:[%s1446 + $0xd8] sm:$0xff]
  %v1475 = vld [vmem:[%s1446 + $0xe0] sm:$0xff]
  %v1476 = vld [vmem:[%s1446 + $0xe8] sm:$0xff]
  %v1477 = vld [vmem:[%s1446 + $0xf0] sm:$0xff]
  %v1478 = vld [vmem:[%s1446 + $0xf8] sm:$0xff]
  %v1479 = vld [vmem:[%s1446 + $0x100] sm:$0xff]
  %v1480 = vld [vmem:[%s1446 + $0x108] sm:$0xff]
  %v1481 = vld [vmem:[%s1446 + $0x110] sm:$0xff]
  %v1482 = vld [vmem:[%s1446 + $0x118] sm:$0xff]
  %v1483 = vld [vmem:[%s1446 + $0x120] sm:$0xff]
  %v1484 = vld [vmem:[%s1446 + $0x128] sm:$0xff]
  %v1485 = vld [vmem:[%s1446 + $0x130] sm:$0xff]
  %v1486 = vld [vmem:[%s1446 + $0x138] sm:$0xff]
  %v1487 = vld [vmem:[%s1446 + $0x140] sm:$0xff]
  %v1488 = vld [vmem:[%s1446 + $0x148] sm:$0xff]
  %v1489 = vld [vmem:[%s1446 + $0x150] sm:$0xff]
  %v1490 = vld [vmem:[%s1446 + $0x158] sm:$0xff]
  %v1491 = vld [vmem:[%s1446 + $0x160] sm:$0xff]
  %v1492 = vld [vmem:[%s1446 + $0x168] sm:$0xff]
  %v1493 = vld [vmem:[%s1446 + $0x170] sm:$0xff]
  %v1494 = vld [vmem:[%s1446 + $0x178] sm:$0xff]
  %v1495 = vld [vmem:[%s1446 + $0x180] sm:$0xff]
  %v1496 = vld [vmem:[%s1446 + $0x188] sm:$0xff]
  %v1547 = vunpack.c.l.b16 %v1447
  %v1548 = vunpack.c.h.b16 %v1447
  %v1549 = vunpack.c.l.b16 %v1448
  %v1550 = vunpack.c.h.b16 %v1448
  %v1551 = vunpack.c.l.b16 %v1449
  %v1552 = vunpack.c.h.b16 %v1449
  %v1553 = vunpack.c.l.b16 %v1450
  %v1554 = vunpack.c.h.b16 %v1450
  %v1555 = vunpack.c.l.b16 %v1451
  %v1556 = vunpack.c.h.b16 %v1451
  %v1557 = vunpack.c.l.b16 %v1452
  %v1558 = vunpack.c.h.b16 %v1452
  %v1559 = vunpack.c.l.b16 %v1453
  %v1560 = vunpack.c.h.b16 %v1453
  %v1561 = vunpack.c.l.b16 %v1454
  %v1562 = vunpack.c.h.b16 %v1454
  %v1563 = vunpack.c.l.b16 %v1455
  %v1564 = vunpack.c.h.b16 %v1455
  %v1565 = vunpack.c.l.b16 %v1456
  %v1566 = vunpack.c.h.b16 %v1456
  %v1567 = vunpack.c.l.b16 %v1457
  %v1568 = vunpack.c.h.b16 %v1457
  %v1569 = vunpack.c.l.b16 %v1458
  %v1570 = vunpack.c.h.b16 %v1458
  %v1571 = vunpack.c.l.b16 %v1459
  %v1572 = vunpack.c.h.b16 %v1459
  %v1573 = vunpack.c.l.b16 %v1460
  %v1574 = vunpack.c.h.b16 %v1460
  %v1575 = vunpack.c.l.b16 %v1461
  %v1576 = vunpack.c.h.b16 %v1461
  %v1577 = vunpack.c.l.b16 %v1462
  %v1578 = vunpack.c.h.b16 %v1462
  %v1579 = vunpack.c.l.b16 %v1463
  %v1580 = vunpack.c.h.b16 %v1463
  %v1581 = vunpack.c.l.b16 %v1464
  %v1582 = vunpack.c.h.b16 %v1464
  %v1583 = vunpack.c.l.b16 %v1465
  %v1584 = vunpack.c.h.b16 %v1465
  %v1585 = vunpack.c.l.b16 %v1466
  %v1586 = vunpack.c.h.b16 %v1466
  %v1587 = vunpack.c.l.b16 %v1467
  %v1588 = vunpack.c.h.b16 %v1467
  %v1589 = vunpack.c.l.b16 %v1468
  %v1590 = vunpack.c.h.b16 %v1468
  %v1591 = vunpack.c.l.b16 %v1469
  %v1592 = vunpack.c.h.b16 %v1469
  %v1593 = vunpack.c.l.b16 %v1470
  %v1594 = vunpack.c.h.b16 %v1470
  %v1595 = vunpack.c.l.b16 %v1471
  %v1596 = vunpack.c.h.b16 %v1471
  %v1597 = vunpack.c.l.b16 %v1472
  %v1598 = vunpack.c.h.b16 %v1472
  %v1599 = vunpack.c.l.b16 %v1473
  %v1600 = vunpack.c.h.b16 %v1473
  %v1601 = vunpack.c.l.b16 %v1474
  %v1602 = vunpack.c.h.b16 %v1474
  %v1603 = vunpack.c.l.b16 %v1475
  %v1604 = vunpack.c.h.b16 %v1475
  %v1605 = vunpack.c.l.b16 %v1476
  %v1606 = vunpack.c.h.b16 %v1476
  %v1607 = vunpack.c.l.b16 %v1477
  %v1608 = vunpack.c.h.b16 %v1477
  %v1609 = vunpack.c.l.b16 %v1478
  %v1610 = vunpack.c.h.b16 %v1478
  %v1611 = vunpack.c.l.b16 %v1479
  %v1612 = vunpack.c.h.b16 %v1479
  %v1613 = vunpack.c.l.b16 %v1480
  %v1614 = vunpack.c.h.b16 %v1480
  %v1615 = vunpack.c.l.b16 %v1481
  %v1616 = vunpack.c.h.b16 %v1481
  %v1617 = vunpack.c.l.b16 %v1482
  %v1618 = vunpack.c.h.b16 %v1482
  %v1619 = vunpack.c.l.b16 %v1483
  %v1620 = vunpack.c.h.b16 %v1483
  %v1621 = vunpack.c.l.b16 %v1484
  %v1622 = vunpack.c.h.b16 %v1484
  %v1623 = vunpack.c.l.b16 %v1485
  %v1624 = vunpack.c.h.b16 %v1485
  %v1625 = vunpack.c.l.b16 %v1486
  %v1626 = vunpack.c.h.b16 %v1486
  %v1627 = vunpack.c.l.b16 %v1487
  %v1628 = vunpack.c.h.b16 %v1487
  %v1629 = vunpack.c.l.b16 %v1488
  %v1630 = vunpack.c.h.b16 %v1488
  %v1631 = vunpack.c.l.b16 %v1489
  %v1632 = vunpack.c.h.b16 %v1489
  %v1633 = vunpack.c.l.b16 %v1490
  %v1634 = vunpack.c.h.b16 %v1490
  %v1635 = vunpack.c.l.b16 %v1491
  %v1636 = vunpack.c.h.b16 %v1491
  %v1637 = vunpack.c.l.b16 %v1492
  %v1638 = vunpack.c.h.b16 %v1492
  %v1639 = vunpack.c.l.b16 %v1493
  %v1640 = vunpack.c.h.b16 %v1493
  %v1641 = vunpack.c.l.b16 %v1494
  %v1642 = vunpack.c.h.b16 %v1494
  %v1643 = vunpack.c.l.b16 %v1495
  %v1644 = vunpack.c.h.b16 %v1495
  %v1645 = vunpack.c.l.b16 %v1496
  %v1646 = vunpack.c.h.b16 %v1496
  %v1647 = vpack.c.b16 %v1551, %v1547
  %v1648 = vpack.c.b16 %v1552, %v1548
  %v1649 = vpack.c.b16 %v1553, %v1549
  %v1650 = vpack.c.b16 %v1554, %v1550
  %v1651 = vpack.c.b16 %v1559, %v1555
  %v1652 = vpack.c.b16 %v1560, %v1556
  %v1653 = vpack.c.b16 %v1561, %v1557
  %v1654 = vpack.c.b16 %v1562, %v1558
  %v1655 = vpack.c.b16 %v1567, %v1563
  %v1656 = vpack.c.b16 %v1568, %v1564
  %v1657 = vpack.c.b16 %v1569, %v1565
  %v1658 = vpack.c.b16 %v1570, %v1566
  %v1659 = vpack.c.b16 %v1575, %v1571
  %v1660 = vpack.c.b16 %v1576, %v1572
  %v1661 = vpack.c.b16 %v1577, %v1573
  %v1662 = vpack.c.b16 %v1578, %v1574
  %v1663 = vpack.c.b16 %v1583, %v1579
  %v1664 = vpack.c.b16 %v1584, %v1580
  %v1665 = vpack.c.b16 %v1585, %v1581
  %v1666 = vpack.c.b16 %v1586, %v1582
  %v1667 = vpack.c.b16 %v1591, %v1587
  %v1668 = vpack.c.b16 %v1592, %v1588
  %v1669 = vpack.c.b16 %v1593, %v1589
  %v1670 = vpack.c.b16 %v1594, %v1590
  %v1671 = vpack.c.b16 %v1599, %v1595
  %v1672 = vpack.c.b16 %v1600, %v1596
  %v1673 = vpack.c.b16 %v1601, %v1597
  %v1674 = vpack.c.b16 %v1602, %v1598
  %v1675 = vpack.c.b16 %v1607, %v1603
  %v1676 = vpack.c.b16 %v1608, %v1604
  %v1677 = vpack.c.b16 %v1609, %v1605
  %v1678 = vpack.c.b16 %v1610, %v1606
  %v1679 = vpack.c.b16 %v1615, %v1611
  %v1680 = vpack.c.b16 %v1616, %v1612
  %v1681 = vpack.c.b16 %v1617, %v1613
  %v1682 = vpack.c.b16 %v1618, %v1614
  %v1683 = vpack.c.b16 %v1623, %v1619
  %v1684 = vpack.c.b16 %v1624, %v1620
  %v1685 = vpack.c.b16 %v1625, %v1621
  %v1686 = vpack.c.b16 %v1626, %v1622
  %v1687 = vpack.c.b16 %v1631, %v1627
  %v1688 = vpack.c.b16 %v1632, %v1628
  %v1689 = vpack.c.b16 %v1633, %v1629
  %v1690 = vpack.c.b16 %v1634, %v1630
  %v1691 = vpack.c.b16 %v1639, %v1635
  %v1692 = vpack.c.b16 %v1640, %v1636
  %v1693 = vpack.c.b16 %v1641, %v1637
  %v1694 = vpack.c.b16 %v1642, %v1638
  %v1695 = vpack.c.b16 %v1643, %v1643
  %v1696 = vpack.c.b16 %v1644, %v1644
  %v1697 = vpack.c.b16 %v1645, %v1645
  %v1698 = vpack.c.b16 %v1646, %v1646
  %v1739 = vsel %vm506, %v1650, 0
  %v1742 = vsel %vm506, %v1654, 0
  %v1745 = vsel %vm506, %v1658, 0
  %v1748 = vsel %vm506, %v1662, 0
  %v1751 = vsel %vm506, %v1666, 0
  %v1754 = vsel %vm506, %v1670, 0
  %v1757 = vsel %vm506, %v1674, 0
  %v1760 = vsel %vm506, %v1678, 0
  %v1763 = vsel %vm506, %v1682, 0
  %v1766 = vsel %vm506, %v1686, 0
  %v1769 = vsel %vm506, %v1690, 0
  %v1772 = vsel %vm506, %v1694, 0
  %v1775 = vsel %vm506, %v1698, 0
  %1777 = vmatprep.subr.bf16.mxu0 0
  %1778 = vmatpush1.bf16.msra.mxu0 %v456
  %1779 = vmatprep.subr.bf16.mxu0 0
  %1780 = vmatpush1.bf16.msra.mxu0 %v457
  %1781 = vmatprep.subr.bf16.mxu0 0
  %1782 = vmatpush1.bf16.msra.mxu0 %v458
  %1783 = vmatprep.subr.bf16.mxu0 0
  %1784 = vmatpush1.bf16.msra.mxu0 %v459
  %1785 = vmatprep.subr.bf16.mxu0 0
  %1786 = vmatpush1.bf16.msra.mxu0 %v460
  %1787 = vmatprep.subr.bf16.mxu0 0
  %1788 = vmatpush1.bf16.msra.mxu0 %v461
  %1789 = vmatprep.subr.bf16.mxu0 0
  %1790 = vmatpush1.bf16.msra.mxu0 %v462
  %1791 = vmatprep.subr.bf16.mxu0 0
  %1792 = vmatpush1.bf16.msra.mxu0 %v463
  %1793 = vmatprep.subr.bf16.mxu0 0
  %1794 = vmatpush1.bf16.msra.mxu0 %v464
  %1795 = vmatprep.subr.bf16.mxu0 0
  %1796 = vmatpush1.bf16.msra.mxu0 %v465
  %1797 = vmatprep.subr.bf16.mxu0 0
  %1798 = vmatpush1.bf16.msra.mxu0 %v466
  %1799 = vmatprep.subr.bf16.mxu0 0
  %1800 = vmatpush1.bf16.msra.mxu0 %v467
  %1801 = vmatprep.subr.bf16.mxu0 0
  %1802 = vmatpush1.bf16.msra.mxu0 %v468
  %1803 = vmatprep.subr.bf16.mxu0 0
  %1804 = vmatpush1.bf16.msra.mxu0 %v469
  %1805 = vmatprep.subr.bf16.mxu0 0
  %1806 = vmatpush1.bf16.msra.mxu0 %v470
  %1807 = vmatprep.subr.bf16.mxu0 0
  %1808 = vmatpush1.bf16.msra.mxu0 %v471
  %1809 = vmatprep.mubr.bf16.mxu0 %v1648
  %1810 = vmatmul.mubr.bf16.gmra.mrb[0].mxu0 %v1647
  %v1811 = vpop.f32.mrb[0].mxu0
  %v1812 = vadd.f32 0.0, %v1811
  %v1813 = vpop.f32.mrb[0].mxu0
  %v1814 = vpop.f32.mrb[0].mxu0
  %v1815 = vadd.f32 0.0, %v1814
  %v1816 = vpop.f32.mrb[0].mxu0
  %1817 = vmatprep.mubr.bf16.mxu0 %v1652
  %1818 = vmatmul.mubr.bf16.gmra.mrb[0].mxu0 %v1651
  %v1819 = vpop.f32.mrb[0].mxu0
  %v1820 = vadd.f32 0.0, %v1819
  %v1821 = vpop.f32.mrb[0].mxu0
  %v1822 = vpop.f32.mrb[0].mxu0
  %v1823 = vadd.f32 0.0, %v1822
  %v1824 = vpop.f32.mrb[0].mxu0
  %1825 = vmatprep.mubr.bf16.mxu0 %v1656
  %1826 = vmatmul.mubr.bf16.gmra.mrb[0].mxu0 %v1655
  %v1827 = vpop.f32.mrb[0].mxu0
  %v1828 = vadd.f32 0.0, %v1827
  %v1829 = vpop.f32.mrb[0].mxu0
  %v1830 = vpop.f32.mrb[0].mxu0
  %v1831 = vadd.f32 0.0, %v1830
  %v1832 = vpop.f32.mrb[0].mxu0
  %1833 = vmatprep.mubr.bf16.mxu0 %v1660
  %1834 = vmatmul.mubr.bf16.gmra.mrb[0].mxu0 %v1659
  %v1835 = vpop.f32.mrb[0].mxu0
  %v1836 = vadd.f32 0.0, %v1835
  %v1837 = vpop.f32.mrb[0].mxu0
  %v1838 = vpop.f32.mrb[0].mxu0
  %v1839 = vadd.f32 0.0, %v1838
  %v1840 = vpop.f32.mrb[0].mxu0
  %1841 = vmatprep.mubr.bf16.mxu0 %v1664
  %1842 = vmatmul.mubr.bf16.gmra.mrb[0].mxu0 %v1663
  %v1843 = vpop.f32.mrb[0].mxu0
  %v1844 = vadd.f32 0.0, %v1843
  %v1845 = vpop.f32.mrb[0].mxu0
  %v1846 = vpop.f32.mrb[0].mxu0
  %v1847 = vadd.f32 0.0, %v1846
  %v1848 = vpop.f32.mrb[0].mxu0
  %1849 = vmatprep.mubr.bf16.mxu0 %v1668
  %1850 = vmatmul.mubr.bf16.gmra.mrb[0].mxu0 %v1667
  %v1851 = vpop.f32.mrb[0].mxu0
  %v1852 = vadd.f32 0.0, %v1851
  %v1853 = vpop.f32.mrb[0].mxu0
  %v1854 = vpop.f32.mrb[0].mxu0
  %v1855 = vadd.f32 0.0, %v1854
  %v1856 = vpop.f32.mrb[0].mxu0
  %1857 = vmatprep.mubr.bf16.mxu0 %v1672
  %1858 = vmatmul.mubr.bf16.gmra.mrb[0].mxu0 %v1671
  %v1859 = vpop.f32.mrb[0].mxu0
  %v1860 = vadd.f32 0.0, %v1859
  %v1861 = vpop.f32.mrb[0].mxu0
  %v1862 = vpop.f32.mrb[0].mxu0
  %v1863 = vadd.f32 0.0, %v1862
  %v1864 = vpop.f32.mrb[0].mxu0
  %1865 = vmatprep.mubr.bf16.mxu0 %v1676
  %1866 = vmatmul.mubr.bf16.gmra.mrb[0].mxu0 %v1675
  %v1867 = vpop.f32.mrb[0].mxu0
  %v1868 = vadd.f32 0.0, %v1867
  %v1869 = vpop.f32.mrb[0].mxu0
  %v1870 = vpop.f32.mrb[0].mxu0
  %v1871 = vadd.f32 0.0, %v1870
  %v1872 = vpop.f32.mrb[0].mxu0
  %1873 = vmatprep.mubr.bf16.mxu0 %v1680
  %1874 = vmatmul.mubr.bf16.gmra.mrb[0].mxu0 %v1679
  %v1875 = vpop.f32.mrb[0].mxu0
  %v1876 = vadd.f32 0.0, %v1875
  %v1877 = vpop.f32.mrb[0].mxu0
  %v1878 = vpop.f32.mrb[0].mxu0
  %v1879 = vadd.f32 0.0, %v1878
  %v1880 = vpop.f32.mrb[0].mxu0
  %1881 = vmatprep.mubr.bf16.mxu0 %v1684
  %1882 = vmatmul.mubr.bf16.gmra.mrb[0].mxu0 %v1683
  %v1883 = vpop.f32.mrb[0].mxu0
  %v1884 = vadd.f32 0.0, %v1883
  %v1885 = vpop.f32.mrb[0].mxu0
  %v1886 = vpop.f32.mrb[0].mxu0
  %v1887 = vadd.f32 0.0, %v1886
  %v1888 = vpop.f32.mrb[0].mxu0
  %1889 = vmatprep.mubr.bf16.mxu0 %v1688
  %1890 = vmatmul.mubr.bf16.gmra.mrb[0].mxu0 %v1687
  %v1891 = vpop.f32.mrb[0].mxu0
  %v1892 = vadd.f32 0.0, %v1891
  %v1893 = vpop.f32.mrb[0].mxu0
  %v1894 = vpop.f32.mrb[0].mxu0
  %v1895 = vadd.f32 0.0, %v1894
  %v1896 = vpop.f32.mrb[0].mxu0
  %1897 = vmatprep.mubr.bf16.mxu0 %v1692
  %1898 = vmatmul.mubr.bf16.gmra.mrb[0].mxu0 %v1691
  %v1899 = vpop.f32.mrb[0].mxu0
  %v1900 = vadd.f32 0.0, %v1899
  %v1901 = vpop.f32.mrb[0].mxu0
  %v1902 = vpop.f32.mrb[0].mxu0
  %v1903 = vadd.f32 0.0, %v1902
  %v1904 = vpop.f32.mrb[0].mxu0
  %1905 = vmatprep.mubr.bf16.mxu0 %v1696
  %1906 = vmatmul.mubr.bf16.gmra.mrb[0].mxu0 %v1695
  %v1907 = vpop.f32.mrb[0].mxu0
  %v1908 = vadd.f32 0.0, %v1907
  %v1909 = vpop.f32.mrb[0].mxu0
  %v1910 = vpop.f32.mrb[0].mxu0
  %v1911 = vpop.f32.mrb[0].mxu0
  %1912 = vdwg.mxu0
  %1913 = vmatprep.subr.bf16.mxu0 0
  %1914 = vmatpush1.bf16.msra.mxu0 %v472
  %1915 = vmatprep.subr.bf16.mxu0 0
  %1916 = vmatpush1.bf16.msra.mxu0 %v473
  %1917 = vmatprep.subr.bf16.mxu0 0
  %1918 = vmatpush1.bf16.msra.mxu0 %v474
  %1919 = vmatprep.subr.bf16.mxu0 0
  %1920 = vmatpush1.bf16.msra.mxu0 %v475
  %1921 = vmatprep.subr.bf16.mxu0 0
  %1922 = vmatpush1.bf16.msra.mxu0 %v476
  %1923 = vmatprep.subr.bf16.mxu0 0
  %1924 = vmatpush1.bf16.msra.mxu0 %v477
  %1925 = vmatprep.subr.bf16.mxu0 0
  %1926 = vmatpush1.bf16.msra.mxu0 %v478
  %1927 = vmatprep.subr.bf16.mxu0 0
  %1928 = vmatpush1.bf16.msra.mxu0 %v479
  %1929 = vmatprep.subr.bf16.mxu0 0
  %1930 = vmatpush1.bf16.msra.mxu0 %v480
  %1931 = vmatprep.subr.bf16.mxu0 0
  %1932 = vmatpush1.bf16.msra.mxu0 0
  %1933 = vmatprep.subr.bf16.mxu0 0
  %1934 = vmatpush1.bf16.msra.mxu0 0
  %1935 = vmatprep.subr.bf16.mxu0 0
  %1936 = vmatpush1.bf16.msra.mxu0 0
  %1937 = vmatprep.subr.bf16.mxu0 0
  %1938 = vmatpush1.bf16.msra.mxu0 0
  %1939 = vmatprep.subr.bf16.mxu0 0
  %1940 = vmatpush1.bf16.msra.mxu0 0
  %1941 = vmatprep.subr.bf16.mxu0 0
  %1942 = vmatpush1.bf16.msra.mxu0 0
  %1943 = vmatprep.subr.bf16.mxu0 0
  %1944 = vmatpush1.bf16.msra.mxu0 0
  %1945 = vmatprep.mubr.bf16.mxu0 %v1739
  %1946 = vmatmul.mubr.bf16.gmra.mrb[0].mxu0 %v1649
  %v1947 = vpop.f32.mrb[0].mxu0
  %v1948 = vadd.f32 %v1812, %v1947
  %v1949 = vpop.f32.mrb[0].mxu0
  %v1950 = vpop.f32.mrb[0].mxu0
  %v1951 = vadd.f32 %v1815, %v1950
  %v1952 = vpop.f32.mrb[0].mxu0
  %1953 = vmatprep.mubr.bf16.mxu0 %v1742
  %1954 = vmatmul.mubr.bf16.gmra.mrb[0].mxu0 %v1653
  %v1955 = vpop.f32.mrb[0].mxu0
  %v1956 = vadd.f32 %v1820, %v1955
  %v1957 = vpop.f32.mrb[0].mxu0
  %v1958 = vpop.f32.mrb[0].mxu0
  %v1959 = vadd.f32 %v1823, %v1958
  %v1960 = vpop.f32.mrb[0].mxu0
  %1961 = vmatprep.mubr.bf16.mxu0 %v1745
  %1962 = vmatmul.mubr.bf16.gmra.mrb[0].mxu0 %v1657
  %v1963 = vpop.f32.mrb[0].mxu0
  %v1964 = vadd.f32 %v1828, %v1963
  %v1965 = vpop.f32.mrb[0].mxu0
  %v1966 = vpop.f32.mrb[0].mxu0
  %v1967 = vadd.f32 %v1831, %v1966
  %v1968 = vpop.f32.mrb[0].mxu0
  %1969 = vmatprep.mubr.bf16.mxu0 %v1748
  %1970 = vmatmul.mubr.bf16.gmra.mrb[0].mxu0 %v1661
  %v1971 = vpop.f32.mrb[0].mxu0
  %v1972 = vadd.f32 %v1836, %v1971
  %v1973 = vpop.f32.mrb[0].mxu0
  %v1974 = vpop.f32.mrb[0].mxu0
  %v1975 = vadd.f32 %v1839, %v1974
  %v1976 = vpop.f32.mrb[0].mxu0
  %1977 = vmatprep.mubr.bf16.mxu0 %v1751
  %1978 = vmatmul.mubr.bf16.gmra.mrb[0].mxu0 %v1665
  %v1979 = vpop.f32.mrb[0].mxu0
  %v1980 = vadd.f32 %v1844, %v1979
  %v1981 = vpop.f32.mrb[0].mxu0
  %v1982 = vpop.f32.mrb[0].mxu0
  %v1983 = vadd.f32 %v1847, %v1982
  %v1984 = vpop.f32.mrb[0].mxu0
  %1985 = vmatprep.mubr.bf16.mxu0 %v1754
  %1986 = vmatmul.mubr.bf16.gmra.mrb[0].mxu0 %v1669
  %v1987 = vpop.f32.mrb[0].mxu0
  %v1988 = vadd.f32 %v1852, %v1987
  %v1989 = vpop.f32.mrb[0].mxu0
  %v1990 = vpop.f32.mrb[0].mxu0
  %v1991 = vadd.f32 %v1855, %v1990
  %v1992 = vpop.f32.mrb[0].mxu0
  %1993 = vmatprep.mubr.bf16.mxu0 %v1757
  %1994 = vmatmul.mubr.bf16.gmra.mrb[0].mxu0 %v1673
  %v1995 = vpop.f32.mrb[0].mxu0
  %v1996 = vadd.f32 %v1860, %v1995
  %v1997 = vpop.f32.mrb[0].mxu0
  %v1998 = vpop.f32.mrb[0].mxu0
  %v1999 = vadd.f32 %v1863, %v1998
  %v2000 = vpop.f32.mrb[0].mxu0
  %2001 = vmatprep.mubr.bf16.mxu0 %v1760
  %2002 = vmatmul.mubr.bf16.gmra.mrb[0].mxu0 %v1677
  %v2003 = vpop.f32.mrb[0].mxu0
  %v2004 = vadd.f32 %v1868, %v2003
  %v2005 = vpop.f32.mrb[0].mxu0
  %v2006 = vpop.f32.mrb[0].mxu0
  %v2007 = vadd.f32 %v1871, %v2006
  %v2008 = vpop.f32.mrb[0].mxu0
  %2009 = vmatprep.mubr.bf16.mxu0 %v1763
  %2010 = vmatmul.mubr.bf16.gmra.mrb[0].mxu0 %v1681
  %v2011 = vpop.f32.mrb[0].mxu0
  %v2012 = vadd.f32 %v1876, %v2011
  %v2013 = vpop.f32.mrb[0].mxu0
  %v2014 = vpop.f32.mrb[0].mxu0
  %v2015 = vadd.f32 %v1879, %v2014
  %v2016 = vpop.f32.mrb[0].mxu0
  %2017 = vmatprep.mubr.bf16.mxu0 %v1766
  %2018 = vmatmul.mubr.bf16.gmra.mrb[0].mxu0 %v1685
  %v2019 = vpop.f32.mrb[0].mxu0
  %v2020 = vadd.f32 %v1884, %v2019
  %v2021 = vpop.f32.mrb[0].mxu0
  %v2022 = vpop.f32.mrb[0].mxu0
  %v2023 = vadd.f32 %v1887, %v2022
  %v2024 = vpop.f32.mrb[0].mxu0
  %2025 = vmatprep.mubr.bf16.mxu0 %v1769
  %2026 = vmatmul.mubr.bf16.gmra.mrb[0].mxu0 %v1689
  %v2027 = vpop.f32.mrb[0].mxu0
  %v2028 = vadd.f32 %v1892, %v2027
  %v2029 = vpop.f32.mrb[0].mxu0
  %v2030 = vpop.f32.mrb[0].mxu0
  %v2031 = vadd.f32 %v1895, %v2030
  %v2032 = vpop.f32.mrb[0].mxu0
  %2033 = vmatprep.mubr.bf16.mxu0 %v1772
  %2034 = vmatmul.mubr.bf16.gmra.mrb[0].mxu0 %v1693
  %v2035 = vpop.f32.mrb[0].mxu0
  %v2036 = vadd.f32 %v1900, %v2035
  %v2037 = vpop.f32.mrb[0].mxu0
  %v2038 = vpop.f32.mrb[0].mxu0
  %v2039 = vadd.f32 %v1903, %v2038
  %v2040 = vpop.f32.mrb[0].mxu0
  %2041 = vmatprep.mubr.bf16.mxu0 %v1775
  %2042 = vmatmul.mubr.bf16.gmra.mrb[0].mxu0 %v1697
  %v2043 = vpop.f32.mrb[0].mxu0
  %v2044 = vadd.f32 %v1908, %v2043
  %v2045 = vpop.f32.mrb[0].mxu0
  %v2046 = vpop.f32.mrb[0].mxu0
  %v2047 = vpop.f32.mrb[0].mxu0
  %2048 = vdwg.mxu0
  %v2049 = vmax.f32 %v1421, %v1948
  %v2050 = vmax.f32 %v1422, %v1951
  %v2051 = vmax.f32 %v1423, %v1956
  %v2052 = vmax.f32 %v1424, %v1959
  %v2053 = vmax.f32 %v1425, %v1964
  %v2054 = vmax.f32 %v1426, %v1967
  %v2055 = vmax.f32 %v1427, %v1972
  %v2056 = vmax.f32 %v1428, %v1975
  %v2057 = vmax.f32 %v1429, %v1980
  %v2058 = vmax.f32 %v1430, %v1983
  %v2059 = vmax.f32 %v1431, %v1988
  %v2060 = vmax.f32 %v1432, %v1991
  %v2061 = vmax.f32 %v1433, %v1996
  %v2062 = vmax.f32 %v1434, %v1999
  %v2063 = vmax.f32 %v1435, %v2004
  %v2064 = vmax.f32 %v1436, %v2007
  %v2065 = vmax.f32 %v1437, %v2012
  %v2066 = vmax.f32 %v1438, %v2015
  %v2067 = vmax.f32 %v1439, %v2020
  %v2068 = vmax.f32 %v1440, %v2023
  %v2069 = vmax.f32 %v1441, %v2028
  %v2070 = vmax.f32 %v1442, %v2031
  %v2071 = vmax.f32 %v1443, %v2036
  %v2072 = vmax.f32 %v1444, %v2039
  %v2073 = vmax.f32 %v1445, %v2044
  %s2074 = scalar_lea.vmem %s0, 1200
  %v2075 = vld [vmem:[%s2074] sm:$0xff]
  %v2076 = vld [vmem:[%s2074 + $0x8] sm:$0xff]
  %v2077 = vld [vmem:[%s2074 + $0x10] sm:$0xff]
  %v2078 = vld [vmem:[%s2074 + $0x18] sm:$0xff]
  %v2079 = vld [vmem:[%s2074 + $0x20] sm:$0xff]
  %v2080 = vld [vmem:[%s2074 + $0x28] sm:$0xff]
  %v2081 = vld [vmem:[%s2074 + $0x30] sm:$0xff]
  %v2082 = vld [vmem:[%s2074 + $0x38] sm:$0xff]
  %v2083 = vld [vmem:[%s2074 + $0x40] sm:$0xff]
  %v2084 = vld [vmem:[%s2074 + $0x48] sm:$0xff]
  %v2085 = vld [vmem:[%s2074 + $0x50] sm:$0xff]
  %v2086 = vld [vmem:[%s2074 + $0x58] sm:$0xff]
  %v2087 = vld [vmem:[%s2074 + $0x60] sm:$0xff]
  %v2088 = vld [vmem:[%s2074 + $0x68] sm:$0xff]
  %v2089 = vld [vmem:[%s2074 + $0x70] sm:$0xff]
  %v2090 = vld [vmem:[%s2074 + $0x78] sm:$0xff]
  %v2091 = vld [vmem:[%s2074 + $0x80] sm:$0xff]
  %v2092 = vld [vmem:[%s2074 + $0x88] sm:$0xff]
  %v2093 = vld [vmem:[%s2074 + $0x90] sm:$0xff]
  %v2094 = vld [vmem:[%s2074 + $0x98] sm:$0xff]
  %v2095 = vld [vmem:[%s2074 + $0xa0] sm:$0xff]
  %v2096 = vld [vmem:[%s2074 + $0xa8] sm:$0xff]
  %v2097 = vld [vmem:[%s2074 + $0xb0] sm:$0xff]
  %v2098 = vld [vmem:[%s2074 + $0xb8] sm:$0xff]
  %v2099 = vld [vmem:[%s2074 + $0xc0] sm:$0xff]
  %v2100 = vld [vmem:[%s2074 + $0xc8] sm:$0xff]
  %v2101 = vld [vmem:[%s2074 + $0xd0] sm:$0xff]
  %v2102 = vld [vmem:[%s2074 + $0xd8] sm:$0xff]
  %v2103 = vld [vmem:[%s2074 + $0xe0] sm:$0xff]
  %v2104 = vld [vmem:[%s2074 + $0xe8] sm:$0xff]
  %v2105 = vld [vmem:[%s2074 + $0xf0] sm:$0xff]
  %v2106 = vld [vmem:[%s2074 + $0xf8] sm:$0xff]
  %v2107 = vld [vmem:[%s2074 + $0x100] sm:$0xff]
  %v2108 = vld [vmem:[%s2074 + $0x108] sm:$0xff]
  %v2109 = vld [vmem:[%s2074 + $0x110] sm:$0xff]
  %v2110 = vld [vmem:[%s2074 + $0x118] sm:$0xff]
  %v2111 = vld [vmem:[%s2074 + $0x120] sm:$0xff]
  %v2112 = vld [vmem:[%s2074 + $0x128] sm:$0xff]
  %v2113 = vld [vmem:[%s2074 + $0x130] sm:$0xff]
  %v2114 = vld [vmem:[%s2074 + $0x138] sm:$0xff]
  %v2115 = vld [vmem:[%s2074 + $0x140] sm:$0xff]
  %v2116 = vld [vmem:[%s2074 + $0x148] sm:$0xff]
  %v2117 = vld [vmem:[%s2074 + $0x150] sm:$0xff]
  %v2118 = vld [vmem:[%s2074 + $0x158] sm:$0xff]
  %v2119 = vld [vmem:[%s2074 + $0x160] sm:$0xff]
  %v2120 = vld [vmem:[%s2074 + $0x168] sm:$0xff]
  %v2121 = vld [vmem:[%s2074 + $0x170] sm:$0xff]
  %v2122 = vld [vmem:[%s2074 + $0x178] sm:$0xff]
  %v2123 = vld [vmem:[%s2074 + $0x180] sm:$0xff]
  %v2124 = vld [vmem:[%s2074 + $0x188] sm:$0xff]
  %v2175 = vunpack.c.l.b16 %v2075
  %v2176 = vunpack.c.h.b16 %v2075
  %v2177 = vunpack.c.l.b16 %v2076
  %v2178 = vunpack.c.h.b16 %v2076
  %v2179 = vunpack.c.l.b16 %v2077
  %v2180 = vunpack.c.h.b16 %v2077
  %v2181 = vunpack.c.l.b16 %v2078
  %v2182 = vunpack.c.h.b16 %v2078
  %v2183 = vunpack.c.l.b16 %v2079
  %v2184 = vunpack.c.h.b16 %v2079
  %v2185 = vunpack.c.l.b16 %v2080
  %v2186 = vunpack.c.h.b16 %v2080
  %v2187 = vunpack.c.l.b16 %v2081
  %v2188 = vunpack.c.h.b16 %v2081
  %v2189 = vunpack.c.l.b16 %v2082
  %v2190 = vunpack.c.h.b16 %v2082
  %v2191 = vunpack.c.l.b16 %v2083
  %v2192 = vunpack.c.h.b16 %v2083
  %v2193 = vunpack.c.l.b16 %v2084
  %v2194 = vunpack.c.h.b16 %v2084
  %v2195 = vunpack.c.l.b16 %v2085
  %v2196 = vunpack.c.h.b16 %v2085
  %v2197 = vunpack.c.l.b16 %v2086
  %v2198 = vunpack.c.h.b16 %v2086
  %v2199 = vunpack.c.l.b16 %v2087
  %v2200 = vunpack.c.h.b16 %v2087
  %v2201 = vunpack.c.l.b16 %v2088
  %v2202 = vunpack.c.h.b16 %v2088
  %v2203 = vunpack.c.l.b16 %v2089
  %v2204 = vunpack.c.h.b16 %v2089
  %v2205 = vunpack.c.l.b16 %v2090
  %v2206 = vunpack.c.h.b16 %v2090
  %v2207 = vunpack.c.l.b16 %v2091
  %v2208 = vunpack.c.h.b16 %v2091
  %v2209 = vunpack.c.l.b16 %v2092
  %v2210 = vunpack.c.h.b16 %v2092
  %v2211 = vunpack.c.l.b16 %v2093
  %v2212 = vunpack.c.h.b16 %v2093
  %v2213 = vunpack.c.l.b16 %v2094
  %v2214 = vunpack.c.h.b16 %v2094
  %v2215 = vunpack.c.l.b16 %v2095
  %v2216 = vunpack.c.h.b16 %v2095
  %v2217 = vunpack.c.l.b16 %v2096
  %v2218 = vunpack.c.h.b16 %v2096
  %v2219 = vunpack.c.l.b16 %v2097
  %v2220 = vunpack.c.h.b16 %v2097
  %v2221 = vunpack.c.l.b16 %v2098
  %v2222 = vunpack.c.h.b16 %v2098
  %v2223 = vunpack.c.l.b16 %v2099
  %v2224 = vunpack.c.h.b16 %v2099
  %v2225 = vunpack.c.l.b16 %v2100
  %v2226 = vunpack.c.h.b16 %v2100
  %v2227 = vunpack.c.l.b16 %v2101
  %v2228 = vunpack.c.h.b16 %v2101
  %v2229 = vunpack.c.l.b16 %v2102
  %v2230 = vunpack.c.h.b16 %v2102
  %v2231 = vunpack.c.l.b16 %v2103
  %v2232 = vunpack.c.h.b16 %v2103
  %v2233 = vunpack.c.l.b16 %v2104
  %v2234 = vunpack.c.h.b16 %v2104
  %v2235 = vunpack.c.l.b16 %v2105
  %v2236 = vunpack.c.h.b16 %v2105
  %v2237 = vunpack.c.l.b16 %v2106
  %v2238 = vunpack.c.h.b16 %v2106
  %v2239 = vunpack.c.l.b16 %v2107
  %v2240 = vunpack.c.h.b16 %v2107
  %v2241 = vunpack.c.l.b16 %v2108
  %v2242 = vunpack.c.h.b16 %v2108
  %v2243 = vunpack.c.l.b16 %v2109
  %v2244 = vunpack.c.h.b16 %v2109
  %v2245 = vunpack.c.l.b16 %v2110
  %v2246 = vunpack.c.h.b16 %v2110
  %v2247 = vunpack.c.l.b16 %v2111
  %v2248 = vunpack.c.h.b16 %v2111
  %v2249 = vunpack.c.l.b16 %v2112
  %v2250 = vunpack.c.h.b16 %v2112
  %v2251 = vunpack.c.l.b16 %v2113
  %v2252 = vunpack.c.h.b16 %v2113
  %v2253 = vunpack.c.l.b16 %v2114
  %v2254 = vunpack.c.h.b16 %v2114
  %v2255 = vunpack.c.l.b16 %v2115
  %v2256 = vunpack.c.h.b16 %v2115
  %v2257 = vunpack.c.l.b16 %v2116
  %v2258 = vunpack.c.h.b16 %v2116
  %v2259 = vunpack.c.l.b16 %v2117
  %v2260 = vunpack.c.h.b16 %v2117
  %v2261 = vunpack.c.l.b16 %v2118
  %v2262 = vunpack.c.h.b16 %v2118
  %v2263 = vunpack.c.l.b16 %v2119
  %v2264 = vunpack.c.h.b16 %v2119
  %v2265 = vunpack.c.l.b16 %v2120
  %v2266 = vunpack.c.h.b16 %v2120
  %v2267 = vunpack.c.l.b16 %v2121
  %v2268 = vunpack.c.h.b16 %v2121
  %v2269 = vunpack.c.l.b16 %v2122
  %v2270 = vunpack.c.h.b16 %v2122
  %v2271 = vunpack.c.l.b16 %v2123
  %v2272 = vunpack.c.h.b16 %v2123
  %v2273 = vunpack.c.l.b16 %v2124
  %v2274 = vunpack.c.h.b16 %v2124
  %v2275 = vpack.c.b16 %v2179, %v2175
  %v2276 = vpack.c.b16 %v2180, %v2176
  %v2277 = vpack.c.b16 %v2181, %v2177
  %v2278 = vpack.c.b16 %v2182, %v2178
  %v2279 = vpack.c.b16 %v2187, %v2183
  %v2280 = vpack.c.b16 %v2188, %v2184
  %v2281 = vpack.c.b16 %v2189, %v2185
  %v2282 = vpack.c.b16 %v2190, %v2186
  %v2283 = vpack.c.b16 %v2195, %v2191
  %v2284 = vpack.c.b16 %v2196, %v2192
  %v2285 = vpack.c.b16 %v2197, %v2193
  %v2286 = vpack.c.b16 %v2198, %v2194
  %v2287 = vpack.c.b16 %v2203, %v2199
  %v2288 = vpack.c.b16 %v2204, %v2200
  %v2289 = vpack.c.b16 %v2205, %v2201
  %v2290 = vpack.c.b16 %v2206, %v2202
  %v2291 = vpack.c.b16 %v2211, %v2207
  %v2292 = vpack.c.b16 %v2212, %v2208
  %v2293 = vpack.c.b16 %v2213, %v2209
  %v2294 = vpack.c.b16 %v2214, %v2210
  %v2295 = vpack.c.b16 %v2219, %v2215
  %v2296 = vpack.c.b16 %v2220, %v2216
  %v2297 = vpack.c.b16 %v2221, %v2217
  %v2298 = vpack.c.b16 %v2222, %v2218
  %v2299 = vpack.c.b16 %v2227, %v2223
  %v2300 = vpack.c.b16 %v2228, %v2224
  %v2301 = vpack.c.b16 %v2229, %v2225
  %v2302 = vpack.c.b16 %v2230, %v2226
  %v2303 = vpack.c.b16 %v2235, %v2231
  %v2304 = vpack.c.b16 %v2236, %v2232
  %v2305 = vpack.c.b16 %v2237, %v2233
  %v2306 = vpack.c.b16 %v2238, %v2234
  %v2307 = vpack.c.b16 %v2243, %v2239
  %v2308 = vpack.c.b16 %v2244, %v2240
  %v2309 = vpack.c.b16 %v2245, %v2241
  %v2310 = vpack.c.b16 %v2246, %v2242
  %v2311 = vpack.c.b16 %v2251, %v2247
  %v2312 = vpack.c.b16 %v2252, %v2248
  %v2313 = vpack.c.b16 %v2253, %v2249
  %v2314 = vpack.c.b16 %v2254, %v2250
  %v2315 = vpack.c.b16 %v2259, %v2255
  %v2316 = vpack.c.b16 %v2260, %v2256
  %v2317 = vpack.c.b16 %v2261, %v2257
  %v2318 = vpack.c.b16 %v2262, %v2258
  %v2319 = vpack.c.b16 %v2267, %v2263
  %v2320 = vpack.c.b16 %v2268, %v2264
  %v2321 = vpack.c.b16 %v2269, %v2265
  %v2322 = vpack.c.b16 %v2270, %v2266
  %v2323 = vpack.c.b16 %v2271, %v2271
  %v2324 = vpack.c.b16 %v2272, %v2272
  %v2325 = vpack.c.b16 %v2273, %v2273
  %v2326 = vpack.c.b16 %v2274, %v2274
  %v2367 = vsel %vm506, %v2278, 0
  %v2370 = vsel %vm506, %v2282, 0
  %v2373 = vsel %vm506, %v2286, 0
  %v2376 = vsel %vm506, %v2290, 0
  %v2379 = vsel %vm506, %v2294, 0
  %v2382 = vsel %vm506, %v2298, 0
  %v2385 = vsel %vm506, %v2302, 0
  %v2388 = vsel %vm506, %v2306, 0
  %v2391 = vsel %vm506, %v2310, 0
  %v2394 = vsel %vm506, %v2314, 0
  %v2397 = vsel %vm506, %v2318, 0
  %v2400 = vsel %vm506, %v2322, 0
  %v2403 = vsel %vm506, %v2326, 0
  %2405 = vmatprep.subr.bf16.mxu0 0
  %2406 = vmatpush1.bf16.msra.mxu0 %v456
  %2407 = vmatprep.subr.bf16.mxu0 0
  %2408 = vmatpush1.bf16.msra.mxu0 %v457
  %2409 = vmatprep.subr.bf16.mxu0 0
  %2410 = vmatpush1.bf16.msra.mxu0 %v458
  %2411 = vmatprep.subr.bf16.mxu0 0
  %2412 = vmatpush1.bf16.msra.mxu0 %v459
  %2413 = vmatprep.subr.bf16.mxu0 0
  %2414 = vmatpush1.bf16.msra.mxu0 %v460
  %2415 = vmatprep.subr.bf16.mxu0 0
  %2416 = vmatpush1.bf16.msra.mxu0 %v461
  %2417 = vmatprep.subr.bf16.mxu0 0
  %2418 = vmatpush1.bf16.msra.mxu0 %v462
  %2419 = vmatprep.subr.bf16.mxu0 0
  %2420 = vmatpush1.bf16.msra.mxu0 %v463
  %2421 = vmatprep.subr.bf16.mxu0 0
  %2422 = vmatpush1.bf16.msra.mxu0 %v464
  %2423 = vmatprep.subr.bf16.mxu0 0
  %2424 = vmatpush1.bf16.msra.mxu0 %v465
  %2425 = vmatprep.subr.bf16.mxu0 0
  %2426 = vmatpush1.bf16.msra.mxu0 %v466
  %2427 = vmatprep.subr.bf16.mxu0 0
  %2428 = vmatpush1.bf16.msra.mxu0 %v467
  %2429 = vmatprep.subr.bf16.mxu0 0
  %2430 = vmatpush1.bf16.msra.mxu0 %v468
  %2431 = vmatprep.subr.bf16.mxu0 0
  %2432 = vmatpush1.bf16.msra.mxu0 %v469
  %2433 = vmatprep.subr.bf16.mxu0 0
  %2434 = vmatpush1.bf16.msra.mxu0 %v470
  %2435 = vmatprep.subr.bf16.mxu0 0
  %2436 = vmatpush1.bf16.msra.mxu0 %v471
  %2437 = vmatprep.mubr.bf16.mxu0 %v2276
  %2438 = vmatmul.mubr.bf16.gmra.mrb[0].mxu0 %v2275
  %v2439 = vpop.f32.mrb[0].mxu0
  %v2440 = vadd.f32 0.0, %v2439
  %v2441 = vpop.f32.mrb[0].mxu0
  %v2442 = vpop.f32.mrb[0].mxu0
  %v2443 = vadd.f32 0.0, %v2442
  %v2444 = vpop.f32.mrb[0].mxu0
  %2445 = vmatprep.mubr.bf16.mxu0 %v2280
  %2446 = vmatmul.mubr.bf16.gmra.mrb[0].mxu0 %v2279
  %v2447 = vpop.f32.mrb[0].mxu0
  %v2448 = vadd.f32 0.0, %v2447
  %v2449 = vpop.f32.mrb[0].mxu0
  %v2450 = vpop.f32.mrb[0].mxu0
  %v2451 = vadd.f32 0.0, %v2450
  %v2452 = vpop.f32.mrb[0].mxu0
  %2453 = vmatprep.mubr.bf16.mxu0 %v2284
  %2454 = vmatmul.mubr.bf16.gmra.mrb[0].mxu0 %v2283
  %v2455 = vpop.f32.mrb[0].mxu0
  %v2456 = vadd.f32 0.0, %v2455
  %v2457 = vpop.f32.mrb[0].mxu0
  %v2458 = vpop.f32.mrb[0].mxu0
  %v2459 = vadd.f32 0.0, %v2458
  %v2460 = vpop.f32.mrb[0].mxu0
  %2461 = vmatprep.mubr.bf16.mxu0 %v2288
  %2462 = vmatmul.mubr.bf16.gmra.mrb[0].mxu0 %v2287
  %v2463 = vpop.f32.mrb[0].mxu0
  %v2464 = vadd.f32 0.0, %v2463
  %v2465 = vpop.f32.mrb[0].mxu0
  %v2466 = vpop.f32.mrb[0].mxu0
  %v2467 = vadd.f32 0.0, %v2466
  %v2468 = vpop.f32.mrb[0].mxu0
  %2469 = vmatprep.mubr.bf16.mxu0 %v2292
  %2470 = vmatmul.mubr.bf16.gmra.mrb[0].mxu0 %v2291
  %v2471 = vpop.f32.mrb[0].mxu0
  %v2472 = vadd.f32 0.0, %v2471
  %v2473 = vpop.f32.mrb[0].mxu0
  %v2474 = vpop.f32.mrb[0].mxu0
  %v2475 = vadd.f32 0.0, %v2474
  %v2476 = vpop.f32.mrb[0].mxu0
  %2477 = vmatprep.mubr.bf16.mxu0 %v2296
  %2478 = vmatmul.mubr.bf16.gmra.mrb[0].mxu0 %v2295
  %v2479 = vpop.f32.mrb[0].mxu0
  %v2480 = vadd.f32 0.0, %v2479
  %v2481 = vpop.f32.mrb[0].mxu0
  %v2482 = vpop.f32.mrb[0].mxu0
  %v2483 = vadd.f32 0.0, %v2482
  %v2484 = vpop.f32.mrb[0].mxu0
  %2485 = vmatprep.mubr.bf16.mxu0 %v2300
  %2486 = vmatmul.mubr.bf16.gmra.mrb[0].mxu0 %v2299
  %v2487 = vpop.f32.mrb[0].mxu0
  %v2488 = vadd.f32 0.0, %v2487
  %v2489 = vpop.f32.mrb[0].mxu0
  %v2490 = vpop.f32.mrb[0].mxu0
  %v2491 = vadd.f32 0.0, %v2490
  %v2492 = vpop.f32.mrb[0].mxu0
  %2493 = vmatprep.mubr.bf16.mxu0 %v2304
  %2494 = vmatmul.mubr.bf16.gmra.mrb[0].mxu0 %v2303
  %v2495 = vpop.f32.mrb[0].mxu0
  %v2496 = vadd.f32 0.0, %v2495
  %v2497 = vpop.f32.mrb[0].mxu0
  %v2498 = vpop.f32.mrb[0].mxu0
  %v2499 = vadd.f32 0.0, %v2498
  %v2500 = vpop.f32.mrb[0].mxu0
  %2501 = vmatprep.mubr.bf16.mxu0 %v2308
  %2502 = vmatmul.mubr.bf16.gmra.mrb[0].mxu0 %v2307
  %v2503 = vpop.f32.mrb[0].mxu0
  %v2504 = vadd.f32 0.0, %v2503
  %v2505 = vpop.f32.mrb[0].mxu0
  %v2506 = vpop.f32.mrb[0].mxu0
  %v2507 = vadd.f32 0.0, %v2506
  %v2508 = vpop.f32.mrb[0].mxu0
  %2509 = vmatprep.mubr.bf16.mxu0 %v2312
  %2510 = vmatmul.mubr.bf16.gmra.mrb[0].mxu0 %v2311
  %v2511 = vpop.f32.mrb[0].mxu0
  %v2512 = vadd.f32 0.0, %v2511
  %v2513 = vpop.f32.mrb[0].mxu0
  %v2514 = vpop.f32.mrb[0].mxu0
  %v2515 = vadd.f32 0.0, %v2514
  %v2516 = vpop.f32.mrb[0].mxu0
  %2517 = vmatprep.mubr.bf16.mxu0 %v2316
  %2518 = vmatmul.mubr.bf16.gmra.mrb[0].mxu0 %v2315
  %v2519 = vpop.f32.mrb[0].mxu0
  %v2520 = vadd.f32 0.0, %v2519
  %v2521 = vpop.f32.mrb[0].mxu0
  %v2522 = vpop.f32.mrb[0].mxu0
  %v2523 = vadd.f32 0.0, %v2522
  %v2524 = vpop.f32.mrb[0].mxu0
  %2525 = vmatprep.mubr.bf16.mxu0 %v2320
  %2526 = vmatmul.mubr.bf16.gmra.mrb[0].mxu0 %v2319
  %v2527 = vpop.f32.mrb[0].mxu0
  %v2528 = vadd.f32 0.0, %v2527
  %v2529 = vpop.f32.mrb[0].mxu0
  %v2530 = vpop.f32.mrb[0].mxu0
  %v2531 = vadd.f32 0.0, %v2530
  %v2532 = vpop.f32.mrb[0].mxu0
  %2533 = vmatprep.mubr.bf16.mxu0 %v2324
  %2534 = vmatmul.mubr.bf16.gmra.mrb[0].mxu0 %v2323
  %v2535 = vpop.f32.mrb[0].mxu0
  %v2536 = vadd.f32 0.0, %v2535
  %v2537 = vpop.f32.mrb[0].mxu0
  %v2538 = vpop.f32.mrb[0].mxu0
  %v2539 = vpop.f32.mrb[0].mxu0
  %2540 = vdwg.mxu0
  %2541 = vmatprep.subr.bf16.mxu0 0
  %2542 = vmatpush1.bf16.msra.mxu0 %v472
  %2543 = vmatprep.subr.bf16.mxu0 0
  %2544 = vmatpush1.bf16.msra.mxu0 %v473
  %2545 = vmatprep.subr.bf16.mxu0 0
  %2546 = vmatpush1.bf16.msra.mxu0 %v474
  %2547 = vmatprep.subr.bf16.mxu0 0
  %2548 = vmatpush1.bf16.msra.mxu0 %v475
  %2549 = vmatprep.subr.bf16.mxu0 0
  %2550 = vmatpush1.bf16.msra.mxu0 %v476
  %2551 = vmatprep.subr.bf16.mxu0 0
  %2552 = vmatpush1.bf16.msra.mxu0 %v477
  %2553 = vmatprep.subr.bf16.mxu0 0
  %2554 = vmatpush1.bf16.msra.mxu0 %v478
  %2555 = vmatprep.subr.bf16.mxu0 0
  %2556 = vmatpush1.bf16.msra.mxu0 %v479
  %2557 = vmatprep.subr.bf16.mxu0 0
  %2558 = vmatpush1.bf16.msra.mxu0 %v480
  %2559 = vmatprep.subr.bf16.mxu0 0
  %2560 = vmatpush1.bf16.msra.mxu0 0
  %2561 = vmatprep.subr.bf16.mxu0 0
  %2562 = vmatpush1.bf16.msra.mxu0 0
  %2563 = vmatprep.subr.bf16.mxu0 0
  %2564 = vmatpush1.bf16.msra.mxu0 0
  %2565 = vmatprep.subr.bf16.mxu0 0
  %2566 = vmatpush1.bf16.msra.mxu0 0
  %2567 = vmatprep.subr.bf16.mxu0 0
  %2568 = vmatpush1.bf16.msra.mxu0 0
  %2569 = vmatprep.subr.bf16.mxu0 0
  %2570 = vmatpush1.bf16.msra.mxu0 0
  %2571 = vmatprep.subr.bf16.mxu0 0
  %2572 = vmatpush1.bf16.msra.mxu0 0
  %2573 = vmatprep.mubr.bf16.mxu0 %v2367
  %2574 = vmatmul.mubr.bf16.gmra.mrb[0].mxu0 %v2277
  %v2575 = vpop.f32.mrb[0].mxu0
  %v2576 = vadd.f32 %v2440, %v2575
  %v2577 = vpop.f32.mrb[0].mxu0
  %v2578 = vpop.f32.mrb[0].mxu0
  %v2579 = vadd.f32 %v2443, %v2578
  %v2580 = vpop.f32.mrb[0].mxu0
  %2581 = vmatprep.mubr.bf16.mxu0 %v2370
  %2582 = vmatmul.mubr.bf16.gmra.mrb[0].mxu0 %v2281
  %v2583 = vpop.f32.mrb[0].mxu0
  %v2584 = vadd.f32 %v2448, %v2583
  %v2585 = vpop.f32.mrb[0].mxu0
  %v2586 = vpop.f32.mrb[0].mxu0
  %v2587 = vadd.f32 %v2451, %v2586
  %v2588 = vpop.f32.mrb[0].mxu0
  %2589 = vmatprep.mubr.bf16.mxu0 %v2373
  %2590 = vmatmul.mubr.bf16.gmra.mrb[0].mxu0 %v2285
  %v2591 = vpop.f32.mrb[0].mxu0
  %v2592 = vadd.f32 %v2456, %v2591
  %v2593 = vpop.f32.mrb[0].mxu0
  %v2594 = vpop.f32.mrb[0].mxu0
  %v2595 = vadd.f32 %v2459, %v2594
  %v2596 = vpop.f32.mrb[0].mxu0
  %2597 = vmatprep.mubr.bf16.mxu0 %v2376
  %2598 = vmatmul.mubr.bf16.gmra.mrb[0].mxu0 %v2289
  %v2599 = vpop.f32.mrb[0].mxu0
  %v2600 = vadd.f32 %v2464, %v2599
  %v2601 = vpop.f32.mrb[0].mxu0
  %v2602 = vpop.f32.mrb[0].mxu0
  %v2603 = vadd.f32 %v2467, %v2602
  %v2604 = vpop.f32.mrb[0].mxu0
  %2605 = vmatprep.mubr.bf16.mxu0 %v2379
  %2606 = vmatmul.mubr.bf16.gmra.mrb[0].mxu0 %v2293
  %v2607 = vpop.f32.mrb[0].mxu0
  %v2608 = vadd.f32 %v2472, %v2607
  %v2609 = vpop.f32.mrb[0].mxu0
  %v2610 = vpop.f32.mrb[0].mxu0
  %v2611 = vadd.f32 %v2475, %v2610
  %v2612 = vpop.f32.mrb[0].mxu0
  %2613 = vmatprep.mubr.bf16.mxu0 %v2382
  %2614 = vmatmul.mubr.bf16.gmra.mrb[0].mxu0 %v2297
  %v2615 = vpop.f32.mrb[0].mxu0
  %v2616 = vadd.f32 %v2480, %v2615
  %v2617 = vpop.f32.mrb[0].mxu0
  %v2618 = vpop.f32.mrb[0].mxu0
  %v2619 = vadd.f32 %v2483, %v2618
  %v2620 = vpop.f32.mrb[0].mxu0
  %2621 = vmatprep.mubr.bf16.mxu0 %v2385
  %2622 = vmatmul.mubr.bf16.gmra.mrb[0].mxu0 %v2301
  %v2623 = vpop.f32.mrb[0].mxu0
  %v2624 = vadd.f32 %v2488, %v2623
  %v2625 = vpop.f32.mrb[0].mxu0
  %v2626 = vpop.f32.mrb[0].mxu0
  %v2627 = vadd.f32 %v2491, %v2626
  %v2628 = vpop.f32.mrb[0].mxu0
  %2629 = vmatprep.mubr.bf16.mxu0 %v2388
  %2630 = vmatmul.mubr.bf16.gmra.mrb[0].mxu0 %v2305
  %v2631 = vpop.f32.mrb[0].mxu0
  %v2632 = vadd.f32 %v2496, %v2631
  %v2633 = vpop.f32.mrb[0].mxu0
  %v2634 = vpop.f32.mrb[0].mxu0
  %v2635 = vadd.f32 %v2499, %v2634
  %v2636 = vpop.f32.mrb[0].mxu0
  %2637 = vmatprep.mubr.bf16.mxu0 %v2391
  %2638 = vmatmul.mubr.bf16.gmra.mrb[0].mxu0 %v2309
  %v2639 = vpop.f32.mrb[0].mxu0
  %v2640 = vadd.f32 %v2504, %v2639
  %v2641 = vpop.f32.mrb[0].mxu0
  %v2642 = vpop.f32.mrb[0].mxu0
  %v2643 = vadd.f32 %v2507, %v2642
  %v2644 = vpop.f32.mrb[0].mxu0
  %2645 = vmatprep.mubr.bf16.mxu0 %v2394
  %2646 = vmatmul.mubr.bf16.gmra.mrb[0].mxu0 %v2313
  %v2647 = vpop.f32.mrb[0].mxu0
  %v2648 = vadd.f32 %v2512, %v2647
  %v2649 = vpop.f32.mrb[0].mxu0
  %v2650 = vpop.f32.mrb[0].mxu0
  %v2651 = vadd.f32 %v2515, %v2650
  %v2652 = vpop.f32.mrb[0].mxu0
  %2653 = vmatprep.mubr.bf16.mxu0 %v2397
  %2654 = vmatmul.mubr.bf16.gmra.mrb[0].mxu0 %v2317
  %v2655 = vpop.f32.mrb[0].mxu0
  %v2656 = vadd.f32 %v2520, %v2655
  %v2657 = vpop.f32.mrb[0].mxu0
  %v2658 = vpop.f32.mrb[0].mxu0
  %v2659 = vadd.f32 %v2523, %v2658
  %v2660 = vpop.f32.mrb[0].mxu0
  %2661 = vmatprep.mubr.bf16.mxu0 %v2400
  %2662 = vmatmul.mubr.bf16.gmra.mrb[0].mxu0 %v2321
  %v2663 = vpop.f32.mrb[0].mxu0
  %v2664 = vadd.f32 %v2528, %v2663
  %v2665 = vpop.f32.mrb[0].mxu0
  %v2666 = vpop.f32.mrb[0].mxu0
  %v2667 = vadd.f32 %v2531, %v2666
  %v2668 = vpop.f32.mrb[0].mxu0
  %2669 = vmatprep.mubr.bf16.mxu0 %v2403
  %2670 = vmatmul.mubr.bf16.gmra.mrb[0].mxu0 %v2325
  %v2671 = vpop.f32.mrb[0].mxu0
  %v2672 = vadd.f32 %v2536, %v2671
  %v2673 = vpop.f32.mrb[0].mxu0
  %v2674 = vpop.f32.mrb[0].mxu0
  %v2675 = vpop.f32.mrb[0].mxu0
  %2676 = vdwg.mxu0
  %v2677 = vmax.f32 %v2049, %v2576
  %v2678 = vmax.f32 %v2050, %v2579
  %v2679 = vmax.f32 %v2051, %v2584
  %v2680 = vmax.f32 %v2052, %v2587
  %v2681 = vmax.f32 %v2053, %v2592
  %v2682 = vmax.f32 %v2054, %v2595
  %v2683 = vmax.f32 %v2055, %v2600
  %v2684 = vmax.f32 %v2056, %v2603
  %v2685 = vmax.f32 %v2057, %v2608
  %v2686 = vmax.f32 %v2058, %v2611
  %v2687 = vmax.f32 %v2059, %v2616
  %v2688 = vmax.f32 %v2060, %v2619
  %v2689 = vmax.f32 %v2061, %v2624
  %v2690 = vmax.f32 %v2062, %v2627
  %v2691 = vmax.f32 %v2063, %v2632
  %v2692 = vmax.f32 %v2064, %v2635
  %v2693 = vmax.f32 %v2065, %v2640
  %v2694 = vmax.f32 %v2066, %v2643
  %v2695 = vmax.f32 %v2067, %v2648
  %v2696 = vmax.f32 %v2068, %v2651
  %v2697 = vmax.f32 %v2069, %v2656
  %v2698 = vmax.f32 %v2070, %v2659
  %v2699 = vmax.f32 %v2071, %v2664
  %v2700 = vmax.f32 %v2072, %v2667
  %v2701 = vmax.f32 %v2073, %v2672
  %v2702 = vld [vmem:[%s2] sm:$0x1]
  %v2704 = vlaneseq
  %v2705 = vshrl.u32 %v2704, 7
  %v2706 = vsub.s32 0, %v2705
  %v2707 = vrot.slane %v2702, %v2706
  %v2709 = vadd.f32 %v2677, %v2707
  %v2710 = vadd.f32 %v2678, %v2707
  %v2711 = vadd.f32 %v2679, %v2707
  %v2712 = vadd.f32 %v2680, %v2707
  %v2713 = vadd.f32 %v2681, %v2707
  %v2714 = vadd.f32 %v2682, %v2707
  %v2715 = vadd.f32 %v2683, %v2707
  %v2716 = vadd.f32 %v2684, %v2707
  %v2717 = vadd.f32 %v2685, %v2707
  %v2718 = vadd.f32 %v2686, %v2707
  %v2719 = vadd.f32 %v2687, %v2707
  %v2720 = vadd.f32 %v2688, %v2707
  %v2721 = vadd.f32 %v2689, %v2707
  %v2722 = vadd.f32 %v2690, %v2707
  %v2723 = vadd.f32 %v2691, %v2707
  %v2724 = vadd.f32 %v2692, %v2707
  %v2725 = vadd.f32 %v2693, %v2707
  %v2726 = vadd.f32 %v2694, %v2707
  %v2727 = vadd.f32 %v2695, %v2707
  %v2728 = vadd.f32 %v2696, %v2707
  %v2729 = vadd.f32 %v2697, %v2707
  %v2730 = vadd.f32 %v2698, %v2707
  %v2731 = vadd.f32 %v2699, %v2707
  %v2732 = vadd.f32 %v2700, %v2707
  %v2733 = vadd.f32 %v2701, %v2707
  %v2734 = vmax.f32 %v2709, 0.0
  %v2735 = vmax.f32 %v2710, 0.0
  %v2736 = vmax.f32 %v2711, 0.0
  %v2737 = vmax.f32 %v2712, 0.0
  %v2738 = vmax.f32 %v2713, 0.0
  %v2739 = vmax.f32 %v2714, 0.0
  %v2740 = vmax.f32 %v2715, 0.0
  %v2741 = vmax.f32 %v2716, 0.0
  %v2742 = vmax.f32 %v2717, 0.0
  %v2743 = vmax.f32 %v2718, 0.0
  %v2744 = vmax.f32 %v2719, 0.0
  %v2745 = vmax.f32 %v2720, 0.0
  %v2746 = vmax.f32 %v2721, 0.0
  %v2747 = vmax.f32 %v2722, 0.0
  %v2748 = vmax.f32 %v2723, 0.0
  %v2749 = vmax.f32 %v2724, 0.0
  %v2750 = vmax.f32 %v2725, 0.0
  %v2751 = vmax.f32 %v2726, 0.0
  %v2752 = vmax.f32 %v2727, 0.0
  %v2753 = vmax.f32 %v2728, 0.0
  %v2754 = vmax.f32 %v2729, 0.0
  %v2755 = vmax.f32 %v2730, 0.0
  %v2756 = vmax.f32 %v2731, 0.0
  %v2757 = vmax.f32 %v2732, 0.0
  %v2758 = vmax.f32 %v2733, 0.0
  %v2759 = vpack.c.bf16 %v2735, %v2734
  %v2760 = vpack.c.bf16 %v2737, %v2736
  %v2761 = vpack.c.bf16 %v2739, %v2738
  %v2762 = vpack.c.bf16 %v2741, %v2740
  %v2763 = vpack.c.bf16 %v2743, %v2742
  %v2764 = vpack.c.bf16 %v2745, %v2744
  %v2765 = vpack.c.bf16 %v2747, %v2746
  %v2766 = vpack.c.bf16 %v2749, %v2748
  %v2767 = vpack.c.bf16 %v2751, %v2750
  %v2768 = vpack.c.bf16 %v2753, %v2752
  %v2769 = vpack.c.bf16 %v2755, %v2754
  %v2770 = vpack.c.bf16 %v2757, %v2756
  %v2771 = vpack.c.bf16 %v2758, %v2758
  %v2785 = vunpack.c.l.b16 %v2759
  %v2786 = vunpack.c.h.b16 %v2759
  %v2787 = vunpack.c.l.b16 %v2760
  %v2788 = vunpack.c.h.b16 %v2760
  %v2789 = vunpack.c.l.b16 %v2761
  %v2790 = vunpack.c.h.b16 %v2761
  %v2791 = vunpack.c.l.b16 %v2762
  %v2792 = vunpack.c.h.b16 %v2762
  %v2793 = vunpack.c.l.b16 %v2763
  %v2794 = vunpack.c.h.b16 %v2763
  %v2795 = vunpack.c.l.b16 %v2764
  %v2796 = vunpack.c.h.b16 %v2764
  %v2797 = vunpack.c.l.b16 %v2765
  %v2798 = vunpack.c.h.b16 %v2765
  %v2799 = vunpack.c.l.b16 %v2766
  %v2800 = vunpack.c.h.b16 %v2766
  %v2801 = vunpack.c.l.b16 %v2767
  %v2802 = vunpack.c.h.b16 %v2767
  %v2803 = vunpack.c.l.b16 %v2768
  %v2804 = vunpack.c.h.b16 %v2768
  %v2805 = vunpack.c.l.b16 %v2769
  %v2806 = vunpack.c.h.b16 %v2769
  %v2807 = vunpack.c.l.b16 %v2770
  %v2808 = vunpack.c.h.b16 %v2770
  %v2809 = vunpack.c.l.b16 %v2771
  %v2810 = vpack.c.b16 %v2785, %v2785
  %v2811 = vpack.c.b16 %v2786, %v2786
  %v2812 = vpack.c.b16 %v2787, %v2787
  %v2813 = vpack.c.b16 %v2788, %v2788
  %v2814 = vpack.c.b16 %v2789, %v2789
  %v2815 = vpack.c.b16 %v2790, %v2790
  %v2816 = vpack.c.b16 %v2791, %v2791
  %v2817 = vpack.c.b16 %v2792, %v2792
  %v2818 = vpack.c.b16 %v2793, %v2793
  %v2819 = vpack.c.b16 %v2794, %v2794
  %v2820 = vpack.c.b16 %v2795, %v2795
  %v2821 = vpack.c.b16 %v2796, %v2796
  %v2822 = vpack.c.b16 %v2797, %v2797
  %v2823 = vpack.c.b16 %v2798, %v2798
  %v2824 = vpack.c.b16 %v2799, %v2799
  %v2825 = vpack.c.b16 %v2800, %v2800
  %v2826 = vpack.c.b16 %v2801, %v2801
  %v2827 = vpack.c.b16 %v2802, %v2802
  %v2828 = vpack.c.b16 %v2803, %v2803
  %v2829 = vpack.c.b16 %v2804, %v2804
  %v2830 = vpack.c.b16 %v2805, %v2805
  %v2831 = vpack.c.b16 %v2806, %v2806
  %v2832 = vpack.c.b16 %v2807, %v2807
  %v2833 = vpack.c.b16 %v2808, %v2808
  %v2834 = vpack.c.b16 %v2809, %v2809
  %2860 = vst [vmem:[%s3] sm:$0xf] %v2810
  %2861 = vst [vmem:[%s3 + $0x4] sm:$0xf] %v2811
  %2862 = vst [vmem:[%s3 + $0x8] sm:$0xf] %v2812
  %2863 = vst [vmem:[%s3 + $0xc] sm:$0xf] %v2813
  %2864 = vst [vmem:[%s3 + $0x10] sm:$0xf] %v2814
  %2865 = vst [vmem:[%s3 + $0x14] sm:$0xf] %v2815
  %2866 = vst [vmem:[%s3 + $0x18] sm:$0xf] %v2816
  %2867 = vst [vmem:[%s3 + $0x1c] sm:$0xf] %v2817
  %2868 = vst [vmem:[%s3 + $0x20] sm:$0xf] %v2818
  %2869 = vst [vmem:[%s3 + $0x24] sm:$0xf] %v2819
  %2870 = vst [vmem:[%s3 + $0x28] sm:$0xf] %v2820
  %2871 = vst [vmem:[%s3 + $0x2c] sm:$0xf] %v2821
  %2872 = vst [vmem:[%s3 + $0x30] sm:$0xf] %v2822
  %2873 = vst [vmem:[%s3 + $0x34] sm:$0xf] %v2823
  %2874 = vst [vmem:[%s3 + $0x38] sm:$0xf] %v2824
  %2875 = vst [vmem:[%s3 + $0x3c] sm:$0xf] %v2825
  %2876 = vst [vmem:[%s3 + $0x40] sm:$0xf] %v2826
  %2877 = vst [vmem:[%s3 + $0x44] sm:$0xf] %v2827
  %2878 = vst [vmem:[%s3 + $0x48] sm:$0xf] %v2828
  %2879 = vst [vmem:[%s3 + $0x4c] sm:$0xf] %v2829
  %2880 = vst [vmem:[%s3 + $0x50] sm:$0xf] %v2830
  %2881 = vst [vmem:[%s3 + $0x54] sm:$0xf] %v2831
  %2882 = vst [vmem:[%s3 + $0x58] sm:$0xf] %v2832
  %2883 = vst [vmem:[%s3 + $0x5c] sm:$0xf] %v2833
  %2884 = vst [vmem:[%s3 + $0x60] sm:$0xf] %v2834
  // Predicated region
  $region14: #{mnist30k_forward.4} parent=0 // pred_check
    _
  $region15: #{mnist30k_forward.4} parent=0 // pred_check_branch
    %2886 = sbr.rel (0) target = $region17
  $region16: #{mnist30k_forward.4} parent=0 // pred_region
    _
  $region17: #{mnist30k_forward.4} parent=0 // pred_fallthru
    _
  // Predicated region
  $region18: #{mnist30k_forward.4} parent=0 // pred_check
    _
  $region19: #{mnist30k_forward.4} parent=0 // pred_check_branch
    %2888 = sbr.rel (0) target = $region21
  $region20: #{mnist30k_forward.4} parent=0 // pred_region
    _
  $region21: #{mnist30k_forward.4} parent=0 // pred_fallthru
    _

// kernel: mnist30k_forward.5
$region0: #{mnist30k_forward.5}
  #allocation0 [shape = 'u32[]', space=smem, size = 0x4, offset = 0x4, fixed_abs, tag = 'smem constant byte address 0x4 - core index']
  #allocation1 [shape = 'u32[144,128]{1,0:T(1,128)}', space=vmem, size = 0x12000, scoped, tag = 'internal scratch']
  %s0 = inlined_call_operand.vmem [shape: bf16[4,1568], index: 0, kind: input, shape index: {}]
  %s1 = inlined_call_operand.vmem [shape: bf16[1568,128], index: 1, kind: input, shape index: {}]
  %s2 = inlined_call_operand.vmem [shape: f32[1,128], index: 2, kind: input, shape index: {}]
  %s3 = inlined_call_operand.hbm [shape: f32[4,128], index: 3, kind: output, shape index: {}]
  %s4 = sld [smem:[#allocation0]]
  $region22: #{mnist30k_forward.5} parent=0
    _
  %s6 = ssub.s32 1, %s4
  %s7 = scalar_select 0, %s6, %s4
  $region1: #{mnist30k_forward.5} parent=0
    #allocation2 [shape = 'u8[2048]{0}', space=vmem, size = 0x800, scoped, tag = 'output window, operand 0, single buffered']
    #allocation3 [shape = 's32[1]{0}', space=sflag, size = 0x4, scoped, tag = 'scoped memory for mnist30k_forward.5']
    %8 = vsyncpa [#allocation3], 0
    // Predicated region
    $region2: #{mnist30k_forward.5} parent=1 // pred_check
      _
    $region3: #{mnist30k_forward.5} parent=1 // pred_check_branch
      %10 = sbr.rel (0) target = $region5
    $region4: #{mnist30k_forward.5} parent=1 // pred_region
      _
    $region5: #{mnist30k_forward.5} parent=1 // pred_fallthru
      _
    // Predicated region
    $region6: #{mnist30k_forward.5} parent=1 // pred_check
      _
    $region7: #{mnist30k_forward.5} parent=1 // pred_check_branch
      %12 = sbr.rel (0) target = $region9
    $region8: #{mnist30k_forward.5} parent=1 // pred_region
      _
    $region9: #{mnist30k_forward.5} parent=1 // pred_fallthru
      _
    // Predicated region
    $region10: #{mnist30k_forward.5} parent=1 // pred_check
      _
    $region11: #{mnist30k_forward.5} parent=1 // pred_check_branch
      %14 = sbr.rel (0) target = $region13
    $region12: #{mnist30k_forward.5} parent=1 // pred_region
      _
    $region13: #{mnist30k_forward.5} parent=1 // pred_fallthru
      _
    %v16 = vld [vmem:[%s0] sm:$0xff]
    %v17 = vld [vmem:[%s0 + $0x8] sm:$0xff]
    %v18 = vld [vmem:[%s0 + $0x10] sm:$0xff]
    %v19 = vld [vmem:[%s0 + $0x18] sm:$0x3]
    %v20 = vunpack.c.l.bf16 %v16
    %v21 = vunpack.c.h.bf16 %v16
    %v22 = vunpack.c.l.bf16 %v17
    %v23 = vunpack.c.h.bf16 %v17
    %v24 = vunpack.c.l.bf16 %v18
    %v25 = vunpack.c.h.bf16 %v18
    %v26 = vunpack.c.l.bf16 %v19
    %v33 = vcombine.high %v20, %v20
    %v34 = vcombine.high %v21, %v21
    %v35 = vcombine.high %v22, %v22
    %v36 = vcombine.high %v23, %v23
    %v37 = vcombine.high %v24, %v24
    %v38 = vcombine.high %v25, %v25
    %vm45 = vcmask 1043456
    %v46 = vsel %vm45, %v20, 0.0
    %v47 = vrot.slane %v46, 4
    %v48 = vadd.f32 %v46, %v47
    %v49 = vrot.slane %v48, 2
    %v50 = vadd.f32 %v48, %v49
    %v51 = vrot.slane %v50, 1
    %v52 = vadd.f32 %v50, %v51
    %v53 = vsel %vm45, %v33, 0.0
    %v54 = vrot.slane %v53, 4
    %v55 = vadd.f32 %v53, %v54
    %v56 = vrot.slane %v55, 2
    %v57 = vadd.f32 %v55, %v56
    %v58 = vrot.slane %v57, 1
    %v59 = vadd.f32 %v57, %v58
    %v60 = vsel %vm45, %v21, 0.0
    %v61 = vrot.slane %v60, 4
    %v62 = vadd.f32 %v60, %v61
    %v63 = vrot.slane %v62, 2
    %v64 = vadd.f32 %v62, %v63
    %v65 = vrot.slane %v64, 1
    %v66 = vadd.f32 %v64, %v65
    %v67 = vsel %vm45, %v34, 0.0
    %v68 = vrot.slane %v67, 4
    %v69 = vadd.f32 %v67, %v68
    %v70 = vrot.slane %v69, 2
    %v71 = vadd.f32 %v69, %v70
    %v72 = vrot.slane %v71, 1
    %v73 = vadd.f32 %v71, %v72
    %v74 = vsel %vm45, %v22, 0.0
    %v75 = vrot.slane %v74, 4
    %v76 = vadd.f32 %v74, %v75
    %v77 = vrot.slane %v76, 2
    %v78 = vadd.f32 %v76, %v77
    %v79 = vrot.slane %v78, 1
    %v80 = vadd.f32 %v78, %v79
    %v81 = vsel %vm45, %v35, 0.0
    %v82 = vrot.slane %v81, 4
    %v83 = vadd.f32 %v81, %v82
    %v84 = vrot.slane %v83, 2
    %v85 = vadd.f32 %v83, %v84
    %v86 = vrot.slane %v85, 1
    %v87 = vadd.f32 %v85, %v86
    %v88 = vsel %vm45, %v23, 0.0
    %v89 = vrot.slane %v88, 4
    %v90 = vadd.f32 %v88, %v89
    %v91 = vrot.slane %v90, 2
    %v92 = vadd.f32 %v90, %v91
    %v93 = vrot.slane %v92, 1
    %v94 = vadd.f32 %v92, %v93
    %v95 = vsel %vm45, %v36, 0.0
    %v96 = vrot.slane %v95, 4
    %v97 = vadd.f32 %v95, %v96
    %v98 = vrot.slane %v97, 2
    %v99 = vadd.f32 %v97, %v98
    %v100 = vrot.slane %v99, 1
    %v101 = vadd.f32 %v99, %v100
    %v102 = vsel %vm45, %v24, 0.0
    %v103 = vrot.slane %v102, 4
    %v104 = vadd.f32 %v102, %v103
    %v105 = vrot.slane %v104, 2
    %v106 = vadd.f32 %v104, %v105
    %v107 = vrot.slane %v106, 1
    %v108 = vadd.f32 %v106, %v107
    %v109 = vsel %vm45, %v37, 0.0
    %v110 = vrot.slane %v109, 4
    %v111 = vadd.f32 %v109, %v110
    %v112 = vrot.slane %v111, 2
    %v113 = vadd.f32 %v111, %v112
    %v114 = vrot.slane %v113, 1
    %v115 = vadd.f32 %v113, %v114
    %v116 = vsel %vm45, %v25, 0.0
    %v117 = vrot.slane %v116, 4
    %v118 = vadd.f32 %v116, %v117
    %v119 = vrot.slane %v118, 2
    %v120 = vadd.f32 %v118, %v119
    %v121 = vrot.slane %v120, 1
    %v122 = vadd.f32 %v120, %v121
    %v123 = vsel %vm45, %v38, 0.0
    %v124 = vrot.slane %v123, 4
    %v125 = vadd.f32 %v123, %v124
    %v126 = vrot.slane %v125, 2
    %v127 = vadd.f32 %v125, %v126
    %v128 = vrot.slane %v127, 1
    %v129 = vadd.f32 %v127, %v128
    %vm130 = vcmask 257024
    %v131 = vsel %vm130, %v26, 0.0
    %v132 = vrot.slane %v131, 4
    %v133 = vadd.f32 %v131, %v132
    %v134 = vrot.slane %v133, 2
    %v135 = vadd.f32 %v133, %v134
    %v136 = vrot.slane %v135, 1
    %v137 = vadd.f32 %v135, %v136
    %v138 = vrcp.pop 4.0
    %v139 = vmul.f32 %v52, %v138
    %v140 = vmul.f32 %v59, %v138
    %v141 = vmul.f32 %v66, %v138
    %v142 = vmul.f32 %v73, %v138
    %v143 = vmul.f32 %v80, %v138
    %v144 = vmul.f32 %v87, %v138
    %v145 = vmul.f32 %v94, %v138
    %v146 = vmul.f32 %v101, %v138
    %v147 = vmul.f32 %v108, %v138
    %v148 = vmul.f32 %v115, %v138
    %v149 = vmul.f32 %v122, %v138
    %v150 = vmul.f32 %v129, %v138
    %v151 = vmul.f32 %v137, %v138
    %v164 = vcombine.low %v139, %v140
    %v165 = vcombine.low %v141, %v142
    %v166 = vcombine.low %v143, %v144
    %v167 = vcombine.low %v145, %v146
    %v168 = vcombine.low %v147, %v148
    %v169 = vcombine.low %v149, %v150
    %v176 = vsub.f32 %v20, %v164
    %v177 = vsub.f32 %v21, %v165
    %v178 = vsub.f32 %v22, %v166
    %v179 = vsub.f32 %v23, %v167
    %v180 = vsub.f32 %v24, %v168
    %v181 = vsub.f32 %v25, %v169
    %v182 = vsub.f32 %v26, %v151
    %v183 = vmul.f32 %v176, %v176
    %v184 = vmul.f32 %v177, %v177
    %v185 = vmul.f32 %v178, %v178
    %v186 = vmul.f32 %v179, %v179
    %v187 = vmul.f32 %v180, %v180
    %v188 = vmul.f32 %v181, %v181
    %v189 = vmul.f32 %v182, %v182
    %v196 = vcombine.high %v183, %v183
    %v197 = vcombine.high %v184, %v184
    %v198 = vcombine.high %v185, %v185
    %v199 = vcombine.high %v186, %v186
    %v200 = vcombine.high %v187, %v187
    %v201 = vcombine.high %v188, %v188
    %v208 = vsel %vm45, %v183, 0.0
    %v209 = vrot.slane %v208, 4
    %v210 = vadd.f32 %v208, %v209
    %v211 = vrot.slane %v210, 2
    %v212 = vadd.f32 %v210, %v211
    %v213 = vrot.slane %v212, 1
    %v214 = vadd.f32 %v212, %v213
    %v215 = vsel %vm45, %v196, 0.0
    %v216 = vrot.slane %v215, 4
    %v217 = vadd.f32 %v215, %v216
    %v218 = vrot.slane %v217, 2
    %v219 = vadd.f32 %v217, %v218
    %v220 = vrot.slane %v219, 1
    %v221 = vadd.f32 %v219, %v220
    %v222 = vsel %vm45, %v184, 0.0
    %v223 = vrot.slane %v222, 4
    %v224 = vadd.f32 %v222, %v223
    %v225 = vrot.slane %v224, 2
    %v226 = vadd.f32 %v224, %v225
    %v227 = vrot.slane %v226, 1
    %v228 = vadd.f32 %v226, %v227
    %v229 = vsel %vm45, %v197, 0.0
    %v230 = vrot.slane %v229, 4
    %v231 = vadd.f32 %v229, %v230
    %v232 = vrot.slane %v231, 2
    %v233 = vadd.f32 %v231, %v232
    %v234 = vrot.slane %v233, 1
    %v235 = vadd.f32 %v233, %v234
    %v236 = vsel %vm45, %v185, 0.0
    %v237 = vrot.slane %v236, 4
    %v238 = vadd.f32 %v236, %v237
    %v239 = vrot.slane %v238, 2
    %v240 = vadd.f32 %v238, %v239
    %v241 = vrot.slane %v240, 1
    %v242 = vadd.f32 %v240, %v241
    %v243 = vsel %vm45, %v198, 0.0
    %v244 = vrot.slane %v243, 4
    %v245 = vadd.f32 %v243, %v244
    %v246 = vrot.slane %v245, 2
    %v247 = vadd.f32 %v245, %v246
    %v248 = vrot.slane %v247, 1
    %v249 = vadd.f32 %v247, %v248
    %v250 = vsel %vm45, %v186, 0.0
    %v251 = vrot.slane %v250, 4
    %v252 = vadd.f32 %v250, %v251
    %v253 = vrot.slane %v252, 2
    %v254 = vadd.f32 %v252, %v253
    %v255 = vrot.slane %v254, 1
    %v256 = vadd.f32 %v254, %v255
    %v257 = vsel %vm45, %v199, 0.0
    %v258 = vrot.slane %v257, 4
    %v259 = vadd.f32 %v257, %v258
    %v260 = vrot.slane %v259, 2
    %v261 = vadd.f32 %v259, %v260
    %v262 = vrot.slane %v261, 1
    %v263 = vadd.f32 %v261, %v262
    %v264 = vsel %vm45, %v187, 0.0
    %v265 = vrot.slane %v264, 4
    %v266 = vadd.f32 %v264, %v265
    %v267 = vrot.slane %v266, 2
    %v268 = vadd.f32 %v266, %v267
    %v269 = vrot.slane %v268, 1
    %v270 = vadd.f32 %v268, %v269
    %v271 = vsel %vm45, %v200, 0.0
    %v272 = vrot.slane %v271, 4
    %v273 = vadd.f32 %v271, %v272
    %v274 = vrot.slane %v273, 2
    %v275 = vadd.f32 %v273, %v274
    %v276 = vrot.slane %v275, 1
    %v277 = vadd.f32 %v275, %v276
    %v278 = vsel %vm45, %v188, 0.0
    %v279 = vrot.slane %v278, 4
    %v280 = vadd.f32 %v278, %v279
    %v281 = vrot.slane %v280, 2
    %v282 = vadd.f32 %v280, %v281
    %v283 = vrot.slane %v282, 1
    %v284 = vadd.f32 %v282, %v283
    %v285 = vsel %vm45, %v201, 0.0
    %v286 = vrot.slane %v285, 4
    %v287 = vadd.f32 %v285, %v286
    %v288 = vrot.slane %v287, 2
    %v289 = vadd.f32 %v287, %v288
    %v290 = vrot.slane %v289, 1
    %v291 = vadd.f32 %v289, %v290
    %v292 = vsel %vm130, %v189, 0.0
    %v293 = vrot.slane %v292, 4
    %v294 = vadd.f32 %v292, %v293
    %v295 = vrot.slane %v294, 2
    %v296 = vadd.f32 %v294, %v295
    %v297 = vrot.slane %v296, 1
    %v298 = vadd.f32 %v296, %v297
    %v299 = vmul.f32 %v214, %v138
    %v300 = vmul.f32 %v221, %v138
    %v301 = vmul.f32 %v228, %v138
    %v302 = vmul.f32 %v235, %v138
    %v303 = vmul.f32 %v242, %v138
    %v304 = vmul.f32 %v249, %v138
    %v305 = vmul.f32 %v256, %v138
    %v306 = vmul.f32 %v263, %v138
    %v307 = vmul.f32 %v270, %v138
    %v308 = vmul.f32 %v277, %v138
    %v309 = vmul.f32 %v284, %v138
    %v310 = vmul.f32 %v291, %v138
    %v311 = vmul.f32 %v298, %v138
    %v312 = vadd.f32 %v299, 1e-05
    %v313 = vadd.f32 %v300, 1e-05
    %v314 = vadd.f32 %v301, 1e-05
    %v315 = vadd.f32 %v302, 1e-05
    %v316 = vadd.f32 %v303, 1e-05
    %v317 = vadd.f32 %v304, 1e-05
    %v318 = vadd.f32 %v305, 1e-05
    %v319 = vadd.f32 %v306, 1e-05
    %v320 = vadd.f32 %v307, 1e-05
    %v321 = vadd.f32 %v308, 1e-05
    %v322 = vadd.f32 %v309, 1e-05
    %v323 = vadd.f32 %v310, 1e-05
    %v324 = vadd.f32 %v311, 1e-05
    %v325 = vrsqrt.pop %v312
    %v326 = vrsqrt.pop %v313
    %v327 = vrsqrt.pop %v314
    %v328 = vrsqrt.pop %v315
    %v329 = vrsqrt.pop %v316
    %v330 = vrsqrt.pop %v317
    %v331 = vrsqrt.pop %v318
    %v332 = vrsqrt.pop %v319
    %v333 = vrsqrt.pop %v320
    %v334 = vrsqrt.pop %v321
    %v335 = vrsqrt.pop %v322
    %v336 = vrsqrt.pop %v323
    %v337 = vrsqrt.pop %v324
    %v350 = vcombine.low %v325, %v326
    %v351 = vcombine.low %v327, %v328
    %v352 = vcombine.low %v329, %v330
    %v353 = vcombine.low %v331, %v332
    %v354 = vcombine.low %v333, %v334
    %v355 = vcombine.low %v335, %v336
    %v362 = vmul.f32 %v176, %v350
    %v363 = vmul.f32 %v177, %v351
    %v364 = vmul.f32 %v178, %v352
    %v365 = vmul.f32 %v179, %v353
    %v366 = vmul.f32 %v180, %v354
    %v367 = vmul.f32 %v181, %v355
    %v368 = vmul.f32 %v182, %v337
    %v375 = vcombine.high %v362, %v362
    %v376 = vcombine.high %v363, %v363
    %v377 = vcombine.high %v364, %v364
    %v378 = vcombine.high %v365, %v365
    %v379 = vcombine.high %v366, %v366
    %v380 = vcombine.high %v367, %v367
    %v387 = vpack.c.bf16 %v362, %v362
    %v388 = vpack.c.bf16 %v375, %v375
    %v389 = vpack.c.bf16 %v363, %v363
    %v390 = vpack.c.bf16 %v376, %v376
    %v391 = vpack.c.bf16 %v364, %v364
    %v392 = vpack.c.bf16 %v377, %v377
    %v393 = vpack.c.bf16 %v365, %v365
    %v394 = vpack.c.bf16 %v378, %v378
    %v395 = vpack.c.bf16 %v366, %v366
    %v396 = vpack.c.bf16 %v379, %v379
    %v397 = vpack.c.bf16 %v367, %v367
    %v398 = vpack.c.bf16 %v380, %v380
    %v399 = vpack.c.bf16 %v368, %v368
    %v400 = vld [vmem:[%s1] sm:$0xf]
    %v401 = vld [vmem:[%s1 + $0x4] sm:$0xf]
    %v402 = vld [vmem:[%s1 + $0x8] sm:$0xf]
    %v403 = vld [vmem:[%s1 + $0xc] sm:$0xf]
    %v404 = vld [vmem:[%s1 + $0x10] sm:$0xf]
    %v405 = vld [vmem:[%s1 + $0x14] sm:$0xf]
    %v406 = vld [vmem:[%s1 + $0x18] sm:$0xf]
    %v407 = vld [vmem:[%s1 + $0x1c] sm:$0xf]
    %v408 = vld [vmem:[%s1 + $0x20] sm:$0xf]
    %v409 = vld [vmem:[%s1 + $0x24] sm:$0xf]
    %v410 = vld [vmem:[%s1 + $0x28] sm:$0xf]
    %v411 = vld [vmem:[%s1 + $0x2c] sm:$0xf]
    %v412 = vld [vmem:[%s1 + $0x30] sm:$0xf]
    %v413 = vld [vmem:[%s1 + $0x34] sm:$0xf]
    %v414 = vld [vmem:[%s1 + $0x38] sm:$0xf]
    %v415 = vld [vmem:[%s1 + $0x3c] sm:$0xf]
    %v416 = vld [vmem:[%s1 + $0x40] sm:$0xf]
    %v417 = vld [vmem:[%s1 + $0x44] sm:$0xf]
    %v418 = vld [vmem:[%s1 + $0x48] sm:$0xf]
    %v419 = vld [vmem:[%s1 + $0x4c] sm:$0xf]
    %v420 = vld [vmem:[%s1 + $0x50] sm:$0xf]
    %v421 = vld [vmem:[%s1 + $0x54] sm:$0xf]
    %v422 = vld [vmem:[%s1 + $0x58] sm:$0xf]
    %v423 = vld [vmem:[%s1 + $0x5c] sm:$0xf]
    %v424 = vld [vmem:[%s1 + $0x60] sm:$0xf]
    %v425 = vld [vmem:[%s1 + $0x64] sm:$0xf]
    %v426 = vld [vmem:[%s1 + $0x68] sm:$0xf]
    %v427 = vld [vmem:[%s1 + $0x6c] sm:$0xf]
    %v428 = vld [vmem:[%s1 + $0x70] sm:$0xf]
    %v429 = vld [vmem:[%s1 + $0x74] sm:$0xf]
    %v430 = vld [vmem:[%s1 + $0x78] sm:$0xf]
    %v431 = vld [vmem:[%s1 + $0x7c] sm:$0xf]
    %v432 = vld [vmem:[%s1 + $0x80] sm:$0xf]
    %v433 = vld [vmem:[%s1 + $0x84] sm:$0xf]
    %v434 = vld [vmem:[%s1 + $0x88] sm:$0xf]
    %v435 = vld [vmem:[%s1 + $0x8c] sm:$0xf]
    %v436 = vld [vmem:[%s1 + $0x90] sm:$0xf]
    %v437 = vld [vmem:[%s1 + $0x94] sm:$0xf]
    %v438 = vld [vmem:[%s1 + $0x98] sm:$0xf]
    %v439 = vld [vmem:[%s1 + $0x9c] sm:$0xf]
    %v440 = vld [vmem:[%s1 + $0xa0] sm:$0xf]
    %v441 = vld [vmem:[%s1 + $0xa4] sm:$0xf]
    %v442 = vld [vmem:[%s1 + $0xa8] sm:$0xf]
    %v443 = vld [vmem:[%s1 + $0xac] sm:$0xf]
    %v444 = vld [vmem:[%s1 + $0xb0] sm:$0xf]
    %v445 = vld [vmem:[%s1 + $0xb4] sm:$0xf]
    %v446 = vld [vmem:[%s1 + $0xb8] sm:$0xf]
    %v447 = vld [vmem:[%s1 + $0xbc] sm:$0xf]
    %v448 = vld [vmem:[%s1 + $0xc0] sm:$0xf]
    %v449 = vld [vmem:[%s1 + $0xc4] sm:$0xf]
    %v450 = vld [vmem:[%s1 + $0xc8] sm:$0xf]
    %v451 = vld [vmem:[%s1 + $0xcc] sm:$0xf]
    %v452 = vld [vmem:[%s1 + $0xd0] sm:$0xf]
    %v453 = vld [vmem:[%s1 + $0xd4] sm:$0xf]
    %v454 = vld [vmem:[%s1 + $0xd8] sm:$0xf]
    %v455 = vld [vmem:[%s1 + $0xdc] sm:$0xf]
    %v456 = vld [vmem:[%s1 + $0xe0] sm:$0xf]
    %v457 = vld [vmem:[%s1 + $0xe4] sm:$0xf]
    %v458 = vld [vmem:[%s1 + $0xe8] sm:$0xf]
    %v459 = vld [vmem:[%s1 + $0xec] sm:$0xf]
    %v460 = vld [vmem:[%s1 + $0xf0] sm:$0xf]
    %v461 = vld [vmem:[%s1 + $0xf4] sm:$0xf]
    %v462 = vld [vmem:[%s1 + $0xf8] sm:$0xf]
    %v463 = vld [vmem:[%s1 + $0xfc] sm:$0xf]
    %v464 = vld [vmem:[%s1 + $0x100] sm:$0xf]
    %v465 = vld [vmem:[%s1 + $0x104] sm:$0xf]
    %v466 = vld [vmem:[%s1 + $0x108] sm:$0xf]
    %v467 = vld [vmem:[%s1 + $0x10c] sm:$0xf]
    %v468 = vld [vmem:[%s1 + $0x110] sm:$0xf]
    %v469 = vld [vmem:[%s1 + $0x114] sm:$0xf]
    %v470 = vld [vmem:[%s1 + $0x118] sm:$0xf]
    %v471 = vld [vmem:[%s1 + $0x11c] sm:$0xf]
    %v472 = vld [vmem:[%s1 + $0x120] sm:$0xf]
    %v473 = vld [vmem:[%s1 + $0x124] sm:$0xf]
    %v474 = vld [vmem:[%s1 + $0x128] sm:$0xf]
    %v475 = vld [vmem:[%s1 + $0x12c] sm:$0xf]
    %v476 = vld [vmem:[%s1 + $0x130] sm:$0xf]
    %v477 = vld [vmem:[%s1 + $0x134] sm:$0xf]
    %v478 = vld [vmem:[%s1 + $0x138] sm:$0xf]
    %v479 = vld [vmem:[%s1 + $0x13c] sm:$0xf]
    %v480 = vld [vmem:[%s1 + $0x140] sm:$0xf]
    %v481 = vld [vmem:[%s1 + $0x144] sm:$0xf]
    %v482 = vld [vmem:[%s1 + $0x148] sm:$0xf]
    %v483 = vld [vmem:[%s1 + $0x14c] sm:$0xf]
    %v484 = vld [vmem:[%s1 + $0x150] sm:$0xf]
    %v485 = vld [vmem:[%s1 + $0x154] sm:$0xf]
    %v486 = vld [vmem:[%s1 + $0x158] sm:$0xf]
    %v487 = vld [vmem:[%s1 + $0x15c] sm:$0xf]
    %v488 = vld [vmem:[%s1 + $0x160] sm:$0xf]
    %v489 = vld [vmem:[%s1 + $0x164] sm:$0xf]
    %v490 = vld [vmem:[%s1 + $0x168] sm:$0xf]
    %v491 = vld [vmem:[%s1 + $0x16c] sm:$0xf]
    %v492 = vld [vmem:[%s1 + $0x170] sm:$0xf]
    %v493 = vld [vmem:[%s1 + $0x174] sm:$0xf]
    %v494 = vld [vmem:[%s1 + $0x178] sm:$0xf]
    %v495 = vld [vmem:[%s1 + $0x17c] sm:$0xf]
    %v496 = vld [vmem:[%s1 + $0x180] sm:$0xf]
    %v497 = vld [vmem:[%s1 + $0x184] sm:$0xf]
    %v498 = vld [vmem:[%s1 + $0x188] sm:$0xf]
    %v499 = vld [vmem:[%s1 + $0x18c] sm:$0xf]
    %v500 = vld [vmem:[%s1 + $0x190] sm:$0xf]
    %v501 = vld [vmem:[%s1 + $0x194] sm:$0xf]
    %v502 = vld [vmem:[%s1 + $0x198] sm:$0xf]
    %v503 = vld [vmem:[%s1 + $0x19c] sm:$0xf]
    %v504 = vld [vmem:[%s1 + $0x1a0] sm:$0xf]
    %v505 = vld [vmem:[%s1 + $0x1a4] sm:$0xf]
    %v506 = vld [vmem:[%s1 + $0x1a8] sm:$0xf]
    %v507 = vld [vmem:[%s1 + $0x1ac] sm:$0xf]
    %v508 = vld [vmem:[%s1 + $0x1b0] sm:$0xf]
    %v509 = vld [vmem:[%s1 + $0x1b4] sm:$0xf]
    %v510 = vld [vmem:[%s1 + $0x1b8] sm:$0xf]
    %v511 = vld [vmem:[%s1 + $0x1bc] sm:$0xf]
    %v512 = vld [vmem:[%s1 + $0x1c0] sm:$0xf]
    %v513 = vld [vmem:[%s1 + $0x1c4] sm:$0xf]
    %v514 = vld [vmem:[%s1 + $0x1c8] sm:$0xf]
    %v515 = vld [vmem:[%s1 + $0x1cc] sm:$0xf]
    %v516 = vld [vmem:[%s1 + $0x1d0] sm:$0xf]
    %v517 = vld [vmem:[%s1 + $0x1d4] sm:$0xf]
    %v518 = vld [vmem:[%s1 + $0x1d8] sm:$0xf]
    %v519 = vld [vmem:[%s1 + $0x1dc] sm:$0xf]
    %v520 = vld [vmem:[%s1 + $0x1e0] sm:$0xf]
    %v521 = vld [vmem:[%s1 + $0x1e4] sm:$0xf]
    %v522 = vld [vmem:[%s1 + $0x1e8] sm:$0xf]
    %v523 = vld [vmem:[%s1 + $0x1ec] sm:$0xf]
    %v524 = vld [vmem:[%s1 + $0x1f0] sm:$0xf]
    %v525 = vld [vmem:[%s1 + $0x1f4] sm:$0xf]
    %v526 = vld [vmem:[%s1 + $0x1f8] sm:$0xf]
    %v527 = vld [vmem:[%s1 + $0x1fc] sm:$0xf]
    %v528 = vld [vmem:[%s1 + $0x200] sm:$0xf]
    %v529 = vld [vmem:[%s1 + $0x204] sm:$0xf]
    %v530 = vld [vmem:[%s1 + $0x208] sm:$0xf]
    %v531 = vld [vmem:[%s1 + $0x20c] sm:$0xf]
    %v532 = vld [vmem:[%s1 + $0x210] sm:$0xf]
    %v533 = vld [vmem:[%s1 + $0x214] sm:$0xf]
    %v534 = vld [vmem:[%s1 + $0x218] sm:$0xf]
    %v535 = vld [vmem:[%s1 + $0x21c] sm:$0xf]
    %v536 = vld [vmem:[%s1 + $0x220] sm:$0xf]
    %v537 = vld [vmem:[%s1 + $0x224] sm:$0xf]
    %v538 = vld [vmem:[%s1 + $0x228] sm:$0xf]
    %v539 = vld [vmem:[%s1 + $0x22c] sm:$0xf]
    %v540 = vld [vmem:[%s1 + $0x230] sm:$0xf]
    %v541 = vld [vmem:[%s1 + $0x234] sm:$0xf]
    %v542 = vld [vmem:[%s1 + $0x238] sm:$0xf]
    %v543 = vld [vmem:[%s1 + $0x23c] sm:$0xf]
    %v544 = vld [vmem:[%s1 + $0x240] sm:$0xf]
    %v545 = vld [vmem:[%s1 + $0x244] sm:$0xf]
    %v546 = vld [vmem:[%s1 + $0x248] sm:$0xf]
    %v547 = vld [vmem:[%s1 + $0x24c] sm:$0xf]
    %v548 = vld [vmem:[%s1 + $0x250] sm:$0xf]
    %v549 = vld [vmem:[%s1 + $0x254] sm:$0xf]
    %v550 = vld [vmem:[%s1 + $0x258] sm:$0xf]
    %v551 = vld [vmem:[%s1 + $0x25c] sm:$0xf]
    %v552 = vld [vmem:[%s1 + $0x260] sm:$0xf]
    %v553 = vld [vmem:[%s1 + $0x264] sm:$0xf]
    %v554 = vld [vmem:[%s1 + $0x268] sm:$0xf]
    %v555 = vld [vmem:[%s1 + $0x26c] sm:$0xf]
    %v556 = vld [vmem:[%s1 + $0x270] sm:$0xf]
    %v557 = vld [vmem:[%s1 + $0x274] sm:$0xf]
    %v558 = vld [vmem:[%s1 + $0x278] sm:$0xf]
    %v559 = vld [vmem:[%s1 + $0x27c] sm:$0xf]
    %v560 = vld [vmem:[%s1 + $0x280] sm:$0xf]
    %v561 = vld [vmem:[%s1 + $0x284] sm:$0xf]
    %v562 = vld [vmem:[%s1 + $0x288] sm:$0xf]
    %v563 = vld [vmem:[%s1 + $0x28c] sm:$0xf]
    %v564 = vld [vmem:[%s1 + $0x290] sm:$0xf]
    %v565 = vld [vmem:[%s1 + $0x294] sm:$0xf]
    %v566 = vld [vmem:[%s1 + $0x298] sm:$0xf]
    %v567 = vld [vmem:[%s1 + $0x29c] sm:$0xf]
    %v568 = vld [vmem:[%s1 + $0x2a0] sm:$0xf]
    %v569 = vld [vmem:[%s1 + $0x2a4] sm:$0xf]
    %v570 = vld [vmem:[%s1 + $0x2a8] sm:$0xf]
    %v571 = vld [vmem:[%s1 + $0x2ac] sm:$0xf]
    %v572 = vld [vmem:[%s1 + $0x2b0] sm:$0xf]
    %v573 = vld [vmem:[%s1 + $0x2b4] sm:$0xf]
    %v574 = vld [vmem:[%s1 + $0x2b8] sm:$0xf]
    %v575 = vld [vmem:[%s1 + $0x2bc] sm:$0xf]
    %v576 = vld [vmem:[%s1 + $0x2c0] sm:$0xf]
    %v577 = vld [vmem:[%s1 + $0x2c4] sm:$0xf]
    %v578 = vld [vmem:[%s1 + $0x2c8] sm:$0xf]
    %v579 = vld [vmem:[%s1 + $0x2cc] sm:$0xf]
    %v580 = vld [vmem:[%s1 + $0x2d0] sm:$0xf]
    %v581 = vld [vmem:[%s1 + $0x2d4] sm:$0xf]
    %v582 = vld [vmem:[%s1 + $0x2d8] sm:$0xf]
    %v583 = vld [vmem:[%s1 + $0x2dc] sm:$0xf]
    %v584 = vld [vmem:[%s1 + $0x2e0] sm:$0xf]
    %v585 = vld [vmem:[%s1 + $0x2e4] sm:$0xf]
    %v586 = vld [vmem:[%s1 + $0x2e8] sm:$0xf]
    %v587 = vld [vmem:[%s1 + $0x2ec] sm:$0xf]
    %v588 = vld [vmem:[%s1 + $0x2f0] sm:$0xf]
    %v589 = vld [vmem:[%s1 + $0x2f4] sm:$0xf]
    %v590 = vld [vmem:[%s1 + $0x2f8] sm:$0xf]
    %v591 = vld [vmem:[%s1 + $0x2fc] sm:$0xf]
    %v592 = vld [vmem:[%s1 + $0x300] sm:$0xf]
    %v593 = vld [vmem:[%s1 + $0x304] sm:$0xf]
    %v594 = vld [vmem:[%s1 + $0x308] sm:$0xf]
    %v595 = vld [vmem:[%s1 + $0x30c] sm:$0xf]
    %v596 = vld [vmem:[%s2] sm:$0x1]
    %v598 = vlaneseq
    %v599 = vshrl.u32 %v598, 7
    %v600 = vsub.s32 0, %v599
    %v601 = vrot.slane %v596, %v600
    %v799 = vunpack.c.l.b16 %v400
    %v800 = vunpack.c.l.b16 %v401
    %v801 = vunpack.c.l.b16 %v402
    %v802 = vunpack.c.l.b16 %v403
    %v803 = vunpack.c.l.b16 %v404
    %v804 = vunpack.c.l.b16 %v405
    %v805 = vunpack.c.l.b16 %v406
    %v806 = vunpack.c.l.b16 %v407
    %v807 = vunpack.c.l.b16 %v408
    %v808 = vunpack.c.l.b16 %v409
    %v809 = vunpack.c.l.b16 %v410
    %v810 = vunpack.c.l.b16 %v411
    %v811 = vunpack.c.l.b16 %v412
    %v812 = vunpack.c.l.b16 %v413
    %v813 = vunpack.c.l.b16 %v414
    %v814 = vunpack.c.l.b16 %v415
    %v815 = vunpack.c.l.b16 %v416
    %v816 = vunpack.c.l.b16 %v417
    %v817 = vunpack.c.l.b16 %v418
    %v818 = vunpack.c.l.b16 %v419
    %v819 = vunpack.c.l.b16 %v420
    %v820 = vunpack.c.l.b16 %v421
    %v821 = vunpack.c.l.b16 %v422
    %v822 = vunpack.c.l.b16 %v423
    %v823 = vunpack.c.l.b16 %v424
    %v824 = vunpack.c.l.b16 %v425
    %v825 = vunpack.c.l.b16 %v426
    %v826 = vunpack.c.l.b16 %v427
    %v827 = vunpack.c.l.b16 %v428
    %v828 = vunpack.c.l.b16 %v429
    %v829 = vunpack.c.l.b16 %v430
    %v830 = vunpack.c.l.b16 %v431
    %v831 = vunpack.c.l.b16 %v432
    %v832 = vunpack.c.l.b16 %v433
    %v833 = vunpack.c.l.b16 %v434
    %v834 = vunpack.c.l.b16 %v435
    %v835 = vunpack.c.l.b16 %v436
    %v836 = vunpack.c.l.b16 %v437
    %v837 = vunpack.c.l.b16 %v438
    %v838 = vunpack.c.l.b16 %v439
    %v839 = vunpack.c.l.b16 %v440
    %v840 = vunpack.c.l.b16 %v441
    %v841 = vunpack.c.l.b16 %v442
    %v842 = vunpack.c.l.b16 %v443
    %v843 = vunpack.c.l.b16 %v444
    %v844 = vunpack.c.l.b16 %v445
    %v845 = vunpack.c.l.b16 %v446
    %v846 = vunpack.c.l.b16 %v447
    %v847 = vunpack.c.l.b16 %v448
    %v848 = vunpack.c.l.b16 %v449
    %v849 = vunpack.c.l.b16 %v450
    %v850 = vunpack.c.l.b16 %v451
    %v851 = vunpack.c.l.b16 %v452
    %v852 = vunpack.c.l.b16 %v453
    %v853 = vunpack.c.l.b16 %v454
    %v854 = vunpack.c.l.b16 %v455
    %v855 = vunpack.c.l.b16 %v456
    %v856 = vunpack.c.l.b16 %v457
    %v857 = vunpack.c.l.b16 %v458
    %v858 = vunpack.c.l.b16 %v459
    %v859 = vunpack.c.l.b16 %v460
    %v860 = vunpack.c.l.b16 %v461
    %v861 = vunpack.c.l.b16 %v462
    %v862 = vunpack.c.l.b16 %v463
    %v863 = vunpack.c.l.b16 %v464
    %v864 = vunpack.c.l.b16 %v465
    %v865 = vunpack.c.l.b16 %v466
    %v866 = vunpack.c.l.b16 %v467
    %v867 = vunpack.c.l.b16 %v468
    %v868 = vunpack.c.l.b16 %v469
    %v869 = vunpack.c.l.b16 %v470
    %v870 = vunpack.c.l.b16 %v471
    %v871 = vunpack.c.l.b16 %v472
    %v872 = vunpack.c.l.b16 %v473
    %v873 = vunpack.c.l.b16 %v474
    %v874 = vunpack.c.l.b16 %v475
    %v875 = vunpack.c.l.b16 %v476
    %v876 = vunpack.c.l.b16 %v477
    %v877 = vunpack.c.l.b16 %v478
    %v878 = vunpack.c.l.b16 %v479
    %v879 = vunpack.c.l.b16 %v480
    %v880 = vunpack.c.l.b16 %v481
    %v881 = vunpack.c.l.b16 %v482
    %v882 = vunpack.c.l.b16 %v483
    %v883 = vunpack.c.l.b16 %v484
    %v884 = vunpack.c.l.b16 %v485
    %v885 = vunpack.c.l.b16 %v486
    %v886 = vunpack.c.l.b16 %v487
    %v887 = vunpack.c.l.b16 %v488
    %v888 = vunpack.c.l.b16 %v489
    %v889 = vunpack.c.l.b16 %v490
    %v890 = vunpack.c.l.b16 %v491
    %v891 = vunpack.c.l.b16 %v492
    %v892 = vunpack.c.l.b16 %v493
    %v893 = vunpack.c.l.b16 %v494
    %v894 = vunpack.c.l.b16 %v495
    %v895 = vunpack.c.l.b16 %v496
    %v896 = vunpack.c.l.b16 %v497
    %v897 = vunpack.c.l.b16 %v498
    %v898 = vunpack.c.l.b16 %v499
    %v899 = vunpack.c.l.b16 %v500
    %v900 = vunpack.c.l.b16 %v501
    %v901 = vunpack.c.l.b16 %v502
    %v902 = vunpack.c.l.b16 %v503
    %v903 = vunpack.c.l.b16 %v504
    %v904 = vunpack.c.l.b16 %v505
    %v905 = vunpack.c.l.b16 %v506
    %v906 = vunpack.c.l.b16 %v507
    %v907 = vunpack.c.l.b16 %v508
    %v908 = vunpack.c.l.b16 %v509
    %v909 = vunpack.c.l.b16 %v510
    %v910 = vunpack.c.l.b16 %v511
    %v911 = vunpack.c.l.b16 %v512
    %v912 = vunpack.c.l.b16 %v513
    %v913 = vunpack.c.l.b16 %v514
    %v914 = vunpack.c.l.b16 %v515
    %v915 = vunpack.c.l.b16 %v516
    %v916 = vunpack.c.l.b16 %v517
    %v917 = vunpack.c.l.b16 %v518
    %v918 = vunpack.c.l.b16 %v519
    %v919 = vunpack.c.l.b16 %v520
    %v920 = vunpack.c.l.b16 %v521
    %v921 = vunpack.c.l.b16 %v522
    %v922 = vunpack.c.l.b16 %v523
    %v923 = vunpack.c.l.b16 %v524
    %v924 = vunpack.c.l.b16 %v525
    %v925 = vunpack.c.l.b16 %v526
    %v926 = vunpack.c.l.b16 %v527
    %v927 = vunpack.c.l.b16 %v528
    %v928 = vunpack.c.l.b16 %v529
    %v929 = vunpack.c.l.b16 %v530
    %v930 = vunpack.c.l.b16 %v531
    %v931 = vunpack.c.l.b16 %v532
    %v932 = vunpack.c.l.b16 %v533
    %v933 = vunpack.c.l.b16 %v534
    %v934 = vunpack.c.l.b16 %v535
    %v935 = vunpack.c.l.b16 %v536
    %v936 = vunpack.c.l.b16 %v537
    %v937 = vunpack.c.l.b16 %v538
    %v938 = vunpack.c.l.b16 %v539
    %v939 = vunpack.c.l.b16 %v540
    %v940 = vunpack.c.l.b16 %v541
    %v941 = vunpack.c.l.b16 %v542
    %v942 = vunpack.c.l.b16 %v543
    %v943 = vunpack.c.l.b16 %v544
    %v944 = vunpack.c.l.b16 %v545
    %v945 = vunpack.c.l.b16 %v546
    %v946 = vunpack.c.l.b16 %v547
    %v947 = vunpack.c.l.b16 %v548
    %v948 = vunpack.c.l.b16 %v549
    %v949 = vunpack.c.l.b16 %v550
    %v950 = vunpack.c.l.b16 %v551
    %v951 = vunpack.c.l.b16 %v552
    %v952 = vunpack.c.l.b16 %v553
    %v953 = vunpack.c.l.b16 %v554
    %v954 = vunpack.c.l.b16 %v555
    %v955 = vunpack.c.l.b16 %v556
    %v956 = vunpack.c.l.b16 %v557
    %v957 = vunpack.c.l.b16 %v558
    %v958 = vunpack.c.l.b16 %v559
    %v959 = vunpack.c.l.b16 %v560
    %v960 = vunpack.c.l.b16 %v561
    %v961 = vunpack.c.l.b16 %v562
    %v962 = vunpack.c.l.b16 %v563
    %v963 = vunpack.c.l.b16 %v564
    %v964 = vunpack.c.l.b16 %v565
    %v965 = vunpack.c.l.b16 %v566
    %v966 = vunpack.c.l.b16 %v567
    %v967 = vunpack.c.l.b16 %v568
    %v968 = vunpack.c.l.b16 %v569
    %v969 = vunpack.c.l.b16 %v570
    %v970 = vunpack.c.l.b16 %v571
    %v971 = vunpack.c.l.b16 %v572
    %v972 = vunpack.c.l.b16 %v573
    %v973 = vunpack.c.l.b16 %v574
    %v974 = vunpack.c.l.b16 %v575
    %v975 = vunpack.c.l.b16 %v576
    %v976 = vunpack.c.l.b16 %v577
    %v977 = vunpack.c.l.b16 %v578
    %v978 = vunpack.c.l.b16 %v579
    %v979 = vunpack.c.l.b16 %v580
    %v980 = vunpack.c.l.b16 %v581
    %v981 = vunpack.c.l.b16 %v582
    %v982 = vunpack.c.l.b16 %v583
    %v983 = vunpack.c.l.b16 %v584
    %v984 = vunpack.c.l.b16 %v585
    %v985 = vunpack.c.l.b16 %v586
    %v986 = vunpack.c.l.b16 %v587
    %v987 = vunpack.c.l.b16 %v588
    %v988 = vunpack.c.l.b16 %v589
    %v989 = vunpack.c.l.b16 %v590
    %v990 = vunpack.c.l.b16 %v591
    %v991 = vunpack.c.l.b16 %v592
    %v992 = vunpack.c.l.b16 %v593
    %v993 = vunpack.c.l.b16 %v594
    %v994 = vunpack.c.l.b16 %v595
    %v995 = vpack.c.b16 %v800, %v799
    %v996 = vpack.c.b16 %v802, %v801
    %v997 = vpack.c.b16 %v804, %v803
    %v998 = vpack.c.b16 %v806, %v805
    %v999 = vpack.c.b16 %v808, %v807
    %v1000 = vpack.c.b16 %v810, %v809
    %v1001 = vpack.c.b16 %v812, %v811
    %v1002 = vpack.c.b16 %v814, %v813
    %v1003 = vpack.c.b16 %v816, %v815
    %v1004 = vpack.c.b16 %v818, %v817
    %v1005 = vpack.c.b16 %v820, %v819
    %v1006 = vpack.c.b16 %v822, %v821
    %v1007 = vpack.c.b16 %v824, %v823
    %v1008 = vpack.c.b16 %v826, %v825
    %v1009 = vpack.c.b16 %v828, %v827
    %v1010 = vpack.c.b16 %v830, %v829
    %v1011 = vpack.c.b16 %v832, %v831
    %v1012 = vpack.c.b16 %v834, %v833
    %v1013 = vpack.c.b16 %v836, %v835
    %v1014 = vpack.c.b16 %v838, %v837
    %v1015 = vpack.c.b16 %v840, %v839
    %v1016 = vpack.c.b16 %v842, %v841
    %v1017 = vpack.c.b16 %v844, %v843
    %v1018 = vpack.c.b16 %v846, %v845
    %v1019 = vpack.c.b16 %v848, %v847
    %v1020 = vpack.c.b16 %v850, %v849
    %v1021 = vpack.c.b16 %v852, %v851
    %v1022 = vpack.c.b16 %v854, %v853
    %v1023 = vpack.c.b16 %v856, %v855
    %v1024 = vpack.c.b16 %v858, %v857
    %v1025 = vpack.c.b16 %v860, %v859
    %v1026 = vpack.c.b16 %v862, %v861
    %v1027 = vpack.c.b16 %v864, %v863
    %v1028 = vpack.c.b16 %v866, %v865
    %v1029 = vpack.c.b16 %v868, %v867
    %v1030 = vpack.c.b16 %v870, %v869
    %v1031 = vpack.c.b16 %v872, %v871
    %v1032 = vpack.c.b16 %v874, %v873
    %v1033 = vpack.c.b16 %v876, %v875
    %v1034 = vpack.c.b16 %v878, %v877
    %v1035 = vpack.c.b16 %v880, %v879
    %v1036 = vpack.c.b16 %v882, %v881
    %v1037 = vpack.c.b16 %v884, %v883
    %v1038 = vpack.c.b16 %v886, %v885
    %v1039 = vpack.c.b16 %v888, %v887
    %v1040 = vpack.c.b16 %v890, %v889
    %v1041 = vpack.c.b16 %v892, %v891
    %v1042 = vpack.c.b16 %v894, %v893
    %v1043 = vpack.c.b16 %v896, %v895
    %v1044 = vpack.c.b16 %v898, %v897
    %v1045 = vpack.c.b16 %v900, %v899
    %v1046 = vpack.c.b16 %v902, %v901
    %v1047 = vpack.c.b16 %v904, %v903
    %v1048 = vpack.c.b16 %v906, %v905
    %v1049 = vpack.c.b16 %v908, %v907
    %v1050 = vpack.c.b16 %v910, %v909
    %v1051 = vpack.c.b16 %v912, %v911
    %v1052 = vpack.c.b16 %v914, %v913
    %v1053 = vpack.c.b16 %v916, %v915
    %v1054 = vpack.c.b16 %v918, %v917
    %v1055 = vpack.c.b16 %v920, %v919
    %v1056 = vpack.c.b16 %v922, %v921
    %v1057 = vpack.c.b16 %v924, %v923
    %v1058 = vpack.c.b16 %v926, %v925
    %v1059 = vpack.c.b16 %v928, %v927
    %v1060 = vpack.c.b16 %v930, %v929
    %v1061 = vpack.c.b16 %v932, %v931
    %v1062 = vpack.c.b16 %v934, %v933
    %v1063 = vpack.c.b16 %v936, %v935
    %v1064 = vpack.c.b16 %v938, %v937
    %v1065 = vpack.c.b16 %v940, %v939
    %v1066 = vpack.c.b16 %v942, %v941
    %v1067 = vpack.c.b16 %v944, %v943
    %v1068 = vpack.c.b16 %v946, %v945
    %v1069 = vpack.c.b16 %v948, %v947
    %v1070 = vpack.c.b16 %v950, %v949
    %v1071 = vpack.c.b16 %v952, %v951
    %v1072 = vpack.c.b16 %v954, %v953
    %v1073 = vpack.c.b16 %v956, %v955
    %v1074 = vpack.c.b16 %v958, %v957
    %v1075 = vpack.c.b16 %v960, %v959
    %v1076 = vpack.c.b16 %v962, %v961
    %v1077 = vpack.c.b16 %v964, %v963
    %v1078 = vpack.c.b16 %v966, %v965
    %v1079 = vpack.c.b16 %v968, %v967
    %v1080 = vpack.c.b16 %v970, %v969
    %v1081 = vpack.c.b16 %v972, %v971
    %v1082 = vpack.c.b16 %v974, %v973
    %v1083 = vpack.c.b16 %v976, %v975
    %v1084 = vpack.c.b16 %v978, %v977
    %v1085 = vpack.c.b16 %v980, %v979
    %v1086 = vpack.c.b16 %v982, %v981
    %v1087 = vpack.c.b16 %v984, %v983
    %v1088 = vpack.c.b16 %v986, %v985
    %v1089 = vpack.c.b16 %v988, %v987
    %v1090 = vpack.c.b16 %v990, %v989
    %v1091 = vpack.c.b16 %v992, %v991
    %v1092 = vpack.c.b16 %v994, %v993
    %vm1191 = vcmask 261120
    %v1193 = vsel %vm1191, %v399, 0
    %1195 = vmatprep.subr.bf16.mxu0 0
    %1196 = vmatpush1.bf16.msra.mxu0 %v995
    %1197 = vmatprep.subr.bf16.mxu0 0
    %1198 = vmatpush1.bf16.msra.mxu0 %v996
    %1199 = vmatprep.subr.bf16.mxu0 0
    %1200 = vmatpush1.bf16.msra.mxu0 %v997
    %1201 = vmatprep.subr.bf16.mxu0 0
    %1202 = vmatpush1.bf16.msra.mxu0 %v998
    %1203 = vmatprep.subr.bf16.mxu0 0
    %1204 = vmatpush1.bf16.msra.mxu0 %v999
    %1205 = vmatprep.subr.bf16.mxu0 0
    %1206 = vmatpush1.bf16.msra.mxu0 %v1000
    %1207 = vmatprep.subr.bf16.mxu0 0
    %1208 = vmatpush1.bf16.msra.mxu0 %v1001
    %1209 = vmatprep.subr.bf16.mxu0 0
    %1210 = vmatpush1.bf16.msra.mxu0 %v1002
    %1211 = vmatprep.subr.bf16.mxu0 0
    %1212 = vmatpush1.bf16.msra.mxu0 %v1003
    %1213 = vmatprep.subr.bf16.mxu0 0
    %1214 = vmatpush1.bf16.msra.mxu0 %v1004
    %1215 = vmatprep.subr.bf16.mxu0 0
    %1216 = vmatpush1.bf16.msra.mxu0 %v1005
    %1217 = vmatprep.subr.bf16.mxu0 0
    %1218 = vmatpush1.bf16.msra.mxu0 %v1006
    %1219 = vmatprep.subr.bf16.mxu0 0
    %1220 = vmatpush1.bf16.msra.mxu0 %v1007
    %1221 = vmatprep.subr.bf16.mxu0 0
    %1222 = vmatpush1.bf16.msra.mxu0 %v1008
    %1223 = vmatprep.subr.bf16.mxu0 0
    %1224 = vmatpush1.bf16.msra.mxu0 %v1009
    %1225 = vmatprep.subr.bf16.mxu0 0
    %1226 = vmatpush1.bf16.msra.mxu0 %v1010
    %1227 = vmatprep.mubr.bf16.mxu0 %v388
    %1228 = vmatmul.mubr.bf16.gmra.mrb[0].mxu0 %v387
    %v1229 = vpop.f32.mrb[0].mxu0
    %v1230 = vadd.f32 %v601, %v1229
    %v1231 = vpop.f32.mrb[0].mxu0
    %v1232 = vpop.f32.mrb[0].mxu0
    %v1233 = vpop.f32.mrb[0].mxu0
    %1234 = vdwg.mxu0
    %1235 = vmatprep.subr.bf16.mxu0 0
    %1236 = vmatpush1.bf16.msra.mxu0 %v1011
    %1237 = vmatprep.subr.bf16.mxu0 0
    %1238 = vmatpush1.bf16.msra.mxu0 %v1012
    %1239 = vmatprep.subr.bf16.mxu0 0
    %1240 = vmatpush1.bf16.msra.mxu0 %v1013
    %1241 = vmatprep.subr.bf16.mxu0 0
    %1242 = vmatpush1.bf16.msra.mxu0 %v1014
    %1243 = vmatprep.subr.bf16.mxu0 0
    %1244 = vmatpush1.bf16.msra.mxu0 %v1015
    %1245 = vmatprep.subr.bf16.mxu0 0
    %1246 = vmatpush1.bf16.msra.mxu0 %v1016
    %1247 = vmatprep.subr.bf16.mxu0 0
    %1248 = vmatpush1.bf16.msra.mxu0 %v1017
    %1249 = vmatprep.subr.bf16.mxu0 0
    %1250 = vmatpush1.bf16.msra.mxu0 %v1018
    %1251 = vmatprep.subr.bf16.mxu0 0
    %1252 = vmatpush1.bf16.msra.mxu0 %v1019
    %1253 = vmatprep.subr.bf16.mxu0 0
    %1254 = vmatpush1.bf16.msra.mxu0 %v1020
    %1255 = vmatprep.subr.bf16.mxu0 0
    %1256 = vmatpush1.bf16.msra.mxu0 %v1021
    %1257 = vmatprep.subr.bf16.mxu0 0
    %1258 = vmatpush1.bf16.msra.mxu0 %v1022
    %1259 = vmatprep.subr.bf16.mxu0 0
    %1260 = vmatpush1.bf16.msra.mxu0 %v1023
    %1261 = vmatprep.subr.bf16.mxu0 0
    %1262 = vmatpush1.bf16.msra.mxu0 %v1024
    %1263 = vmatprep.subr.bf16.mxu0 0
    %1264 = vmatpush1.bf16.msra.mxu0 %v1025
    %1265 = vmatprep.subr.bf16.mxu0 0
    %1266 = vmatpush1.bf16.msra.mxu0 %v1026
    %1267 = vmatprep.mubr.bf16.mxu0 %v390
    %1268 = vmatmul.mubr.bf16.gmra.mrb[0].mxu0 %v389
    %v1269 = vpop.f32.mrb[0].mxu0
    %v1270 = vadd.f32 %v1230, %v1269
    %v1271 = vpop.f32.mrb[0].mxu0
    %v1272 = vpop.f32.mrb[0].mxu0
    %v1273 = vpop.f32.mrb[0].mxu0
    %1274 = vdwg.mxu0
    %1275 = vmatprep.subr.bf16.mxu0 0
    %1276 = vmatpush1.bf16.msra.mxu0 %v1027
    %1277 = vmatprep.subr.bf16.mxu0 0
    %1278 = vmatpush1.bf16.msra.mxu0 %v1028
    %1279 = vmatprep.subr.bf16.mxu0 0
    %1280 = vmatpush1.bf16.msra.mxu0 %v1029
    %1281 = vmatprep.subr.bf16.mxu0 0
    %1282 = vmatpush1.bf16.msra.mxu0 %v1030
    %1283 = vmatprep.subr.bf16.mxu0 0
    %1284 = vmatpush1.bf16.msra.mxu0 %v1031
    %1285 = vmatprep.subr.bf16.mxu0 0
    %1286 = vmatpush1.bf16.msra.mxu0 %v1032
    %1287 = vmatprep.subr.bf16.mxu0 0
    %1288 = vmatpush1.bf16.msra.mxu0 %v1033
    %1289 = vmatprep.subr.bf16.mxu0 0
    %1290 = vmatpush1.bf16.msra.mxu0 %v1034
    %1291 = vmatprep.subr.bf16.mxu0 0
    %1292 = vmatpush1.bf16.msra.mxu0 %v1035
    %1293 = vmatprep.subr.bf16.mxu0 0
    %1294 = vmatpush1.bf16.msra.mxu0 %v1036
    %1295 = vmatprep.subr.bf16.mxu0 0
    %1296 = vmatpush1.bf16.msra.mxu0 %v1037
    %1297 = vmatprep.subr.bf16.mxu0 0
    %1298 = vmatpush1.bf16.msra.mxu0 %v1038
    %1299 = vmatprep.subr.bf16.mxu0 0
    %1300 = vmatpush1.bf16.msra.mxu0 %v1039
    %1301 = vmatprep.subr.bf16.mxu0 0
    %1302 = vmatpush1.bf16.msra.mxu0 %v1040
    %1303 = vmatprep.subr.bf16.mxu0 0
    %1304 = vmatpush1.bf16.msra.mxu0 %v1041
    %1305 = vmatprep.subr.bf16.mxu0 0
    %1306 = vmatpush1.bf16.msra.mxu0 %v1042
    %1307 = vmatprep.mubr.bf16.mxu0 %v392
    %1308 = vmatmul.mubr.bf16.gmra.mrb[0].mxu0 %v391
    %v1309 = vpop.f32.mrb[0].mxu0
    %v1310 = vadd.f32 %v1270, %v1309
    %v1311 = vpop.f32.mrb[0].mxu0
    %v1312 = vpop.f32.mrb[0].mxu0
    %v1313 = vpop.f32.mrb[0].mxu0
    %1314 = vdwg.mxu0
    %1315 = vmatprep.subr.bf16.mxu0 0
    %1316 = vmatpush1.bf16.msra.mxu0 %v1043
    %1317 = vmatprep.subr.bf16.mxu0 0
    %1318 = vmatpush1.bf16.msra.mxu0 %v1044
    %1319 = vmatprep.subr.bf16.mxu0 0
    %1320 = vmatpush1.bf16.msra.mxu0 %v1045
    %1321 = vmatprep.subr.bf16.mxu0 0
    %1322 = vmatpush1.bf16.msra.mxu0 %v1046
    %1323 = vmatprep.subr.bf16.mxu0 0
    %1324 = vmatpush1.bf16.msra.mxu0 %v1047
    %1325 = vmatprep.subr.bf16.mxu0 0
    %1326 = vmatpush1.bf16.msra.mxu0 %v1048
    %1327 = vmatprep.subr.bf16.mxu0 0
    %1328 = vmatpush1.bf16.msra.mxu0 %v1049
    %1329 = vmatprep.subr.bf16.mxu0 0
    %1330 = vmatpush1.bf16.msra.mxu0 %v1050
    %1331 = vmatprep.subr.bf16.mxu0 0
    %1332 = vmatpush1.bf16.msra.mxu0 %v1051
    %1333 = vmatprep.subr.bf16.mxu0 0
    %1334 = vmatpush1.bf16.msra.mxu0 %v1052
    %1335 = vmatprep.subr.bf16.mxu0 0
    %1336 = vmatpush1.bf16.msra.mxu0 %v1053
    %1337 = vmatprep.subr.bf16.mxu0 0
    %1338 = vmatpush1.bf16.msra.mxu0 %v1054
    %1339 = vmatprep.subr.bf16.mxu0 0
    %1340 = vmatpush1.bf16.msra.mxu0 %v1055
    %1341 = vmatprep.subr.bf16.mxu0 0
    %1342 = vmatpush1.bf16.msra.mxu0 %v1056
    %1343 = vmatprep.subr.bf16.mxu0 0
    %1344 = vmatpush1.bf16.msra.mxu0 %v1057
    %1345 = vmatprep.subr.bf16.mxu0 0
    %1346 = vmatpush1.bf16.msra.mxu0 %v1058
    %1347 = vmatprep.mubr.bf16.mxu0 %v394
    %1348 = vmatmul.mubr.bf16.gmra.mrb[0].mxu0 %v393
    %v1349 = vpop.f32.mrb[0].mxu0
    %v1350 = vadd.f32 %v1310, %v1349
    %v1351 = vpop.f32.mrb[0].mxu0
    %v1352 = vpop.f32.mrb[0].mxu0
    %v1353 = vpop.f32.mrb[0].mxu0
    %1354 = vdwg.mxu0
    %1355 = vmatprep.subr.bf16.mxu0 0
    %1356 = vmatpush1.bf16.msra.mxu0 %v1059
    %1357 = vmatprep.subr.bf16.mxu0 0
    %1358 = vmatpush1.bf16.msra.mxu0 %v1060
    %1359 = vmatprep.subr.bf16.mxu0 0
    %1360 = vmatpush1.bf16.msra.mxu0 %v1061
    %1361 = vmatprep.subr.bf16.mxu0 0
    %1362 = vmatpush1.bf16.msra.mxu0 %v1062
    %1363 = vmatprep.subr.bf16.mxu0 0
    %1364 = vmatpush1.bf16.msra.mxu0 %v1063
    %1365 = vmatprep.subr.bf16.mxu0 0
    %1366 = vmatpush1.bf16.msra.mxu0 %v1064
    %1367 = vmatprep.subr.bf16.mxu0 0
    %1368 = vmatpush1.bf16.msra.mxu0 %v1065
    %1369 = vmatprep.subr.bf16.mxu0 0
    %1370 = vmatpush1.bf16.msra.mxu0 %v1066
    %1371 = vmatprep.subr.bf16.mxu0 0
    %1372 = vmatpush1.bf16.msra.mxu0 %v1067
    %1373 = vmatprep.subr.bf16.mxu0 0
    %1374 = vmatpush1.bf16.msra.mxu0 %v1068
    %1375 = vmatprep.subr.bf16.mxu0 0
    %1376 = vmatpush1.bf16.msra.mxu0 %v1069
    %1377 = vmatprep.subr.bf16.mxu0 0
    %1378 = vmatpush1.bf16.msra.mxu0 %v1070
    %1379 = vmatprep.subr.bf16.mxu0 0
    %1380 = vmatpush1.bf16.msra.mxu0 %v1071
    %1381 = vmatprep.subr.bf16.mxu0 0
    %1382 = vmatpush1.bf16.msra.mxu0 %v1072
    %1383 = vmatprep.subr.bf16.mxu0 0
    %1384 = vmatpush1.bf16.msra.mxu0 %v1073
    %1385 = vmatprep.subr.bf16.mxu0 0
    %1386 = vmatpush1.bf16.msra.mxu0 %v1074
    %1387 = vmatprep.mubr.bf16.mxu0 %v396
    %1388 = vmatmul.mubr.bf16.gmra.mrb[0].mxu0 %v395
    %v1389 = vpop.f32.mrb[0].mxu0
    %v1390 = vadd.f32 %v1350, %v1389
    %v1391 = vpop.f32.mrb[0].mxu0
    %v1392 = vpop.f32.mrb[0].mxu0
    %v1393 = vpop.f32.mrb[0].mxu0
    %1394 = vdwg.mxu0
    %1395 = vmatprep.subr.bf16.mxu0 0
    %1396 = vmatpush1.bf16.msra.mxu0 %v1075
    %1397 = vmatprep.subr.bf16.mxu0 0
    %1398 = vmatpush1.bf16.msra.mxu0 %v1076
    %1399 = vmatprep.subr.bf16.mxu0 0
    %1400 = vmatpush1.bf16.msra.mxu0 %v1077
    %1401 = vmatprep.subr.bf16.mxu0 0
    %1402 = vmatpush1.bf16.msra.mxu0 %v1078
    %1403 = vmatprep.subr.bf16.mxu0 0
    %1404 = vmatpush1.bf16.msra.mxu0 %v1079
    %1405 = vmatprep.subr.bf16.mxu0 0
    %1406 = vmatpush1.bf16.msra.mxu0 %v1080
    %1407 = vmatprep.subr.bf16.mxu0 0
    %1408 = vmatpush1.bf16.msra.mxu0 %v1081
    %1409 = vmatprep.subr.bf16.mxu0 0
    %1410 = vmatpush1.bf16.msra.mxu0 %v1082
    %1411 = vmatprep.subr.bf16.mxu0 0
    %1412 = vmatpush1.bf16.msra.mxu0 %v1083
    %1413 = vmatprep.subr.bf16.mxu0 0
    %1414 = vmatpush1.bf16.msra.mxu0 %v1084
    %1415 = vmatprep.subr.bf16.mxu0 0
    %1416 = vmatpush1.bf16.msra.mxu0 %v1085
    %1417 = vmatprep.subr.bf16.mxu0 0
    %1418 = vmatpush1.bf16.msra.mxu0 %v1086
    %1419 = vmatprep.subr.bf16.mxu0 0
    %1420 = vmatpush1.bf16.msra.mxu0 %v1087
    %1421 = vmatprep.subr.bf16.mxu0 0
    %1422 = vmatpush1.bf16.msra.mxu0 %v1088
    %1423 = vmatprep.subr.bf16.mxu0 0
    %1424 = vmatpush1.bf16.msra.mxu0 %v1089
    %1425 = vmatprep.subr.bf16.mxu0 0
    %1426 = vmatpush1.bf16.msra.mxu0 %v1090
    %1427 = vmatprep.mubr.bf16.mxu0 %v398
    %1428 = vmatmul.mubr.bf16.gmra.mrb[0].mxu0 %v397
    %v1429 = vpop.f32.mrb[0].mxu0
    %v1430 = vadd.f32 %v1390, %v1429
    %v1431 = vpop.f32.mrb[0].mxu0
    %v1432 = vpop.f32.mrb[0].mxu0
    %v1433 = vpop.f32.mrb[0].mxu0
    %1434 = vdwg.mxu0
    %1435 = vmatprep.subr.bf16.mxu0 0
    %1436 = vmatpush1.bf16.msra.mxu0 %v1091
    %1437 = vmatprep.subr.bf16.mxu0 0
    %1438 = vmatpush1.bf16.msra.mxu0 %v1092
    %1439 = vmatprep.subr.bf16.mxu0 0
    %1440 = vmatpush1.bf16.msra.mxu0 0
    %1441 = vmatprep.subr.bf16.mxu0 0
    %1442 = vmatpush1.bf16.msra.mxu0 0
    %1443 = vmatprep.subr.bf16.mxu0 0
    %1444 = vmatpush1.bf16.msra.mxu0 0
    %1445 = vmatprep.subr.bf16.mxu0 0
    %1446 = vmatpush1.bf16.msra.mxu0 0
    %1447 = vmatprep.subr.bf16.mxu0 0
    %1448 = vmatpush1.bf16.msra.mxu0 0
    %1449 = vmatprep.subr.bf16.mxu0 0
    %1450 = vmatpush1.bf16.msra.mxu0 0
    %1451 = vmatprep.subr.bf16.mxu0 0
    %1452 = vmatpush1.bf16.msra.mxu0 0
    %1453 = vmatprep.subr.bf16.mxu0 0
    %1454 = vmatpush1.bf16.msra.mxu0 0
    %1455 = vmatprep.subr.bf16.mxu0 0
    %1456 = vmatpush1.bf16.msra.mxu0 0
    %1457 = vmatprep.subr.bf16.mxu0 0
    %1458 = vmatpush1.bf16.msra.mxu0 0
    %1459 = vmatprep.subr.bf16.mxu0 0
    %1460 = vmatpush1.bf16.msra.mxu0 0
    %1461 = vmatprep.subr.bf16.mxu0 0
    %1462 = vmatpush1.bf16.msra.mxu0 0
    %1463 = vmatprep.subr.bf16.mxu0 0
    %1464 = vmatpush1.bf16.msra.mxu0 0
    %1465 = vmatprep.subr.bf16.mxu0 0
    %1466 = vmatpush1.bf16.msra.mxu0 0
    %1467 = vmatprep.mubr.bf16.mxu0 0
    %1468 = vmatmul.mubr.bf16.gmra.mrb[0].mxu0 %v1193
    %v1469 = vpop.f32.mrb[0].mxu0
    %v1470 = vadd.f32 %v1430, %v1469
    %v1471 = vpop.f32.mrb[0].mxu0
    %v1472 = vpop.f32.mrb[0].mxu0
    %v1473 = vpop.f32.mrb[0].mxu0
    %1474 = vdwg.mxu0
    %1475 = vst [vmem:[#allocation2] sm:$0xf] %v1470
    // Predicated region
    $region14: #{mnist30k_forward.5} parent=1 // pred_check
      _
    $region15: #{mnist30k_forward.5} parent=1 // pred_check_branch
      %1477 = sbr.rel (0) target = $region17
    $region16: #{mnist30k_forward.5} parent=1 // pred_region
      %s1479 = ssub.s32 64, 64
      %1480 = vsyncadd [#allocation3], %s1479
      %s1482 = sshll.u32 [#allocation2], 4
      %s1483 = int_to_ptr.vmem [resolvable:$true] %s1482
      %1485 = dma.vmem_to_hbm [thread:$0]  %s1483, 64, %s3, [#allocation3]
    $region17: #{mnist30k_forward.5} parent=1 // pred_fallthru
      _
    // Predicated region
    $region18: #{mnist30k_forward.5} parent=1 // pred_check
      _
    $region19: #{mnist30k_forward.5} parent=1 // pred_check_branch
      %1487 = sbr.rel (0) target = $region21
    $region20: #{mnist30k_forward.5} parent=1 // pred_region
      %1488 = dma.done [#allocation3], 64
    $region21: #{mnist30k_forward.5} parent=1 // pred_fallthru
      _
    %1489 = vsyncpa [#allocation3], 1

</llo_original>
